<compile_context>
chip_gen: v7x
topology: tpu7x:2x2x1
jax: 0.10.0
libtpu: 0.0.40
codegen_flags: <defaults>
</compile_context>

<pallas_src>
import math

import jax
import jax.numpy as jnp
from jax.experimental import pallas as pl
from jax.experimental.pallas import tpu as pltpu

# ----------------------------- small config ---------------------------------
B = 2            # batch
C = 3            # channels (RGB, as the ViT expects)
T = 8            # num_frames
IMG = 16         # img_size
PATCH = 8        # patch_size
EMBED = 32       # embed_dim
NUM_HEADS = 4    # ViT heads
TEMP_HEADS = 4   # temporal MultiheadAttention heads
DEPTH = 2        # ViT depth (scaled down from 12)
MLP_HID = EMBED * 4          # mlp_ratio = 4.0
BH_HID = 256                 # boundary_head hidden
CL_HID = 64                  # classifier hidden
NUM_PATCHES = (IMG // PATCH) ** 2        # 4  (power of 2 -> frame id via shift)
NUM_TOK = NUM_PATCHES + 1                # 5
TN = T * NUM_TOK                         # 40 fused tokens per batch element
PATCH_DIM = C * PATCH * PATCH            # 192
LN_EPS = 1e-6
NEG_INF = -1e9
PATCH_SHIFT = NUM_PATCHES.bit_length() - 1   # log2(NUM_PATCHES) = 2

# misc constant-pack row offsets (shape (48, EMBED) f32)
R_POS = 0                      # rows [0, 32): per-patch positional embedding
R_TE = T * NUM_PATCHES         # rows [32, 40): time_embed (8-row aligned)
R_PATCH_B = R_TE + T           # 40: patch-embed bias
R_CLS = R_PATCH_B + 1          # 41: cls_token + pos_embed[0]
R_VNG = R_CLS + 1              # 42: final ViT LayerNorm gamma
R_VNB = R_VNG + 1              # 43: final ViT LayerNorm beta
MISC_ROWS = 48                 # padded to a multiple of 8

# per-block vector-pack rows (shape (DEPTH, 8, 128) f32)
BV_LN1_G, BV_LN1_B, BV_LN2_G, BV_LN2_B = 0, 1, 2, 3
BV_QKV_B, BV_PROJ_B, BV_FC1_B, BV_FC2_B = 4, 5, 6, 7

# tail-pack rows (shape (8, 256) f32)
TR_BH_B1, TR_BH_W2, TR_CL_B1, TR_CL_W2, TR_SCAL = 0, 1, 2, 3, 4


# ------------------------------ kernel helpers -------------------------------
def _mm(a, b):
    """Matmul with bf16 operands and f32 accumulation (MXU-friendly).

    Weights are pre-cast to bf16 host-side, so the astype is a no-op on them;
    only f32 activations get one cast."""
    return jnp.dot(a.astype(jnp.bfloat16), b.astype(jnp.bfloat16),
                   preferred_element_type=jnp.float32)


def _layernorm(x, g, b, eps=LN_EPS):
    mu = jnp.mean(x, axis=-1, keepdims=True)
    var = jnp.mean((x - mu) ** 2, axis=-1, keepdims=True)
    return (x - mu) * jax.lax.rsqrt(var + eps) * g + b


def _gelu_tanh(x):
    # TODO(synk): timm ViT uses exact-erf GELU; tanh approximation kept for
    # TPU-lowering safety (the in-script reference uses the same formula).
    c = math.sqrt(2.0 / math.pi)
    return 0.5 * x * (1.0 + jnp.tanh(c * (x + 0.044715 * x * x * x)))


def _attention(x, w_in, b_in, w_out, b_out, num_heads, mask=None):
    """Multi-head self attention on an (n, d) token slab, fully in registers.

    Single QKV matmul (Q pre-scaled host-side); per-head score/softmax/PV;
    head outputs concatenated along lanes; ONE output-projection matmul.
    `mask` (bool (n, n)) makes the fused slab behave as independent per-frame
    attentions; it is applied to the f32 scores before the row-max subtraction
    so the -1e9 fill underflows cleanly through exp()."""
    n, d = x.shape
    dh = d // num_heads
    qkv = _mm(x, w_in) + b_in                                    # (n, 3d) f32
    heads = []
    for h in range(num_heads):
        q = qkv[:, h * dh:(h + 1) * dh]
        k = qkv[:, d + h * dh: d + (h + 1) * dh]
        v = qkv[:, 2 * d + h * dh: 2 * d + (h + 1) * dh]
        s = _mm(q, k.T)                                          # (n, n) f32
        if mask is not None:
            s = jnp.where(mask, s, NEG_INF)
        s = s - jnp.max(s, axis=-1, keepdims=True)
        p = jnp.exp(s)
        # NOTE: approx reciprocal (EUP) is the dominant error source vs the
        # f32 reference; switch to approx=False if a tighter tolerance is ever
        # required.
        p = p * pl.reciprocal(jnp.sum(p, axis=-1, keepdims=True), approx=True)
        heads.append(_mm(p, v))                                  # (n, dh) f32
    attn = jnp.concatenate(heads, axis=-1)                       # (n, d) f32
    return _mm(attn, w_out) + b_out


# ------------------------------ fused kernel ---------------------------------
def _fused_kernel(patches_ref, patch_w_ref, misc_ref,
                  qkv_w_ref, proj_w_ref, fc1_w_ref, fc2_w_ref, blk_vec_ref,
                  tin_w_ref, tout_w_ref, tmp_vec_ref,
                  bh_w1_ref, cl_w1_ref, tail_ref,
                  out_ref):
    misc = misc_ref[...]                                          # (48, 32) f32

    # ---- patch embedding + token assembly (registers only, no scratch) ------
    # Token layout: rows [0, T) = CLS token of frame t; rows [T, TN) = patch
    # tokens, row T + t*NUM_PATCHES + p.
    emb = _mm(patches_ref[0], patch_w_ref[...]) + misc[R_PATCH_B:R_PATCH_B + 1, :]
    cls_rows = jnp.broadcast_to(misc[R_CLS:R_CLS + 1, :], (T, EMBED))
    x = jnp.concatenate([cls_rows, emb + misc[R_POS:R_POS + T * NUM_PATCHES, :]],
                        axis=0)                                   # (TN, D) f32

    # ---- block-diagonal (per-frame) attention mask, built in-kernel ---------
    row = jax.lax.broadcasted_iota(jnp.int32, (TN, TN), 0)
    col = jax.lax.broadcasted_iota(jnp.int32, (TN, TN), 1)

    def _fid(v):   # frame id of token row v
        return jnp.where(v < T, v, (jnp.maximum(v - T, 0) >> PATCH_SHIFT))

    same_frame = _fid(row) == _fid(col)                           # bool (TN, TN)

    # ---- ViT blocks (weights stacked along DEPTH; all frames fused) ---------
    for blk in range(DEPTH):
        vec = blk_vec_ref[blk]                                    # (8, 128) f32
        xn = _layernorm(x, vec[BV_LN1_G:BV_LN1_G + 1, :EMBED],
                        vec[BV_LN1_B:BV_LN1_B + 1, :EMBED])
        x = x + _attention(xn, qkv_w_ref[blk], vec[BV_QKV_B:BV_QKV_B + 1, :3 * EMBED],
                           proj_w_ref[blk], vec[BV_PROJ_B:BV_PROJ_B + 1, :EMBED],
                           NUM_HEADS, mask=same_frame)
        xn2 = _layernorm(x, vec[BV_LN2_G:BV_LN2_G + 1, :EMBED],
                         vec[BV_LN2_B:BV_LN2_B + 1, :EMBED])
        h1 = _gelu_tanh(_mm(xn2, fc1_w_ref[blk]) + vec[BV_FC1_B:BV_FC1_B + 1, :MLP_HID])
        x = x + _mm(h1, fc2_w_ref[blk]) + vec[BV_FC2_B:BV_FC2_B + 1, :EMBED]

    # ---- CLS tokens -> final ViT LayerNorm + time embedding -----------------
    tf = _layernorm(x[0:T, :], misc[R_VNG:R_VNG + 1, :],
                    misc[R_VNB:R_VNB + 1, :]) + misc[R_TE:R_TE + T, :]   # (T, D)

    # ---- temporal nn.MultiheadAttention layers with residual add ------------
    for layer in range(2):
        vt = tmp_vec_ref[layer]                                   # (1, 128) f32
        tf = tf + _attention(tf, tin_w_ref[layer], vt[:, 0:3 * EMBED],
                             tout_w_ref[layer], vt[:, 3 * EMBED:4 * EMBED],
                             TEMP_HEADS, mask=None)

    # ---- boundary head + classifier tail (lane-dense, no N=1 MXU passes) ----
    tail = tail_ref[...]                                          # (8, 256) f32
    hb = jnp.maximum(_mm(tf, bh_w1_ref[...]) + tail[TR_BH_B1:TR_BH_B1 + 1, :], 0.0)
    scores = (jnp.sum(hb * tail[TR_BH_W2:TR_BH_W2 + 1, :], axis=-1, keepdims=True)
              + tail[TR_SCAL:TR_SCAL + 1, 0:1])                   # (T, 1)
    h2 = jnp.maximum(jnp.sum(scores * cl_w1_ref[...], axis=0, keepdims=True)
                     + tail[TR_CL_B1:TR_CL_B1 + 1, 0:CL_HID], 0.0)  # (1, CL_HID)
    logit = (jnp.sum(h2 * tail[TR_CL_W2:TR_CL_W2 + 1, 0:CL_HID], axis=-1, keepdims=True)
             + tail[TR_SCAL:TR_SCAL + 1, 1:2])                    # (1, 1)
    out_ref[0] = jax.nn.sigmoid(logit)


# ------------------------------ host-side prep -------------------------------
def _extract_patches(x):
    # x: (B, C, T, H, W) -> (B, T*num_patches, C*ps*ps), one transpose op.
    # TODO(synk): if the caller can provide pre-patchified frames, this XLA
    # transpose disappears and only a reshape remains.
    b, c, t, h, w = x.shape
    ps = PATCH
    x = x.reshape(b, c, t, h // ps, ps, w // ps, ps)
    x = jnp.transpose(x, (0, 2, 3, 5, 1, 4, 6))       # (B,T,Hp,Wp,C,ps,ps)
    return x.reshape(b, t * (h // ps) * (w // ps), c * ps * ps)


def prepare_params(params):
    """One-time host-side packing (called OUTSIDE the jit'd forward):
    pre-cast matmul weights to bf16, fold the softmax scale into the Q
    projections, and pack the tiny per-layer vectors into a few operands."""
    f32, bf16 = jnp.float32, jnp.bfloat16
    scale = 1.0 / math.sqrt(EMBED // NUM_HEADS)
    tscale = 1.0 / math.sqrt(EMBED // TEMP_HEADS)

    qkv_w = params["qkv_w"].at[:, :, :EMBED].multiply(scale)
    qkv_b = params["qkv_b"].at[:, :, :EMBED].multiply(scale)
    tin_w = params["tin_w"].at[:, :, :EMBED].multiply(tscale)
    tin_b = params["tin_b"].at[:, :, :EMBED].multiply(tscale)

    def lanes(v, width=128):
        return jnp.pad(v, [(0, 0)] * (v.ndim - 1) + [(0, width - v.shape[-1])])

    blk_vec = jnp.concatenate([
        lanes(params["ln1_g"]), lanes(params["ln1_b"]),
        lanes(params["ln2_g"]), lanes(params["ln2_b"]),
        lanes(qkv_b), lanes(params["proj_b"]),
        lanes(params["fc1_b"]), lanes(params["fc2_b"])], axis=1).astype(f32)

    tmp_vec = jnp.concatenate([tin_b, params["tout_b"]], axis=-1).astype(f32)

    misc = jnp.concatenate([
        jnp.tile(params["pos_embed"][1:], (T, 1)),                # rows 0:32
        params["time_embed"],                                     # rows 32:40
        params["patch_b"],                                        # row 40
        params["cls_token"] + params["pos_embed"][0:1],           # row 41
        params["vit_norm_g"], params["vit_norm_b"],               # rows 42, 43
        jnp.zeros((MISC_ROWS - R_VNB - 1, EMBED), f32)], axis=0).astype(f32)

    def row256(v):
        v = v.reshape(1, -1)
        return jnp.pad(v, ((0, 0), (0, 256 - v.shape[-1])))

    tail = jnp.concatenate([
        row256(params["bh_b1"]), row256(params["bh_w2"]),
        row256(params["cl_b1"]), row256(params["cl_w2"]),
        row256(jnp.concatenate([params["bh_b2"].reshape(1, 1),
                                params["cl_b2"].reshape(1, 1)], axis=1)),
        jnp.zeros((3, 256), f32)], axis=0).astype(f32)

    return {
        "patch_w": params["patch_w"].astype(bf16),
        "misc": misc,
        "qkv_w": qkv_w.astype(bf16),
        "proj_w": params["proj_w"].astype(bf16),
        "fc1_w": params["fc1_w"].astype(bf16),
        "fc2_w": params["fc2_w"].astype(bf16),
        "blk_vec": blk_vec,
        "tin_w": tin_w.astype(bf16),
        "tout_w": params["tout_w"].astype(bf16),
        "tmp_vec": tmp_vec,
        "bh_w1": params["bh_w1"].astype(bf16),
        "cl_w1": params["cl_w1"].astype(f32),
        "tail": tail,
    }


def _const_spec(shape):
    nd = len(shape)
    return pl.BlockSpec(shape, lambda i, _n=nd: (0,) * _n)


@jax.jit
def pallas_forward(x, ops):
    b = x.shape[0]
    patches = _extract_patches(x).astype(jnp.bfloat16)       # (B, T*P, PATCH_DIM)

    operands = (
        patches, ops["patch_w"], ops["misc"],
        ops["qkv_w"], ops["proj_w"], ops["fc1_w"], ops["fc2_w"], ops["blk_vec"],
        ops["tin_w"], ops["tout_w"], ops["tmp_vec"],
        ops["bh_w1"], ops["cl_w1"], ops["tail"],
    )
    in_specs = [pl.BlockSpec((1, T * NUM_PATCHES, PATCH_DIM), lambda i: (i, 0, 0))]
    in_specs += [_const_spec(op.shape) for op in operands[1:]]

    out = pl.pallas_call(
        _fused_kernel,
        out_shape=jax.ShapeDtypeStruct((b, 1, 1), jnp.float32),
        grid=(b,),
        in_specs=in_specs,
        out_specs=pl.BlockSpec((1, 1, 1), lambda i: (i, 0, 0)),
        compiler_params=pltpu.CompilerParams(dimension_semantics=("parallel",)),
    )(*operands)
    return out.reshape(b, 1)


# ------------------------------ pure-JAX reference ---------------------------
def _ref_ln(x, g, b):
    mu = jnp.mean(x, axis=-1, keepdims=True)
    var = jnp.mean((x - mu) ** 2, axis=-1, keepdims=True)
    return (x - mu) * jax.lax.rsqrt(var + LN_EPS) * g + b


def _ref_attn(x, w_in, b_in, w_out, b_out, num_heads):
    bb, s, d = x.shape
    dh = d // num_heads
    qkv = jnp.einsum("bsd,de->bse", x, w_in) + b_in
    q, k, v = qkv[..., :d], qkv[..., d:2 * d], qkv[..., 2 * d:]
    q = q.reshape(bb, s, num_heads, dh)
    k = k.reshape(bb, s, num_heads, dh)
    v = v.reshape(bb, s, num_heads, dh)
    sc = jnp.einsum("bqhd,bkhd->bhqk", q, k) * (1.0 / math.sqrt(dh))
    p = jax.nn.softmax(sc, axis=-1)
    o = jnp.einsum("bhqk,bkhd->bqhd", p, v).reshape(bb, s, d)
    return jnp.einsum("bsd,de->bse", o, w_out) + b_out


def reference_forward(x, params):
    with jax.default_matmul_precision("float32"):
        b = x.shape[0]
        d = EMBED
        patches = _extract_patches(x).reshape(b * T, NUM_PATCHES, PATCH_DIM)
        tok = jnp.einsum("bpk,kd->bpd", patches, params["patch_w"]) + params["patch_b"]
        cls = jnp.broadcast_to(params["cls_token"][None], (tok.shape[0], 1, d))
        tok = jnp.concatenate([cls, tok], axis=1) + params["pos_embed"][None]
        for blk in range(DEPTH):
            xn = _ref_ln(tok, params["ln1_g"][blk], params["ln1_b"][blk])
            tok = tok + _ref_attn(xn, params["qkv_w"][blk], params["qkv_b"][blk],
                                  params["proj_w"][blk], params["proj_b"][blk], NUM_HEADS)
            xn2 = _ref_ln(tok, params["ln2_g"][blk], params["ln2_b"][blk])
            hid = _gelu_tanh(jnp.einsum("bnd,dm->bnm", xn2, params["fc1_w"][blk])
                             + params["fc1_b"][blk])
            tok = tok + jnp.einsum("bnm,md->bnd", hid, params["fc2_w"][blk]) + params["fc2_b"][blk]
        cls_raw = tok[:, 0, :].reshape(b, T, d)
        tf = _ref_ln(cls_raw, params["vit_norm_g"], params["vit_norm_b"]) + params["time_embed"]
        for layer in range(2):
            tf = tf + _ref_attn(tf, params["tin_w"][layer], params["tin_b"][layer],
                                params["tout_w"][layer], params["tout_b"][layer], TEMP_HEADS)
        feat = tf.reshape(b * T, d)
        hh = jnp.maximum(feat @ params["bh_w1"] + params["bh_b1"], 0.0)
        scores = (hh @ params["bh_w2"] + params["bh_b2"]).reshape(b, T)
        h2 = jnp.maximum(scores @ params["cl_w1"] + params["cl_b1"], 0.0)
        return jax.nn.sigmoid(h2 @ params["cl_w2"] + params["cl_b2"])


# ------------------------------ parameter init -------------------------------
def init_params(key):
    keys = iter(jax.random.split(key, 64))

    def rnd(shape, scale=0.02):
        return (scale * jax.random.normal(next(keys), shape)).astype(jnp.float32)

    return {
        "patch_w": rnd((PATCH_DIM, EMBED)), "patch_b": rnd((1, EMBED)),
        "cls_token": rnd((1, EMBED)),
        "pos_embed": rnd((NUM_TOK, EMBED)),
        # ViT block weights stacked along DEPTH, all pre-transposed to (in, out)
        "ln1_g": jnp.ones((DEPTH, 1, EMBED), jnp.float32), "ln1_b": rnd((DEPTH, 1, EMBED)),
        "qkv_w": rnd((DEPTH, EMBED, 3 * EMBED)), "qkv_b": rnd((DEPTH, 1, 3 * EMBED)),
        "proj_w": rnd((DEPTH, EMBED, EMBED)), "proj_b": rnd((DEPTH, 1, EMBED)),
        "ln2_g": jnp.ones((DEPTH, 1, EMBED), jnp.float32), "ln2_b": rnd((DEPTH, 1, EMBED)),
        "fc1_w": rnd((DEPTH, EMBED, MLP_HID)), "fc1_b": rnd((DEPTH, 1, MLP_HID)),
        "fc2_w": rnd((DEPTH, MLP_HID, EMBED)), "fc2_b": rnd((DEPTH, 1, EMBED)),
        "vit_norm_g": jnp.ones((1, EMBED), jnp.float32), "vit_norm_b": rnd((1, EMBED)),
        # module inits time_embed to zeros; random here (deterministic) to exercise the add
        "time_embed": rnd((T, EMBED)),
        # two temporal MultiheadAttention layers, stacked
        "tin_w": rnd((2, EMBED, 3 * EMBED)), "tin_b": rnd((2, 1, 3 * EMBED)),
        "tout_w": rnd((2, EMBED, EMBED)), "tout_b": rnd((2, 1, EMBED)),
        "bh_w1": rnd((EMBED, BH_HID)), "bh_b1": rnd((1, BH_HID)),
        "bh_w2": rnd((BH_HID, 1)), "bh_b2": rnd((1, 1)),
        "cl_w1": rnd((T, CL_HID)), "cl_b1": rnd((1, CL_HID)),
        "cl_w2": rnd((CL_HID, 1)), "cl_b2": rnd((1, 1)),
    }


# ------------------------------------ main ------------------------------------
if __name__ == "__main__":
    key = jax.random.PRNGKey(0)
    kx, kp = jax.random.split(key)
    x = jax.random.normal(kx, (B, C, T, IMG, IMG), jnp.float32)
    params = init_params(kp)
    ops = prepare_params(params)   # one-time packing, outside the jit'd forward

    out = jax.block_until_ready(pallas_forward(x, ops))
    ref = jax.block_until_ready(reference_forward(x, params))

    assert out.shape == (B, 1), out.shape
    err = float(jnp.max(jnp.abs(out - ref)))
    if not (err < 5e-3):
        raise AssertionError(f"Pallas vs reference mismatch: max abs err = {err}")
    print("KERNEL_OK")
</pallas_src>

<mosaic_0001>
module attributes {stable_mosaic.version = 11 : i64} {
  func.func @_fused_kernel(%arg0: i32, %arg1: memref<1x32x192xbf16, #tpu.memory_space<vmem>>, %arg2: memref<192x32xbf16, #tpu.memory_space<vmem>>, %arg3: memref<48x32xf32, #tpu.memory_space<vmem>>, %arg4: memref<2x32x96xbf16, #tpu.memory_space<vmem>>, %arg5: memref<2x32x32xbf16, #tpu.memory_space<vmem>>, %arg6: memref<2x32x128xbf16, #tpu.memory_space<vmem>>, %arg7: memref<2x128x32xbf16, #tpu.memory_space<vmem>>, %arg8: memref<2x8x128xf32, #tpu.memory_space<vmem>>, %arg9: memref<2x32x96xbf16, #tpu.memory_space<vmem>>, %arg10: memref<2x32x32xbf16, #tpu.memory_space<vmem>>, %arg11: memref<2x1x128xf32, #tpu.memory_space<vmem>>, %arg12: memref<32x256xbf16, #tpu.memory_space<vmem>>, %arg13: memref<8x64xf32, #tpu.memory_space<vmem>>, %arg14: memref<8x256xf32, #tpu.memory_space<vmem>>, %arg15: memref<1x1x1xf32, #tpu.memory_space<vmem>>) attributes {dimension_semantics = [#tpu.dimension_semantics<parallel>], iteration_bounds = array<i64: 2>, scalar_prefetch = 0 : i64, scratch_operands = 0 : i64, tpu.core_type = #tpu.core_type<tc>, window_params = [{transform_indices = @transform_0, window_bounds = array<i64: 1, 32, 192>}, {pipeline_mode = #tpu.pipeline_mode<synchronous>, transform_indices = @transform_1, window_bounds = array<i64: 192, 32>}, {pipeline_mode = #tpu.pipeline_mode<synchronous>, transform_indices = @transform_2, window_bounds = array<i64: 48, 32>}, {pipeline_mode = #tpu.pipeline_mode<synchronous>, transform_indices = @transform_3, window_bounds = array<i64: 2, 32, 96>}, {pipeline_mode = #tpu.pipeline_mode<synchronous>, transform_indices = @transform_4, window_bounds = array<i64: 2, 32, 32>}, {pipeline_mode = #tpu.pipeline_mode<synchronous>, transform_indices = @transform_5, window_bounds = array<i64: 2, 32, 128>}, {pipeline_mode = #tpu.pipeline_mode<synchronous>, transform_indices = @transform_6, window_bounds = array<i64: 2, 128, 32>}, {pipeline_mode = #tpu.pipeline_mode<synchronous>, transform_indices = @transform_7, window_bounds = array<i64: 2, 8, 128>}, {pipeline_mode = #tpu.pipeline_mode<synchronous>, transform_indices = @transform_8, window_bounds = array<i64: 2, 32, 96>}, {pipeline_mode = #tpu.pipeline_mode<synchronous>, transform_indices = @transform_9, window_bounds = array<i64: 2, 32, 32>}, {pipeline_mode = #tpu.pipeline_mode<synchronous>, transform_indices = @transform_10, window_bounds = array<i64: 2, 1, 128>}, {pipeline_mode = #tpu.pipeline_mode<synchronous>, transform_indices = @transform_11, window_bounds = array<i64: 32, 256>}, {pipeline_mode = #tpu.pipeline_mode<synchronous>, transform_indices = @transform_12, window_bounds = array<i64: 8, 64>}, {pipeline_mode = #tpu.pipeline_mode<synchronous>, transform_indices = @transform_13, window_bounds = array<i64: 8, 256>}, {transform_indices = @transform_14, window_bounds = array<i64: 1, 1, 1>}]} {
    %c0 = arith.constant 0 : index
    %c0_0 = arith.constant 0 : index
    %0 = vector.load %arg3[%c0, %c0_0] : memref<48x32xf32, #tpu.memory_space<vmem>>, vector<48x32xf32>
    %c0_1 = arith.constant 0 : index
    %c0_2 = arith.constant 0 : index
    %c0_3 = arith.constant 0 : index
    %1 = vector.load %arg1[%c0_1, %c0_2, %c0_3] : memref<1x32x192xbf16, #tpu.memory_space<vmem>>, vector<1x32x192xbf16>
    %2 = vector.shape_cast %1 : vector<1x32x192xbf16> to vector<32x192xbf16>
    %c0_4 = arith.constant 0 : index
    %c0_5 = arith.constant 0 : index
    %3 = vector.load %arg2[%c0_4, %c0_5] : memref<192x32xbf16, #tpu.memory_space<vmem>>, vector<192x32xbf16>
    %cst = arith.constant dense<0.000000e+00> : vector<32x32xf32>
    %4 = tpu.matmul %2, %3, %cst {dimension_numbers = #tpu.dot_dimension_numbers<[1], [0], [0], [1], [0, 0, 1, 1], [], []>} : vector<32x192xbf16>, vector<192x32xbf16>, vector<32x32xf32> -> vector<32x32xf32>
    %5 = vector.extract_strided_slice %0 {offsets = [40, 0], sizes = [1, 32], strides = [1, 1]} : vector<48x32xf32> to vector<1x32xf32>
    %6 = vector.broadcast %5 : vector<1x32xf32> to vector<32x32xf32>
    %7 = arith.addf %4, %6 : vector<32x32xf32>
    %8 = vector.extract_strided_slice %0 {offsets = [41, 0], sizes = [1, 32], strides = [1, 1]} : vector<48x32xf32> to vector<1x32xf32>
    %9 = vector.shape_cast %8 : vector<1x32xf32> to vector<1x32xf32>
    %10 = vector.broadcast %9 : vector<1x32xf32> to vector<8x32xf32>
    %11 = vector.extract_strided_slice %0 {offsets = [0, 0], sizes = [32, 32], strides = [1, 1]} : vector<48x32xf32> to vector<32x32xf32>
    %12 = arith.addf %7, %11 : vector<32x32xf32>
    %13 = tpu.concatenate %10, %12 in 0 : vector<8x32xf32>, vector<32x32xf32> -> vector<40x32xf32>
    %14 = tpu.iota {dimensions = array<i32: 0>} : vector<40x40xi32>
    %15 = tpu.iota {dimensions = array<i32: 1>} : vector<40x40xi32>
    %c8_i32 = arith.constant 8 : i32
    %16 = vector.broadcast %c8_i32 : i32 to vector<40x40xi32>
    %17 = arith.cmpi slt, %14, %16 : vector<40x40xi32>
    %c8_i32_6 = arith.constant 8 : i32
    %18 = vector.broadcast %c8_i32_6 : i32 to vector<40x40xi32>
    %19 = arith.subi %14, %18 : vector<40x40xi32>
    %c0_i32 = arith.constant 0 : i32
    %20 = vector.broadcast %c0_i32 : i32 to vector<40x40xi32>
    %21 = arith.maxsi %19, %20 : vector<40x40xi32>
    %c2_i32 = arith.constant 2 : i32
    %22 = vector.broadcast %c2_i32 : i32 to vector<40x40xi32>
    %23 = arith.shrsi %21, %22 : vector<40x40xi32>
    %24 = arith.select %17, %14, %23 : vector<40x40xi1>, vector<40x40xi32>
    %c8_i32_7 = arith.constant 8 : i32
    %25 = vector.broadcast %c8_i32_7 : i32 to vector<40x40xi32>
    %26 = arith.cmpi slt, %15, %25 : vector<40x40xi32>
    %c8_i32_8 = arith.constant 8 : i32
    %27 = vector.broadcast %c8_i32_8 : i32 to vector<40x40xi32>
    %28 = arith.subi %15, %27 : vector<40x40xi32>
    %c0_i32_9 = arith.constant 0 : i32
    %29 = vector.broadcast %c0_i32_9 : i32 to vector<40x40xi32>
    %30 = arith.maxsi %28, %29 : vector<40x40xi32>
    %c2_i32_10 = arith.constant 2 : i32
    %31 = vector.broadcast %c2_i32_10 : i32 to vector<40x40xi32>
    %32 = arith.shrsi %30, %31 : vector<40x40xi32>
    %33 = arith.select %26, %15, %32 : vector<40x40xi1>, vector<40x40xi32>
    %34 = arith.cmpi eq, %24, %33 : vector<40x40xi32>
    %c0_11 = arith.constant 0 : index
    %c0_12 = arith.constant 0 : index
    %c0_13 = arith.constant 0 : index
    %35 = vector.load %arg8[%c0_11, %c0_12, %c0_13] : memref<2x8x128xf32, #tpu.memory_space<vmem>>, vector<1x8x128xf32>
    %36 = vector.shape_cast %35 : vector<1x8x128xf32> to vector<8x128xf32>
    %37 = vector.extract_strided_slice %36 {offsets = [0, 0], sizes = [1, 32], strides = [1, 1]} : vector<8x128xf32> to vector<1x32xf32>
    %38 = vector.extract_strided_slice %36 {offsets = [1, 0], sizes = [1, 32], strides = [1, 1]} : vector<8x128xf32> to vector<1x32xf32>
    %cst_14 = arith.constant dense<0.000000e+00> : vector<40xf32>
    %39 = vector.multi_reduction <add>, %13, %cst_14 [1] : vector<40x32xf32> to vector<40xf32>
    %40 = vector.shape_cast %39 : vector<40xf32> to vector<40x1xf32>
    %cst_15 = arith.constant 3.200000e+01 : f32
    %41 = vector.broadcast %cst_15 : f32 to vector<40x1xf32>
    %42 = arith.divf %40, %41 : vector<40x1xf32>
    %43 = vector.broadcast %42 : vector<40x1xf32> to vector<40x32xf32>
    %44 = arith.subf %13, %43 : vector<40x32xf32>
    %45 = arith.mulf %44, %44 : vector<40x32xf32>
    %cst_16 = arith.constant dense<0.000000e+00> : vector<40xf32>
    %46 = vector.multi_reduction <add>, %45, %cst_16 [1] : vector<40x32xf32> to vector<40xf32>
    %47 = vector.shape_cast %46 : vector<40xf32> to vector<40x1xf32>
    %cst_17 = arith.constant 3.200000e+01 : f32
    %48 = vector.broadcast %cst_17 : f32 to vector<40x1xf32>
    %49 = arith.divf %47, %48 : vector<40x1xf32>
    %50 = vector.broadcast %42 : vector<40x1xf32> to vector<40x32xf32>
    %51 = arith.subf %13, %50 : vector<40x32xf32>
    %cst_18 = arith.constant 9.99999997E-7 : f32
    %52 = vector.broadcast %cst_18 : f32 to vector<40x1xf32>
    %53 = arith.addf %49, %52 : vector<40x1xf32>
    %54 = math.rsqrt %53 : vector<40x1xf32>
    %55 = vector.broadcast %54 : vector<40x1xf32> to vector<40x32xf32>
    %56 = arith.mulf %51, %55 : vector<40x32xf32>
    %57 = vector.broadcast %37 : vector<1x32xf32> to vector<40x32xf32>
    %58 = arith.mulf %56, %57 : vector<40x32xf32>
    %59 = vector.broadcast %38 : vector<1x32xf32> to vector<40x32xf32>
    %60 = arith.addf %58, %59 : vector<40x32xf32>
    %c0_19 = arith.constant 0 : index
    %c0_20 = arith.constant 0 : index
    %c0_21 = arith.constant 0 : index
    %61 = vector.load %arg4[%c0_19, %c0_20, %c0_21] : memref<2x32x96xbf16, #tpu.memory_space<vmem>>, vector<1x32x96xbf16>
    %62 = vector.shape_cast %61 : vector<1x32x96xbf16> to vector<32x96xbf16>
    %63 = vector.extract_strided_slice %36 {offsets = [4, 0], sizes = [1, 96], strides = [1, 1]} : vector<8x128xf32> to vector<1x96xf32>
    %c0_22 = arith.constant 0 : index
    %c0_23 = arith.constant 0 : index
    %c0_24 = arith.constant 0 : index
    %64 = vector.load %arg5[%c0_22, %c0_23, %c0_24] : memref<2x32x32xbf16, #tpu.memory_space<vmem>>, vector<1x32x32xbf16>
    %65 = vector.shape_cast %64 : vector<1x32x32xbf16> to vector<32x32xbf16>
    %66 = vector.extract_strided_slice %36 {offsets = [5, 0], sizes = [1, 32], strides = [1, 1]} : vector<8x128xf32> to vector<1x32xf32>
    %67 = arith.truncf %60 : vector<40x32xf32> to vector<40x32xbf16>
    %cst_25 = arith.constant dense<0.000000e+00> : vector<40x96xf32>
    %68 = tpu.matmul %67, %62, %cst_25 {dimension_numbers = #tpu.dot_dimension_numbers<[1], [0], [0], [1], [0, 0, 1, 1], [], []>} : vector<40x32xbf16>, vector<32x96xbf16>, vector<40x96xf32> -> vector<40x96xf32>
    %69 = vector.broadcast %63 : vector<1x96xf32> to vector<40x96xf32>
    %70 = arith.addf %68, %69 : vector<40x96xf32>
    %71 = vector.extract_strided_slice %70 {offsets = [0, 0], sizes = [40, 8], strides = [1, 1]} : vector<40x96xf32> to vector<40x8xf32>
    %72 = vector.extract_strided_slice %70 {offsets = [0, 32], sizes = [40, 8], strides = [1, 1]} : vector<40x96xf32> to vector<40x8xf32>
    %73 = vector.extract_strided_slice %70 {offsets = [0, 64], sizes = [40, 8], strides = [1, 1]} : vector<40x96xf32> to vector<40x8xf32>
    %74 = tpu.transpose %72, [1, 0] : vector<40x8xf32> -> vector<8x40xf32>
    %75 = arith.truncf %71 : vector<40x8xf32> to vector<40x8xbf16>
    %76 = arith.truncf %74 : vector<8x40xf32> to vector<8x40xbf16>
    %cst_26 = arith.constant dense<0.000000e+00> : vector<40x40xf32>
    %77 = tpu.matmul %75, %76, %cst_26 {dimension_numbers = #tpu.dot_dimension_numbers<[1], [0], [0], [1], [0, 0, 1, 1], [], []>} : vector<40x8xbf16>, vector<8x40xbf16>, vector<40x40xf32> -> vector<40x40xf32>
    %cst_27 = arith.constant -1.000000e+09 : f32
    %78 = vector.broadcast %cst_27 : f32 to vector<40x40xf32>
    %79 = arith.select %34, %77, %78 : vector<40x40xi1>, vector<40x40xf32>
    %cst_28 = arith.constant dense<0xFF800000> : vector<40xf32>
    %80 = vector.multi_reduction <maximumf>, %79, %cst_28 [1] : vector<40x40xf32> to vector<40xf32>
    %81 = vector.shape_cast %80 : vector<40xf32> to vector<40x1xf32>
    %82 = vector.broadcast %81 : vector<40x1xf32> to vector<40x40xf32>
    %83 = arith.subf %79, %82 : vector<40x40xf32>
    %84 = math.exp %83 : vector<40x40xf32>
    %cst_29 = arith.constant dense<0.000000e+00> : vector<40xf32>
    %85 = vector.multi_reduction <add>, %84, %cst_29 [1] : vector<40x40xf32> to vector<40xf32>
    %86 = vector.shape_cast %85 : vector<40xf32> to vector<40x1xf32>
    %87 = tpu.reciprocal %86 {approx = true} : vector<40x1xf32> -> vector<40x1xf32>
    %88 = vector.broadcast %87 : vector<40x1xf32> to vector<40x40xf32>
    %89 = arith.mulf %84, %88 : vector<40x40xf32>
    %90 = arith.truncf %89 : vector<40x40xf32> to vector<40x40xbf16>
    %91 = arith.truncf %73 : vector<40x8xf32> to vector<40x8xbf16>
    %cst_30 = arith.constant dense<0.000000e+00> : vector<40x8xf32>
    %92 = tpu.matmul %90, %91, %cst_30 {dimension_numbers = #tpu.dot_dimension_numbers<[1], [0], [0], [1], [0, 0, 1, 1], [], []>} : vector<40x40xbf16>, vector<40x8xbf16>, vector<40x8xf32> -> vector<40x8xf32>
    %93 = vector.extract_strided_slice %70 {offsets = [0, 8], sizes = [40, 8], strides = [1, 1]} : vector<40x96xf32> to vector<40x8xf32>
    %94 = vector.extract_strided_slice %70 {offsets = [0, 40], sizes = [40, 8], strides = [1, 1]} : vector<40x96xf32> to vector<40x8xf32>
    %95 = vector.extract_strided_slice %70 {offsets = [0, 72], sizes = [40, 8], strides = [1, 1]} : vector<40x96xf32> to vector<40x8xf32>
    %96 = tpu.transpose %94, [1, 0] : vector<40x8xf32> -> vector<8x40xf32>
    %97 = arith.truncf %93 : vector<40x8xf32> to vector<40x8xbf16>
    %98 = arith.truncf %96 : vector<8x40xf32> to vector<8x40xbf16>
    %cst_31 = arith.constant dense<0.000000e+00> : vector<40x40xf32>
    %99 = tpu.matmul %97, %98, %cst_31 {dimension_numbers = #tpu.dot_dimension_numbers<[1], [0], [0], [1], [0, 0, 1, 1], [], []>} : vector<40x8xbf16>, vector<8x40xbf16>, vector<40x40xf32> -> vector<40x40xf32>
    %cst_32 = arith.constant -1.000000e+09 : f32
    %100 = vector.broadcast %cst_32 : f32 to vector<40x40xf32>
    %101 = arith.select %34, %99, %100 : vector<40x40xi1>, vector<40x40xf32>
    %cst_33 = arith.constant dense<0xFF800000> : vector<40xf32>
    %102 = vector.multi_reduction <maximumf>, %101, %cst_33 [1] : vector<40x40xf32> to vector<40xf32>
    %103 = vector.shape_cast %102 : vector<40xf32> to vector<40x1xf32>
    %104 = vector.broadcast %103 : vector<40x1xf32> to vector<40x40xf32>
    %105 = arith.subf %101, %104 : vector<40x40xf32>
    %106 = math.exp %105 : vector<40x40xf32>
    %cst_34 = arith.constant dense<0.000000e+00> : vector<40xf32>
    %107 = vector.multi_reduction <add>, %106, %cst_34 [1] : vector<40x40xf32> to vector<40xf32>
    %108 = vector.shape_cast %107 : vector<40xf32> to vector<40x1xf32>
    %109 = tpu.reciprocal %108 {approx = true} : vector<40x1xf32> -> vector<40x1xf32>
    %110 = vector.broadcast %109 : vector<40x1xf32> to vector<40x40xf32>
    %111 = arith.mulf %106, %110 : vector<40x40xf32>
    %112 = arith.truncf %111 : vector<40x40xf32> to vector<40x40xbf16>
    %113 = arith.truncf %95 : vector<40x8xf32> to vector<40x8xbf16>
    %cst_35 = arith.constant dense<0.000000e+00> : vector<40x8xf32>
    %114 = tpu.matmul %112, %113, %cst_35 {dimension_numbers = #tpu.dot_dimension_numbers<[1], [0], [0], [1], [0, 0, 1, 1], [], []>} : vector<40x40xbf16>, vector<40x8xbf16>, vector<40x8xf32> -> vector<40x8xf32>
    %115 = vector.extract_strided_slice %70 {offsets = [0, 16], sizes = [40, 8], strides = [1, 1]} : vector<40x96xf32> to vector<40x8xf32>
    %116 = vector.extract_strided_slice %70 {offsets = [0, 48], sizes = [40, 8], strides = [1, 1]} : vector<40x96xf32> to vector<40x8xf32>
    %117 = vector.extract_strided_slice %70 {offsets = [0, 80], sizes = [40, 8], strides = [1, 1]} : vector<40x96xf32> to vector<40x8xf32>
    %118 = tpu.transpose %116, [1, 0] : vector<40x8xf32> -> vector<8x40xf32>
    %119 = arith.truncf %115 : vector<40x8xf32> to vector<40x8xbf16>
    %120 = arith.truncf %118 : vector<8x40xf32> to vector<8x40xbf16>
    %cst_36 = arith.constant dense<0.000000e+00> : vector<40x40xf32>
    %121 = tpu.matmul %119, %120, %cst_36 {dimension_numbers = #tpu.dot_dimension_numbers<[1], [0], [0], [1], [0, 0, 1, 1], [], []>} : vector<40x8xbf16>, vector<8x40xbf16>, vector<40x40xf32> -> vector<40x40xf32>
    %cst_37 = arith.constant -1.000000e+09 : f32
    %122 = vector.broadcast %cst_37 : f32 to vector<40x40xf32>
    %123 = arith.select %34, %121, %122 : vector<40x40xi1>, vector<40x40xf32>
    %cst_38 = arith.constant dense<0xFF800000> : vector<40xf32>
    %124 = vector.multi_reduction <maximumf>, %123, %cst_38 [1] : vector<40x40xf32> to vector<40xf32>
    %125 = vector.shape_cast %124 : vector<40xf32> to vector<40x1xf32>
    %126 = vector.broadcast %125 : vector<40x1xf32> to vector<40x40xf32>
    %127 = arith.subf %123, %126 : vector<40x40xf32>
    %128 = math.exp %127 : vector<40x40xf32>
    %cst_39 = arith.constant dense<0.000000e+00> : vector<40xf32>
    %129 = vector.multi_reduction <add>, %128, %cst_39 [1] : vector<40x40xf32> to vector<40xf32>
    %130 = vector.shape_cast %129 : vector<40xf32> to vector<40x1xf32>
    %131 = tpu.reciprocal %130 {approx = true} : vector<40x1xf32> -> vector<40x1xf32>
    %132 = vector.broadcast %131 : vector<40x1xf32> to vector<40x40xf32>
    %133 = arith.mulf %128, %132 : vector<40x40xf32>
    %134 = arith.truncf %133 : vector<40x40xf32> to vector<40x40xbf16>
    %135 = arith.truncf %117 : vector<40x8xf32> to vector<40x8xbf16>
    %cst_40 = arith.constant dense<0.000000e+00> : vector<40x8xf32>
    %136 = tpu.matmul %134, %135, %cst_40 {dimension_numbers = #tpu.dot_dimension_numbers<[1], [0], [0], [1], [0, 0, 1, 1], [], []>} : vector<40x40xbf16>, vector<40x8xbf16>, vector<40x8xf32> -> vector<40x8xf32>
    %137 = vector.extract_strided_slice %70 {offsets = [0, 24], sizes = [40, 8], strides = [1, 1]} : vector<40x96xf32> to vector<40x8xf32>
    %138 = vector.extract_strided_slice %70 {offsets = [0, 56], sizes = [40, 8], strides = [1, 1]} : vector<40x96xf32> to vector<40x8xf32>
    %139 = vector.extract_strided_slice %70 {offsets = [0, 88], sizes = [40, 8], strides = [1, 1]} : vector<40x96xf32> to vector<40x8xf32>
    %140 = tpu.transpose %138, [1, 0] : vector<40x8xf32> -> vector<8x40xf32>
    %141 = arith.truncf %137 : vector<40x8xf32> to vector<40x8xbf16>
    %142 = arith.truncf %140 : vector<8x40xf32> to vector<8x40xbf16>
    %cst_41 = arith.constant dense<0.000000e+00> : vector<40x40xf32>
    %143 = tpu.matmul %141, %142, %cst_41 {dimension_numbers = #tpu.dot_dimension_numbers<[1], [0], [0], [1], [0, 0, 1, 1], [], []>} : vector<40x8xbf16>, vector<8x40xbf16>, vector<40x40xf32> -> vector<40x40xf32>
    %cst_42 = arith.constant -1.000000e+09 : f32
    %144 = vector.broadcast %cst_42 : f32 to vector<40x40xf32>
    %145 = arith.select %34, %143, %144 : vector<40x40xi1>, vector<40x40xf32>
    %cst_43 = arith.constant dense<0xFF800000> : vector<40xf32>
    %146 = vector.multi_reduction <maximumf>, %145, %cst_43 [1] : vector<40x40xf32> to vector<40xf32>
    %147 = vector.shape_cast %146 : vector<40xf32> to vector<40x1xf32>
    %148 = vector.broadcast %147 : vector<40x1xf32> to vector<40x40xf32>
    %149 = arith.subf %145, %148 : vector<40x40xf32>
    %150 = math.exp %149 : vector<40x40xf32>
    %cst_44 = arith.constant dense<0.000000e+00> : vector<40xf32>
    %151 = vector.multi_reduction <add>, %150, %cst_44 [1] : vector<40x40xf32> to vector<40xf32>
    %152 = vector.shape_cast %151 : vector<40xf32> to vector<40x1xf32>
    %153 = tpu.reciprocal %152 {approx = true} : vector<40x1xf32> -> vector<40x1xf32>
    %154 = vector.broadcast %153 : vector<40x1xf32> to vector<40x40xf32>
    %155 = arith.mulf %150, %154 : vector<40x40xf32>
    %156 = arith.truncf %155 : vector<40x40xf32> to vector<40x40xbf16>
    %157 = arith.truncf %139 : vector<40x8xf32> to vector<40x8xbf16>
    %cst_45 = arith.constant dense<0.000000e+00> : vector<40x8xf32>
    %158 = tpu.matmul %156, %157, %cst_45 {dimension_numbers = #tpu.dot_dimension_numbers<[1], [0], [0], [1], [0, 0, 1, 1], [], []>} : vector<40x40xbf16>, vector<40x8xbf16>, vector<40x8xf32> -> vector<40x8xf32>
    %159 = tpu.concatenate %92, %114, %136, %158 in 1 : vector<40x8xf32>, vector<40x8xf32>, vector<40x8xf32>, vector<40x8xf32> -> vector<40x32xf32>
    %160 = arith.truncf %159 : vector<40x32xf32> to vector<40x32xbf16>
    %cst_46 = arith.constant dense<0.000000e+00> : vector<40x32xf32>
    %161 = tpu.matmul %160, %65, %cst_46 {dimension_numbers = #tpu.dot_dimension_numbers<[1], [0], [0], [1], [0, 0, 1, 1], [], []>} : vector<40x32xbf16>, vector<32x32xbf16>, vector<40x32xf32> -> vector<40x32xf32>
    %162 = vector.broadcast %66 : vector<1x32xf32> to vector<40x32xf32>
    %163 = arith.addf %161, %162 : vector<40x32xf32>
    %164 = arith.addf %13, %163 : vector<40x32xf32>
    %165 = vector.extract_strided_slice %36 {offsets = [2, 0], sizes = [1, 32], strides = [1, 1]} : vector<8x128xf32> to vector<1x32xf32>
    %166 = vector.extract_strided_slice %36 {offsets = [3, 0], sizes = [1, 32], strides = [1, 1]} : vector<8x128xf32> to vector<1x32xf32>
    %cst_47 = arith.constant dense<0.000000e+00> : vector<40xf32>
    %167 = vector.multi_reduction <add>, %164, %cst_47 [1] : vector<40x32xf32> to vector<40xf32>
    %168 = vector.shape_cast %167 : vector<40xf32> to vector<40x1xf32>
    %cst_48 = arith.constant 3.200000e+01 : f32
    %169 = vector.broadcast %cst_48 : f32 to vector<40x1xf32>
    %170 = arith.divf %168, %169 : vector<40x1xf32>
    %171 = vector.broadcast %170 : vector<40x1xf32> to vector<40x32xf32>
    %172 = arith.subf %164, %171 : vector<40x32xf32>
    %173 = arith.mulf %172, %172 : vector<40x32xf32>
    %cst_49 = arith.constant dense<0.000000e+00> : vector<40xf32>
    %174 = vector.multi_reduction <add>, %173, %cst_49 [1] : vector<40x32xf32> to vector<40xf32>
    %175 = vector.shape_cast %174 : vector<40xf32> to vector<40x1xf32>
    %cst_50 = arith.constant 3.200000e+01 : f32
    %176 = vector.broadcast %cst_50 : f32 to vector<40x1xf32>
    %177 = arith.divf %175, %176 : vector<40x1xf32>
    %178 = vector.broadcast %170 : vector<40x1xf32> to vector<40x32xf32>
    %179 = arith.subf %164, %178 : vector<40x32xf32>
    %cst_51 = arith.constant 9.99999997E-7 : f32
    %180 = vector.broadcast %cst_51 : f32 to vector<40x1xf32>
    %181 = arith.addf %177, %180 : vector<40x1xf32>
    %182 = math.rsqrt %181 : vector<40x1xf32>
    %183 = vector.broadcast %182 : vector<40x1xf32> to vector<40x32xf32>
    %184 = arith.mulf %179, %183 : vector<40x32xf32>
    %185 = vector.broadcast %165 : vector<1x32xf32> to vector<40x32xf32>
    %186 = arith.mulf %184, %185 : vector<40x32xf32>
    %187 = vector.broadcast %166 : vector<1x32xf32> to vector<40x32xf32>
    %188 = arith.addf %186, %187 : vector<40x32xf32>
    %c0_52 = arith.constant 0 : index
    %c0_53 = arith.constant 0 : index
    %c0_54 = arith.constant 0 : index
    %189 = vector.load %arg6[%c0_52, %c0_53, %c0_54] : memref<2x32x128xbf16, #tpu.memory_space<vmem>>, vector<1x32x128xbf16>
    %190 = vector.shape_cast %189 : vector<1x32x128xbf16> to vector<32x128xbf16>
    %191 = arith.truncf %188 : vector<40x32xf32> to vector<40x32xbf16>
    %cst_55 = arith.constant dense<0.000000e+00> : vector<40x128xf32>
    %192 = tpu.matmul %191, %190, %cst_55 {dimension_numbers = #tpu.dot_dimension_numbers<[1], [0], [0], [1], [0, 0, 1, 1], [], []>} : vector<40x32xbf16>, vector<32x128xbf16>, vector<40x128xf32> -> vector<40x128xf32>
    %193 = vector.extract_strided_slice %36 {offsets = [6, 0], sizes = [1, 128], strides = [1, 1]} : vector<8x128xf32> to vector<1x128xf32>
    %194 = vector.broadcast %193 : vector<1x128xf32> to vector<40x128xf32>
    %195 = arith.addf %192, %194 : vector<40x128xf32>
    %cst_56 = arith.constant 5.000000e-01 : f32
    %196 = vector.broadcast %cst_56 : f32 to vector<40x128xf32>
    %197 = arith.mulf %196, %195 : vector<40x128xf32>
    %cst_57 = arith.constant 4.471500e-02 : f32
    %198 = vector.broadcast %cst_57 : f32 to vector<40x128xf32>
    %199 = arith.mulf %198, %195 : vector<40x128xf32>
    %200 = arith.mulf %199, %195 : vector<40x128xf32>
    %201 = arith.mulf %200, %195 : vector<40x128xf32>
    %202 = arith.addf %195, %201 : vector<40x128xf32>
    %cst_58 = arith.constant 0.797884583 : f32
    %203 = vector.broadcast %cst_58 : f32 to vector<40x128xf32>
    %204 = arith.mulf %203, %202 : vector<40x128xf32>
    %205 = math.tanh %204 : vector<40x128xf32>
    %cst_59 = arith.constant 1.000000e+00 : f32
    %206 = vector.broadcast %cst_59 : f32 to vector<40x128xf32>
    %207 = arith.addf %206, %205 : vector<40x128xf32>
    %208 = arith.mulf %197, %207 : vector<40x128xf32>
    %c0_60 = arith.constant 0 : index
    %c0_61 = arith.constant 0 : index
    %c0_62 = arith.constant 0 : index
    %209 = vector.load %arg7[%c0_60, %c0_61, %c0_62] : memref<2x128x32xbf16, #tpu.memory_space<vmem>>, vector<1x128x32xbf16>
    %210 = vector.shape_cast %209 : vector<1x128x32xbf16> to vector<128x32xbf16>
    %211 = arith.truncf %208 : vector<40x128xf32> to vector<40x128xbf16>
    %cst_63 = arith.constant dense<0.000000e+00> : vector<40x32xf32>
    %212 = tpu.matmul %211, %210, %cst_63 {dimension_numbers = #tpu.dot_dimension_numbers<[1], [0], [0], [1], [0, 0, 1, 1], [], []>} : vector<40x128xbf16>, vector<128x32xbf16>, vector<40x32xf32> -> vector<40x32xf32>
    %213 = arith.addf %164, %212 : vector<40x32xf32>
    %214 = vector.extract_strided_slice %36 {offsets = [7, 0], sizes = [1, 32], strides = [1, 1]} : vector<8x128xf32> to vector<1x32xf32>
    %215 = vector.broadcast %214 : vector<1x32xf32> to vector<40x32xf32>
    %216 = arith.addf %213, %215 : vector<40x32xf32>
    %c1 = arith.constant 1 : index
    %c0_64 = arith.constant 0 : index
    %c0_65 = arith.constant 0 : index
    %217 = vector.load %arg8[%c1, %c0_64, %c0_65] : memref<2x8x128xf32, #tpu.memory_space<vmem>>, vector<1x8x128xf32>
    %218 = vector.shape_cast %217 : vector<1x8x128xf32> to vector<8x128xf32>
    %219 = vector.extract_strided_slice %218 {offsets = [0, 0], sizes = [1, 32], strides = [1, 1]} : vector<8x128xf32> to vector<1x32xf32>
    %220 = vector.extract_strided_slice %218 {offsets = [1, 0], sizes = [1, 32], strides = [1, 1]} : vector<8x128xf32> to vector<1x32xf32>
    %cst_66 = arith.constant dense<0.000000e+00> : vector<40xf32>
    %221 = vector.multi_reduction <add>, %216, %cst_66 [1] : vector<40x32xf32> to vector<40xf32>
    %222 = vector.shape_cast %221 : vector<40xf32> to vector<40x1xf32>
    %cst_67 = arith.constant 3.200000e+01 : f32
    %223 = vector.broadcast %cst_67 : f32 to vector<40x1xf32>
    %224 = arith.divf %222, %223 : vector<40x1xf32>
    %225 = vector.broadcast %224 : vector<40x1xf32> to vector<40x32xf32>
    %226 = arith.subf %216, %225 : vector<40x32xf32>
    %227 = arith.mulf %226, %226 : vector<40x32xf32>
    %cst_68 = arith.constant dense<0.000000e+00> : vector<40xf32>
    %228 = vector.multi_reduction <add>, %227, %cst_68 [1] : vector<40x32xf32> to vector<40xf32>
    %229 = vector.shape_cast %228 : vector<40xf32> to vector<40x1xf32>
    %cst_69 = arith.constant 3.200000e+01 : f32
    %230 = vector.broadcast %cst_69 : f32 to vector<40x1xf32>
    %231 = arith.divf %229, %230 : vector<40x1xf32>
    %232 = vector.broadcast %224 : vector<40x1xf32> to vector<40x32xf32>
    %233 = arith.subf %216, %232 : vector<40x32xf32>
    %cst_70 = arith.constant 9.99999997E-7 : f32
    %234 = vector.broadcast %cst_70 : f32 to vector<40x1xf32>
    %235 = arith.addf %231, %234 : vector<40x1xf32>
    %236 = math.rsqrt %235 : vector<40x1xf32>
    %237 = vector.broadcast %236 : vector<40x1xf32> to vector<40x32xf32>
    %238 = arith.mulf %233, %237 : vector<40x32xf32>
    %239 = vector.broadcast %219 : vector<1x32xf32> to vector<40x32xf32>
    %240 = arith.mulf %238, %239 : vector<40x32xf32>
    %241 = vector.broadcast %220 : vector<1x32xf32> to vector<40x32xf32>
    %242 = arith.addf %240, %241 : vector<40x32xf32>
    %c1_71 = arith.constant 1 : index
    %c0_72 = arith.constant 0 : index
    %c0_73 = arith.constant 0 : index
    %243 = vector.load %arg4[%c1_71, %c0_72, %c0_73] : memref<2x32x96xbf16, #tpu.memory_space<vmem>>, vector<1x32x96xbf16>
    %244 = vector.shape_cast %243 : vector<1x32x96xbf16> to vector<32x96xbf16>
    %245 = vector.extract_strided_slice %218 {offsets = [4, 0], sizes = [1, 96], strides = [1, 1]} : vector<8x128xf32> to vector<1x96xf32>
    %c1_74 = arith.constant 1 : index
    %c0_75 = arith.constant 0 : index
    %c0_76 = arith.constant 0 : index
    %246 = vector.load %arg5[%c1_74, %c0_75, %c0_76] : memref<2x32x32xbf16, #tpu.memory_space<vmem>>, vector<1x32x32xbf16>
    %247 = vector.shape_cast %246 : vector<1x32x32xbf16> to vector<32x32xbf16>
    %248 = vector.extract_strided_slice %218 {offsets = [5, 0], sizes = [1, 32], strides = [1, 1]} : vector<8x128xf32> to vector<1x32xf32>
    %249 = arith.truncf %242 : vector<40x32xf32> to vector<40x32xbf16>
    %cst_77 = arith.constant dense<0.000000e+00> : vector<40x96xf32>
    %250 = tpu.matmul %249, %244, %cst_77 {dimension_numbers = #tpu.dot_dimension_numbers<[1], [0], [0], [1], [0, 0, 1, 1], [], []>} : vector<40x32xbf16>, vector<32x96xbf16>, vector<40x96xf32> -> vector<40x96xf32>
    %251 = vector.broadcast %245 : vector<1x96xf32> to vector<40x96xf32>
    %252 = arith.addf %250, %251 : vector<40x96xf32>
    %253 = vector.extract_strided_slice %252 {offsets = [0, 0], sizes = [40, 8], strides = [1, 1]} : vector<40x96xf32> to vector<40x8xf32>
    %254 = vector.extract_strided_slice %252 {offsets = [0, 32], sizes = [40, 8], strides = [1, 1]} : vector<40x96xf32> to vector<40x8xf32>
    %255 = vector.extract_strided_slice %252 {offsets = [0, 64], sizes = [40, 8], strides = [1, 1]} : vector<40x96xf32> to vector<40x8xf32>
    %256 = tpu.transpose %254, [1, 0] : vector<40x8xf32> -> vector<8x40xf32>
    %257 = arith.truncf %253 : vector<40x8xf32> to vector<40x8xbf16>
    %258 = arith.truncf %256 : vector<8x40xf32> to vector<8x40xbf16>
    %cst_78 = arith.constant dense<0.000000e+00> : vector<40x40xf32>
    %259 = tpu.matmul %257, %258, %cst_78 {dimension_numbers = #tpu.dot_dimension_numbers<[1], [0], [0], [1], [0, 0, 1, 1], [], []>} : vector<40x8xbf16>, vector<8x40xbf16>, vector<40x40xf32> -> vector<40x40xf32>
    %cst_79 = arith.constant -1.000000e+09 : f32
    %260 = vector.broadcast %cst_79 : f32 to vector<40x40xf32>
    %261 = arith.select %34, %259, %260 : vector<40x40xi1>, vector<40x40xf32>
    %cst_80 = arith.constant dense<0xFF800000> : vector<40xf32>
    %262 = vector.multi_reduction <maximumf>, %261, %cst_80 [1] : vector<40x40xf32> to vector<40xf32>
    %263 = vector.shape_cast %262 : vector<40xf32> to vector<40x1xf32>
    %264 = vector.broadcast %263 : vector<40x1xf32> to vector<40x40xf32>
    %265 = arith.subf %261, %264 : vector<40x40xf32>
    %266 = math.exp %265 : vector<40x40xf32>
    %cst_81 = arith.constant dense<0.000000e+00> : vector<40xf32>
    %267 = vector.multi_reduction <add>, %266, %cst_81 [1] : vector<40x40xf32> to vector<40xf32>
    %268 = vector.shape_cast %267 : vector<40xf32> to vector<40x1xf32>
    %269 = tpu.reciprocal %268 {approx = true} : vector<40x1xf32> -> vector<40x1xf32>
    %270 = vector.broadcast %269 : vector<40x1xf32> to vector<40x40xf32>
    %271 = arith.mulf %266, %270 : vector<40x40xf32>
    %272 = arith.truncf %271 : vector<40x40xf32> to vector<40x40xbf16>
    %273 = arith.truncf %255 : vector<40x8xf32> to vector<40x8xbf16>
    %cst_82 = arith.constant dense<0.000000e+00> : vector<40x8xf32>
    %274 = tpu.matmul %272, %273, %cst_82 {dimension_numbers = #tpu.dot_dimension_numbers<[1], [0], [0], [1], [0, 0, 1, 1], [], []>} : vector<40x40xbf16>, vector<40x8xbf16>, vector<40x8xf32> -> vector<40x8xf32>
    %275 = vector.extract_strided_slice %252 {offsets = [0, 8], sizes = [40, 8], strides = [1, 1]} : vector<40x96xf32> to vector<40x8xf32>
    %276 = vector.extract_strided_slice %252 {offsets = [0, 40], sizes = [40, 8], strides = [1, 1]} : vector<40x96xf32> to vector<40x8xf32>
    %277 = vector.extract_strided_slice %252 {offsets = [0, 72], sizes = [40, 8], strides = [1, 1]} : vector<40x96xf32> to vector<40x8xf32>
    %278 = tpu.transpose %276, [1, 0] : vector<40x8xf32> -> vector<8x40xf32>
    %279 = arith.truncf %275 : vector<40x8xf32> to vector<40x8xbf16>
    %280 = arith.truncf %278 : vector<8x40xf32> to vector<8x40xbf16>
    %cst_83 = arith.constant dense<0.000000e+00> : vector<40x40xf32>
    %281 = tpu.matmul %279, %280, %cst_83 {dimension_numbers = #tpu.dot_dimension_numbers<[1], [0], [0], [1], [0, 0, 1, 1], [], []>} : vector<40x8xbf16>, vector<8x40xbf16>, vector<40x40xf32> -> vector<40x40xf32>
    %cst_84 = arith.constant -1.000000e+09 : f32
    %282 = vector.broadcast %cst_84 : f32 to vector<40x40xf32>
    %283 = arith.select %34, %281, %282 : vector<40x40xi1>, vector<40x40xf32>
    %cst_85 = arith.constant dense<0xFF800000> : vector<40xf32>
    %284 = vector.multi_reduction <maximumf>, %283, %cst_85 [1] : vector<40x40xf32> to vector<40xf32>
    %285 = vector.shape_cast %284 : vector<40xf32> to vector<40x1xf32>
    %286 = vector.broadcast %285 : vector<40x1xf32> to vector<40x40xf32>
    %287 = arith.subf %283, %286 : vector<40x40xf32>
    %288 = math.exp %287 : vector<40x40xf32>
    %cst_86 = arith.constant dense<0.000000e+00> : vector<40xf32>
    %289 = vector.multi_reduction <add>, %288, %cst_86 [1] : vector<40x40xf32> to vector<40xf32>
    %290 = vector.shape_cast %289 : vector<40xf32> to vector<40x1xf32>
    %291 = tpu.reciprocal %290 {approx = true} : vector<40x1xf32> -> vector<40x1xf32>
    %292 = vector.broadcast %291 : vector<40x1xf32> to vector<40x40xf32>
    %293 = arith.mulf %288, %292 : vector<40x40xf32>
    %294 = arith.truncf %293 : vector<40x40xf32> to vector<40x40xbf16>
    %295 = arith.truncf %277 : vector<40x8xf32> to vector<40x8xbf16>
    %cst_87 = arith.constant dense<0.000000e+00> : vector<40x8xf32>
    %296 = tpu.matmul %294, %295, %cst_87 {dimension_numbers = #tpu.dot_dimension_numbers<[1], [0], [0], [1], [0, 0, 1, 1], [], []>} : vector<40x40xbf16>, vector<40x8xbf16>, vector<40x8xf32> -> vector<40x8xf32>
    %297 = vector.extract_strided_slice %252 {offsets = [0, 16], sizes = [40, 8], strides = [1, 1]} : vector<40x96xf32> to vector<40x8xf32>
    %298 = vector.extract_strided_slice %252 {offsets = [0, 48], sizes = [40, 8], strides = [1, 1]} : vector<40x96xf32> to vector<40x8xf32>
    %299 = vector.extract_strided_slice %252 {offsets = [0, 80], sizes = [40, 8], strides = [1, 1]} : vector<40x96xf32> to vector<40x8xf32>
    %300 = tpu.transpose %298, [1, 0] : vector<40x8xf32> -> vector<8x40xf32>
    %301 = arith.truncf %297 : vector<40x8xf32> to vector<40x8xbf16>
    %302 = arith.truncf %300 : vector<8x40xf32> to vector<8x40xbf16>
    %cst_88 = arith.constant dense<0.000000e+00> : vector<40x40xf32>
    %303 = tpu.matmul %301, %302, %cst_88 {dimension_numbers = #tpu.dot_dimension_numbers<[1], [0], [0], [1], [0, 0, 1, 1], [], []>} : vector<40x8xbf16>, vector<8x40xbf16>, vector<40x40xf32> -> vector<40x40xf32>
    %cst_89 = arith.constant -1.000000e+09 : f32
    %304 = vector.broadcast %cst_89 : f32 to vector<40x40xf32>
    %305 = arith.select %34, %303, %304 : vector<40x40xi1>, vector<40x40xf32>
    %cst_90 = arith.constant dense<0xFF800000> : vector<40xf32>
    %306 = vector.multi_reduction <maximumf>, %305, %cst_90 [1] : vector<40x40xf32> to vector<40xf32>
    %307 = vector.shape_cast %306 : vector<40xf32> to vector<40x1xf32>
    %308 = vector.broadcast %307 : vector<40x1xf32> to vector<40x40xf32>
    %309 = arith.subf %305, %308 : vector<40x40xf32>
    %310 = math.exp %309 : vector<40x40xf32>
    %cst_91 = arith.constant dense<0.000000e+00> : vector<40xf32>
    %311 = vector.multi_reduction <add>, %310, %cst_91 [1] : vector<40x40xf32> to vector<40xf32>
    %312 = vector.shape_cast %311 : vector<40xf32> to vector<40x1xf32>
    %313 = tpu.reciprocal %312 {approx = true} : vector<40x1xf32> -> vector<40x1xf32>
    %314 = vector.broadcast %313 : vector<40x1xf32> to vector<40x40xf32>
    %315 = arith.mulf %310, %314 : vector<40x40xf32>
    %316 = arith.truncf %315 : vector<40x40xf32> to vector<40x40xbf16>
    %317 = arith.truncf %299 : vector<40x8xf32> to vector<40x8xbf16>
    %cst_92 = arith.constant dense<0.000000e+00> : vector<40x8xf32>
    %318 = tpu.matmul %316, %317, %cst_92 {dimension_numbers = #tpu.dot_dimension_numbers<[1], [0], [0], [1], [0, 0, 1, 1], [], []>} : vector<40x40xbf16>, vector<40x8xbf16>, vector<40x8xf32> -> vector<40x8xf32>
    %319 = vector.extract_strided_slice %252 {offsets = [0, 24], sizes = [40, 8], strides = [1, 1]} : vector<40x96xf32> to vector<40x8xf32>
    %320 = vector.extract_strided_slice %252 {offsets = [0, 56], sizes = [40, 8], strides = [1, 1]} : vector<40x96xf32> to vector<40x8xf32>
    %321 = vector.extract_strided_slice %252 {offsets = [0, 88], sizes = [40, 8], strides = [1, 1]} : vector<40x96xf32> to vector<40x8xf32>
    %322 = tpu.transpose %320, [1, 0] : vector<40x8xf32> -> vector<8x40xf32>
    %323 = arith.truncf %319 : vector<40x8xf32> to vector<40x8xbf16>
    %324 = arith.truncf %322 : vector<8x40xf32> to vector<8x40xbf16>
    %cst_93 = arith.constant dense<0.000000e+00> : vector<40x40xf32>
    %325 = tpu.matmul %323, %324, %cst_93 {dimension_numbers = #tpu.dot_dimension_numbers<[1], [0], [0], [1], [0, 0, 1, 1], [], []>} : vector<40x8xbf16>, vector<8x40xbf16>, vector<40x40xf32> -> vector<40x40xf32>
    %cst_94 = arith.constant -1.000000e+09 : f32
    %326 = vector.broadcast %cst_94 : f32 to vector<40x40xf32>
    %327 = arith.select %34, %325, %326 : vector<40x40xi1>, vector<40x40xf32>
    %cst_95 = arith.constant dense<0xFF800000> : vector<40xf32>
    %328 = vector.multi_reduction <maximumf>, %327, %cst_95 [1] : vector<40x40xf32> to vector<40xf32>
    %329 = vector.shape_cast %328 : vector<40xf32> to vector<40x1xf32>
    %330 = vector.broadcast %329 : vector<40x1xf32> to vector<40x40xf32>
    %331 = arith.subf %327, %330 : vector<40x40xf32>
    %332 = math.exp %331 : vector<40x40xf32>
    %cst_96 = arith.constant dense<0.000000e+00> : vector<40xf32>
    %333 = vector.multi_reduction <add>, %332, %cst_96 [1] : vector<40x40xf32> to vector<40xf32>
    %334 = vector.shape_cast %333 : vector<40xf32> to vector<40x1xf32>
    %335 = tpu.reciprocal %334 {approx = true} : vector<40x1xf32> -> vector<40x1xf32>
    %336 = vector.broadcast %335 : vector<40x1xf32> to vector<40x40xf32>
    %337 = arith.mulf %332, %336 : vector<40x40xf32>
    %338 = arith.truncf %337 : vector<40x40xf32> to vector<40x40xbf16>
    %339 = arith.truncf %321 : vector<40x8xf32> to vector<40x8xbf16>
    %cst_97 = arith.constant dense<0.000000e+00> : vector<40x8xf32>
    %340 = tpu.matmul %338, %339, %cst_97 {dimension_numbers = #tpu.dot_dimension_numbers<[1], [0], [0], [1], [0, 0, 1, 1], [], []>} : vector<40x40xbf16>, vector<40x8xbf16>, vector<40x8xf32> -> vector<40x8xf32>
    %341 = tpu.concatenate %274, %296, %318, %340 in 1 : vector<40x8xf32>, vector<40x8xf32>, vector<40x8xf32>, vector<40x8xf32> -> vector<40x32xf32>
    %342 = arith.truncf %341 : vector<40x32xf32> to vector<40x32xbf16>
    %cst_98 = arith.constant dense<0.000000e+00> : vector<40x32xf32>
    %343 = tpu.matmul %342, %247, %cst_98 {dimension_numbers = #tpu.dot_dimension_numbers<[1], [0], [0], [1], [0, 0, 1, 1], [], []>} : vector<40x32xbf16>, vector<32x32xbf16>, vector<40x32xf32> -> vector<40x32xf32>
    %344 = vector.broadcast %248 : vector<1x32xf32> to vector<40x32xf32>
    %345 = arith.addf %343, %344 : vector<40x32xf32>
    %346 = arith.addf %216, %345 : vector<40x32xf32>
    %347 = vector.extract_strided_slice %218 {offsets = [2, 0], sizes = [1, 32], strides = [1, 1]} : vector<8x128xf32> to vector<1x32xf32>
    %348 = vector.extract_strided_slice %218 {offsets = [3, 0], sizes = [1, 32], strides = [1, 1]} : vector<8x128xf32> to vector<1x32xf32>
    %cst_99 = arith.constant dense<0.000000e+00> : vector<40xf32>
    %349 = vector.multi_reduction <add>, %346, %cst_99 [1] : vector<40x32xf32> to vector<40xf32>
    %350 = vector.shape_cast %349 : vector<40xf32> to vector<40x1xf32>
    %cst_100 = arith.constant 3.200000e+01 : f32
    %351 = vector.broadcast %cst_100 : f32 to vector<40x1xf32>
    %352 = arith.divf %350, %351 : vector<40x1xf32>
    %353 = vector.broadcast %352 : vector<40x1xf32> to vector<40x32xf32>
    %354 = arith.subf %346, %353 : vector<40x32xf32>
    %355 = arith.mulf %354, %354 : vector<40x32xf32>
    %cst_101 = arith.constant dense<0.000000e+00> : vector<40xf32>
    %356 = vector.multi_reduction <add>, %355, %cst_101 [1] : vector<40x32xf32> to vector<40xf32>
    %357 = vector.shape_cast %356 : vector<40xf32> to vector<40x1xf32>
    %cst_102 = arith.constant 3.200000e+01 : f32
    %358 = vector.broadcast %cst_102 : f32 to vector<40x1xf32>
    %359 = arith.divf %357, %358 : vector<40x1xf32>
    %360 = vector.broadcast %352 : vector<40x1xf32> to vector<40x32xf32>
    %361 = arith.subf %346, %360 : vector<40x32xf32>
    %cst_103 = arith.constant 9.99999997E-7 : f32
    %362 = vector.broadcast %cst_103 : f32 to vector<40x1xf32>
    %363 = arith.addf %359, %362 : vector<40x1xf32>
    %364 = math.rsqrt %363 : vector<40x1xf32>
    %365 = vector.broadcast %364 : vector<40x1xf32> to vector<40x32xf32>
    %366 = arith.mulf %361, %365 : vector<40x32xf32>
    %367 = vector.broadcast %347 : vector<1x32xf32> to vector<40x32xf32>
    %368 = arith.mulf %366, %367 : vector<40x32xf32>
    %369 = vector.broadcast %348 : vector<1x32xf32> to vector<40x32xf32>
    %370 = arith.addf %368, %369 : vector<40x32xf32>
    %c1_104 = arith.constant 1 : index
    %c0_105 = arith.constant 0 : index
    %c0_106 = arith.constant 0 : index
    %371 = vector.load %arg6[%c1_104, %c0_105, %c0_106] : memref<2x32x128xbf16, #tpu.memory_space<vmem>>, vector<1x32x128xbf16>
    %372 = vector.shape_cast %371 : vector<1x32x128xbf16> to vector<32x128xbf16>
    %373 = arith.truncf %370 : vector<40x32xf32> to vector<40x32xbf16>
    %cst_107 = arith.constant dense<0.000000e+00> : vector<40x128xf32>
    %374 = tpu.matmul %373, %372, %cst_107 {dimension_numbers = #tpu.dot_dimension_numbers<[1], [0], [0], [1], [0, 0, 1, 1], [], []>} : vector<40x32xbf16>, vector<32x128xbf16>, vector<40x128xf32> -> vector<40x128xf32>
    %375 = vector.extract_strided_slice %218 {offsets = [6, 0], sizes = [1, 128], strides = [1, 1]} : vector<8x128xf32> to vector<1x128xf32>
    %376 = vector.broadcast %375 : vector<1x128xf32> to vector<40x128xf32>
    %377 = arith.addf %374, %376 : vector<40x128xf32>
    %cst_108 = arith.constant 5.000000e-01 : f32
    %378 = vector.broadcast %cst_108 : f32 to vector<40x128xf32>
    %379 = arith.mulf %378, %377 : vector<40x128xf32>
    %cst_109 = arith.constant 4.471500e-02 : f32
    %380 = vector.broadcast %cst_109 : f32 to vector<40x128xf32>
    %381 = arith.mulf %380, %377 : vector<40x128xf32>
    %382 = arith.mulf %381, %377 : vector<40x128xf32>
    %383 = arith.mulf %382, %377 : vector<40x128xf32>
    %384 = arith.addf %377, %383 : vector<40x128xf32>
    %cst_110 = arith.constant 0.797884583 : f32
    %385 = vector.broadcast %cst_110 : f32 to vector<40x128xf32>
    %386 = arith.mulf %385, %384 : vector<40x128xf32>
    %387 = math.tanh %386 : vector<40x128xf32>
    %cst_111 = arith.constant 1.000000e+00 : f32
    %388 = vector.broadcast %cst_111 : f32 to vector<40x128xf32>
    %389 = arith.addf %388, %387 : vector<40x128xf32>
    %390 = arith.mulf %379, %389 : vector<40x128xf32>
    %c1_112 = arith.constant 1 : index
    %c0_113 = arith.constant 0 : index
    %c0_114 = arith.constant 0 : index
    %391 = vector.load %arg7[%c1_112, %c0_113, %c0_114] : memref<2x128x32xbf16, #tpu.memory_space<vmem>>, vector<1x128x32xbf16>
    %392 = vector.shape_cast %391 : vector<1x128x32xbf16> to vector<128x32xbf16>
    %393 = arith.truncf %390 : vector<40x128xf32> to vector<40x128xbf16>
    %cst_115 = arith.constant dense<0.000000e+00> : vector<40x32xf32>
    %394 = tpu.matmul %393, %392, %cst_115 {dimension_numbers = #tpu.dot_dimension_numbers<[1], [0], [0], [1], [0, 0, 1, 1], [], []>} : vector<40x128xbf16>, vector<128x32xbf16>, vector<40x32xf32> -> vector<40x32xf32>
    %395 = arith.addf %346, %394 : vector<40x32xf32>
    %396 = vector.extract_strided_slice %218 {offsets = [7, 0], sizes = [1, 32], strides = [1, 1]} : vector<8x128xf32> to vector<1x32xf32>
    %397 = vector.broadcast %396 : vector<1x32xf32> to vector<40x32xf32>
    %398 = arith.addf %395, %397 : vector<40x32xf32>
    %399 = vector.extract_strided_slice %398 {offsets = [0, 0], sizes = [8, 32], strides = [1, 1]} : vector<40x32xf32> to vector<8x32xf32>
    %400 = vector.extract_strided_slice %0 {offsets = [42, 0], sizes = [1, 32], strides = [1, 1]} : vector<48x32xf32> to vector<1x32xf32>
    %401 = vector.extract_strided_slice %0 {offsets = [43, 0], sizes = [1, 32], strides = [1, 1]} : vector<48x32xf32> to vector<1x32xf32>
    %cst_116 = arith.constant dense<0.000000e+00> : vector<8xf32>
    %402 = vector.multi_reduction <add>, %399, %cst_116 [1] : vector<8x32xf32> to vector<8xf32>
    %403 = vector.shape_cast %402 : vector<8xf32> to vector<8x1xf32>
    %cst_117 = arith.constant 3.200000e+01 : f32
    %404 = vector.broadcast %cst_117 : f32 to vector<8x1xf32>
    %405 = arith.divf %403, %404 : vector<8x1xf32>
    %406 = vector.broadcast %405 : vector<8x1xf32> to vector<8x32xf32>
    %407 = arith.subf %399, %406 : vector<8x32xf32>
    %408 = arith.mulf %407, %407 : vector<8x32xf32>
    %cst_118 = arith.constant dense<0.000000e+00> : vector<8xf32>
    %409 = vector.multi_reduction <add>, %408, %cst_118 [1] : vector<8x32xf32> to vector<8xf32>
    %410 = vector.shape_cast %409 : vector<8xf32> to vector<8x1xf32>
    %cst_119 = arith.constant 3.200000e+01 : f32
    %411 = vector.broadcast %cst_119 : f32 to vector<8x1xf32>
    %412 = arith.divf %410, %411 : vector<8x1xf32>
    %413 = vector.broadcast %405 : vector<8x1xf32> to vector<8x32xf32>
    %414 = arith.subf %399, %413 : vector<8x32xf32>
    %cst_120 = arith.constant 9.99999997E-7 : f32
    %415 = vector.broadcast %cst_120 : f32 to vector<8x1xf32>
    %416 = arith.addf %412, %415 : vector<8x1xf32>
    %417 = math.rsqrt %416 : vector<8x1xf32>
    %418 = vector.broadcast %417 : vector<8x1xf32> to vector<8x32xf32>
    %419 = arith.mulf %414, %418 : vector<8x32xf32>
    %420 = vector.broadcast %400 : vector<1x32xf32> to vector<8x32xf32>
    %421 = arith.mulf %419, %420 : vector<8x32xf32>
    %422 = vector.broadcast %401 : vector<1x32xf32> to vector<8x32xf32>
    %423 = arith.addf %421, %422 : vector<8x32xf32>
    %424 = vector.extract_strided_slice %0 {offsets = [32, 0], sizes = [8, 32], strides = [1, 1]} : vector<48x32xf32> to vector<8x32xf32>
    %425 = arith.addf %423, %424 : vector<8x32xf32>
    %c0_121 = arith.constant 0 : index
    %c0_122 = arith.constant 0 : index
    %c0_123 = arith.constant 0 : index
    %426 = vector.load %arg11[%c0_121, %c0_122, %c0_123] : memref<2x1x128xf32, #tpu.memory_space<vmem>>, vector<1x1x128xf32>
    %427 = vector.shape_cast %426 : vector<1x1x128xf32> to vector<1x128xf32>
    %c0_124 = arith.constant 0 : index
    %c0_125 = arith.constant 0 : index
    %c0_126 = arith.constant 0 : index
    %428 = vector.load %arg9[%c0_124, %c0_125, %c0_126] : memref<2x32x96xbf16, #tpu.memory_space<vmem>>, vector<1x32x96xbf16>
    %429 = vector.shape_cast %428 : vector<1x32x96xbf16> to vector<32x96xbf16>
    %430 = vector.extract_strided_slice %427 {offsets = [0, 0], sizes = [1, 96], strides = [1, 1]} : vector<1x128xf32> to vector<1x96xf32>
    %c0_127 = arith.constant 0 : index
    %c0_128 = arith.constant 0 : index
    %c0_129 = arith.constant 0 : index
    %431 = vector.load %arg10[%c0_127, %c0_128, %c0_129] : memref<2x32x32xbf16, #tpu.memory_space<vmem>>, vector<1x32x32xbf16>
    %432 = vector.shape_cast %431 : vector<1x32x32xbf16> to vector<32x32xbf16>
    %433 = vector.extract_strided_slice %427 {offsets = [0, 96], sizes = [1, 32], strides = [1, 1]} : vector<1x128xf32> to vector<1x32xf32>
    %434 = arith.truncf %425 : vector<8x32xf32> to vector<8x32xbf16>
    %cst_130 = arith.constant dense<0.000000e+00> : vector<8x96xf32>
    %435 = tpu.matmul %434, %429, %cst_130 {dimension_numbers = #tpu.dot_dimension_numbers<[1], [0], [0], [1], [0, 0, 1, 1], [], []>} : vector<8x32xbf16>, vector<32x96xbf16>, vector<8x96xf32> -> vector<8x96xf32>
    %436 = vector.broadcast %430 : vector<1x96xf32> to vector<8x96xf32>
    %437 = arith.addf %435, %436 : vector<8x96xf32>
    %438 = vector.extract_strided_slice %437 {offsets = [0, 0], sizes = [8, 8], strides = [1, 1]} : vector<8x96xf32> to vector<8x8xf32>
    %439 = vector.extract_strided_slice %437 {offsets = [0, 32], sizes = [8, 8], strides = [1, 1]} : vector<8x96xf32> to vector<8x8xf32>
    %440 = vector.extract_strided_slice %437 {offsets = [0, 64], sizes = [8, 8], strides = [1, 1]} : vector<8x96xf32> to vector<8x8xf32>
    %441 = tpu.transpose %439, [1, 0] : vector<8x8xf32> -> vector<8x8xf32>
    %442 = arith.truncf %438 : vector<8x8xf32> to vector<8x8xbf16>
    %443 = arith.truncf %441 : vector<8x8xf32> to vector<8x8xbf16>
    %cst_131 = arith.constant dense<0.000000e+00> : vector<8x8xf32>
    %444 = tpu.matmul %442, %443, %cst_131 {dimension_numbers = #tpu.dot_dimension_numbers<[1], [0], [0], [1], [0, 0, 1, 1], [], []>} : vector<8x8xbf16>, vector<8x8xbf16>, vector<8x8xf32> -> vector<8x8xf32>
    %cst_132 = arith.constant dense<0xFF800000> : vector<8xf32>
    %445 = vector.multi_reduction <maximumf>, %444, %cst_132 [1] : vector<8x8xf32> to vector<8xf32>
    %446 = vector.shape_cast %445 : vector<8xf32> to vector<8x1xf32>
    %447 = vector.broadcast %446 : vector<8x1xf32> to vector<8x8xf32>
    %448 = arith.subf %444, %447 : vector<8x8xf32>
    %449 = math.exp %448 : vector<8x8xf32>
    %cst_133 = arith.constant dense<0.000000e+00> : vector<8xf32>
    %450 = vector.multi_reduction <add>, %449, %cst_133 [1] : vector<8x8xf32> to vector<8xf32>
    %451 = vector.shape_cast %450 : vector<8xf32> to vector<8x1xf32>
    %452 = tpu.reciprocal %451 {approx = true} : vector<8x1xf32> -> vector<8x1xf32>
    %453 = vector.broadcast %452 : vector<8x1xf32> to vector<8x8xf32>
    %454 = arith.mulf %449, %453 : vector<8x8xf32>
    %455 = arith.truncf %454 : vector<8x8xf32> to vector<8x8xbf16>
    %456 = arith.truncf %440 : vector<8x8xf32> to vector<8x8xbf16>
    %cst_134 = arith.constant dense<0.000000e+00> : vector<8x8xf32>
    %457 = tpu.matmul %455, %456, %cst_134 {dimension_numbers = #tpu.dot_dimension_numbers<[1], [0], [0], [1], [0, 0, 1, 1], [], []>} : vector<8x8xbf16>, vector<8x8xbf16>, vector<8x8xf32> -> vector<8x8xf32>
    %458 = vector.extract_strided_slice %437 {offsets = [0, 8], sizes = [8, 8], strides = [1, 1]} : vector<8x96xf32> to vector<8x8xf32>
    %459 = vector.extract_strided_slice %437 {offsets = [0, 40], sizes = [8, 8], strides = [1, 1]} : vector<8x96xf32> to vector<8x8xf32>
    %460 = vector.extract_strided_slice %437 {offsets = [0, 72], sizes = [8, 8], strides = [1, 1]} : vector<8x96xf32> to vector<8x8xf32>
    %461 = tpu.transpose %459, [1, 0] : vector<8x8xf32> -> vector<8x8xf32>
    %462 = arith.truncf %458 : vector<8x8xf32> to vector<8x8xbf16>
    %463 = arith.truncf %461 : vector<8x8xf32> to vector<8x8xbf16>
    %cst_135 = arith.constant dense<0.000000e+00> : vector<8x8xf32>
    %464 = tpu.matmul %462, %463, %cst_135 {dimension_numbers = #tpu.dot_dimension_numbers<[1], [0], [0], [1], [0, 0, 1, 1], [], []>} : vector<8x8xbf16>, vector<8x8xbf16>, vector<8x8xf32> -> vector<8x8xf32>
    %cst_136 = arith.constant dense<0xFF800000> : vector<8xf32>
    %465 = vector.multi_reduction <maximumf>, %464, %cst_136 [1] : vector<8x8xf32> to vector<8xf32>
    %466 = vector.shape_cast %465 : vector<8xf32> to vector<8x1xf32>
    %467 = vector.broadcast %466 : vector<8x1xf32> to vector<8x8xf32>
    %468 = arith.subf %464, %467 : vector<8x8xf32>
    %469 = math.exp %468 : vector<8x8xf32>
    %cst_137 = arith.constant dense<0.000000e+00> : vector<8xf32>
    %470 = vector.multi_reduction <add>, %469, %cst_137 [1] : vector<8x8xf32> to vector<8xf32>
    %471 = vector.shape_cast %470 : vector<8xf32> to vector<8x1xf32>
    %472 = tpu.reciprocal %471 {approx = true} : vector<8x1xf32> -> vector<8x1xf32>
    %473 = vector.broadcast %472 : vector<8x1xf32> to vector<8x8xf32>
    %474 = arith.mulf %469, %473 : vector<8x8xf32>
    %475 = arith.truncf %474 : vector<8x8xf32> to vector<8x8xbf16>
    %476 = arith.truncf %460 : vector<8x8xf32> to vector<8x8xbf16>
    %cst_138 = arith.constant dense<0.000000e+00> : vector<8x8xf32>
    %477 = tpu.matmul %475, %476, %cst_138 {dimension_numbers = #tpu.dot_dimension_numbers<[1], [0], [0], [1], [0, 0, 1, 1], [], []>} : vector<8x8xbf16>, vector<8x8xbf16>, vector<8x8xf32> -> vector<8x8xf32>
    %478 = vector.extract_strided_slice %437 {offsets = [0, 16], sizes = [8, 8], strides = [1, 1]} : vector<8x96xf32> to vector<8x8xf32>
    %479 = vector.extract_strided_slice %437 {offsets = [0, 48], sizes = [8, 8], strides = [1, 1]} : vector<8x96xf32> to vector<8x8xf32>
    %480 = vector.extract_strided_slice %437 {offsets = [0, 80], sizes = [8, 8], strides = [1, 1]} : vector<8x96xf32> to vector<8x8xf32>
    %481 = tpu.transpose %479, [1, 0] : vector<8x8xf32> -> vector<8x8xf32>
    %482 = arith.truncf %478 : vector<8x8xf32> to vector<8x8xbf16>
    %483 = arith.truncf %481 : vector<8x8xf32> to vector<8x8xbf16>
    %cst_139 = arith.constant dense<0.000000e+00> : vector<8x8xf32>
    %484 = tpu.matmul %482, %483, %cst_139 {dimension_numbers = #tpu.dot_dimension_numbers<[1], [0], [0], [1], [0, 0, 1, 1], [], []>} : vector<8x8xbf16>, vector<8x8xbf16>, vector<8x8xf32> -> vector<8x8xf32>
    %cst_140 = arith.constant dense<0xFF800000> : vector<8xf32>
    %485 = vector.multi_reduction <maximumf>, %484, %cst_140 [1] : vector<8x8xf32> to vector<8xf32>
    %486 = vector.shape_cast %485 : vector<8xf32> to vector<8x1xf32>
    %487 = vector.broadcast %486 : vector<8x1xf32> to vector<8x8xf32>
    %488 = arith.subf %484, %487 : vector<8x8xf32>
    %489 = math.exp %488 : vector<8x8xf32>
    %cst_141 = arith.constant dense<0.000000e+00> : vector<8xf32>
    %490 = vector.multi_reduction <add>, %489, %cst_141 [1] : vector<8x8xf32> to vector<8xf32>
    %491 = vector.shape_cast %490 : vector<8xf32> to vector<8x1xf32>
    %492 = tpu.reciprocal %491 {approx = true} : vector<8x1xf32> -> vector<8x1xf32>
    %493 = vector.broadcast %492 : vector<8x1xf32> to vector<8x8xf32>
    %494 = arith.mulf %489, %493 : vector<8x8xf32>
    %495 = arith.truncf %494 : vector<8x8xf32> to vector<8x8xbf16>
    %496 = arith.truncf %480 : vector<8x8xf32> to vector<8x8xbf16>
    %cst_142 = arith.constant dense<0.000000e+00> : vector<8x8xf32>
    %497 = tpu.matmul %495, %496, %cst_142 {dimension_numbers = #tpu.dot_dimension_numbers<[1], [0], [0], [1], [0, 0, 1, 1], [], []>} : vector<8x8xbf16>, vector<8x8xbf16>, vector<8x8xf32> -> vector<8x8xf32>
    %498 = vector.extract_strided_slice %437 {offsets = [0, 24], sizes = [8, 8], strides = [1, 1]} : vector<8x96xf32> to vector<8x8xf32>
    %499 = vector.extract_strided_slice %437 {offsets = [0, 56], sizes = [8, 8], strides = [1, 1]} : vector<8x96xf32> to vector<8x8xf32>
    %500 = vector.extract_strided_slice %437 {offsets = [0, 88], sizes = [8, 8], strides = [1, 1]} : vector<8x96xf32> to vector<8x8xf32>
    %501 = tpu.transpose %499, [1, 0] : vector<8x8xf32> -> vector<8x8xf32>
    %502 = arith.truncf %498 : vector<8x8xf32> to vector<8x8xbf16>
    %503 = arith.truncf %501 : vector<8x8xf32> to vector<8x8xbf16>
    %cst_143 = arith.constant dense<0.000000e+00> : vector<8x8xf32>
    %504 = tpu.matmul %502, %503, %cst_143 {dimension_numbers = #tpu.dot_dimension_numbers<[1], [0], [0], [1], [0, 0, 1, 1], [], []>} : vector<8x8xbf16>, vector<8x8xbf16>, vector<8x8xf32> -> vector<8x8xf32>
    %cst_144 = arith.constant dense<0xFF800000> : vector<8xf32>
    %505 = vector.multi_reduction <maximumf>, %504, %cst_144 [1] : vector<8x8xf32> to vector<8xf32>
    %506 = vector.shape_cast %505 : vector<8xf32> to vector<8x1xf32>
    %507 = vector.broadcast %506 : vector<8x1xf32> to vector<8x8xf32>
    %508 = arith.subf %504, %507 : vector<8x8xf32>
    %509 = math.exp %508 : vector<8x8xf32>
    %cst_145 = arith.constant dense<0.000000e+00> : vector<8xf32>
    %510 = vector.multi_reduction <add>, %509, %cst_145 [1] : vector<8x8xf32> to vector<8xf32>
    %511 = vector.shape_cast %510 : vector<8xf32> to vector<8x1xf32>
    %512 = tpu.reciprocal %511 {approx = true} : vector<8x1xf32> -> vector<8x1xf32>
    %513 = vector.broadcast %512 : vector<8x1xf32> to vector<8x8xf32>
    %514 = arith.mulf %509, %513 : vector<8x8xf32>
    %515 = arith.truncf %514 : vector<8x8xf32> to vector<8x8xbf16>
    %516 = arith.truncf %500 : vector<8x8xf32> to vector<8x8xbf16>
    %cst_146 = arith.constant dense<0.000000e+00> : vector<8x8xf32>
    %517 = tpu.matmul %515, %516, %cst_146 {dimension_numbers = #tpu.dot_dimension_numbers<[1], [0], [0], [1], [0, 0, 1, 1], [], []>} : vector<8x8xbf16>, vector<8x8xbf16>, vector<8x8xf32> -> vector<8x8xf32>
    %518 = tpu.concatenate %457, %477, %497, %517 in 1 : vector<8x8xf32>, vector<8x8xf32>, vector<8x8xf32>, vector<8x8xf32> -> vector<8x32xf32>
    %519 = arith.truncf %518 : vector<8x32xf32> to vector<8x32xbf16>
    %cst_147 = arith.constant dense<0.000000e+00> : vector<8x32xf32>
    %520 = tpu.matmul %519, %432, %cst_147 {dimension_numbers = #tpu.dot_dimension_numbers<[1], [0], [0], [1], [0, 0, 1, 1], [], []>} : vector<8x32xbf16>, vector<32x32xbf16>, vector<8x32xf32> -> vector<8x32xf32>
    %521 = vector.broadcast %433 : vector<1x32xf32> to vector<8x32xf32>
    %522 = arith.addf %520, %521 : vector<8x32xf32>
    %523 = arith.addf %425, %522 : vector<8x32xf32>
    %c1_148 = arith.constant 1 : index
    %c0_149 = arith.constant 0 : index
    %c0_150 = arith.constant 0 : index
    %524 = vector.load %arg11[%c1_148, %c0_149, %c0_150] : memref<2x1x128xf32, #tpu.memory_space<vmem>>, vector<1x1x128xf32>
    %525 = vector.shape_cast %524 : vector<1x1x128xf32> to vector<1x128xf32>
    %c1_151 = arith.constant 1 : index
    %c0_152 = arith.constant 0 : index
    %c0_153 = arith.constant 0 : index
    %526 = vector.load %arg9[%c1_151, %c0_152, %c0_153] : memref<2x32x96xbf16, #tpu.memory_space<vmem>>, vector<1x32x96xbf16>
    %527 = vector.shape_cast %526 : vector<1x32x96xbf16> to vector<32x96xbf16>
    %528 = vector.extract_strided_slice %525 {offsets = [0, 0], sizes = [1, 96], strides = [1, 1]} : vector<1x128xf32> to vector<1x96xf32>
    %c1_154 = arith.constant 1 : index
    %c0_155 = arith.constant 0 : index
    %c0_156 = arith.constant 0 : index
    %529 = vector.load %arg10[%c1_154, %c0_155, %c0_156] : memref<2x32x32xbf16, #tpu.memory_space<vmem>>, vector<1x32x32xbf16>
    %530 = vector.shape_cast %529 : vector<1x32x32xbf16> to vector<32x32xbf16>
    %531 = vector.extract_strided_slice %525 {offsets = [0, 96], sizes = [1, 32], strides = [1, 1]} : vector<1x128xf32> to vector<1x32xf32>
    %532 = arith.truncf %523 : vector<8x32xf32> to vector<8x32xbf16>
    %cst_157 = arith.constant dense<0.000000e+00> : vector<8x96xf32>
    %533 = tpu.matmul %532, %527, %cst_157 {dimension_numbers = #tpu.dot_dimension_numbers<[1], [0], [0], [1], [0, 0, 1, 1], [], []>} : vector<8x32xbf16>, vector<32x96xbf16>, vector<8x96xf32> -> vector<8x96xf32>
    %534 = vector.broadcast %528 : vector<1x96xf32> to vector<8x96xf32>
    %535 = arith.addf %533, %534 : vector<8x96xf32>
    %536 = vector.extract_strided_slice %535 {offsets = [0, 0], sizes = [8, 8], strides = [1, 1]} : vector<8x96xf32> to vector<8x8xf32>
    %537 = vector.extract_strided_slice %535 {offsets = [0, 32], sizes = [8, 8], strides = [1, 1]} : vector<8x96xf32> to vector<8x8xf32>
    %538 = vector.extract_strided_slice %535 {offsets = [0, 64], sizes = [8, 8], strides = [1, 1]} : vector<8x96xf32> to vector<8x8xf32>
    %539 = tpu.transpose %537, [1, 0] : vector<8x8xf32> -> vector<8x8xf32>
    %540 = arith.truncf %536 : vector<8x8xf32> to vector<8x8xbf16>
    %541 = arith.truncf %539 : vector<8x8xf32> to vector<8x8xbf16>
    %cst_158 = arith.constant dense<0.000000e+00> : vector<8x8xf32>
    %542 = tpu.matmul %540, %541, %cst_158 {dimension_numbers = #tpu.dot_dimension_numbers<[1], [0], [0], [1], [0, 0, 1, 1], [], []>} : vector<8x8xbf16>, vector<8x8xbf16>, vector<8x8xf32> -> vector<8x8xf32>
    %cst_159 = arith.constant dense<0xFF800000> : vector<8xf32>
    %543 = vector.multi_reduction <maximumf>, %542, %cst_159 [1] : vector<8x8xf32> to vector<8xf32>
    %544 = vector.shape_cast %543 : vector<8xf32> to vector<8x1xf32>
    %545 = vector.broadcast %544 : vector<8x1xf32> to vector<8x8xf32>
    %546 = arith.subf %542, %545 : vector<8x8xf32>
    %547 = math.exp %546 : vector<8x8xf32>
    %cst_160 = arith.constant dense<0.000000e+00> : vector<8xf32>
    %548 = vector.multi_reduction <add>, %547, %cst_160 [1] : vector<8x8xf32> to vector<8xf32>
    %549 = vector.shape_cast %548 : vector<8xf32> to vector<8x1xf32>
    %550 = tpu.reciprocal %549 {approx = true} : vector<8x1xf32> -> vector<8x1xf32>
    %551 = vector.broadcast %550 : vector<8x1xf32> to vector<8x8xf32>
    %552 = arith.mulf %547, %551 : vector<8x8xf32>
    %553 = arith.truncf %552 : vector<8x8xf32> to vector<8x8xbf16>
    %554 = arith.truncf %538 : vector<8x8xf32> to vector<8x8xbf16>
    %cst_161 = arith.constant dense<0.000000e+00> : vector<8x8xf32>
    %555 = tpu.matmul %553, %554, %cst_161 {dimension_numbers = #tpu.dot_dimension_numbers<[1], [0], [0], [1], [0, 0, 1, 1], [], []>} : vector<8x8xbf16>, vector<8x8xbf16>, vector<8x8xf32> -> vector<8x8xf32>
    %556 = vector.extract_strided_slice %535 {offsets = [0, 8], sizes = [8, 8], strides = [1, 1]} : vector<8x96xf32> to vector<8x8xf32>
    %557 = vector.extract_strided_slice %535 {offsets = [0, 40], sizes = [8, 8], strides = [1, 1]} : vector<8x96xf32> to vector<8x8xf32>
    %558 = vector.extract_strided_slice %535 {offsets = [0, 72], sizes = [8, 8], strides = [1, 1]} : vector<8x96xf32> to vector<8x8xf32>
    %559 = tpu.transpose %557, [1, 0] : vector<8x8xf32> -> vector<8x8xf32>
    %560 = arith.truncf %556 : vector<8x8xf32> to vector<8x8xbf16>
    %561 = arith.truncf %559 : vector<8x8xf32> to vector<8x8xbf16>
    %cst_162 = arith.constant dense<0.000000e+00> : vector<8x8xf32>
    %562 = tpu.matmul %560, %561, %cst_162 {dimension_numbers = #tpu.dot_dimension_numbers<[1], [0], [0], [1], [0, 0, 1, 1], [], []>} : vector<8x8xbf16>, vector<8x8xbf16>, vector<8x8xf32> -> vector<8x8xf32>
    %cst_163 = arith.constant dense<0xFF800000> : vector<8xf32>
    %563 = vector.multi_reduction <maximumf>, %562, %cst_163 [1] : vector<8x8xf32> to vector<8xf32>
    %564 = vector.shape_cast %563 : vector<8xf32> to vector<8x1xf32>
    %565 = vector.broadcast %564 : vector<8x1xf32> to vector<8x8xf32>
    %566 = arith.subf %562, %565 : vector<8x8xf32>
    %567 = math.exp %566 : vector<8x8xf32>
    %cst_164 = arith.constant dense<0.000000e+00> : vector<8xf32>
    %568 = vector.multi_reduction <add>, %567, %cst_164 [1] : vector<8x8xf32> to vector<8xf32>
    %569 = vector.shape_cast %568 : vector<8xf32> to vector<8x1xf32>
    %570 = tpu.reciprocal %569 {approx = true} : vector<8x1xf32> -> vector<8x1xf32>
    %571 = vector.broadcast %570 : vector<8x1xf32> to vector<8x8xf32>
    %572 = arith.mulf %567, %571 : vector<8x8xf32>
    %573 = arith.truncf %572 : vector<8x8xf32> to vector<8x8xbf16>
    %574 = arith.truncf %558 : vector<8x8xf32> to vector<8x8xbf16>
    %cst_165 = arith.constant dense<0.000000e+00> : vector<8x8xf32>
    %575 = tpu.matmul %573, %574, %cst_165 {dimension_numbers = #tpu.dot_dimension_numbers<[1], [0], [0], [1], [0, 0, 1, 1], [], []>} : vector<8x8xbf16>, vector<8x8xbf16>, vector<8x8xf32> -> vector<8x8xf32>
    %576 = vector.extract_strided_slice %535 {offsets = [0, 16], sizes = [8, 8], strides = [1, 1]} : vector<8x96xf32> to vector<8x8xf32>
    %577 = vector.extract_strided_slice %535 {offsets = [0, 48], sizes = [8, 8], strides = [1, 1]} : vector<8x96xf32> to vector<8x8xf32>
    %578 = vector.extract_strided_slice %535 {offsets = [0, 80], sizes = [8, 8], strides = [1, 1]} : vector<8x96xf32> to vector<8x8xf32>
    %579 = tpu.transpose %577, [1, 0] : vector<8x8xf32> -> vector<8x8xf32>
    %580 = arith.truncf %576 : vector<8x8xf32> to vector<8x8xbf16>
    %581 = arith.truncf %579 : vector<8x8xf32> to vector<8x8xbf16>
    %cst_166 = arith.constant dense<0.000000e+00> : vector<8x8xf32>
    %582 = tpu.matmul %580, %581, %cst_166 {dimension_numbers = #tpu.dot_dimension_numbers<[1], [0], [0], [1], [0, 0, 1, 1], [], []>} : vector<8x8xbf16>, vector<8x8xbf16>, vector<8x8xf32> -> vector<8x8xf32>
    %cst_167 = arith.constant dense<0xFF800000> : vector<8xf32>
    %583 = vector.multi_reduction <maximumf>, %582, %cst_167 [1] : vector<8x8xf32> to vector<8xf32>
    %584 = vector.shape_cast %583 : vector<8xf32> to vector<8x1xf32>
    %585 = vector.broadcast %584 : vector<8x1xf32> to vector<8x8xf32>
    %586 = arith.subf %582, %585 : vector<8x8xf32>
    %587 = math.exp %586 : vector<8x8xf32>
    %cst_168 = arith.constant dense<0.000000e+00> : vector<8xf32>
    %588 = vector.multi_reduction <add>, %587, %cst_168 [1] : vector<8x8xf32> to vector<8xf32>
    %589 = vector.shape_cast %588 : vector<8xf32> to vector<8x1xf32>
    %590 = tpu.reciprocal %589 {approx = true} : vector<8x1xf32> -> vector<8x1xf32>
    %591 = vector.broadcast %590 : vector<8x1xf32> to vector<8x8xf32>
    %592 = arith.mulf %587, %591 : vector<8x8xf32>
    %593 = arith.truncf %592 : vector<8x8xf32> to vector<8x8xbf16>
    %594 = arith.truncf %578 : vector<8x8xf32> to vector<8x8xbf16>
    %cst_169 = arith.constant dense<0.000000e+00> : vector<8x8xf32>
    %595 = tpu.matmul %593, %594, %cst_169 {dimension_numbers = #tpu.dot_dimension_numbers<[1], [0], [0], [1], [0, 0, 1, 1], [], []>} : vector<8x8xbf16>, vector<8x8xbf16>, vector<8x8xf32> -> vector<8x8xf32>
    %596 = vector.extract_strided_slice %535 {offsets = [0, 24], sizes = [8, 8], strides = [1, 1]} : vector<8x96xf32> to vector<8x8xf32>
    %597 = vector.extract_strided_slice %535 {offsets = [0, 56], sizes = [8, 8], strides = [1, 1]} : vector<8x96xf32> to vector<8x8xf32>
    %598 = vector.extract_strided_slice %535 {offsets = [0, 88], sizes = [8, 8], strides = [1, 1]} : vector<8x96xf32> to vector<8x8xf32>
    %599 = tpu.transpose %597, [1, 0] : vector<8x8xf32> -> vector<8x8xf32>
    %600 = arith.truncf %596 : vector<8x8xf32> to vector<8x8xbf16>
    %601 = arith.truncf %599 : vector<8x8xf32> to vector<8x8xbf16>
    %cst_170 = arith.constant dense<0.000000e+00> : vector<8x8xf32>
    %602 = tpu.matmul %600, %601, %cst_170 {dimension_numbers = #tpu.dot_dimension_numbers<[1], [0], [0], [1], [0, 0, 1, 1], [], []>} : vector<8x8xbf16>, vector<8x8xbf16>, vector<8x8xf32> -> vector<8x8xf32>
    %cst_171 = arith.constant dense<0xFF800000> : vector<8xf32>
    %603 = vector.multi_reduction <maximumf>, %602, %cst_171 [1] : vector<8x8xf32> to vector<8xf32>
    %604 = vector.shape_cast %603 : vector<8xf32> to vector<8x1xf32>
    %605 = vector.broadcast %604 : vector<8x1xf32> to vector<8x8xf32>
    %606 = arith.subf %602, %605 : vector<8x8xf32>
    %607 = math.exp %606 : vector<8x8xf32>
    %cst_172 = arith.constant dense<0.000000e+00> : vector<8xf32>
    %608 = vector.multi_reduction <add>, %607, %cst_172 [1] : vector<8x8xf32> to vector<8xf32>
    %609 = vector.shape_cast %608 : vector<8xf32> to vector<8x1xf32>
    %610 = tpu.reciprocal %609 {approx = true} : vector<8x1xf32> -> vector<8x1xf32>
    %611 = vector.broadcast %610 : vector<8x1xf32> to vector<8x8xf32>
    %612 = arith.mulf %607, %611 : vector<8x8xf32>
    %613 = arith.truncf %612 : vector<8x8xf32> to vector<8x8xbf16>
    %614 = arith.truncf %598 : vector<8x8xf32> to vector<8x8xbf16>
    %cst_173 = arith.constant dense<0.000000e+00> : vector<8x8xf32>
    %615 = tpu.matmul %613, %614, %cst_173 {dimension_numbers = #tpu.dot_dimension_numbers<[1], [0], [0], [1], [0, 0, 1, 1], [], []>} : vector<8x8xbf16>, vector<8x8xbf16>, vector<8x8xf32> -> vector<8x8xf32>
    %616 = tpu.concatenate %555, %575, %595, %615 in 1 : vector<8x8xf32>, vector<8x8xf32>, vector<8x8xf32>, vector<8x8xf32> -> vector<8x32xf32>
    %617 = arith.truncf %616 : vector<8x32xf32> to vector<8x32xbf16>
    %cst_174 = arith.constant dense<0.000000e+00> : vector<8x32xf32>
    %618 = tpu.matmul %617, %530, %cst_174 {dimension_numbers = #tpu.dot_dimension_numbers<[1], [0], [0], [1], [0, 0, 1, 1], [], []>} : vector<8x32xbf16>, vector<32x32xbf16>, vector<8x32xf32> -> vector<8x32xf32>
    %619 = vector.broadcast %531 : vector<1x32xf32> to vector<8x32xf32>
    %620 = arith.addf %618, %619 : vector<8x32xf32>
    %621 = arith.addf %523, %620 : vector<8x32xf32>
    %c0_175 = arith.constant 0 : index
    %c0_176 = arith.constant 0 : index
    %622 = vector.load %arg14[%c0_175, %c0_176] : memref<8x256xf32, #tpu.memory_space<vmem>>, vector<8x256xf32>
    %c0_177 = arith.constant 0 : index
    %c0_178 = arith.constant 0 : index
    %623 = vector.load %arg12[%c0_177, %c0_178] : memref<32x256xbf16, #tpu.memory_space<vmem>>, vector<32x256xbf16>
    %624 = arith.truncf %621 : vector<8x32xf32> to vector<8x32xbf16>
    %cst_179 = arith.constant dense<0.000000e+00> : vector<8x256xf32>
    %625 = tpu.matmul %624, %623, %cst_179 {dimension_numbers = #tpu.dot_dimension_numbers<[1], [0], [0], [1], [0, 0, 1, 1], [], []>} : vector<8x32xbf16>, vector<32x256xbf16>, vector<8x256xf32> -> vector<8x256xf32>
    %626 = vector.extract_strided_slice %622 {offsets = [0, 0], sizes = [1, 256], strides = [1, 1]} : vector<8x256xf32> to vector<1x256xf32>
    %627 = vector.broadcast %626 : vector<1x256xf32> to vector<8x256xf32>
    %628 = arith.addf %625, %627 : vector<8x256xf32>
    %cst_180 = arith.constant 0.000000e+00 : f32
    %629 = vector.broadcast %cst_180 : f32 to vector<8x256xf32>
    %630 = arith.maximumf %628, %629 : vector<8x256xf32>
    %631 = vector.extract_strided_slice %622 {offsets = [1, 0], sizes = [1, 256], strides = [1, 1]} : vector<8x256xf32> to vector<1x256xf32>
    %632 = vector.broadcast %631 : vector<1x256xf32> to vector<8x256xf32>
    %633 = arith.mulf %630, %632 : vector<8x256xf32>
    %cst_181 = arith.constant dense<0.000000e+00> : vector<8xf32>
    %634 = vector.multi_reduction <add>, %633, %cst_181 [1] : vector<8x256xf32> to vector<8xf32>
    %635 = vector.shape_cast %634 : vector<8xf32> to vector<8x1xf32>
    %636 = vector.extract_strided_slice %622 {offsets = [4, 0], sizes = [1, 1], strides = [1, 1]} : vector<8x256xf32> to vector<1x1xf32>
    %637 = vector.broadcast %636 : vector<1x1xf32> to vector<8x1xf32>
    %638 = arith.addf %635, %637 : vector<8x1xf32>
    %c0_182 = arith.constant 0 : index
    %c0_183 = arith.constant 0 : index
    %639 = vector.load %arg13[%c0_182, %c0_183] : memref<8x64xf32, #tpu.memory_space<vmem>>, vector<8x64xf32>
    %640 = vector.broadcast %638 : vector<8x1xf32> to vector<8x64xf32>
    %641 = arith.mulf %640, %639 : vector<8x64xf32>
    %cst_184 = arith.constant dense<0.000000e+00> : vector<64xf32>
    %642 = vector.multi_reduction <add>, %641, %cst_184 [0] : vector<8x64xf32> to vector<64xf32>
    %643 = vector.shape_cast %642 : vector<64xf32> to vector<1x64xf32>
    %644 = vector.extract_strided_slice %622 {offsets = [2, 0], sizes = [1, 64], strides = [1, 1]} : vector<8x256xf32> to vector<1x64xf32>
    %645 = arith.addf %643, %644 : vector<1x64xf32>
    %cst_185 = arith.constant 0.000000e+00 : f32
    %646 = vector.broadcast %cst_185 : f32 to vector<1x64xf32>
    %647 = arith.maximumf %645, %646 : vector<1x64xf32>
    %648 = vector.extract_strided_slice %622 {offsets = [3, 0], sizes = [1, 64], strides = [1, 1]} : vector<8x256xf32> to vector<1x64xf32>
    %649 = arith.mulf %647, %648 : vector<1x64xf32>
    %cst_186 = arith.constant dense<0.000000e+00> : vector<1xf32>
    %650 = vector.multi_reduction <add>, %649, %cst_186 [1] : vector<1x64xf32> to vector<1xf32>
    %651 = vector.shape_cast %650 : vector<1xf32> to vector<1x1xf32>
    %652 = vector.extract_strided_slice %622 {offsets = [4, 1], sizes = [1, 1], strides = [1, 1]} : vector<8x256xf32> to vector<1x1xf32>
    %653 = arith.addf %651, %652 : vector<1x1xf32>
    %654 = arith.negf %653 : vector<1x1xf32>
    %655 = math.exp %654 : vector<1x1xf32>
    %cst_187 = arith.constant 1.000000e+00 : f32
    %656 = vector.broadcast %cst_187 : f32 to vector<1x1xf32>
    %657 = arith.addf %656, %655 : vector<1x1xf32>
    %658 = arith.divf %656, %657 : vector<1x1xf32>
    %c0_188 = arith.constant 0 : index
    %c0_189 = arith.constant 0 : index
    %c0_190 = arith.constant 0 : index
    %659 = vector.load %arg15[%c0_188, %c0_189, %c0_190] : memref<1x1x1xf32, #tpu.memory_space<vmem>>, vector<1x1x1xf32>
    %660 = vector.shape_cast %659 : vector<1x1x1xf32> to vector<1x1xf32>
    %661 = vector.shape_cast %658 : vector<1x1xf32> to vector<1x1x1xf32>
    tpu.vector_store %arg15[%c0_188, %c0_189, %c0_190], %661 {strides = array<i32>} : memref<1x1x1xf32, #tpu.memory_space<vmem>>, vector<1x1x1xf32>,
    return
  }
  func.func @transform_0(%arg0: i32) -> (i32, i32, i32) {
    %c0_i32 = arith.constant 0 : i32
    %c0_i32_0 = arith.constant 0 : i32
    %c0_i32_1 = arith.constant 0 : i32
    return %arg0, %c0_i32, %c0_i32_0 : i32, i32, i32
  }
  func.func @transform_1(%arg0: i32) -> (i32, i32) {
    %c0_i32 = arith.constant 0 : i32
    %c0_i32_0 = arith.constant 0 : i32
    %c0_i32_1 = arith.constant 0 : i32
    return %c0_i32, %c0_i32_0 : i32, i32
  }
  func.func @transform_2(%arg0: i32) -> (i32, i32) {
    %c0_i32 = arith.constant 0 : i32
    %c0_i32_0 = arith.constant 0 : i32
    %c0_i32_1 = arith.constant 0 : i32
    return %c0_i32, %c0_i32_0 : i32, i32
  }
  func.func @transform_3(%arg0: i32) -> (i32, i32, i32) {
    %c0_i32 = arith.constant 0 : i32
    %c0_i32_0 = arith.constant 0 : i32
    %c0_i32_1 = arith.constant 0 : i32
    %c0_i32_2 = arith.constant 0 : i32
    return %c0_i32, %c0_i32_0, %c0_i32_1 : i32, i32, i32
  }
  func.func @transform_4(%arg0: i32) -> (i32, i32, i32) {
    %c0_i32 = arith.constant 0 : i32
    %c0_i32_0 = arith.constant 0 : i32
    %c0_i32_1 = arith.constant 0 : i32
    %c0_i32_2 = arith.constant 0 : i32
    return %c0_i32, %c0_i32_0, %c0_i32_1 : i32, i32, i32
  }
  func.func @transform_5(%arg0: i32) -> (i32, i32, i32) {
    %c0_i32 = arith.constant 0 : i32
    %c0_i32_0 = arith.constant 0 : i32
    %c0_i32_1 = arith.constant 0 : i32
    %c0_i32_2 = arith.constant 0 : i32
    return %c0_i32, %c0_i32_0, %c0_i32_1 : i32, i32, i32
  }
  func.func @transform_6(%arg0: i32) -> (i32, i32, i32) {
    %c0_i32 = arith.constant 0 : i32
    %c0_i32_0 = arith.constant 0 : i32
    %c0_i32_1 = arith.constant 0 : i32
    %c0_i32_2 = arith.constant 0 : i32
    return %c0_i32, %c0_i32_0, %c0_i32_1 : i32, i32, i32
  }
  func.func @transform_7(%arg0: i32) -> (i32, i32, i32) {
    %c0_i32 = arith.constant 0 : i32
    %c0_i32_0 = arith.constant 0 : i32
    %c0_i32_1 = arith.constant 0 : i32
    %c0_i32_2 = arith.constant 0 : i32
    return %c0_i32, %c0_i32_0, %c0_i32_1 : i32, i32, i32
  }
  func.func @transform_8(%arg0: i32) -> (i32, i32, i32) {
    %c0_i32 = arith.constant 0 : i32
    %c0_i32_0 = arith.constant 0 : i32
    %c0_i32_1 = arith.constant 0 : i32
    %c0_i32_2 = arith.constant 0 : i32
    return %c0_i32, %c0_i32_0, %c0_i32_1 : i32, i32, i32
  }
  func.func @transform_9(%arg0: i32) -> (i32, i32, i32) {
    %c0_i32 = arith.constant 0 : i32
    %c0_i32_0 = arith.constant 0 : i32
    %c0_i32_1 = arith.constant 0 : i32
    %c0_i32_2 = arith.constant 0 : i32
    return %c0_i32, %c0_i32_0, %c0_i32_1 : i32, i32, i32
  }
  func.func @transform_10(%arg0: i32) -> (i32, i32, i32) {
    %c0_i32 = arith.constant 0 : i32
    %c0_i32_0 = arith.constant 0 : i32
    %c0_i32_1 = arith.constant 0 : i32
    %c0_i32_2 = arith.constant 0 : i32
    return %c0_i32, %c0_i32_0, %c0_i32_1 : i32, i32, i32
  }
  func.func @transform_11(%arg0: i32) -> (i32, i32) {
    %c0_i32 = arith.constant 0 : i32
    %c0_i32_0 = arith.constant 0 : i32
    %c0_i32_1 = arith.constant 0 : i32
    return %c0_i32, %c0_i32_0 : i32, i32
  }
  func.func @transform_12(%arg0: i32) -> (i32, i32) {
    %c0_i32 = arith.constant 0 : i32
    %c0_i32_0 = arith.constant 0 : i32
    %c0_i32_1 = arith.constant 0 : i32
    return %c0_i32, %c0_i32_0 : i32, i32
  }
  func.func @transform_13(%arg0: i32) -> (i32, i32) {
    %c0_i32 = arith.constant 0 : i32
    %c0_i32_0 = arith.constant 0 : i32
    %c0_i32_1 = arith.constant 0 : i32
    return %c0_i32, %c0_i32_0 : i32, i32
  }
  func.func @transform_14(%arg0: i32) -> (i32, i32, i32) {
    %c0_i32 = arith.constant 0 : i32
    %c0_i32_0 = arith.constant 0 : i32
    %c0_i32_1 = arith.constant 0 : i32
    return %arg0, %c0_i32, %c0_i32_0 : i32, i32, i32
  }
}

</mosaic_0001>

<llo_original>
// kernel: pallas_forward.1
$region0: #{pallas_forward.1}
  #allocation0 [shape = 'u32[]', space=smem, size = 0x4, offset = 0x4, fixed_abs, tag = 'smem constant byte address 0x4 - core index']
  #allocation1 [shape = 'u32[144,128]{1,0:T(1,128)}', space=vmem, size = 0x12000, scoped, tag = 'internal scratch']
  %s0 = inlined_call_operand.vmem [shape: bf16[2,32,192], index: 0, kind: input, shape index: {}]
  %s1 = inlined_call_operand.vmem [shape: bf16[192,32], index: 1, kind: input, shape index: {}]
  %s2 = inlined_call_operand.vmem [shape: f32[48,32], index: 2, kind: input, shape index: {}]
  %s3 = inlined_call_operand.vmem [shape: bf16[2,32,96], index: 3, kind: input, shape index: {}]
  %s4 = inlined_call_operand.vmem [shape: bf16[2,32,32], index: 4, kind: input, shape index: {}]
  %s5 = inlined_call_operand.vmem [shape: bf16[2,32,128], index: 5, kind: input, shape index: {}]
  %s6 = inlined_call_operand.vmem [shape: bf16[2,128,32], index: 6, kind: input, shape index: {}]
  %s7 = inlined_call_operand.vmem [shape: f32[2,8,128], index: 7, kind: input, shape index: {}]
  %s8 = inlined_call_operand.vmem [shape: bf16[2,32,96], index: 8, kind: input, shape index: {}]
  %s9 = inlined_call_operand.vmem [shape: bf16[2,32,32], index: 9, kind: input, shape index: {}]
  %s10 = inlined_call_operand.vmem [shape: f32[2,1,128], index: 10, kind: input, shape index: {}]
  %s11 = inlined_call_operand.vmem [shape: bf16[32,256], index: 11, kind: input, shape index: {}]
  %s12 = inlined_call_operand.vmem [shape: f32[8,64], index: 12, kind: input, shape index: {}]
  %s13 = inlined_call_operand.vmem [shape: f32[8,256], index: 13, kind: input, shape index: {}]
  %s14 = inlined_call_operand.vmem [shape: f32[2,1,1], index: 14, kind: output, shape index: {}]
  %s15 = sld [smem:[#allocation0]]
  $region89: #{pallas_forward.1} parent=0
    _
  %s17 = ssub.s32 1, %s15
  %s18 = scalar_select 0, %s17, %s15
  loop: start=0, step=1, limit=4
  $region2: #{pallas_forward.1} parent=0 // loop_pre_header
    _
  $region3: #{pallas_forward.1} parent=0 // loop_header
    %s20 = sphi 0, %s24
    %p21 = scmp.ge.s32.totalorder %s20, 4
    %s30 = sphi 0, %s32
    %s33 = sphi 0, %s30
    %s34 = sphi 0, %s33
    %s50 = sphi 0, %s34
    %s54 = sphi 0, %s54
    %s56 = sphi 0, %s54
    %s57 = sphi 0, %s56
    %s71 = sphi 0, %s57
    %s75 = sphi 0, %s75
    %s77 = sphi 0, %s75
    %s78 = sphi 0, %s77
    %s92 = sphi 0, %s78
    %s96 = sphi 0, %s96
    %s98 = sphi 0, %s96
    %s99 = sphi 0, %s98
    %s113 = sphi 0, %s99
    %s117 = sphi 0, %s117
    %s119 = sphi 0, %s117
    %s120 = sphi 0, %s119
    %s134 = sphi 0, %s120
    %s138 = sphi 0, %s138
    %s140 = sphi 0, %s138
    %s141 = sphi 0, %s140
    %s155 = sphi 0, %s141
    %s159 = sphi 0, %s159
    %s161 = sphi 0, %s159
    %s162 = sphi 0, %s161
    %s176 = sphi 0, %s162
    %s180 = sphi 0, %s180
    %s182 = sphi 0, %s180
    %s183 = sphi 0, %s182
    %s197 = sphi 0, %s183
    %s201 = sphi 0, %s201
    %s203 = sphi 0, %s201
    %s204 = sphi 0, %s203
    %s218 = sphi 0, %s204
    %s222 = sphi 0, %s222
    %s224 = sphi 0, %s222
    %s225 = sphi 0, %s224
    %s239 = sphi 0, %s225
    %s243 = sphi 0, %s243
    %s245 = sphi 0, %s243
    %s246 = sphi 0, %s245
    %s260 = sphi 0, %s246
    %s264 = sphi 0, %s264
    %s266 = sphi 0, %s264
    %s267 = sphi 0, %s266
    %s281 = sphi 0, %s267
    %s285 = sphi 0, %s285
    %s287 = sphi 0, %s285
    %s288 = sphi 0, %s287
    %s302 = sphi 0, %s288
    %s306 = sphi 0, %s306
    %s308 = sphi 0, %s306
    %s309 = sphi 0, %s308
    %s323 = sphi 0, %s309
    %s329 = sphi 0, %s331
    %s332 = sphi 0, %s329
    %s333 = sphi 0, %s332
    %s349 = sphi 0, %s333
  $region4: #{pallas_forward.1} parent=0 // loop_header_branch
    %23 = sbr.rel (%p21) target = $region8
  $region5: #{pallas_forward.1} parent=0 // loop_body
    %s25 = ssub.s32 %s20, 1
    %s26 = ssub.s32 %s20, 2
    %s27 = sadd.s32 %s20, 1
    %s28 = ssub.s32 %s20, %s27
    %p29 = scmp.eq.s32.totalorder %s28, 0
    %s31 = sadd.s32 %s30, 1
    %s32 = scalar_select %p29, %s30, %s31
    %p35 = pneg %p29
    %p36 = scmp.eq.s32.totalorder %s20, 1
    %p37 = por %p35, %p36
    %p38 = scmp.ne.s32.totalorder %s30, %s33
    %p39 = scmp.eq.s32.totalorder %s20, 0
    %p40 = por %p38, %p39
    %p41 = scmp.ne.s32.totalorder %s30, %s33
    %p42 = scmp.eq.s32.totalorder %s25, 1
    %p43 = por %p41, %p42
    %p44 = scmp.ne.s32.totalorder %s33, %s34
    %p45 = scmp.eq.s32.totalorder %s25, 0
    %p46 = por %p44, %p45
    %p47 = scmp.ne.s32.totalorder %s33, %s34
    %p48 = scmp.eq.s32.totalorder %s26, 1
    %p49 = por %p47, %p48
    %p51 = scmp.ne.s32.totalorder %s34, %s50
    %p52 = scmp.eq.s32.totalorder %s26, 0
    %p53 = por %p51, %p52
    %s55 = sadd.s32 %s54, 1
    %p58 = scmp.eq.s32.totalorder %s20, 1
    %p59 = scmp.ne.s32.totalorder %s54, %s56
    %p60 = scmp.eq.s32.totalorder %s20, 0
    %p61 = por %p59, %p60
    %p62 = scmp.ne.s32.totalorder %s54, %s56
    %p63 = scmp.eq.s32.totalorder %s25, 1
    %p64 = por %p62, %p63
    %p65 = scmp.ne.s32.totalorder %s56, %s57
    %p66 = scmp.eq.s32.totalorder %s25, 0
    %p67 = por %p65, %p66
    %p68 = scmp.ne.s32.totalorder %s56, %s57
    %p69 = scmp.eq.s32.totalorder %s26, 1
    %p70 = por %p68, %p69
    %p72 = scmp.ne.s32.totalorder %s57, %s71
    %p73 = scmp.eq.s32.totalorder %s26, 0
    %p74 = por %p72, %p73
    %s76 = sadd.s32 %s75, 1
    %p79 = scmp.eq.s32.totalorder %s20, 1
    %p80 = scmp.ne.s32.totalorder %s75, %s77
    %p81 = scmp.eq.s32.totalorder %s20, 0
    %p82 = por %p80, %p81
    %p83 = scmp.ne.s32.totalorder %s75, %s77
    %p84 = scmp.eq.s32.totalorder %s25, 1
    %p85 = por %p83, %p84
    %p86 = scmp.ne.s32.totalorder %s77, %s78
    %p87 = scmp.eq.s32.totalorder %s25, 0
    %p88 = por %p86, %p87
    %p89 = scmp.ne.s32.totalorder %s77, %s78
    %p90 = scmp.eq.s32.totalorder %s26, 1
    %p91 = por %p89, %p90
    %p93 = scmp.ne.s32.totalorder %s78, %s92
    %p94 = scmp.eq.s32.totalorder %s26, 0
    %p95 = por %p93, %p94
    %s97 = sadd.s32 %s96, 1
    %p100 = scmp.eq.s32.totalorder %s20, 1
    %p101 = scmp.ne.s32.totalorder %s96, %s98
    %p102 = scmp.eq.s32.totalorder %s20, 0
    %p103 = por %p101, %p102
    %p104 = scmp.ne.s32.totalorder %s96, %s98
    %p105 = scmp.eq.s32.totalorder %s25, 1
    %p106 = por %p104, %p105
    %p107 = scmp.ne.s32.totalorder %s98, %s99
    %p108 = scmp.eq.s32.totalorder %s25, 0
    %p109 = por %p107, %p108
    %p110 = scmp.ne.s32.totalorder %s98, %s99
    %p111 = scmp.eq.s32.totalorder %s26, 1
    %p112 = por %p110, %p111
    %p114 = scmp.ne.s32.totalorder %s99, %s113
    %p115 = scmp.eq.s32.totalorder %s26, 0
    %p116 = por %p114, %p115
    %s118 = sadd.s32 %s117, 1
    %p121 = scmp.eq.s32.totalorder %s20, 1
    %p122 = scmp.ne.s32.totalorder %s117, %s119
    %p123 = scmp.eq.s32.totalorder %s20, 0
    %p124 = por %p122, %p123
    %p125 = scmp.ne.s32.totalorder %s117, %s119
    %p126 = scmp.eq.s32.totalorder %s25, 1
    %p127 = por %p125, %p126
    %p128 = scmp.ne.s32.totalorder %s119, %s120
    %p129 = scmp.eq.s32.totalorder %s25, 0
    %p130 = por %p128, %p129
    %p131 = scmp.ne.s32.totalorder %s119, %s120
    %p132 = scmp.eq.s32.totalorder %s26, 1
    %p133 = por %p131, %p132
    %p135 = scmp.ne.s32.totalorder %s120, %s134
    %p136 = scmp.eq.s32.totalorder %s26, 0
    %p137 = por %p135, %p136
    %s139 = sadd.s32 %s138, 1
    %p142 = scmp.eq.s32.totalorder %s20, 1
    %p143 = scmp.ne.s32.totalorder %s138, %s140
    %p144 = scmp.eq.s32.totalorder %s20, 0
    %p145 = por %p143, %p144
    %p146 = scmp.ne.s32.totalorder %s138, %s140
    %p147 = scmp.eq.s32.totalorder %s25, 1
    %p148 = por %p146, %p147
    %p149 = scmp.ne.s32.totalorder %s140, %s141
    %p150 = scmp.eq.s32.totalorder %s25, 0
    %p151 = por %p149, %p150
    %p152 = scmp.ne.s32.totalorder %s140, %s141
    %p153 = scmp.eq.s32.totalorder %s26, 1
    %p154 = por %p152, %p153
    %p156 = scmp.ne.s32.totalorder %s141, %s155
    %p157 = scmp.eq.s32.totalorder %s26, 0
    %p158 = por %p156, %p157
    %s160 = sadd.s32 %s159, 1
    %p163 = scmp.eq.s32.totalorder %s20, 1
    %p164 = scmp.ne.s32.totalorder %s159, %s161
    %p165 = scmp.eq.s32.totalorder %s20, 0
    %p166 = por %p164, %p165
    %p167 = scmp.ne.s32.totalorder %s159, %s161
    %p168 = scmp.eq.s32.totalorder %s25, 1
    %p169 = por %p167, %p168
    %p170 = scmp.ne.s32.totalorder %s161, %s162
    %p171 = scmp.eq.s32.totalorder %s25, 0
    %p172 = por %p170, %p171
    %p173 = scmp.ne.s32.totalorder %s161, %s162
    %p174 = scmp.eq.s32.totalorder %s26, 1
    %p175 = por %p173, %p174
    %p177 = scmp.ne.s32.totalorder %s162, %s176
    %p178 = scmp.eq.s32.totalorder %s26, 0
    %p179 = por %p177, %p178
    %s181 = sadd.s32 %s180, 1
    %p184 = scmp.eq.s32.totalorder %s20, 1
    %p185 = scmp.ne.s32.totalorder %s180, %s182
    %p186 = scmp.eq.s32.totalorder %s20, 0
    %p187 = por %p185, %p186
    %p188 = scmp.ne.s32.totalorder %s180, %s182
    %p189 = scmp.eq.s32.totalorder %s25, 1
    %p190 = por %p188, %p189
    %p191 = scmp.ne.s32.totalorder %s182, %s183
    %p192 = scmp.eq.s32.totalorder %s25, 0
    %p193 = por %p191, %p192
    %p194 = scmp.ne.s32.totalorder %s182, %s183
    %p195 = scmp.eq.s32.totalorder %s26, 1
    %p196 = por %p194, %p195
    %p198 = scmp.ne.s32.totalorder %s183, %s197
    %p199 = scmp.eq.s32.totalorder %s26, 0
    %p200 = por %p198, %p199
    %s202 = sadd.s32 %s201, 1
    %p205 = scmp.eq.s32.totalorder %s20, 1
    %p206 = scmp.ne.s32.totalorder %s201, %s203
    %p207 = scmp.eq.s32.totalorder %s20, 0
    %p208 = por %p206, %p207
    %p209 = scmp.ne.s32.totalorder %s201, %s203
    %p210 = scmp.eq.s32.totalorder %s25, 1
    %p211 = por %p209, %p210
    %p212 = scmp.ne.s32.totalorder %s203, %s204
    %p213 = scmp.eq.s32.totalorder %s25, 0
    %p214 = por %p212, %p213
    %p215 = scmp.ne.s32.totalorder %s203, %s204
    %p216 = scmp.eq.s32.totalorder %s26, 1
    %p217 = por %p215, %p216
    %p219 = scmp.ne.s32.totalorder %s204, %s218
    %p220 = scmp.eq.s32.totalorder %s26, 0
    %p221 = por %p219, %p220
    %s223 = sadd.s32 %s222, 1
    %p226 = scmp.eq.s32.totalorder %s20, 1
    %p227 = scmp.ne.s32.totalorder %s222, %s224
    %p228 = scmp.eq.s32.totalorder %s20, 0
    %p229 = por %p227, %p228
    %p230 = scmp.ne.s32.totalorder %s222, %s224
    %p231 = scmp.eq.s32.totalorder %s25, 1
    %p232 = por %p230, %p231
    %p233 = scmp.ne.s32.totalorder %s224, %s225
    %p234 = scmp.eq.s32.totalorder %s25, 0
    %p235 = por %p233, %p234
    %p236 = scmp.ne.s32.totalorder %s224, %s225
    %p237 = scmp.eq.s32.totalorder %s26, 1
    %p238 = por %p236, %p237
    %p240 = scmp.ne.s32.totalorder %s225, %s239
    %p241 = scmp.eq.s32.totalorder %s26, 0
    %p242 = por %p240, %p241
    %s244 = sadd.s32 %s243, 1
    %p247 = scmp.eq.s32.totalorder %s20, 1
    %p248 = scmp.ne.s32.totalorder %s243, %s245
    %p249 = scmp.eq.s32.totalorder %s20, 0
    %p250 = por %p248, %p249
    %p251 = scmp.ne.s32.totalorder %s243, %s245
    %p252 = scmp.eq.s32.totalorder %s25, 1
    %p253 = por %p251, %p252
    %p254 = scmp.ne.s32.totalorder %s245, %s246
    %p255 = scmp.eq.s32.totalorder %s25, 0
    %p256 = por %p254, %p255
    %p257 = scmp.ne.s32.totalorder %s245, %s246
    %p258 = scmp.eq.s32.totalorder %s26, 1
    %p259 = por %p257, %p258
    %p261 = scmp.ne.s32.totalorder %s246, %s260
    %p262 = scmp.eq.s32.totalorder %s26, 0
    %p263 = por %p261, %p262
    %s265 = sadd.s32 %s264, 1
    %p268 = scmp.eq.s32.totalorder %s20, 1
    %p269 = scmp.ne.s32.totalorder %s264, %s266
    %p270 = scmp.eq.s32.totalorder %s20, 0
    %p271 = por %p269, %p270
    %p272 = scmp.ne.s32.totalorder %s264, %s266
    %p273 = scmp.eq.s32.totalorder %s25, 1
    %p274 = por %p272, %p273
    %p275 = scmp.ne.s32.totalorder %s266, %s267
    %p276 = scmp.eq.s32.totalorder %s25, 0
    %p277 = por %p275, %p276
    %p278 = scmp.ne.s32.totalorder %s266, %s267
    %p279 = scmp.eq.s32.totalorder %s26, 1
    %p280 = por %p278, %p279
    %p282 = scmp.ne.s32.totalorder %s267, %s281
    %p283 = scmp.eq.s32.totalorder %s26, 0
    %p284 = por %p282, %p283
    %s286 = sadd.s32 %s285, 1
    %p289 = scmp.eq.s32.totalorder %s20, 1
    %p290 = scmp.ne.s32.totalorder %s285, %s287
    %p291 = scmp.eq.s32.totalorder %s20, 0
    %p292 = por %p290, %p291
    %p293 = scmp.ne.s32.totalorder %s285, %s287
    %p294 = scmp.eq.s32.totalorder %s25, 1
    %p295 = por %p293, %p294
    %p296 = scmp.ne.s32.totalorder %s287, %s288
    %p297 = scmp.eq.s32.totalorder %s25, 0
    %p298 = por %p296, %p297
    %p299 = scmp.ne.s32.totalorder %s287, %s288
    %p300 = scmp.eq.s32.totalorder %s26, 1
    %p301 = por %p299, %p300
    %p303 = scmp.ne.s32.totalorder %s288, %s302
    %p304 = scmp.eq.s32.totalorder %s26, 0
    %p305 = por %p303, %p304
    %s307 = sadd.s32 %s306, 1
    %p310 = scmp.eq.s32.totalorder %s20, 1
    %p311 = scmp.ne.s32.totalorder %s306, %s308
    %p312 = scmp.eq.s32.totalorder %s20, 0
    %p313 = por %p311, %p312
    %p314 = scmp.ne.s32.totalorder %s306, %s308
    %p315 = scmp.eq.s32.totalorder %s25, 1
    %p316 = por %p314, %p315
    %p317 = scmp.ne.s32.totalorder %s308, %s309
    %p318 = scmp.eq.s32.totalorder %s25, 0
    %p319 = por %p317, %p318
    %p320 = scmp.ne.s32.totalorder %s308, %s309
    %p321 = scmp.eq.s32.totalorder %s26, 1
    %p322 = por %p320, %p321
    %p324 = scmp.ne.s32.totalorder %s309, %s323
    %p325 = scmp.eq.s32.totalorder %s26, 0
    %p326 = por %p324, %p325
    %s327 = ssub.s32 %s20, %s27
    %p328 = scmp.eq.s32.totalorder %s327, 0
    %s330 = sadd.s32 %s329, 1
    %s331 = scalar_select %p328, %s329, %s330
    %p334 = pneg %p328
    %p335 = scmp.eq.s32.totalorder %s20, 1
    %p336 = por %p334, %p335
    %p337 = scmp.ne.s32.totalorder %s329, %s332
    %p338 = scmp.eq.s32.totalorder %s20, 0
    %p339 = por %p337, %p338
    %p340 = scmp.ne.s32.totalorder %s329, %s332
    %p341 = scmp.eq.s32.totalorder %s25, 1
    %p342 = por %p340, %p341
    %p343 = scmp.ne.s32.totalorder %s332, %s333
    %p344 = scmp.eq.s32.totalorder %s25, 0
    %p345 = por %p343, %p344
    %p346 = scmp.ne.s32.totalorder %s332, %s333
    %p347 = scmp.eq.s32.totalorder %s26, 1
    %p348 = por %p346, %p347
    %p350 = scmp.ne.s32.totalorder %s333, %s349
    %p351 = scmp.eq.s32.totalorder %s26, 0
    %p352 = por %p350, %p351
    %p353 = scmp.le.s32.totalorder 1, %s20
    %p354 = scmp.lt.s32.totalorder %s20, 3
    %p355 = pnand %p353, %p354
    %p356 = pneg %p355
    // Predicated region
    $region9: #{pallas_forward.1} parent=5 // pred_check
      _
    $region10: #{pallas_forward.1} parent=5 // pred_check_branch
      %358 = sbr.rel (%p355) target = $region12
    $region11: #{pallas_forward.1} parent=5 // pred_region
      %s359 = ssub.s32 %s20, 1
      // Predicated region
      $region13: #{pallas_forward.1} parent=11 // pred_check
        %p360 = pneg %p67
      $region14: #{pallas_forward.1} parent=11 // pred_check_branch
        %362 = sbr.rel (%p360) target = $region16
      $region15: #{pallas_forward.1} parent=11 // pred_region
        _
      $region16: #{pallas_forward.1} parent=11 // pred_fallthru
        _
      // Predicated region
      $region17: #{pallas_forward.1} parent=11 // pred_check
        %p363 = pneg %p88
      $region18: #{pallas_forward.1} parent=11 // pred_check_branch
        %365 = sbr.rel (%p363) target = $region20
      $region19: #{pallas_forward.1} parent=11 // pred_region
        _
      $region20: #{pallas_forward.1} parent=11 // pred_fallthru
        _
      // Predicated region
      $region21: #{pallas_forward.1} parent=11 // pred_check
        %p366 = pneg %p109
      $region22: #{pallas_forward.1} parent=11 // pred_check_branch
        %368 = sbr.rel (%p366) target = $region24
      $region23: #{pallas_forward.1} parent=11 // pred_region
        _
      $region24: #{pallas_forward.1} parent=11 // pred_fallthru
        _
      // Predicated region
      $region25: #{pallas_forward.1} parent=11 // pred_check
        %p369 = pneg %p130
      $region26: #{pallas_forward.1} parent=11 // pred_check_branch
        %371 = sbr.rel (%p369) target = $region28
      $region27: #{pallas_forward.1} parent=11 // pred_region
        _
      $region28: #{pallas_forward.1} parent=11 // pred_fallthru
        _
      // Predicated region
      $region29: #{pallas_forward.1} parent=11 // pred_check
        %p372 = pneg %p151
      $region30: #{pallas_forward.1} parent=11 // pred_check_branch
        %374 = sbr.rel (%p372) target = $region32
      $region31: #{pallas_forward.1} parent=11 // pred_region
        _
      $region32: #{pallas_forward.1} parent=11 // pred_fallthru
        _
      // Predicated region
      $region33: #{pallas_forward.1} parent=11 // pred_check
        %p375 = pneg %p172
      $region34: #{pallas_forward.1} parent=11 // pred_check_branch
        %377 = sbr.rel (%p375) target = $region36
      $region35: #{pallas_forward.1} parent=11 // pred_region
        _
      $region36: #{pallas_forward.1} parent=11 // pred_fallthru
        _
      // Predicated region
      $region37: #{pallas_forward.1} parent=11 // pred_check
        %p378 = pneg %p193
      $region38: #{pallas_forward.1} parent=11 // pred_check_branch
        %380 = sbr.rel (%p378) target = $region40
      $region39: #{pallas_forward.1} parent=11 // pred_region
        _
      $region40: #{pallas_forward.1} parent=11 // pred_fallthru
        _
      // Predicated region
      $region41: #{pallas_forward.1} parent=11 // pred_check
        %p381 = pneg %p214
      $region42: #{pallas_forward.1} parent=11 // pred_check_branch
        %383 = sbr.rel (%p381) target = $region44
      $region43: #{pallas_forward.1} parent=11 // pred_region
        _
      $region44: #{pallas_forward.1} parent=11 // pred_fallthru
        _
      // Predicated region
      $region45: #{pallas_forward.1} parent=11 // pred_check
        %p384 = pneg %p235
      $region46: #{pallas_forward.1} parent=11 // pred_check_branch
        %386 = sbr.rel (%p384) target = $region48
      $region47: #{pallas_forward.1} parent=11 // pred_region
        _
      $region48: #{pallas_forward.1} parent=11 // pred_fallthru
        _
      // Predicated region
      $region49: #{pallas_forward.1} parent=11 // pred_check
        %p387 = pneg %p256
      $region50: #{pallas_forward.1} parent=11 // pred_check_branch
        %389 = sbr.rel (%p387) target = $region52
      $region51: #{pallas_forward.1} parent=11 // pred_region
        _
      $region52: #{pallas_forward.1} parent=11 // pred_fallthru
        _
      // Predicated region
      $region53: #{pallas_forward.1} parent=11 // pred_check
        %p390 = pneg %p277
      $region54: #{pallas_forward.1} parent=11 // pred_check_branch
        %392 = sbr.rel (%p390) target = $region56
      $region55: #{pallas_forward.1} parent=11 // pred_region
        _
      $region56: #{pallas_forward.1} parent=11 // pred_fallthru
        _
      // Predicated region
      $region57: #{pallas_forward.1} parent=11 // pred_check
        %p393 = pneg %p298
      $region58: #{pallas_forward.1} parent=11 // pred_check_branch
        %395 = sbr.rel (%p393) target = $region60
      $region59: #{pallas_forward.1} parent=11 // pred_region
        _
      $region60: #{pallas_forward.1} parent=11 // pred_fallthru
        _
      // Predicated region
      $region61: #{pallas_forward.1} parent=11 // pred_check
        %p396 = pneg %p319
      $region62: #{pallas_forward.1} parent=11 // pred_check_branch
        %398 = sbr.rel (%p396) target = $region64
      $region63: #{pallas_forward.1} parent=11 // pred_region
        _
      $region64: #{pallas_forward.1} parent=11 // pred_fallthru
        _
    $region12: #{pallas_forward.1} parent=5 // pred_fallthru
      _
    %p399 = scmp.lt.s32.totalorder %s20, 2
    // Predicated region
    $region65: #{pallas_forward.1} parent=5 // pred_check
      %p400 = pneg %p399
    $region66: #{pallas_forward.1} parent=5 // pred_check_branch
      %402 = sbr.rel (%p400) target = $region68
    $region67: #{pallas_forward.1} parent=5 // pred_region
      // Predicated region
      $region69: #{pallas_forward.1} parent=67 // pred_check
        %p403 = pneg %p40
      $region70: #{pallas_forward.1} parent=67 // pred_check_branch
        %405 = sbr.rel (%p403) target = $region72
      $region71: #{pallas_forward.1} parent=67 // pred_region
        %p406 = scmp.lt.s32.totalorder %s20, 1
        %s407 = scalar_select %p406, %s20, 1
        %s408 = smul.addr %s407, 8
        %s409 = smul.addr %s408, 4
        %s410 = scalar_lea.vmem %s0, %s409
      $region72: #{pallas_forward.1} parent=67 // pred_fallthru
        _
    $region68: #{pallas_forward.1} parent=5 // pred_fallthru
      _
    %p411 = scmp.le.s32.totalorder 1, %s20
    %p412 = scmp.lt.s32.totalorder %s20, 3
    %p413 = pnand %p411, %p412
    %p414 = pneg %p413
    // Predicated region
    $region73: #{pallas_forward.1} parent=5 // pred_check
      _
    $region74: #{pallas_forward.1} parent=5 // pred_check_branch
      %416 = sbr.rel (%p413) target = $region76
    $region75: #{pallas_forward.1} parent=5 // pred_region
      %s417 = ssub.s32 %s20, 1
      %p418 = scmp.lt.s32.totalorder %s25, 1
      %s419 = scalar_select %p418, %s25, 1
      %s420 = smul.addr %s419, 8
      %s421 = smul.addr %s420, 4
      %s422 = scalar_lea.vmem %s0, %s421
      %p423 = pneg %p46
      %p424 = pneg %p43
      %p425 = pneg %p67
      %p426 = pneg %p64
      %p427 = pneg %p88
      %p428 = pneg %p85
      %p429 = pneg %p109
      %p430 = pneg %p106
      %p431 = pneg %p130
      %p432 = pneg %p127
      %p433 = pneg %p151
      %p434 = pneg %p148
      %p435 = pneg %p172
      %p436 = pneg %p169
      %p437 = pneg %p193
      %p438 = pneg %p190
      %p439 = pneg %p214
      %p440 = pneg %p211
      %p441 = pneg %p235
      %p442 = pneg %p232
      %p443 = pneg %p256
      %p444 = pneg %p253
      %p445 = pneg %p277
      %p446 = pneg %p274
      %p447 = pneg %p298
      %p448 = pneg %p295
      %p449 = pneg %p319
      %p450 = pneg %p316
      %p451 = pneg %p345
      %p452 = pneg %p342
      %p453 = scmp.lt.s32.totalorder %s25, 1
      %s454 = scalar_select %p453, %s25, 1
      %s455 = scalar_lea.vmem %s14, %s454
      %p456 = scmp.lt.s32.totalorder %s25, 1
      %s457 = scalar_select %p456, %s25, 1
      %s458 = smul.addr %s457, 8
      %s459 = smul.addr %s458, 4
      %s460 = scalar_lea.vmem %s0, %s459
      %p461 = scmp.lt.s32.totalorder %s25, 1
      %s462 = scalar_select %p461, %s25, 1
      %s463 = scalar_lea.vmem %s14, %s462
      %v465 = vld [vmem:[%s2] sm:$0xff]
      %v466 = vld [vmem:[%s2 + $0x8] sm:$0xff]
      %v467 = vld [vmem:[%s2 + $0x10] sm:$0xff]
      %v468 = vld [vmem:[%s2 + $0x18] sm:$0xff]
      %v469 = vld [vmem:[%s2 + $0x20] sm:$0xff]
      %v470 = vld [vmem:[%s2 + $0x28] sm:$0xff]
      %v471 = vld [vmem:[%s460] sm:$0xff]
      %v472 = vld [vmem:[%s460 + $0x8] sm:$0xff]
      %v473 = vld [vmem:[%s460 + $0x10] sm:$0xff]
      %v474 = vld [vmem:[%s460 + $0x18] sm:$0xff]
      %v475 = vld [vmem:[%s1] sm:$0xf]
      %v476 = vld [vmem:[%s1 + $0x4] sm:$0xf]
      %v477 = vld [vmem:[%s1 + $0x8] sm:$0xf]
      %v478 = vld [vmem:[%s1 + $0xc] sm:$0xf]
      %v479 = vld [vmem:[%s1 + $0x10] sm:$0xf]
      %v480 = vld [vmem:[%s1 + $0x14] sm:$0xf]
      %v481 = vld [vmem:[%s1 + $0x18] sm:$0xf]
      %v482 = vld [vmem:[%s1 + $0x1c] sm:$0xf]
      %v483 = vld [vmem:[%s1 + $0x20] sm:$0xf]
      %v484 = vld [vmem:[%s1 + $0x24] sm:$0xf]
      %v485 = vld [vmem:[%s1 + $0x28] sm:$0xf]
      %v486 = vld [vmem:[%s1 + $0x2c] sm:$0xf]
      %v487 = vld [vmem:[%s1 + $0x30] sm:$0xf]
      %v488 = vld [vmem:[%s1 + $0x34] sm:$0xf]
      %v489 = vld [vmem:[%s1 + $0x38] sm:$0xf]
      %v490 = vld [vmem:[%s1 + $0x3c] sm:$0xf]
      %v491 = vld [vmem:[%s1 + $0x40] sm:$0xf]
      %v492 = vld [vmem:[%s1 + $0x44] sm:$0xf]
      %v493 = vld [vmem:[%s1 + $0x48] sm:$0xf]
      %v494 = vld [vmem:[%s1 + $0x4c] sm:$0xf]
      %v495 = vld [vmem:[%s1 + $0x50] sm:$0xf]
      %v496 = vld [vmem:[%s1 + $0x54] sm:$0xf]
      %v497 = vld [vmem:[%s1 + $0x58] sm:$0xf]
      %v498 = vld [vmem:[%s1 + $0x5c] sm:$0xf]
      %v499 = vlaneseq
      %v500 = vshrl.u32 %v499, 7
      %v501 = vsub.s32 0, %v500
      %v502 = vrot.slane %v470, %v501
      %v507 = vunpack.c.l.b16 %v471
      %v508 = vunpack.c.h.b16 %v471
      %v509 = vunpack.c.l.b16 %v472
      %v510 = vunpack.c.h.b16 %v472
      %v511 = vunpack.c.l.b16 %v473
      %v512 = vunpack.c.h.b16 %v473
      %v513 = vunpack.c.l.b16 %v474
      %v514 = vunpack.c.h.b16 %v474
      %v515 = vpack.c.b16 %v509, %v507
      %v516 = vpack.c.b16 %v510, %v508
      %v517 = vpack.c.b16 %v513, %v511
      %v518 = vpack.c.b16 %v514, %v512
      %v545 = vunpack.c.l.b16 %v475
      %v546 = vunpack.c.l.b16 %v476
      %v547 = vunpack.c.l.b16 %v477
      %v548 = vunpack.c.l.b16 %v478
      %v549 = vunpack.c.l.b16 %v479
      %v550 = vunpack.c.l.b16 %v480
      %v551 = vunpack.c.l.b16 %v481
      %v552 = vunpack.c.l.b16 %v482
      %v553 = vunpack.c.l.b16 %v483
      %v554 = vunpack.c.l.b16 %v484
      %v555 = vunpack.c.l.b16 %v485
      %v556 = vunpack.c.l.b16 %v486
      %v557 = vunpack.c.l.b16 %v487
      %v558 = vunpack.c.l.b16 %v488
      %v559 = vunpack.c.l.b16 %v489
      %v560 = vunpack.c.l.b16 %v490
      %v561 = vunpack.c.l.b16 %v491
      %v562 = vunpack.c.l.b16 %v492
      %v563 = vunpack.c.l.b16 %v493
      %v564 = vunpack.c.l.b16 %v494
      %v565 = vunpack.c.l.b16 %v495
      %v566 = vunpack.c.l.b16 %v496
      %v567 = vunpack.c.l.b16 %v497
      %v568 = vunpack.c.l.b16 %v498
      %v569 = vpack.c.b16 %v546, %v545
      %v570 = vpack.c.b16 %v548, %v547
      %v571 = vpack.c.b16 %v550, %v549
      %v572 = vpack.c.b16 %v552, %v551
      %v573 = vpack.c.b16 %v554, %v553
      %v574 = vpack.c.b16 %v556, %v555
      %v575 = vpack.c.b16 %v558, %v557
      %v576 = vpack.c.b16 %v560, %v559
      %v577 = vpack.c.b16 %v562, %v561
      %v578 = vpack.c.b16 %v564, %v563
      %v579 = vpack.c.b16 %v566, %v565
      %v580 = vpack.c.b16 %v568, %v567
      %vm593 = vcmask 523264
      %v595 = vsel %vm593, %v516, 0
      %v598 = vsel %vm593, %v518, 0
      %600 = vmatprep.subr.bf16.mxu0 0
      %601 = vmatpush1.bf16.msra.mxu0 %v569
      %602 = vmatprep.subr.bf16.mxu0 0
      %603 = vmatpush1.bf16.msra.mxu0 %v570
      %604 = vmatprep.subr.bf16.mxu0 0
      %605 = vmatpush1.bf16.msra.mxu0 %v571
      %606 = vmatprep.subr.bf16.mxu0 0
      %607 = vmatpush1.bf16.msra.mxu0 %v572
      %608 = vmatprep.subr.bf16.mxu0 0
      %609 = vmatpush1.bf16.msra.mxu0 %v573
      %610 = vmatprep.subr.bf16.mxu0 0
      %611 = vmatpush1.bf16.msra.mxu0 %v574
      %612 = vmatprep.subr.bf16.mxu0 0
      %613 = vmatpush1.bf16.msra.mxu0 %v575
      %614 = vmatprep.subr.bf16.mxu0 0
      %615 = vmatpush1.bf16.msra.mxu0 %v576
      %616 = vmatprep.subr.bf16.mxu0 0
      %617 = vmatpush1.bf16.msra.mxu0 %v577
      %618 = vmatprep.subr.bf16.mxu0 0
      %619 = vmatpush1.bf16.msra.mxu0 %v578
      %620 = vmatprep.subr.bf16.mxu0 0
      %621 = vmatpush1.bf16.msra.mxu0 %v579
      %622 = vmatprep.subr.bf16.mxu0 0
      %623 = vmatpush1.bf16.msra.mxu0 %v580
      %624 = vmatprep.subr.bf16.mxu0 0
      %625 = vmatpush1.bf16.msra.mxu0 0
      %626 = vmatprep.subr.bf16.mxu0 0
      %627 = vmatpush1.bf16.msra.mxu0 0
      %628 = vmatprep.subr.bf16.mxu0 0
      %629 = vmatpush1.bf16.msra.mxu0 0
      %630 = vmatprep.subr.bf16.mxu0 0
      %631 = vmatpush1.bf16.msra.mxu0 0
      %632 = vmatprep.mubr.bf16.mxu0 %v595
      %633 = vmatmul.mubr.bf16.gmra.mrb[0].mxu0 %v515
      %v634 = vpop.f32.mrb[0].mxu0
      %v635 = vadd.f32 %v502, %v634
      %v636 = vpop.f32.mrb[0].mxu0
      %v637 = vpop.f32.mrb[0].mxu0
      %v638 = vadd.f32 %v502, %v637
      %v639 = vpop.f32.mrb[0].mxu0
      %640 = vmatprep.mubr.bf16.mxu0 %v598
      %641 = vmatmul.mubr.bf16.gmra.mrb[0].mxu0 %v517
      %v642 = vpop.f32.mrb[0].mxu0
      %v643 = vadd.f32 %v502, %v642
      %v644 = vpop.f32.mrb[0].mxu0
      %v645 = vpop.f32.mrb[0].mxu0
      %v646 = vadd.f32 %v502, %v645
      %v647 = vpop.f32.mrb[0].mxu0
      %648 = vdwg.mxu0
      %v649 = vlaneseq
      %v650 = vshrl.u32 %v649, 7
      %v651 = vsub.s32 1, %v650
      %v652 = vrot.slane %v470, %v651
      %v653 = vadd.f32 %v635, %v465
      %v654 = vadd.f32 %v638, %v466
      %v655 = vadd.f32 %v643, %v467
      %v656 = vadd.f32 %v646, %v468
      %v657 = vlaneseq
      %v658 = vshrl.u32 %v657, 7
      %v659 = vadd.s32 %v658, 8
      %v660 = vadd.s32 %v658, 16
      %v661 = vadd.s32 %v658, 24
      %v662 = vadd.s32 %v658, 32
      %v663 = vlaneseq
      %v664 = vand.u32 %v663, 127
      %vm665 = vcmp.lt.s32.totalorder %v658, 8
      %vm666 = vcmp.lt.s32.totalorder %v659, 8
      %vm667 = vcmp.lt.s32.totalorder %v660, 8
      %vm668 = vcmp.lt.s32.totalorder %v661, 8
      %vm669 = vcmp.lt.s32.totalorder %v662, 8
      %v670 = vsub.s32 %v658, 8
      %v671 = vsub.s32 %v660, 8
      %v672 = vsub.s32 %v661, 8
      %v673 = vsub.s32 %v662, 8
      %vm674 = vcmp.gt.s32.totalorder %v670, 0
      %v675 = vsel %vm674, %v670, 0
      %vm676 = vcmp.gt.s32.totalorder %v658, 0
      %v677 = vsel %vm676, %v658, 0
      %vm678 = vcmp.gt.s32.totalorder %v671, 0
      %v679 = vsel %vm678, %v671, 0
      %vm680 = vcmp.gt.s32.totalorder %v672, 0
      %v681 = vsel %vm680, %v672, 0
      %vm682 = vcmp.gt.s32.totalorder %v673, 0
      %v683 = vsel %vm682, %v673, 0
      %v684 = vshra.s32 %v675, 2
      %v685 = vshra.s32 %v677, 2
      %v686 = vshra.s32 %v679, 2
      %v687 = vshra.s32 %v681, 2
      %v688 = vshra.s32 %v683, 2
      %v689 = vsel %vm665, %v658, %v684
      %v690 = vsel %vm666, %v659, %v685
      %v691 = vsel %vm667, %v660, %v686
      %v692 = vsel %vm668, %v661, %v687
      %v693 = vsel %vm669, %v662, %v688
      %vm694 = vcmp.lt.s32.totalorder %v664, 8
      %v695 = vsub.s32 %v664, 8
      %vm696 = vcmp.gt.s32.totalorder %v695, 0
      %v697 = vsel %vm696, %v695, 0
      %v698 = vshra.s32 %v697, 2
      %v699 = vsel %vm694, %v664, %v698
      %vm700 = vcmp.eq.s32.totalorder %v689, %v699
      %vm701 = vcmp.eq.s32.totalorder %v690, %v699
      %vm702 = vcmp.eq.s32.totalorder %v691, %v699
      %vm703 = vcmp.eq.s32.totalorder %v692, %v699
      %vm704 = vcmp.eq.s32.totalorder %v693, %v699
      %v705 = vld [vmem:[%s7] sm:$0xff]
      %vm706 = vcmask 261120
      %v707 = vsel %vm706, %v652, 0.0
      %708 = vadd.xlane.f32.xlu0 %v707
      %v709 = vpop.xlane.xlu0 %708
      %v710 = vsel %vm706, %v653, 0.0
      %711 = vadd.xlane.f32.xlu0 %v710
      %v712 = vpop.xlane.xlu0 %711
      %v713 = vsel %vm706, %v654, 0.0
      %714 = vadd.xlane.f32.xlu0 %v713
      %v715 = vpop.xlane.xlu0 %714
      %v716 = vsel %vm706, %v655, 0.0
      %717 = vadd.xlane.f32.xlu0 %v716
      %v718 = vpop.xlane.xlu0 %717
      %v719 = vsel %vm706, %v656, 0.0
      %720 = vadd.xlane.f32.xlu0 %v719
      %v721 = vpop.xlane.xlu0 %720
      %v722 = vrcp.pop 32.0
      %v723 = vmul.f32 %v709, %v722
      %v724 = vmul.f32 %v712, %v722
      %v725 = vmul.f32 %v715, %v722
      %v726 = vmul.f32 %v718, %v722
      %v727 = vmul.f32 %v721, %v722
      %v728 = vsub.f32 %v652, %v723
      %v729 = vsub.f32 %v653, %v724
      %v730 = vsub.f32 %v654, %v725
      %v731 = vsub.f32 %v655, %v726
      %v732 = vsub.f32 %v656, %v727
      %v733 = vmul.f32 %v728, %v728
      %v734 = vmul.f32 %v729, %v729
      %v735 = vmul.f32 %v730, %v730
      %v736 = vmul.f32 %v731, %v731
      %v737 = vmul.f32 %v732, %v732
      %v738 = vsel %vm706, %v733, 0.0
      %739 = vadd.xlane.f32.xlu0 %v738
      %v740 = vpop.xlane.xlu0 %739
      %v741 = vsel %vm706, %v734, 0.0
      %742 = vadd.xlane.f32.xlu0 %v741
      %v743 = vpop.xlane.xlu0 %742
      %v744 = vsel %vm706, %v735, 0.0
      %745 = vadd.xlane.f32.xlu0 %v744
      %v746 = vpop.xlane.xlu0 %745
      %v747 = vsel %vm706, %v736, 0.0
      %748 = vadd.xlane.f32.xlu0 %v747
      %v749 = vpop.xlane.xlu0 %748
      %v750 = vsel %vm706, %v737, 0.0
      %751 = vadd.xlane.f32.xlu0 %v750
      %v752 = vpop.xlane.xlu0 %751
      %v753 = vmul.f32 %v740, %v722
      %v754 = vmul.f32 %v743, %v722
      %v755 = vmul.f32 %v746, %v722
      %v756 = vmul.f32 %v749, %v722
      %v757 = vmul.f32 %v752, %v722
      %v758 = vadd.f32 %v753, 1e-06
      %v759 = vadd.f32 %v754, 1e-06
      %v760 = vadd.f32 %v755, 1e-06
      %v761 = vadd.f32 %v756, 1e-06
      %v762 = vadd.f32 %v757, 1e-06
      %v763 = vrsqrt.pop %v758
      %v764 = vrsqrt.pop %v759
      %v765 = vrsqrt.pop %v760
      %v766 = vrsqrt.pop %v761
      %v767 = vrsqrt.pop %v762
      %v768 = vmul.f32 %v728, %v763
      %v769 = vmul.f32 %v729, %v764
      %v770 = vmul.f32 %v730, %v765
      %v771 = vmul.f32 %v731, %v766
      %v772 = vmul.f32 %v732, %v767
      %v773 = vlaneseq
      %v774 = vshrl.u32 %v773, 7
      %v775 = vsub.s32 0, %v774
      %v776 = vrot.slane %v705, %v775
      %v777 = vmul.f32 %v768, %v776
      %v778 = vmul.f32 %v769, %v776
      %v779 = vmul.f32 %v770, %v776
      %v780 = vmul.f32 %v771, %v776
      %v781 = vmul.f32 %v772, %v776
      %v782 = vlaneseq
      %v783 = vshrl.u32 %v782, 7
      %v784 = vsub.s32 1, %v783
      %v785 = vrot.slane %v705, %v784
      %v786 = vadd.f32 %v777, %v785
      %v787 = vadd.f32 %v778, %v785
      %v788 = vadd.f32 %v779, %v785
      %v789 = vadd.f32 %v780, %v785
      %v790 = vadd.f32 %v781, %v785
      %v791 = vld [vmem:[%s3] sm:$0xf]
      %v792 = vld [vmem:[%s3 + $0x4] sm:$0xf]
      %v793 = vld [vmem:[%s3 + $0x8] sm:$0xf]
      %v794 = vld [vmem:[%s3 + $0xc] sm:$0xf]
      %v795 = vld [vmem:[%s4] sm:$0xf]
      %v796 = vld [vmem:[%s4 + $0x4] sm:$0xf]
      %v797 = vld [vmem:[%s4 + $0x8] sm:$0xf]
      %v798 = vld [vmem:[%s4 + $0xc] sm:$0xf]
      %v799 = vpack.c.bf16 %v787, %v786
      %v800 = vpack.c.bf16 %v789, %v788
      %v801 = vpack.c.bf16 %v790, %v790
      %v802 = vlaneseq
      %v803 = vshrl.u32 %v802, 7
      %v804 = vsub.s32 4, %v803
      %v805 = vrot.slane %v705, %v804
      %v810 = vunpack.c.l.b16 %v791
      %v811 = vunpack.c.l.b16 %v792
      %v812 = vunpack.c.l.b16 %v793
      %v813 = vunpack.c.l.b16 %v794
      %v814 = vpack.c.b16 %v811, %v810
      %v815 = vpack.c.b16 %v813, %v812
      %v819 = vsel %vm706, %v799, 0
      %v822 = vsel %vm706, %v800, 0
      %v825 = vsel %vm706, %v801, 0
      %827 = vmatprep.subr.bf16.mxu0 0
      %828 = vmatpush1.bf16.msra.mxu0 %v814
      %829 = vmatprep.subr.bf16.mxu0 0
      %830 = vmatpush1.bf16.msra.mxu0 %v815
      %831 = vmatprep.subr.bf16.mxu0 0
      %832 = vmatpush1.bf16.msra.mxu0 0
      %833 = vmatprep.subr.bf16.mxu0 0
      %834 = vmatpush1.bf16.msra.mxu0 0
      %835 = vmatprep.subr.bf16.mxu0 0
      %836 = vmatpush1.bf16.msra.mxu0 0
      %837 = vmatprep.subr.bf16.mxu0 0
      %838 = vmatpush1.bf16.msra.mxu0 0
      %839 = vmatprep.subr.bf16.mxu0 0
      %840 = vmatpush1.bf16.msra.mxu0 0
      %841 = vmatprep.subr.bf16.mxu0 0
      %842 = vmatpush1.bf16.msra.mxu0 0
      %843 = vmatprep.subr.bf16.mxu0 0
      %844 = vmatpush1.bf16.msra.mxu0 0
      %845 = vmatprep.subr.bf16.mxu0 0
      %846 = vmatpush1.bf16.msra.mxu0 0
      %847 = vmatprep.subr.bf16.mxu0 0
      %848 = vmatpush1.bf16.msra.mxu0 0
      %849 = vmatprep.subr.bf16.mxu0 0
      %850 = vmatpush1.bf16.msra.mxu0 0
      %851 = vmatprep.subr.bf16.mxu0 0
      %852 = vmatpush1.bf16.msra.mxu0 0
      %853 = vmatprep.subr.bf16.mxu0 0
      %854 = vmatpush1.bf16.msra.mxu0 0
      %855 = vmatprep.subr.bf16.mxu0 0
      %856 = vmatpush1.bf16.msra.mxu0 0
      %857 = vmatprep.subr.bf16.mxu0 0
      %858 = vmatpush1.bf16.msra.mxu0 0
      %859 = vmatprep.mubr.bf16.mxu0 0
      %860 = vmatmul.mubr.bf16.gmra.mrb[0].mxu0 %v819
      %v861 = vpop.f32.mrb[0].mxu0
      %v862 = vadd.f32 %v805, %v861
      %v863 = vpop.f32.mrb[0].mxu0
      %v864 = vpop.f32.mrb[0].mxu0
      %v865 = vadd.f32 %v805, %v864
      %v866 = vpop.f32.mrb[0].mxu0
      %867 = vmatprep.mubr.bf16.mxu0 0
      %868 = vmatmul.mubr.bf16.gmra.mrb[0].mxu0 %v822
      %v869 = vpop.f32.mrb[0].mxu0
      %v870 = vadd.f32 %v805, %v869
      %v871 = vpop.f32.mrb[0].mxu0
      %v872 = vpop.f32.mrb[0].mxu0
      %v873 = vadd.f32 %v805, %v872
      %v874 = vpop.f32.mrb[0].mxu0
      %875 = vmatprep.mubr.bf16.mxu0 0
      %876 = vmatmul.mubr.bf16.gmra.mrb[0].mxu0 %v825
      %v877 = vpop.f32.mrb[0].mxu0
      %v878 = vadd.f32 %v805, %v877
      %v879 = vpop.f32.mrb[0].mxu0
      %v880 = vpop.f32.mrb[0].mxu0
      %v881 = vpop.f32.mrb[0].mxu0
      %882 = vdwg.mxu0
      %888 = vrot.lane.b32.xlu0 %v862, 96
      %v889 = vpop.permute.xlu0 %888
      %890 = vrot.lane.b32.xlu0 %v865, 96
      %v891 = vpop.permute.xlu0 %890
      %892 = vrot.lane.b32.xlu0 %v870, 96
      %v893 = vpop.permute.xlu0 %892
      %894 = vrot.lane.b32.xlu0 %v873, 96
      %v895 = vpop.permute.xlu0 %894
      %896 = vrot.lane.b32.xlu0 %v878, 96
      %v897 = vpop.permute.xlu0 %896
      %903 = vxpose.xlu0.b32.start [1/16] %v889, 128
      %904 = vxpose.xlu0.b32.cont [2/16] %v891, 128
      %905 = vxpose.xlu0.b32.cont [3/16] %v893, 128
      %906 = vxpose.xlu0.b32.cont [4/16] %v895, 128
      %907 = vxpose.xlu0.b32.cont [5/16] %v897, 128
      %908 = vxpose.xlu0.b32.cont [6/16] 0.0, 128
      %909 = vxpose.xlu0.b32.cont [7/16] 0.0, 128
      %910 = vxpose.xlu0.b32.cont [8/16] 0.0, 128
      %911 = vxpose.xlu0.b32.cont [9/16] 0.0, 128
      %912 = vxpose.xlu0.b32.cont [10/16] 0.0, 128
      %913 = vxpose.xlu0.b32.cont [11/16] 0.0, 128
      %914 = vxpose.xlu0.b32.cont [12/16] 0.0, 128
      %915 = vxpose.xlu0.b32.cont [13/16] 0.0, 128
      %916 = vxpose.xlu0.b32.cont [14/16] 0.0, 128
      %917 = vxpose.xlu0.b32.cont [15/16] 0.0, 128
      %918 = vxpose.xlu0.b32.end [16/16] 0.0, 128
      %v919 = vpop.trf.xlu0
      %v920 = vpop.trf.xlu0
      %v921 = vpop.trf.xlu0
      %v922 = vpop.trf.xlu0
      %v923 = vpop.trf.xlu0
      %v924 = vpop.trf.xlu0
      %v925 = vpop.trf.xlu0
      %v926 = vpop.trf.xlu0
      %v927 = vpop.trf.xlu0
      %v928 = vpop.trf.xlu0
      %v929 = vpop.trf.xlu0
      %v930 = vpop.trf.xlu0
      %v931 = vpop.trf.xlu0
      %v932 = vpop.trf.xlu0
      %v933 = vpop.trf.xlu0
      %v934 = vpop.trf.xlu0
      %v935 = vpack.c.bf16 %v865, %v862
      %v936 = vpack.c.bf16 %v873, %v870
      %v937 = vpack.c.bf16 %v878, %v878
      %v938 = vpack.c.bf16 %v919, %v919
      %vm939 = vcmask 64512
      %v941 = vsel %vm939, %v935, 0
      %v944 = vsel %vm939, %v936, 0
      %v947 = vsel %vm939, %v937, 0
      %vm949 = vcmask 1043456
      %v951 = vsel %vm949, %v938, 0
      %953 = vmatprep.subr.bf16.mxu0 0
      %954 = vmatpush1.bf16.msra.mxu0 %v951
      %955 = vmatprep.subr.bf16.mxu0 0
      %956 = vmatpush1.bf16.msra.mxu0 0
      %957 = vmatprep.subr.bf16.mxu0 0
      %958 = vmatpush1.bf16.msra.mxu0 0
      %959 = vmatprep.subr.bf16.mxu0 0
      %960 = vmatpush1.bf16.msra.mxu0 0
      %961 = vmatprep.subr.bf16.mxu0 0
      %962 = vmatpush1.bf16.msra.mxu0 0
      %963 = vmatprep.subr.bf16.mxu0 0
      %964 = vmatpush1.bf16.msra.mxu0 0
      %965 = vmatprep.subr.bf16.mxu0 0
      %966 = vmatpush1.bf16.msra.mxu0 0
      %967 = vmatprep.subr.bf16.mxu0 0
      %968 = vmatpush1.bf16.msra.mxu0 0
      %969 = vmatprep.subr.bf16.mxu0 0
      %970 = vmatpush1.bf16.msra.mxu0 0
      %971 = vmatprep.subr.bf16.mxu0 0
      %972 = vmatpush1.bf16.msra.mxu0 0
      %973 = vmatprep.subr.bf16.mxu0 0
      %974 = vmatpush1.bf16.msra.mxu0 0
      %975 = vmatprep.subr.bf16.mxu0 0
      %976 = vmatpush1.bf16.msra.mxu0 0
      %977 = vmatprep.subr.bf16.mxu0 0
      %978 = vmatpush1.bf16.msra.mxu0 0
      %979 = vmatprep.subr.bf16.mxu0 0
      %980 = vmatpush1.bf16.msra.mxu0 0
      %981 = vmatprep.subr.bf16.mxu0 0
      %982 = vmatpush1.bf16.msra.mxu0 0
      %983 = vmatprep.subr.bf16.mxu0 0
      %984 = vmatpush1.bf16.msra.mxu0 0
      %985 = vmatprep.mubr.bf16.mxu0 0
      %986 = vmatmul.mubr.bf16.gmra.mrb[0].mxu0 %v941
      %v987 = vpop.f32.mrb[0].mxu0
      %v988 = vadd.f32 0.0, %v987
      %v989 = vpop.f32.mrb[0].mxu0
      %v990 = vpop.f32.mrb[0].mxu0
      %v991 = vadd.f32 0.0, %v990
      %v992 = vpop.f32.mrb[0].mxu0
      %993 = vmatprep.mubr.bf16.mxu0 0
      %994 = vmatmul.mubr.bf16.gmra.mrb[0].mxu0 %v944
      %v995 = vpop.f32.mrb[0].mxu0
      %v996 = vadd.f32 0.0, %v995
      %v997 = vpop.f32.mrb[0].mxu0
      %v998 = vpop.f32.mrb[0].mxu0
      %v999 = vadd.f32 0.0, %v998
      %v1000 = vpop.f32.mrb[0].mxu0
      %1001 = vmatprep.mubr.bf16.mxu0 0
      %1002 = vmatmul.mubr.bf16.gmra.mrb[0].mxu0 %v947
      %v1003 = vpop.f32.mrb[0].mxu0
      %v1004 = vadd.f32 0.0, %v1003
      %v1005 = vpop.f32.mrb[0].mxu0
      %v1006 = vpop.f32.mrb[0].mxu0
      %v1007 = vpop.f32.mrb[0].mxu0
      %1008 = vdwg.mxu0
      %v1009 = vsel %vm700, %v988, -1e+09
      %v1010 = vsel %vm701, %v991, -1e+09
      %v1011 = vsel %vm702, %v996, -1e+09
      %v1012 = vsel %vm703, %v999, -1e+09
      %v1013 = vsel %vm704, %v1004, -1e+09
      %vm1014 = vcmask 326656
      %v1015 = vsel %vm1014, %v1009, -inf
      %1016 = vmax.xlane.f32.xlu0 %v1015
      %v1017 = vpop.xlane.xlu0 %1016
      %v1018 = vsel %vm1014, %v1010, -inf
      %1019 = vmax.xlane.f32.xlu0 %v1018
      %v1020 = vpop.xlane.xlu0 %1019
      %v1021 = vsel %vm1014, %v1011, -inf
      %1022 = vmax.xlane.f32.xlu0 %v1021
      %v1023 = vpop.xlane.xlu0 %1022
      %v1024 = vsel %vm1014, %v1012, -inf
      %1025 = vmax.xlane.f32.xlu0 %v1024
      %v1026 = vpop.xlane.xlu0 %1025
      %v1027 = vsel %vm1014, %v1013, -inf
      %1028 = vmax.xlane.f32.xlu0 %v1027
      %v1029 = vpop.xlane.xlu0 %1028
      %v1030 = vsub.f32 %v1009, %v1017
      %v1031 = vsub.f32 %v1010, %v1020
      %v1032 = vsub.f32 %v1011, %v1023
      %v1033 = vsub.f32 %v1012, %v1026
      %v1034 = vsub.f32 %v1013, %v1029
      %v1035 = vmul.f32 %v1030, 1.442695
      %v1036 = vpow.pop %v1035
      %v1037 = vmul.f32 %v1031, 1.442695
      %v1038 = vpow.pop %v1037
      %v1039 = vmul.f32 %v1032, 1.442695
      %v1040 = vpow.pop %v1039
      %v1041 = vmul.f32 %v1033, 1.442695
      %v1042 = vpow.pop %v1041
      %v1043 = vmul.f32 %v1034, 1.442695
      %v1044 = vpow.pop %v1043
      %v1045 = vsel %vm1014, %v1036, 0.0
      %1046 = vadd.xlane.f32.xlu0 %v1045
      %v1047 = vpop.xlane.xlu0 %1046
      %v1048 = vsel %vm1014, %v1038, 0.0
      %1049 = vadd.xlane.f32.xlu0 %v1048
      %v1050 = vpop.xlane.xlu0 %1049
      %v1051 = vsel %vm1014, %v1040, 0.0
      %1052 = vadd.xlane.f32.xlu0 %v1051
      %v1053 = vpop.xlane.xlu0 %1052
      %v1054 = vsel %vm1014, %v1042, 0.0
      %1055 = vadd.xlane.f32.xlu0 %v1054
      %v1056 = vpop.xlane.xlu0 %1055
      %v1057 = vsel %vm1014, %v1044, 0.0
      %1058 = vadd.xlane.f32.xlu0 %v1057
      %v1059 = vpop.xlane.xlu0 %1058
      %v1060 = vrcp.pop %v1047
      %v1061 = vrcp.pop %v1050
      %v1062 = vrcp.pop %v1053
      %v1063 = vrcp.pop %v1056
      %v1064 = vrcp.pop %v1059
      %v1065 = vmul.f32 %v1036, %v1060
      %v1066 = vmul.f32 %v1038, %v1061
      %v1067 = vmul.f32 %v1040, %v1062
      %v1068 = vmul.f32 %v1042, %v1063
      %v1069 = vmul.f32 %v1044, %v1064
      %v1070 = vpack.c.bf16 %v1066, %v1065
      %v1071 = vpack.c.bf16 %v1068, %v1067
      %v1072 = vpack.c.bf16 %v1069, %v1069
      %1076 = vrot.lane.b32.xlu0 %v935, 64
      %v1077 = vpop.permute.xlu0 %1076
      %1078 = vrot.lane.b32.xlu0 %v936, 64
      %v1079 = vpop.permute.xlu0 %1078
      %1080 = vrot.lane.b32.xlu0 %v937, 64
      %v1081 = vpop.permute.xlu0 %1080
      %v1085 = vsel %vm1014, %v1070, 0
      %v1088 = vsel %vm1014, %v1071, 0
      %v1091 = vsel %vm1014, %v1072, 0
      %v1094 = vsel %vm949, %v1081, 0
      %1096 = vmatprep.subr.bf16.mxu0 0
      %1097 = vmatpush1.bf16.msra.mxu0 %v1077
      %1098 = vmatprep.subr.bf16.mxu0 0
      %1099 = vmatpush1.bf16.msra.mxu0 %v1079
      %1100 = vmatprep.subr.bf16.mxu0 0
      %1101 = vmatpush1.bf16.msra.mxu0 %v1094
      %1102 = vmatprep.subr.bf16.mxu0 0
      %1103 = vmatpush1.bf16.msra.mxu0 0
      %1104 = vmatprep.subr.bf16.mxu0 0
      %1105 = vmatpush1.bf16.msra.mxu0 0
      %1106 = vmatprep.subr.bf16.mxu0 0
      %1107 = vmatpush1.bf16.msra.mxu0 0
      %1108 = vmatprep.subr.bf16.mxu0 0
      %1109 = vmatpush1.bf16.msra.mxu0 0
      %1110 = vmatprep.subr.bf16.mxu0 0
      %1111 = vmatpush1.bf16.msra.mxu0 0
      %1112 = vmatprep.subr.bf16.mxu0 0
      %1113 = vmatpush1.bf16.msra.mxu0 0
      %1114 = vmatprep.subr.bf16.mxu0 0
      %1115 = vmatpush1.bf16.msra.mxu0 0
      %1116 = vmatprep.subr.bf16.mxu0 0
      %1117 = vmatpush1.bf16.msra.mxu0 0
      %1118 = vmatprep.subr.bf16.mxu0 0
      %1119 = vmatpush1.bf16.msra.mxu0 0
      %1120 = vmatprep.subr.bf16.mxu0 0
      %1121 = vmatpush1.bf16.msra.mxu0 0
      %1122 = vmatprep.subr.bf16.mxu0 0
      %1123 = vmatpush1.bf16.msra.mxu0 0
      %1124 = vmatprep.subr.bf16.mxu0 0
      %1125 = vmatpush1.bf16.msra.mxu0 0
      %1126 = vmatprep.subr.bf16.mxu0 0
      %1127 = vmatpush1.bf16.msra.mxu0 0
      %1128 = vmatprep.mubr.bf16.mxu0 0
      %1129 = vmatmul.mubr.bf16.gmra.mrb[0].mxu0 %v1085
      %v1130 = vpop.f32.mrb[0].mxu0
      %v1131 = vadd.f32 0.0, %v1130
      %v1132 = vpop.f32.mrb[0].mxu0
      %v1133 = vpop.f32.mrb[0].mxu0
      %v1134 = vadd.f32 0.0, %v1133
      %v1135 = vpop.f32.mrb[0].mxu0
      %1136 = vmatprep.mubr.bf16.mxu0 0
      %1137 = vmatmul.mubr.bf16.gmra.mrb[0].mxu0 %v1088
      %v1138 = vpop.f32.mrb[0].mxu0
      %v1139 = vadd.f32 0.0, %v1138
      %v1140 = vpop.f32.mrb[0].mxu0
      %v1141 = vpop.f32.mrb[0].mxu0
      %v1142 = vadd.f32 0.0, %v1141
      %v1143 = vpop.f32.mrb[0].mxu0
      %1144 = vmatprep.mubr.bf16.mxu0 0
      %1145 = vmatmul.mubr.bf16.gmra.mrb[0].mxu0 %v1091
      %v1146 = vpop.f32.mrb[0].mxu0
      %v1147 = vadd.f32 0.0, %v1146
      %v1148 = vpop.f32.mrb[0].mxu0
      %v1149 = vpop.f32.mrb[0].mxu0
      %v1150 = vpop.f32.mrb[0].mxu0
      %1151 = vdwg.mxu0
      %1152 = vrot.lane.b32.xlu0 %v862, 88
      %v1153 = vpop.permute.xlu0 %1152
      %1154 = vrot.lane.b32.xlu0 %v865, 88
      %v1155 = vpop.permute.xlu0 %1154
      %1156 = vrot.lane.b32.xlu0 %v870, 88
      %v1157 = vpop.permute.xlu0 %1156
      %1158 = vrot.lane.b32.xlu0 %v873, 88
      %v1159 = vpop.permute.xlu0 %1158
      %1160 = vrot.lane.b32.xlu0 %v878, 88
      %v1161 = vpop.permute.xlu0 %1160
      %1167 = vxpose.xlu0.b32.start [1/16] %v1153, 128
      %1168 = vxpose.xlu0.b32.cont [2/16] %v1155, 128
      %1169 = vxpose.xlu0.b32.cont [3/16] %v1157, 128
      %1170 = vxpose.xlu0.b32.cont [4/16] %v1159, 128
      %1171 = vxpose.xlu0.b32.cont [5/16] %v1161, 128
      %1172 = vxpose.xlu0.b32.cont [6/16] 0.0, 128
      %1173 = vxpose.xlu0.b32.cont [7/16] 0.0, 128
      %1174 = vxpose.xlu0.b32.cont [8/16] 0.0, 128
      %1175 = vxpose.xlu0.b32.cont [9/16] 0.0, 128
      %1176 = vxpose.xlu0.b32.cont [10/16] 0.0, 128
      %1177 = vxpose.xlu0.b32.cont [11/16] 0.0, 128
      %1178 = vxpose.xlu0.b32.cont [12/16] 0.0, 128
      %1179 = vxpose.xlu0.b32.cont [13/16] 0.0, 128
      %1180 = vxpose.xlu0.b32.cont [14/16] 0.0, 128
      %1181 = vxpose.xlu0.b32.cont [15/16] 0.0, 128
      %1182 = vxpose.xlu0.b32.end [16/16] 0.0, 128
      %v1183 = vpop.trf.xlu0
      %v1184 = vpop.trf.xlu0
      %v1185 = vpop.trf.xlu0
      %v1186 = vpop.trf.xlu0
      %v1187 = vpop.trf.xlu0
      %v1188 = vpop.trf.xlu0
      %v1189 = vpop.trf.xlu0
      %v1190 = vpop.trf.xlu0
      %v1191 = vpop.trf.xlu0
      %v1192 = vpop.trf.xlu0
      %v1193 = vpop.trf.xlu0
      %v1194 = vpop.trf.xlu0
      %v1195 = vpop.trf.xlu0
      %v1196 = vpop.trf.xlu0
      %v1197 = vpop.trf.xlu0
      %v1198 = vpop.trf.xlu0
      %v1199 = vpack.c.bf16 %v1183, %v1183
      %1200 = vrot.lane.b32.xlu0 %v935, 120
      %v1201 = vpop.permute.xlu0 %1200
      %1202 = vrot.lane.b32.xlu0 %v936, 120
      %v1203 = vpop.permute.xlu0 %1202
      %1204 = vrot.lane.b32.xlu0 %v937, 120
      %v1205 = vpop.permute.xlu0 %1204
      %v1207 = vsel %vm939, %v1201, 0
      %v1210 = vsel %vm939, %v1203, 0
      %v1213 = vsel %vm939, %v1205, 0
      %v1216 = vsel %vm949, %v1199, 0
      %1218 = vmatprep.subr.bf16.mxu0 0
      %1219 = vmatpush1.bf16.msra.mxu0 %v1216
      %1220 = vmatprep.subr.bf16.mxu0 0
      %1221 = vmatpush1.bf16.msra.mxu0 0
      %1222 = vmatprep.subr.bf16.mxu0 0
      %1223 = vmatpush1.bf16.msra.mxu0 0
      %1224 = vmatprep.subr.bf16.mxu0 0
      %1225 = vmatpush1.bf16.msra.mxu0 0
      %1226 = vmatprep.subr.bf16.mxu0 0
      %1227 = vmatpush1.bf16.msra.mxu0 0
      %1228 = vmatprep.subr.bf16.mxu0 0
      %1229 = vmatpush1.bf16.msra.mxu0 0
      %1230 = vmatprep.subr.bf16.mxu0 0
      %1231 = vmatpush1.bf16.msra.mxu0 0
      %1232 = vmatprep.subr.bf16.mxu0 0
      %1233 = vmatpush1.bf16.msra.mxu0 0
      %1234 = vmatprep.subr.bf16.mxu0 0
      %1235 = vmatpush1.bf16.msra.mxu0 0
      %1236 = vmatprep.subr.bf16.mxu0 0
      %1237 = vmatpush1.bf16.msra.mxu0 0
      %1238 = vmatprep.subr.bf16.mxu0 0
      %1239 = vmatpush1.bf16.msra.mxu0 0
      %1240 = vmatprep.subr.bf16.mxu0 0
      %1241 = vmatpush1.bf16.msra.mxu0 0
      %1242 = vmatprep.subr.bf16.mxu0 0
      %1243 = vmatpush1.bf16.msra.mxu0 0
      %1244 = vmatprep.subr.bf16.mxu0 0
      %1245 = vmatpush1.bf16.msra.mxu0 0
      %1246 = vmatprep.subr.bf16.mxu0 0
      %1247 = vmatpush1.bf16.msra.mxu0 0
      %1248 = vmatprep.subr.bf16.mxu0 0
      %1249 = vmatpush1.bf16.msra.mxu0 0
      %1250 = vmatprep.mubr.bf16.mxu0 0
      %1251 = vmatmul.mubr.bf16.gmra.mrb[0].mxu0 %v1207
      %v1252 = vpop.f32.mrb[0].mxu0
      %v1253 = vadd.f32 0.0, %v1252
      %v1254 = vpop.f32.mrb[0].mxu0
      %v1255 = vpop.f32.mrb[0].mxu0
      %v1256 = vadd.f32 0.0, %v1255
      %v1257 = vpop.f32.mrb[0].mxu0
      %1258 = vmatprep.mubr.bf16.mxu0 0
      %1259 = vmatmul.mubr.bf16.gmra.mrb[0].mxu0 %v1210
      %v1260 = vpop.f32.mrb[0].mxu0
      %v1261 = vadd.f32 0.0, %v1260
      %v1262 = vpop.f32.mrb[0].mxu0
      %v1263 = vpop.f32.mrb[0].mxu0
      %v1264 = vadd.f32 0.0, %v1263
      %v1265 = vpop.f32.mrb[0].mxu0
      %1266 = vmatprep.mubr.bf16.mxu0 0
      %1267 = vmatmul.mubr.bf16.gmra.mrb[0].mxu0 %v1213
      %v1268 = vpop.f32.mrb[0].mxu0
      %v1269 = vadd.f32 0.0, %v1268
      %v1270 = vpop.f32.mrb[0].mxu0
      %v1271 = vpop.f32.mrb[0].mxu0
      %v1272 = vpop.f32.mrb[0].mxu0
      %1273 = vdwg.mxu0
      %v1274 = vsel %vm700, %v1253, -1e+09
      %v1275 = vsel %vm701, %v1256, -1e+09
      %v1276 = vsel %vm702, %v1261, -1e+09
      %v1277 = vsel %vm703, %v1264, -1e+09
      %v1278 = vsel %vm704, %v1269, -1e+09
      %v1279 = vsel %vm1014, %v1274, -inf
      %1280 = vmax.xlane.f32.xlu0 %v1279
      %v1281 = vpop.xlane.xlu0 %1280
      %v1282 = vsel %vm1014, %v1275, -inf
      %1283 = vmax.xlane.f32.xlu0 %v1282
      %v1284 = vpop.xlane.xlu0 %1283
      %v1285 = vsel %vm1014, %v1276, -inf
      %1286 = vmax.xlane.f32.xlu0 %v1285
      %v1287 = vpop.xlane.xlu0 %1286
      %v1288 = vsel %vm1014, %v1277, -inf
      %1289 = vmax.xlane.f32.xlu0 %v1288
      %v1290 = vpop.xlane.xlu0 %1289
      %v1291 = vsel %vm1014, %v1278, -inf
      %1292 = vmax.xlane.f32.xlu0 %v1291
      %v1293 = vpop.xlane.xlu0 %1292
      %v1294 = vsub.f32 %v1274, %v1281
      %v1295 = vsub.f32 %v1275, %v1284
      %v1296 = vsub.f32 %v1276, %v1287
      %v1297 = vsub.f32 %v1277, %v1290
      %v1298 = vsub.f32 %v1278, %v1293
      %v1299 = vmul.f32 %v1294, 1.442695
      %v1300 = vpow.pop %v1299
      %v1301 = vmul.f32 %v1295, 1.442695
      %v1302 = vpow.pop %v1301
      %v1303 = vmul.f32 %v1296, 1.442695
      %v1304 = vpow.pop %v1303
      %v1305 = vmul.f32 %v1297, 1.442695
      %v1306 = vpow.pop %v1305
      %v1307 = vmul.f32 %v1298, 1.442695
      %v1308 = vpow.pop %v1307
      %v1309 = vsel %vm1014, %v1300, 0.0
      %1310 = vadd.xlane.f32.xlu0 %v1309
      %v1311 = vpop.xlane.xlu0 %1310
      %v1312 = vsel %vm1014, %v1302, 0.0
      %1313 = vadd.xlane.f32.xlu0 %v1312
      %v1314 = vpop.xlane.xlu0 %1313
      %v1315 = vsel %vm1014, %v1304, 0.0
      %1316 = vadd.xlane.f32.xlu0 %v1315
      %v1317 = vpop.xlane.xlu0 %1316
      %v1318 = vsel %vm1014, %v1306, 0.0
      %1319 = vadd.xlane.f32.xlu0 %v1318
      %v1320 = vpop.xlane.xlu0 %1319
      %v1321 = vsel %vm1014, %v1308, 0.0
      %1322 = vadd.xlane.f32.xlu0 %v1321
      %v1323 = vpop.xlane.xlu0 %1322
      %v1324 = vrcp.pop %v1311
      %v1325 = vrcp.pop %v1314
      %v1326 = vrcp.pop %v1317
      %v1327 = vrcp.pop %v1320
      %v1328 = vrcp.pop %v1323
      %v1329 = vmul.f32 %v1300, %v1324
      %v1330 = vmul.f32 %v1302, %v1325
      %v1331 = vmul.f32 %v1304, %v1326
      %v1332 = vmul.f32 %v1306, %v1327
      %v1333 = vmul.f32 %v1308, %v1328
      %v1334 = vpack.c.bf16 %v1330, %v1329
      %v1335 = vpack.c.bf16 %v1332, %v1331
      %v1336 = vpack.c.bf16 %v1333, %v1333
      %1337 = vrot.lane.b32.xlu0 %v935, 56
      %v1338 = vpop.permute.xlu0 %1337
      %1339 = vrot.lane.b32.xlu0 %v936, 56
      %v1340 = vpop.permute.xlu0 %1339
      %1341 = vrot.lane.b32.xlu0 %v937, 56
      %v1342 = vpop.permute.xlu0 %1341
      %v1346 = vsel %vm1014, %v1334, 0
      %v1349 = vsel %vm1014, %v1335, 0
      %v1352 = vsel %vm1014, %v1336, 0
      %v1355 = vsel %vm949, %v1342, 0
      %1357 = vmatprep.subr.bf16.mxu0 0
      %1358 = vmatpush1.bf16.msra.mxu0 %v1338
      %1359 = vmatprep.subr.bf16.mxu0 0
      %1360 = vmatpush1.bf16.msra.mxu0 %v1340
      %1361 = vmatprep.subr.bf16.mxu0 0
      %1362 = vmatpush1.bf16.msra.mxu0 %v1355
      %1363 = vmatprep.subr.bf16.mxu0 0
      %1364 = vmatpush1.bf16.msra.mxu0 0
      %1365 = vmatprep.subr.bf16.mxu0 0
      %1366 = vmatpush1.bf16.msra.mxu0 0
      %1367 = vmatprep.subr.bf16.mxu0 0
      %1368 = vmatpush1.bf16.msra.mxu0 0
      %1369 = vmatprep.subr.bf16.mxu0 0
      %1370 = vmatpush1.bf16.msra.mxu0 0
      %1371 = vmatprep.subr.bf16.mxu0 0
      %1372 = vmatpush1.bf16.msra.mxu0 0
      %1373 = vmatprep.subr.bf16.mxu0 0
      %1374 = vmatpush1.bf16.msra.mxu0 0
      %1375 = vmatprep.subr.bf16.mxu0 0
      %1376 = vmatpush1.bf16.msra.mxu0 0
      %1377 = vmatprep.subr.bf16.mxu0 0
      %1378 = vmatpush1.bf16.msra.mxu0 0
      %1379 = vmatprep.subr.bf16.mxu0 0
      %1380 = vmatpush1.bf16.msra.mxu0 0
      %1381 = vmatprep.subr.bf16.mxu0 0
      %1382 = vmatpush1.bf16.msra.mxu0 0
      %1383 = vmatprep.subr.bf16.mxu0 0
      %1384 = vmatpush1.bf16.msra.mxu0 0
      %1385 = vmatprep.subr.bf16.mxu0 0
      %1386 = vmatpush1.bf16.msra.mxu0 0
      %1387 = vmatprep.subr.bf16.mxu0 0
      %1388 = vmatpush1.bf16.msra.mxu0 0
      %1389 = vmatprep.mubr.bf16.mxu0 0
      %1390 = vmatmul.mubr.bf16.gmra.mrb[0].mxu0 %v1346
      %v1391 = vpop.f32.mrb[0].mxu0
      %v1392 = vadd.f32 0.0, %v1391
      %v1393 = vpop.f32.mrb[0].mxu0
      %v1394 = vpop.f32.mrb[0].mxu0
      %v1395 = vadd.f32 0.0, %v1394
      %v1396 = vpop.f32.mrb[0].mxu0
      %1397 = vmatprep.mubr.bf16.mxu0 0
      %1398 = vmatmul.mubr.bf16.gmra.mrb[0].mxu0 %v1349
      %v1399 = vpop.f32.mrb[0].mxu0
      %v1400 = vadd.f32 0.0, %v1399
      %v1401 = vpop.f32.mrb[0].mxu0
      %v1402 = vpop.f32.mrb[0].mxu0
      %v1403 = vadd.f32 0.0, %v1402
      %v1404 = vpop.f32.mrb[0].mxu0
      %1405 = vmatprep.mubr.bf16.mxu0 0
      %1406 = vmatmul.mubr.bf16.gmra.mrb[0].mxu0 %v1352
      %v1407 = vpop.f32.mrb[0].mxu0
      %v1408 = vadd.f32 0.0, %v1407
      %v1409 = vpop.f32.mrb[0].mxu0
      %v1410 = vpop.f32.mrb[0].mxu0
      %v1411 = vpop.f32.mrb[0].mxu0
      %1412 = vdwg.mxu0
      %1413 = vrot.lane.b32.xlu0 %v862, 80
      %v1414 = vpop.permute.xlu0 %1413
      %1415 = vrot.lane.b32.xlu0 %v865, 80
      %v1416 = vpop.permute.xlu0 %1415
      %1417 = vrot.lane.b32.xlu0 %v870, 80
      %v1418 = vpop.permute.xlu0 %1417
      %1419 = vrot.lane.b32.xlu0 %v873, 80
      %v1420 = vpop.permute.xlu0 %1419
      %1421 = vrot.lane.b32.xlu0 %v878, 80
      %v1422 = vpop.permute.xlu0 %1421
      %1428 = vxpose.xlu0.b32.start [1/16] %v1414, 128
      %1429 = vxpose.xlu0.b32.cont [2/16] %v1416, 128
      %1430 = vxpose.xlu0.b32.cont [3/16] %v1418, 128
      %1431 = vxpose.xlu0.b32.cont [4/16] %v1420, 128
      %1432 = vxpose.xlu0.b32.cont [5/16] %v1422, 128
      %1433 = vxpose.xlu0.b32.cont [6/16] 0.0, 128
      %1434 = vxpose.xlu0.b32.cont [7/16] 0.0, 128
      %1435 = vxpose.xlu0.b32.cont [8/16] 0.0, 128
      %1436 = vxpose.xlu0.b32.cont [9/16] 0.0, 128
      %1437 = vxpose.xlu0.b32.cont [10/16] 0.0, 128
      %1438 = vxpose.xlu0.b32.cont [11/16] 0.0, 128
      %1439 = vxpose.xlu0.b32.cont [12/16] 0.0, 128
      %1440 = vxpose.xlu0.b32.cont [13/16] 0.0, 128
      %1441 = vxpose.xlu0.b32.cont [14/16] 0.0, 128
      %1442 = vxpose.xlu0.b32.cont [15/16] 0.0, 128
      %1443 = vxpose.xlu0.b32.end [16/16] 0.0, 128
      %v1444 = vpop.trf.xlu0
      %v1445 = vpop.trf.xlu0
      %v1446 = vpop.trf.xlu0
      %v1447 = vpop.trf.xlu0
      %v1448 = vpop.trf.xlu0
      %v1449 = vpop.trf.xlu0
      %v1450 = vpop.trf.xlu0
      %v1451 = vpop.trf.xlu0
      %v1452 = vpop.trf.xlu0
      %v1453 = vpop.trf.xlu0
      %v1454 = vpop.trf.xlu0
      %v1455 = vpop.trf.xlu0
      %v1456 = vpop.trf.xlu0
      %v1457 = vpop.trf.xlu0
      %v1458 = vpop.trf.xlu0
      %v1459 = vpop.trf.xlu0
      %v1460 = vpack.c.bf16 %v1444, %v1444
      %1461 = vrot.lane.b32.xlu0 %v935, 112
      %v1462 = vpop.permute.xlu0 %1461
      %1463 = vrot.lane.b32.xlu0 %v936, 112
      %v1464 = vpop.permute.xlu0 %1463
      %1465 = vrot.lane.b32.xlu0 %v937, 112
      %v1466 = vpop.permute.xlu0 %1465
      %v1468 = vsel %vm939, %v1462, 0
      %v1471 = vsel %vm939, %v1464, 0
      %v1474 = vsel %vm939, %v1466, 0
      %v1477 = vsel %vm949, %v1460, 0
      %1479 = vmatprep.subr.bf16.mxu0 0
      %1480 = vmatpush1.bf16.msra.mxu0 %v1477
      %1481 = vmatprep.subr.bf16.mxu0 0
      %1482 = vmatpush1.bf16.msra.mxu0 0
      %1483 = vmatprep.subr.bf16.mxu0 0
      %1484 = vmatpush1.bf16.msra.mxu0 0
      %1485 = vmatprep.subr.bf16.mxu0 0
      %1486 = vmatpush1.bf16.msra.mxu0 0
      %1487 = vmatprep.subr.bf16.mxu0 0
      %1488 = vmatpush1.bf16.msra.mxu0 0
      %1489 = vmatprep.subr.bf16.mxu0 0
      %1490 = vmatpush1.bf16.msra.mxu0 0
      %1491 = vmatprep.subr.bf16.mxu0 0
      %1492 = vmatpush1.bf16.msra.mxu0 0
      %1493 = vmatprep.subr.bf16.mxu0 0
      %1494 = vmatpush1.bf16.msra.mxu0 0
      %1495 = vmatprep.subr.bf16.mxu0 0
      %1496 = vmatpush1.bf16.msra.mxu0 0
      %1497 = vmatprep.subr.bf16.mxu0 0
      %1498 = vmatpush1.bf16.msra.mxu0 0
      %1499 = vmatprep.subr.bf16.mxu0 0
      %1500 = vmatpush1.bf16.msra.mxu0 0
      %1501 = vmatprep.subr.bf16.mxu0 0
      %1502 = vmatpush1.bf16.msra.mxu0 0
      %1503 = vmatprep.subr.bf16.mxu0 0
      %1504 = vmatpush1.bf16.msra.mxu0 0
      %1505 = vmatprep.subr.bf16.mxu0 0
      %1506 = vmatpush1.bf16.msra.mxu0 0
      %1507 = vmatprep.subr.bf16.mxu0 0
      %1508 = vmatpush1.bf16.msra.mxu0 0
      %1509 = vmatprep.subr.bf16.mxu0 0
      %1510 = vmatpush1.bf16.msra.mxu0 0
      %1511 = vmatprep.mubr.bf16.mxu0 0
      %1512 = vmatmul.mubr.bf16.gmra.mrb[0].mxu0 %v1468
      %v1513 = vpop.f32.mrb[0].mxu0
      %v1514 = vadd.f32 0.0, %v1513
      %v1515 = vpop.f32.mrb[0].mxu0
      %v1516 = vpop.f32.mrb[0].mxu0
      %v1517 = vadd.f32 0.0, %v1516
      %v1518 = vpop.f32.mrb[0].mxu0
      %1519 = vmatprep.mubr.bf16.mxu0 0
      %1520 = vmatmul.mubr.bf16.gmra.mrb[0].mxu0 %v1471
      %v1521 = vpop.f32.mrb[0].mxu0
      %v1522 = vadd.f32 0.0, %v1521
      %v1523 = vpop.f32.mrb[0].mxu0
      %v1524 = vpop.f32.mrb[0].mxu0
      %v1525 = vadd.f32 0.0, %v1524
      %v1526 = vpop.f32.mrb[0].mxu0
      %1527 = vmatprep.mubr.bf16.mxu0 0
      %1528 = vmatmul.mubr.bf16.gmra.mrb[0].mxu0 %v1474
      %v1529 = vpop.f32.mrb[0].mxu0
      %v1530 = vadd.f32 0.0, %v1529
      %v1531 = vpop.f32.mrb[0].mxu0
      %v1532 = vpop.f32.mrb[0].mxu0
      %v1533 = vpop.f32.mrb[0].mxu0
      %1534 = vdwg.mxu0
      %v1535 = vsel %vm700, %v1514, -1e+09
      %v1536 = vsel %vm701, %v1517, -1e+09
      %v1537 = vsel %vm702, %v1522, -1e+09
      %v1538 = vsel %vm703, %v1525, -1e+09
      %v1539 = vsel %vm704, %v1530, -1e+09
      %v1540 = vsel %vm1014, %v1535, -inf
      %1541 = vmax.xlane.f32.xlu0 %v1540
      %v1542 = vpop.xlane.xlu0 %1541
      %v1543 = vsel %vm1014, %v1536, -inf
      %1544 = vmax.xlane.f32.xlu0 %v1543
      %v1545 = vpop.xlane.xlu0 %1544
      %v1546 = vsel %vm1014, %v1537, -inf
      %1547 = vmax.xlane.f32.xlu0 %v1546
      %v1548 = vpop.xlane.xlu0 %1547
      %v1549 = vsel %vm1014, %v1538, -inf
      %1550 = vmax.xlane.f32.xlu0 %v1549
      %v1551 = vpop.xlane.xlu0 %1550
      %v1552 = vsel %vm1014, %v1539, -inf
      %1553 = vmax.xlane.f32.xlu0 %v1552
      %v1554 = vpop.xlane.xlu0 %1553
      %v1555 = vsub.f32 %v1535, %v1542
      %v1556 = vsub.f32 %v1536, %v1545
      %v1557 = vsub.f32 %v1537, %v1548
      %v1558 = vsub.f32 %v1538, %v1551
      %v1559 = vsub.f32 %v1539, %v1554
      %v1560 = vmul.f32 %v1555, 1.442695
      %v1561 = vpow.pop %v1560
      %v1562 = vmul.f32 %v1556, 1.442695
      %v1563 = vpow.pop %v1562
      %v1564 = vmul.f32 %v1557, 1.442695
      %v1565 = vpow.pop %v1564
      %v1566 = vmul.f32 %v1558, 1.442695
      %v1567 = vpow.pop %v1566
      %v1568 = vmul.f32 %v1559, 1.442695
      %v1569 = vpow.pop %v1568
      %v1570 = vsel %vm1014, %v1561, 0.0
      %1571 = vadd.xlane.f32.xlu0 %v1570
      %v1572 = vpop.xlane.xlu0 %1571
      %v1573 = vsel %vm1014, %v1563, 0.0
      %1574 = vadd.xlane.f32.xlu0 %v1573
      %v1575 = vpop.xlane.xlu0 %1574
      %v1576 = vsel %vm1014, %v1565, 0.0
      %1577 = vadd.xlane.f32.xlu0 %v1576
      %v1578 = vpop.xlane.xlu0 %1577
      %v1579 = vsel %vm1014, %v1567, 0.0
      %1580 = vadd.xlane.f32.xlu0 %v1579
      %v1581 = vpop.xlane.xlu0 %1580
      %v1582 = vsel %vm1014, %v1569, 0.0
      %1583 = vadd.xlane.f32.xlu0 %v1582
      %v1584 = vpop.xlane.xlu0 %1583
      %v1585 = vrcp.pop %v1572
      %v1586 = vrcp.pop %v1575
      %v1587 = vrcp.pop %v1578
      %v1588 = vrcp.pop %v1581
      %v1589 = vrcp.pop %v1584
      %v1590 = vmul.f32 %v1561, %v1585
      %v1591 = vmul.f32 %v1563, %v1586
      %v1592 = vmul.f32 %v1565, %v1587
      %v1593 = vmul.f32 %v1567, %v1588
      %v1594 = vmul.f32 %v1569, %v1589
      %v1595 = vpack.c.bf16 %v1591, %v1590
      %v1596 = vpack.c.bf16 %v1593, %v1592
      %v1597 = vpack.c.bf16 %v1594, %v1594
      %1598 = vrot.lane.b32.xlu0 %v935, 48
      %v1599 = vpop.permute.xlu0 %1598
      %1600 = vrot.lane.b32.xlu0 %v936, 48
      %v1601 = vpop.permute.xlu0 %1600
      %1602 = vrot.lane.b32.xlu0 %v937, 48
      %v1603 = vpop.permute.xlu0 %1602
      %v1607 = vsel %vm1014, %v1595, 0
      %v1610 = vsel %vm1014, %v1596, 0
      %v1613 = vsel %vm1014, %v1597, 0
      %v1616 = vsel %vm949, %v1603, 0
      %1618 = vmatprep.subr.bf16.mxu0 0
      %1619 = vmatpush1.bf16.msra.mxu0 %v1599
      %1620 = vmatprep.subr.bf16.mxu0 0
      %1621 = vmatpush1.bf16.msra.mxu0 %v1601
      %1622 = vmatprep.subr.bf16.mxu0 0
      %1623 = vmatpush1.bf16.msra.mxu0 %v1616
      %1624 = vmatprep.subr.bf16.mxu0 0
      %1625 = vmatpush1.bf16.msra.mxu0 0
      %1626 = vmatprep.subr.bf16.mxu0 0
      %1627 = vmatpush1.bf16.msra.mxu0 0
      %1628 = vmatprep.subr.bf16.mxu0 0
      %1629 = vmatpush1.bf16.msra.mxu0 0
      %1630 = vmatprep.subr.bf16.mxu0 0
      %1631 = vmatpush1.bf16.msra.mxu0 0
      %1632 = vmatprep.subr.bf16.mxu0 0
      %1633 = vmatpush1.bf16.msra.mxu0 0
      %1634 = vmatprep.subr.bf16.mxu0 0
      %1635 = vmatpush1.bf16.msra.mxu0 0
      %1636 = vmatprep.subr.bf16.mxu0 0
      %1637 = vmatpush1.bf16.msra.mxu0 0
      %1638 = vmatprep.subr.bf16.mxu0 0
      %1639 = vmatpush1.bf16.msra.mxu0 0
      %1640 = vmatprep.subr.bf16.mxu0 0
      %1641 = vmatpush1.bf16.msra.mxu0 0
      %1642 = vmatprep.subr.bf16.mxu0 0
      %1643 = vmatpush1.bf16.msra.mxu0 0
      %1644 = vmatprep.subr.bf16.mxu0 0
      %1645 = vmatpush1.bf16.msra.mxu0 0
      %1646 = vmatprep.subr.bf16.mxu0 0
      %1647 = vmatpush1.bf16.msra.mxu0 0
      %1648 = vmatprep.subr.bf16.mxu0 0
      %1649 = vmatpush1.bf16.msra.mxu0 0
      %1650 = vmatprep.mubr.bf16.mxu0 0
      %1651 = vmatmul.mubr.bf16.gmra.mrb[0].mxu0 %v1607
      %v1652 = vpop.f32.mrb[0].mxu0
      %v1653 = vadd.f32 0.0, %v1652
      %v1654 = vpop.f32.mrb[0].mxu0
      %v1655 = vpop.f32.mrb[0].mxu0
      %v1656 = vadd.f32 0.0, %v1655
      %v1657 = vpop.f32.mrb[0].mxu0
      %1658 = vmatprep.mubr.bf16.mxu0 0
      %1659 = vmatmul.mubr.bf16.gmra.mrb[0].mxu0 %v1610
      %v1660 = vpop.f32.mrb[0].mxu0
      %v1661 = vadd.f32 0.0, %v1660
      %v1662 = vpop.f32.mrb[0].mxu0
      %v1663 = vpop.f32.mrb[0].mxu0
      %v1664 = vadd.f32 0.0, %v1663
      %v1665 = vpop.f32.mrb[0].mxu0
      %1666 = vmatprep.mubr.bf16.mxu0 0
      %1667 = vmatmul.mubr.bf16.gmra.mrb[0].mxu0 %v1613
      %v1668 = vpop.f32.mrb[0].mxu0
      %v1669 = vadd.f32 0.0, %v1668
      %v1670 = vpop.f32.mrb[0].mxu0
      %v1671 = vpop.f32.mrb[0].mxu0
      %v1672 = vpop.f32.mrb[0].mxu0
      %1673 = vdwg.mxu0
      %1674 = vrot.lane.b32.xlu0 %v862, 72
      %v1675 = vpop.permute.xlu0 %1674
      %1676 = vrot.lane.b32.xlu0 %v865, 72
      %v1677 = vpop.permute.xlu0 %1676
      %1678 = vrot.lane.b32.xlu0 %v870, 72
      %v1679 = vpop.permute.xlu0 %1678
      %1680 = vrot.lane.b32.xlu0 %v873, 72
      %v1681 = vpop.permute.xlu0 %1680
      %1682 = vrot.lane.b32.xlu0 %v878, 72
      %v1683 = vpop.permute.xlu0 %1682
      %1689 = vxpose.xlu0.b32.start [1/16] %v1675, 128
      %1690 = vxpose.xlu0.b32.cont [2/16] %v1677, 128
      %1691 = vxpose.xlu0.b32.cont [3/16] %v1679, 128
      %1692 = vxpose.xlu0.b32.cont [4/16] %v1681, 128
      %1693 = vxpose.xlu0.b32.cont [5/16] %v1683, 128
      %1694 = vxpose.xlu0.b32.cont [6/16] 0.0, 128
      %1695 = vxpose.xlu0.b32.cont [7/16] 0.0, 128
      %1696 = vxpose.xlu0.b32.cont [8/16] 0.0, 128
      %1697 = vxpose.xlu0.b32.cont [9/16] 0.0, 128
      %1698 = vxpose.xlu0.b32.cont [10/16] 0.0, 128
      %1699 = vxpose.xlu0.b32.cont [11/16] 0.0, 128
      %1700 = vxpose.xlu0.b32.cont [12/16] 0.0, 128
      %1701 = vxpose.xlu0.b32.cont [13/16] 0.0, 128
      %1702 = vxpose.xlu0.b32.cont [14/16] 0.0, 128
      %1703 = vxpose.xlu0.b32.cont [15/16] 0.0, 128
      %1704 = vxpose.xlu0.b32.end [16/16] 0.0, 128
      %v1705 = vpop.trf.xlu0
      %v1706 = vpop.trf.xlu0
      %v1707 = vpop.trf.xlu0
      %v1708 = vpop.trf.xlu0
      %v1709 = vpop.trf.xlu0
      %v1710 = vpop.trf.xlu0
      %v1711 = vpop.trf.xlu0
      %v1712 = vpop.trf.xlu0
      %v1713 = vpop.trf.xlu0
      %v1714 = vpop.trf.xlu0
      %v1715 = vpop.trf.xlu0
      %v1716 = vpop.trf.xlu0
      %v1717 = vpop.trf.xlu0
      %v1718 = vpop.trf.xlu0
      %v1719 = vpop.trf.xlu0
      %v1720 = vpop.trf.xlu0
      %v1721 = vpack.c.bf16 %v1705, %v1705
      %1722 = vrot.lane.b32.xlu0 %v935, 104
      %v1723 = vpop.permute.xlu0 %1722
      %1724 = vrot.lane.b32.xlu0 %v936, 104
      %v1725 = vpop.permute.xlu0 %1724
      %1726 = vrot.lane.b32.xlu0 %v937, 104
      %v1727 = vpop.permute.xlu0 %1726
      %v1729 = vsel %vm939, %v1723, 0
      %v1732 = vsel %vm939, %v1725, 0
      %v1735 = vsel %vm939, %v1727, 0
      %v1738 = vsel %vm949, %v1721, 0
      %1740 = vmatprep.subr.bf16.mxu0 0
      %1741 = vmatpush1.bf16.msra.mxu0 %v1738
      %1742 = vmatprep.subr.bf16.mxu0 0
      %1743 = vmatpush1.bf16.msra.mxu0 0
      %1744 = vmatprep.subr.bf16.mxu0 0
      %1745 = vmatpush1.bf16.msra.mxu0 0
      %1746 = vmatprep.subr.bf16.mxu0 0
      %1747 = vmatpush1.bf16.msra.mxu0 0
      %1748 = vmatprep.subr.bf16.mxu0 0
      %1749 = vmatpush1.bf16.msra.mxu0 0
      %1750 = vmatprep.subr.bf16.mxu0 0
      %1751 = vmatpush1.bf16.msra.mxu0 0
      %1752 = vmatprep.subr.bf16.mxu0 0
      %1753 = vmatpush1.bf16.msra.mxu0 0
      %1754 = vmatprep.subr.bf16.mxu0 0
      %1755 = vmatpush1.bf16.msra.mxu0 0
      %1756 = vmatprep.subr.bf16.mxu0 0
      %1757 = vmatpush1.bf16.msra.mxu0 0
      %1758 = vmatprep.subr.bf16.mxu0 0
      %1759 = vmatpush1.bf16.msra.mxu0 0
      %1760 = vmatprep.subr.bf16.mxu0 0
      %1761 = vmatpush1.bf16.msra.mxu0 0
      %1762 = vmatprep.subr.bf16.mxu0 0
      %1763 = vmatpush1.bf16.msra.mxu0 0
      %1764 = vmatprep.subr.bf16.mxu0 0
      %1765 = vmatpush1.bf16.msra.mxu0 0
      %1766 = vmatprep.subr.bf16.mxu0 0
      %1767 = vmatpush1.bf16.msra.mxu0 0
      %1768 = vmatprep.subr.bf16.mxu0 0
      %1769 = vmatpush1.bf16.msra.mxu0 0
      %1770 = vmatprep.subr.bf16.mxu0 0
      %1771 = vmatpush1.bf16.msra.mxu0 0
      %1772 = vmatprep.mubr.bf16.mxu0 0
      %1773 = vmatmul.mubr.bf16.gmra.mrb[0].mxu0 %v1729
      %v1774 = vpop.f32.mrb[0].mxu0
      %v1775 = vadd.f32 0.0, %v1774
      %v1776 = vpop.f32.mrb[0].mxu0
      %v1777 = vpop.f32.mrb[0].mxu0
      %v1778 = vadd.f32 0.0, %v1777
      %v1779 = vpop.f32.mrb[0].mxu0
      %1780 = vmatprep.mubr.bf16.mxu0 0
      %1781 = vmatmul.mubr.bf16.gmra.mrb[0].mxu0 %v1732
      %v1782 = vpop.f32.mrb[0].mxu0
      %v1783 = vadd.f32 0.0, %v1782
      %v1784 = vpop.f32.mrb[0].mxu0
      %v1785 = vpop.f32.mrb[0].mxu0
      %v1786 = vadd.f32 0.0, %v1785
      %v1787 = vpop.f32.mrb[0].mxu0
      %1788 = vmatprep.mubr.bf16.mxu0 0
      %1789 = vmatmul.mubr.bf16.gmra.mrb[0].mxu0 %v1735
      %v1790 = vpop.f32.mrb[0].mxu0
      %v1791 = vadd.f32 0.0, %v1790
      %v1792 = vpop.f32.mrb[0].mxu0
      %v1793 = vpop.f32.mrb[0].mxu0
      %v1794 = vpop.f32.mrb[0].mxu0
      %1795 = vdwg.mxu0
      %v1796 = vsel %vm700, %v1775, -1e+09
      %v1797 = vsel %vm701, %v1778, -1e+09
      %v1798 = vsel %vm702, %v1783, -1e+09
      %v1799 = vsel %vm703, %v1786, -1e+09
      %v1800 = vsel %vm704, %v1791, -1e+09
      %v1801 = vsel %vm1014, %v1796, -inf
      %1802 = vmax.xlane.f32.xlu0 %v1801
      %v1803 = vpop.xlane.xlu0 %1802
      %v1804 = vsel %vm1014, %v1797, -inf
      %1805 = vmax.xlane.f32.xlu0 %v1804
      %v1806 = vpop.xlane.xlu0 %1805
      %v1807 = vsel %vm1014, %v1798, -inf
      %1808 = vmax.xlane.f32.xlu0 %v1807
      %v1809 = vpop.xlane.xlu0 %1808
      %v1810 = vsel %vm1014, %v1799, -inf
      %1811 = vmax.xlane.f32.xlu0 %v1810
      %v1812 = vpop.xlane.xlu0 %1811
      %v1813 = vsel %vm1014, %v1800, -inf
      %1814 = vmax.xlane.f32.xlu0 %v1813
      %v1815 = vpop.xlane.xlu0 %1814
      %v1816 = vsub.f32 %v1796, %v1803
      %v1817 = vsub.f32 %v1797, %v1806
      %v1818 = vsub.f32 %v1798, %v1809
      %v1819 = vsub.f32 %v1799, %v1812
      %v1820 = vsub.f32 %v1800, %v1815
      %v1821 = vmul.f32 %v1816, 1.442695
      %v1822 = vpow.pop %v1821
      %v1823 = vmul.f32 %v1817, 1.442695
      %v1824 = vpow.pop %v1823
      %v1825 = vmul.f32 %v1818, 1.442695
      %v1826 = vpow.pop %v1825
      %v1827 = vmul.f32 %v1819, 1.442695
      %v1828 = vpow.pop %v1827
      %v1829 = vmul.f32 %v1820, 1.442695
      %v1830 = vpow.pop %v1829
      %v1831 = vsel %vm1014, %v1822, 0.0
      %1832 = vadd.xlane.f32.xlu0 %v1831
      %v1833 = vpop.xlane.xlu0 %1832
      %v1834 = vsel %vm1014, %v1824, 0.0
      %1835 = vadd.xlane.f32.xlu0 %v1834
      %v1836 = vpop.xlane.xlu0 %1835
      %v1837 = vsel %vm1014, %v1826, 0.0
      %1838 = vadd.xlane.f32.xlu0 %v1837
      %v1839 = vpop.xlane.xlu0 %1838
      %v1840 = vsel %vm1014, %v1828, 0.0
      %1841 = vadd.xlane.f32.xlu0 %v1840
      %v1842 = vpop.xlane.xlu0 %1841
      %v1843 = vsel %vm1014, %v1830, 0.0
      %1844 = vadd.xlane.f32.xlu0 %v1843
      %v1845 = vpop.xlane.xlu0 %1844
      %v1846 = vrcp.pop %v1833
      %v1847 = vrcp.pop %v1836
      %v1848 = vrcp.pop %v1839
      %v1849 = vrcp.pop %v1842
      %v1850 = vrcp.pop %v1845
      %v1851 = vmul.f32 %v1822, %v1846
      %v1852 = vmul.f32 %v1824, %v1847
      %v1853 = vmul.f32 %v1826, %v1848
      %v1854 = vmul.f32 %v1828, %v1849
      %v1855 = vmul.f32 %v1830, %v1850
      %v1856 = vpack.c.bf16 %v1852, %v1851
      %v1857 = vpack.c.bf16 %v1854, %v1853
      %v1858 = vpack.c.bf16 %v1855, %v1855
      %1859 = vrot.lane.b32.xlu0 %v935, 40
      %v1860 = vpop.permute.xlu0 %1859
      %1861 = vrot.lane.b32.xlu0 %v936, 40
      %v1862 = vpop.permute.xlu0 %1861
      %1863 = vrot.lane.b32.xlu0 %v937, 40
      %v1864 = vpop.permute.xlu0 %1863
      %v1868 = vsel %vm1014, %v1856, 0
      %v1871 = vsel %vm1014, %v1857, 0
      %v1874 = vsel %vm1014, %v1858, 0
      %v1877 = vsel %vm949, %v1864, 0
      %1879 = vmatprep.subr.bf16.mxu0 0
      %1880 = vmatpush1.bf16.msra.mxu0 %v1860
      %1881 = vmatprep.subr.bf16.mxu0 0
      %1882 = vmatpush1.bf16.msra.mxu0 %v1862
      %1883 = vmatprep.subr.bf16.mxu0 0
      %1884 = vmatpush1.bf16.msra.mxu0 %v1877
      %1885 = vmatprep.subr.bf16.mxu0 0
      %1886 = vmatpush1.bf16.msra.mxu0 0
      %1887 = vmatprep.subr.bf16.mxu0 0
      %1888 = vmatpush1.bf16.msra.mxu0 0
      %1889 = vmatprep.subr.bf16.mxu0 0
      %1890 = vmatpush1.bf16.msra.mxu0 0
      %1891 = vmatprep.subr.bf16.mxu0 0
      %1892 = vmatpush1.bf16.msra.mxu0 0
      %1893 = vmatprep.subr.bf16.mxu0 0
      %1894 = vmatpush1.bf16.msra.mxu0 0
      %1895 = vmatprep.subr.bf16.mxu0 0
      %1896 = vmatpush1.bf16.msra.mxu0 0
      %1897 = vmatprep.subr.bf16.mxu0 0
      %1898 = vmatpush1.bf16.msra.mxu0 0
      %1899 = vmatprep.subr.bf16.mxu0 0
      %1900 = vmatpush1.bf16.msra.mxu0 0
      %1901 = vmatprep.subr.bf16.mxu0 0
      %1902 = vmatpush1.bf16.msra.mxu0 0
      %1903 = vmatprep.subr.bf16.mxu0 0
      %1904 = vmatpush1.bf16.msra.mxu0 0
      %1905 = vmatprep.subr.bf16.mxu0 0
      %1906 = vmatpush1.bf16.msra.mxu0 0
      %1907 = vmatprep.subr.bf16.mxu0 0
      %1908 = vmatpush1.bf16.msra.mxu0 0
      %1909 = vmatprep.subr.bf16.mxu0 0
      %1910 = vmatpush1.bf16.msra.mxu0 0
      %1911 = vmatprep.mubr.bf16.mxu0 0
      %1912 = vmatmul.mubr.bf16.gmra.mrb[0].mxu0 %v1868
      %v1913 = vpop.f32.mrb[0].mxu0
      %v1914 = vadd.f32 0.0, %v1913
      %v1915 = vpop.f32.mrb[0].mxu0
      %v1916 = vpop.f32.mrb[0].mxu0
      %v1917 = vadd.f32 0.0, %v1916
      %v1918 = vpop.f32.mrb[0].mxu0
      %1919 = vmatprep.mubr.bf16.mxu0 0
      %1920 = vmatmul.mubr.bf16.gmra.mrb[0].mxu0 %v1871
      %v1921 = vpop.f32.mrb[0].mxu0
      %v1922 = vadd.f32 0.0, %v1921
      %v1923 = vpop.f32.mrb[0].mxu0
      %v1924 = vpop.f32.mrb[0].mxu0
      %v1925 = vadd.f32 0.0, %v1924
      %v1926 = vpop.f32.mrb[0].mxu0
      %1927 = vmatprep.mubr.bf16.mxu0 0
      %1928 = vmatmul.mubr.bf16.gmra.mrb[0].mxu0 %v1874
      %v1929 = vpop.f32.mrb[0].mxu0
      %v1930 = vadd.f32 0.0, %v1929
      %v1931 = vpop.f32.mrb[0].mxu0
      %v1932 = vpop.f32.mrb[0].mxu0
      %v1933 = vpop.f32.mrb[0].mxu0
      %1934 = vdwg.mxu0
      %1940 = vrot.lane.b32.xlu0 %v1392, 8
      %v1941 = vpop.permute.xlu0 %1940
      %1942 = vrot.lane.b32.xlu0 %v1395, 8
      %v1943 = vpop.permute.xlu0 %1942
      %1944 = vrot.lane.b32.xlu0 %v1400, 8
      %v1945 = vpop.permute.xlu0 %1944
      %1946 = vrot.lane.b32.xlu0 %v1403, 8
      %v1947 = vpop.permute.xlu0 %1946
      %1948 = vrot.lane.b32.xlu0 %v1408, 8
      %v1949 = vpop.permute.xlu0 %1948
      %1960 = vrot.lane.b32.xlu0 %v1653, 16
      %v1961 = vpop.permute.xlu0 %1960
      %1962 = vrot.lane.b32.xlu0 %v1656, 16
      %v1963 = vpop.permute.xlu0 %1962
      %1964 = vrot.lane.b32.xlu0 %v1661, 16
      %v1965 = vpop.permute.xlu0 %1964
      %1966 = vrot.lane.b32.xlu0 %v1664, 16
      %v1967 = vpop.permute.xlu0 %1966
      %1968 = vrot.lane.b32.xlu0 %v1669, 16
      %v1969 = vpop.permute.xlu0 %1968
      %1980 = vrot.lane.b32.xlu0 %v1914, 24
      %v1981 = vpop.permute.xlu0 %1980
      %1982 = vrot.lane.b32.xlu0 %v1917, 24
      %v1983 = vpop.permute.xlu0 %1982
      %1984 = vrot.lane.b32.xlu0 %v1922, 24
      %v1985 = vpop.permute.xlu0 %1984
      %1986 = vrot.lane.b32.xlu0 %v1925, 24
      %v1987 = vpop.permute.xlu0 %1986
      %1988 = vrot.lane.b32.xlu0 %v1930, 24
      %v1989 = vpop.permute.xlu0 %1988
      %v1995 = vsel %vm939, %v1131, %v1941
      %v1996 = vsel %vm939, %v1134, %v1943
      %v1997 = vsel %vm939, %v1139, %v1945
      %v1998 = vsel %vm939, %v1142, %v1947
      %v1999 = vsel %vm939, %v1147, %v1949
      %vm2000 = vcmask 130048
      %v2001 = vsel %vm2000, %v1995, %v1961
      %v2002 = vsel %vm2000, %v1996, %v1963
      %v2003 = vsel %vm2000, %v1997, %v1965
      %v2004 = vsel %vm2000, %v1998, %v1967
      %v2005 = vsel %vm2000, %v1999, %v1969
      %vm2006 = vcmask 195584
      %v2007 = vsel %vm2006, %v2001, %v1981
      %v2008 = vsel %vm2006, %v2002, %v1983
      %v2009 = vsel %vm2006, %v2003, %v1985
      %v2010 = vsel %vm2006, %v2004, %v1987
      %v2011 = vsel %vm2006, %v2005, %v1989
      %v2012 = vpack.c.bf16 %v2008, %v2007
      %v2013 = vpack.c.bf16 %v2010, %v2009
      %v2014 = vpack.c.bf16 %v2011, %v2011
      %v2015 = vlaneseq
      %v2016 = vshrl.u32 %v2015, 7
      %v2017 = vsub.s32 5, %v2016
      %v2018 = vrot.slane %v705, %v2017
      %v2023 = vunpack.c.l.b16 %v795
      %v2024 = vunpack.c.l.b16 %v796
      %v2025 = vunpack.c.l.b16 %v797
      %v2026 = vunpack.c.l.b16 %v798
      %v2027 = vpack.c.b16 %v2024, %v2023
      %v2028 = vpack.c.b16 %v2026, %v2025
      %v2032 = vsel %vm706, %v2012, 0
      %v2035 = vsel %vm706, %v2013, 0
      %v2038 = vsel %vm706, %v2014, 0
      %2040 = vmatprep.subr.bf16.mxu0 0
      %2041 = vmatpush1.bf16.msra.mxu0 %v2027
      %2042 = vmatprep.subr.bf16.mxu0 0
      %2043 = vmatpush1.bf16.msra.mxu0 %v2028
      %2044 = vmatprep.subr.bf16.mxu0 0
      %2045 = vmatpush1.bf16.msra.mxu0 0
      %2046 = vmatprep.subr.bf16.mxu0 0
      %2047 = vmatpush1.bf16.msra.mxu0 0
      %2048 = vmatprep.subr.bf16.mxu0 0
      %2049 = vmatpush1.bf16.msra.mxu0 0
      %2050 = vmatprep.subr.bf16.mxu0 0
      %2051 = vmatpush1.bf16.msra.mxu0 0
      %2052 = vmatprep.subr.bf16.mxu0 0
      %2053 = vmatpush1.bf16.msra.mxu0 0
      %2054 = vmatprep.subr.bf16.mxu0 0
      %2055 = vmatpush1.bf16.msra.mxu0 0
      %2056 = vmatprep.subr.bf16.mxu0 0
      %2057 = vmatpush1.bf16.msra.mxu0 0
      %2058 = vmatprep.subr.bf16.mxu0 0
      %2059 = vmatpush1.bf16.msra.mxu0 0
      %2060 = vmatprep.subr.bf16.mxu0 0
      %2061 = vmatpush1.bf16.msra.mxu0 0
      %2062 = vmatprep.subr.bf16.mxu0 0
      %2063 = vmatpush1.bf16.msra.mxu0 0
      %2064 = vmatprep.subr.bf16.mxu0 0
      %2065 = vmatpush1.bf16.msra.mxu0 0
      %2066 = vmatprep.subr.bf16.mxu0 0
      %2067 = vmatpush1.bf16.msra.mxu0 0
      %2068 = vmatprep.subr.bf16.mxu0 0
      %2069 = vmatpush1.bf16.msra.mxu0 0
      %2070 = vmatprep.subr.bf16.mxu0 0
      %2071 = vmatpush1.bf16.msra.mxu0 0
      %2072 = vmatprep.mubr.bf16.mxu0 0
      %2073 = vmatmul.mubr.bf16.gmra.mrb[0].mxu0 %v2032
      %v2074 = vpop.f32.mrb[0].mxu0
      %v2075 = vadd.f32 %v2018, %v2074
      %v2076 = vpop.f32.mrb[0].mxu0
      %v2077 = vpop.f32.mrb[0].mxu0
      %v2078 = vadd.f32 %v2018, %v2077
      %v2079 = vpop.f32.mrb[0].mxu0
      %2080 = vmatprep.mubr.bf16.mxu0 0
      %2081 = vmatmul.mubr.bf16.gmra.mrb[0].mxu0 %v2035
      %v2082 = vpop.f32.mrb[0].mxu0
      %v2083 = vadd.f32 %v2018, %v2082
      %v2084 = vpop.f32.mrb[0].mxu0
      %v2085 = vpop.f32.mrb[0].mxu0
      %v2086 = vadd.f32 %v2018, %v2085
      %v2087 = vpop.f32.mrb[0].mxu0
      %2088 = vmatprep.mubr.bf16.mxu0 0
      %2089 = vmatmul.mubr.bf16.gmra.mrb[0].mxu0 %v2038
      %v2090 = vpop.f32.mrb[0].mxu0
      %v2091 = vadd.f32 %v2018, %v2090
      %v2092 = vpop.f32.mrb[0].mxu0
      %v2093 = vpop.f32.mrb[0].mxu0
      %v2094 = vpop.f32.mrb[0].mxu0
      %2095 = vdwg.mxu0
      %v2096 = vadd.f32 %v652, %v2075
      %v2097 = vadd.f32 %v653, %v2078
      %v2098 = vadd.f32 %v654, %v2083
      %v2099 = vadd.f32 %v655, %v2086
      %v2100 = vadd.f32 %v656, %v2091
      %v2101 = vsel %vm706, %v2096, 0.0
      %2102 = vadd.xlane.f32.xlu0 %v2101
      %v2103 = vpop.xlane.xlu0 %2102
      %v2104 = vsel %vm706, %v2097, 0.0
      %2105 = vadd.xlane.f32.xlu0 %v2104
      %v2106 = vpop.xlane.xlu0 %2105
      %v2107 = vsel %vm706, %v2098, 0.0
      %2108 = vadd.xlane.f32.xlu0 %v2107
      %v2109 = vpop.xlane.xlu0 %2108
      %v2110 = vsel %vm706, %v2099, 0.0
      %2111 = vadd.xlane.f32.xlu0 %v2110
      %v2112 = vpop.xlane.xlu0 %2111
      %v2113 = vsel %vm706, %v2100, 0.0
      %2114 = vadd.xlane.f32.xlu0 %v2113
      %v2115 = vpop.xlane.xlu0 %2114
      %v2116 = vmul.f32 %v2103, %v722
      %v2117 = vmul.f32 %v2106, %v722
      %v2118 = vmul.f32 %v2109, %v722
      %v2119 = vmul.f32 %v2112, %v722
      %v2120 = vmul.f32 %v2115, %v722
      %v2121 = vsub.f32 %v2096, %v2116
      %v2122 = vsub.f32 %v2097, %v2117
      %v2123 = vsub.f32 %v2098, %v2118
      %v2124 = vsub.f32 %v2099, %v2119
      %v2125 = vsub.f32 %v2100, %v2120
      %v2126 = vmul.f32 %v2121, %v2121
      %v2127 = vmul.f32 %v2122, %v2122
      %v2128 = vmul.f32 %v2123, %v2123
      %v2129 = vmul.f32 %v2124, %v2124
      %v2130 = vmul.f32 %v2125, %v2125
      %v2131 = vsel %vm706, %v2126, 0.0
      %2132 = vadd.xlane.f32.xlu0 %v2131
      %v2133 = vpop.xlane.xlu0 %2132
      %v2134 = vsel %vm706, %v2127, 0.0
      %2135 = vadd.xlane.f32.xlu0 %v2134
      %v2136 = vpop.xlane.xlu0 %2135
      %v2137 = vsel %vm706, %v2128, 0.0
      %2138 = vadd.xlane.f32.xlu0 %v2137
      %v2139 = vpop.xlane.xlu0 %2138
      %v2140 = vsel %vm706, %v2129, 0.0
      %2141 = vadd.xlane.f32.xlu0 %v2140
      %v2142 = vpop.xlane.xlu0 %2141
      %v2143 = vsel %vm706, %v2130, 0.0
      %2144 = vadd.xlane.f32.xlu0 %v2143
      %v2145 = vpop.xlane.xlu0 %2144
      %v2146 = vmul.f32 %v2133, %v722
      %v2147 = vmul.f32 %v2136, %v722
      %v2148 = vmul.f32 %v2139, %v722
      %v2149 = vmul.f32 %v2142, %v722
      %v2150 = vmul.f32 %v2145, %v722
      %v2151 = vadd.f32 %v2146, 1e-06
      %v2152 = vadd.f32 %v2147, 1e-06
      %v2153 = vadd.f32 %v2148, 1e-06
      %v2154 = vadd.f32 %v2149, 1e-06
      %v2155 = vadd.f32 %v2150, 1e-06
      %v2156 = vrsqrt.pop %v2151
      %v2157 = vrsqrt.pop %v2152
      %v2158 = vrsqrt.pop %v2153
      %v2159 = vrsqrt.pop %v2154
      %v2160 = vrsqrt.pop %v2155
      %v2161 = vmul.f32 %v2121, %v2156
      %v2162 = vmul.f32 %v2122, %v2157
      %v2163 = vmul.f32 %v2123, %v2158
      %v2164 = vmul.f32 %v2124, %v2159
      %v2165 = vmul.f32 %v2125, %v2160
      %v2166 = vlaneseq
      %v2167 = vshrl.u32 %v2166, 7
      %v2168 = vsub.s32 2, %v2167
      %v2169 = vrot.slane %v705, %v2168
      %v2170 = vmul.f32 %v2161, %v2169
      %v2171 = vmul.f32 %v2162, %v2169
      %v2172 = vmul.f32 %v2163, %v2169
      %v2173 = vmul.f32 %v2164, %v2169
      %v2174 = vmul.f32 %v2165, %v2169
      %v2175 = vlaneseq
      %v2176 = vshrl.u32 %v2175, 7
      %v2177 = vsub.s32 3, %v2176
      %v2178 = vrot.slane %v705, %v2177
      %v2179 = vadd.f32 %v2170, %v2178
      %v2180 = vadd.f32 %v2171, %v2178
      %v2181 = vadd.f32 %v2172, %v2178
      %v2182 = vadd.f32 %v2173, %v2178
      %v2183 = vadd.f32 %v2174, %v2178
      %v2184 = vld [vmem:[%s5] sm:$0xf]
      %v2185 = vld [vmem:[%s5 + $0x4] sm:$0xf]
      %v2186 = vld [vmem:[%s5 + $0x8] sm:$0xf]
      %v2187 = vld [vmem:[%s5 + $0xc] sm:$0xf]
      %v2188 = vpack.c.bf16 %v2180, %v2179
      %v2189 = vpack.c.bf16 %v2182, %v2181
      %v2190 = vpack.c.bf16 %v2183, %v2183
      %v2191 = vlaneseq
      %v2192 = vshrl.u32 %v2191, 7
      %v2193 = vsub.s32 6, %v2192
      %v2194 = vrot.slane %v705, %v2193
      %v2199 = vunpack.c.l.b16 %v2184
      %v2200 = vunpack.c.l.b16 %v2185
      %v2201 = vunpack.c.l.b16 %v2186
      %v2202 = vunpack.c.l.b16 %v2187
      %v2203 = vpack.c.b16 %v2200, %v2199
      %v2204 = vpack.c.b16 %v2202, %v2201
      %v2208 = vsel %vm706, %v2188, 0
      %v2211 = vsel %vm706, %v2189, 0
      %v2214 = vsel %vm706, %v2190, 0
      %2216 = vmatprep.subr.bf16.mxu0 0
      %2217 = vmatpush1.bf16.msra.mxu0 %v2203
      %2218 = vmatprep.subr.bf16.mxu0 0
      %2219 = vmatpush1.bf16.msra.mxu0 %v2204
      %2220 = vmatprep.subr.bf16.mxu0 0
      %2221 = vmatpush1.bf16.msra.mxu0 0
      %2222 = vmatprep.subr.bf16.mxu0 0
      %2223 = vmatpush1.bf16.msra.mxu0 0
      %2224 = vmatprep.subr.bf16.mxu0 0
      %2225 = vmatpush1.bf16.msra.mxu0 0
      %2226 = vmatprep.subr.bf16.mxu0 0
      %2227 = vmatpush1.bf16.msra.mxu0 0
      %2228 = vmatprep.subr.bf16.mxu0 0
      %2229 = vmatpush1.bf16.msra.mxu0 0
      %2230 = vmatprep.subr.bf16.mxu0 0
      %2231 = vmatpush1.bf16.msra.mxu0 0
      %2232 = vmatprep.subr.bf16.mxu0 0
      %2233 = vmatpush1.bf16.msra.mxu0 0
      %2234 = vmatprep.subr.bf16.mxu0 0
      %2235 = vmatpush1.bf16.msra.mxu0 0
      %2236 = vmatprep.subr.bf16.mxu0 0
      %2237 = vmatpush1.bf16.msra.mxu0 0
      %2238 = vmatprep.subr.bf16.mxu0 0
      %2239 = vmatpush1.bf16.msra.mxu0 0
      %2240 = vmatprep.subr.bf16.mxu0 0
      %2241 = vmatpush1.bf16.msra.mxu0 0
      %2242 = vmatprep.subr.bf16.mxu0 0
      %2243 = vmatpush1.bf16.msra.mxu0 0
      %2244 = vmatprep.subr.bf16.mxu0 0
      %2245 = vmatpush1.bf16.msra.mxu0 0
      %2246 = vmatprep.subr.bf16.mxu0 0
      %2247 = vmatpush1.bf16.msra.mxu0 0
      %2248 = vmatprep.mubr.bf16.mxu0 0
      %2249 = vmatmul.mubr.bf16.gmra.mrb[0].mxu0 %v2208
      %v2250 = vpop.f32.mrb[0].mxu0
      %v2251 = vadd.f32 %v2194, %v2250
      %v2252 = vpop.f32.mrb[0].mxu0
      %v2253 = vpop.f32.mrb[0].mxu0
      %v2254 = vadd.f32 %v2194, %v2253
      %v2255 = vpop.f32.mrb[0].mxu0
      %2256 = vmatprep.mubr.bf16.mxu0 0
      %2257 = vmatmul.mubr.bf16.gmra.mrb[0].mxu0 %v2211
      %v2258 = vpop.f32.mrb[0].mxu0
      %v2259 = vadd.f32 %v2194, %v2258
      %v2260 = vpop.f32.mrb[0].mxu0
      %v2261 = vpop.f32.mrb[0].mxu0
      %v2262 = vadd.f32 %v2194, %v2261
      %v2263 = vpop.f32.mrb[0].mxu0
      %2264 = vmatprep.mubr.bf16.mxu0 0
      %2265 = vmatmul.mubr.bf16.gmra.mrb[0].mxu0 %v2214
      %v2266 = vpop.f32.mrb[0].mxu0
      %v2267 = vadd.f32 %v2194, %v2266
      %v2268 = vpop.f32.mrb[0].mxu0
      %v2269 = vpop.f32.mrb[0].mxu0
      %v2270 = vpop.f32.mrb[0].mxu0
      %2271 = vdwg.mxu0
      %v2272 = vmul.f32 %v2251, 0.5
      %v2273 = vmul.f32 %v2254, 0.5
      %v2274 = vmul.f32 %v2259, 0.5
      %v2275 = vmul.f32 %v2262, 0.5
      %v2276 = vmul.f32 %v2267, 0.5
      %v2277 = vmul.f32 %v2251, 0.044715
      %v2278 = vmul.f32 %v2254, 0.044715
      %v2279 = vmul.f32 %v2259, 0.044715
      %v2280 = vmul.f32 %v2262, 0.044715
      %v2281 = vmul.f32 %v2267, 0.044715
      %v2282 = vmul.f32 %v2277, %v2251
      %v2283 = vmul.f32 %v2278, %v2254
      %v2284 = vmul.f32 %v2279, %v2259
      %v2285 = vmul.f32 %v2280, %v2262
      %v2286 = vmul.f32 %v2281, %v2267
      %v2287 = vmul.f32 %v2282, %v2251
      %v2288 = vmul.f32 %v2283, %v2254
      %v2289 = vmul.f32 %v2284, %v2259
      %v2290 = vmul.f32 %v2285, %v2262
      %v2291 = vmul.f32 %v2286, %v2267
      %v2292 = vadd.f32 %v2251, %v2287
      %v2293 = vadd.f32 %v2254, %v2288
      %v2294 = vadd.f32 %v2259, %v2289
      %v2295 = vadd.f32 %v2262, %v2290
      %v2296 = vadd.f32 %v2267, %v2291
      %v2297 = vmul.f32 %v2292, 0.7978846
      %v2298 = vmul.f32 %v2293, 0.7978846
      %v2299 = vmul.f32 %v2294, 0.7978846
      %v2300 = vmul.f32 %v2295, 0.7978846
      %v2301 = vmul.f32 %v2296, 0.7978846
      %v2302 = vtanh.pop %v2297
      %v2303 = vtanh.pop %v2298
      %v2304 = vtanh.pop %v2299
      %v2305 = vtanh.pop %v2300
      %v2306 = vtanh.pop %v2301
      %v2307 = vadd.f32 %v2302, 1.0
      %v2308 = vadd.f32 %v2303, 1.0
      %v2309 = vadd.f32 %v2304, 1.0
      %v2310 = vadd.f32 %v2305, 1.0
      %v2311 = vadd.f32 %v2306, 1.0
      %v2312 = vmul.f32 %v2272, %v2307
      %v2313 = vmul.f32 %v2273, %v2308
      %v2314 = vmul.f32 %v2274, %v2309
      %v2315 = vmul.f32 %v2275, %v2310
      %v2316 = vmul.f32 %v2276, %v2311
      %v2317 = vld [vmem:[%s6] sm:$0xf]
      %v2318 = vld [vmem:[%s6 + $0x4] sm:$0xf]
      %v2319 = vld [vmem:[%s6 + $0x8] sm:$0xf]
      %v2320 = vld [vmem:[%s6 + $0xc] sm:$0xf]
      %v2321 = vld [vmem:[%s6 + $0x10] sm:$0xf]
      %v2322 = vld [vmem:[%s6 + $0x14] sm:$0xf]
      %v2323 = vld [vmem:[%s6 + $0x18] sm:$0xf]
      %v2324 = vld [vmem:[%s6 + $0x1c] sm:$0xf]
      %v2325 = vld [vmem:[%s6 + $0x20] sm:$0xf]
      %v2326 = vld [vmem:[%s6 + $0x24] sm:$0xf]
      %v2327 = vld [vmem:[%s6 + $0x28] sm:$0xf]
      %v2328 = vld [vmem:[%s6 + $0x2c] sm:$0xf]
      %v2329 = vld [vmem:[%s6 + $0x30] sm:$0xf]
      %v2330 = vld [vmem:[%s6 + $0x34] sm:$0xf]
      %v2331 = vld [vmem:[%s6 + $0x38] sm:$0xf]
      %v2332 = vld [vmem:[%s6 + $0x3c] sm:$0xf]
      %v2333 = vpack.c.bf16 %v2313, %v2312
      %v2334 = vpack.c.bf16 %v2315, %v2314
      %v2335 = vpack.c.bf16 %v2316, %v2316
      %v2352 = vunpack.c.l.b16 %v2317
      %v2353 = vunpack.c.l.b16 %v2318
      %v2354 = vunpack.c.l.b16 %v2319
      %v2355 = vunpack.c.l.b16 %v2320
      %v2356 = vunpack.c.l.b16 %v2321
      %v2357 = vunpack.c.l.b16 %v2322
      %v2358 = vunpack.c.l.b16 %v2323
      %v2359 = vunpack.c.l.b16 %v2324
      %v2360 = vunpack.c.l.b16 %v2325
      %v2361 = vunpack.c.l.b16 %v2326
      %v2362 = vunpack.c.l.b16 %v2327
      %v2363 = vunpack.c.l.b16 %v2328
      %v2364 = vunpack.c.l.b16 %v2329
      %v2365 = vunpack.c.l.b16 %v2330
      %v2366 = vunpack.c.l.b16 %v2331
      %v2367 = vunpack.c.l.b16 %v2332
      %v2368 = vpack.c.b16 %v2353, %v2352
      %v2369 = vpack.c.b16 %v2355, %v2354
      %v2370 = vpack.c.b16 %v2357, %v2356
      %v2371 = vpack.c.b16 %v2359, %v2358
      %v2372 = vpack.c.b16 %v2361, %v2360
      %v2373 = vpack.c.b16 %v2363, %v2362
      %v2374 = vpack.c.b16 %v2365, %v2364
      %v2375 = vpack.c.b16 %v2367, %v2366
      %2384 = vmatprep.subr.bf16.mxu0 0
      %2385 = vmatpush1.bf16.msra.mxu0 %v2368
      %2386 = vmatprep.subr.bf16.mxu0 0
      %2387 = vmatpush1.bf16.msra.mxu0 %v2369
      %2388 = vmatprep.subr.bf16.mxu0 0
      %2389 = vmatpush1.bf16.msra.mxu0 %v2370
      %2390 = vmatprep.subr.bf16.mxu0 0
      %2391 = vmatpush1.bf16.msra.mxu0 %v2371
      %2392 = vmatprep.subr.bf16.mxu0 0
      %2393 = vmatpush1.bf16.msra.mxu0 %v2372
      %2394 = vmatprep.subr.bf16.mxu0 0
      %2395 = vmatpush1.bf16.msra.mxu0 %v2373
      %2396 = vmatprep.subr.bf16.mxu0 0
      %2397 = vmatpush1.bf16.msra.mxu0 %v2374
      %2398 = vmatprep.subr.bf16.mxu0 0
      %2399 = vmatpush1.bf16.msra.mxu0 %v2375
      %2400 = vmatprep.subr.bf16.mxu0 0
      %2401 = vmatpush1.bf16.msra.mxu0 0
      %2402 = vmatprep.subr.bf16.mxu0 0
      %2403 = vmatpush1.bf16.msra.mxu0 0
      %2404 = vmatprep.subr.bf16.mxu0 0
      %2405 = vmatpush1.bf16.msra.mxu0 0
      %2406 = vmatprep.subr.bf16.mxu0 0
      %2407 = vmatpush1.bf16.msra.mxu0 0
      %2408 = vmatprep.subr.bf16.mxu0 0
      %2409 = vmatpush1.bf16.msra.mxu0 0
      %2410 = vmatprep.subr.bf16.mxu0 0
      %2411 = vmatpush1.bf16.msra.mxu0 0
      %2412 = vmatprep.subr.bf16.mxu0 0
      %2413 = vmatpush1.bf16.msra.mxu0 0
      %2414 = vmatprep.subr.bf16.mxu0 0
      %2415 = vmatpush1.bf16.msra.mxu0 0
      %2416 = vmatprep.mubr.bf16.mxu0 0
      %2417 = vmatmul.mubr.bf16.gmra.mrb[0].mxu0 %v2333
      %v2418 = vpop.f32.mrb[0].mxu0
      %v2419 = vadd.f32 0.0, %v2418
      %v2420 = vpop.f32.mrb[0].mxu0
      %v2421 = vpop.f32.mrb[0].mxu0
      %v2422 = vadd.f32 0.0, %v2421
      %v2423 = vpop.f32.mrb[0].mxu0
      %2424 = vmatprep.mubr.bf16.mxu0 0
      %2425 = vmatmul.mubr.bf16.gmra.mrb[0].mxu0 %v2334
      %v2426 = vpop.f32.mrb[0].mxu0
      %v2427 = vadd.f32 0.0, %v2426
      %v2428 = vpop.f32.mrb[0].mxu0
      %v2429 = vpop.f32.mrb[0].mxu0
      %v2430 = vadd.f32 0.0, %v2429
      %v2431 = vpop.f32.mrb[0].mxu0
      %2432 = vmatprep.mubr.bf16.mxu0 0
      %2433 = vmatmul.mubr.bf16.gmra.mrb[0].mxu0 %v2335
      %v2434 = vpop.f32.mrb[0].mxu0
      %v2435 = vadd.f32 0.0, %v2434
      %v2436 = vpop.f32.mrb[0].mxu0
      %v2437 = vpop.f32.mrb[0].mxu0
      %v2438 = vpop.f32.mrb[0].mxu0
      %2439 = vdwg.mxu0
      %v2440 = vadd.f32 %v2096, %v2419
      %v2441 = vadd.f32 %v2097, %v2422
      %v2442 = vadd.f32 %v2098, %v2427
      %v2443 = vadd.f32 %v2099, %v2430
      %v2444 = vadd.f32 %v2100, %v2435
      %v2445 = vlaneseq
      %v2446 = vshrl.u32 %v2445, 7
      %v2447 = vsub.s32 7, %v2446
      %v2448 = vrot.slane %v705, %v2447
      %v2449 = vadd.f32 %v2440, %v2448
      %v2450 = vadd.f32 %v2441, %v2448
      %v2451 = vadd.f32 %v2442, %v2448
      %v2452 = vadd.f32 %v2443, %v2448
      %v2453 = vadd.f32 %v2444, %v2448
      %s2454 = scalar_lea.vmem %s7, 8
      %v2455 = vld [vmem:[%s2454] sm:$0xff]
      %v2456 = vsel %vm706, %v2449, 0.0
      %2457 = vadd.xlane.f32.xlu0 %v2456
      %v2458 = vpop.xlane.xlu0 %2457
      %v2459 = vsel %vm706, %v2450, 0.0
      %2460 = vadd.xlane.f32.xlu0 %v2459
      %v2461 = vpop.xlane.xlu0 %2460
      %v2462 = vsel %vm706, %v2451, 0.0
      %2463 = vadd.xlane.f32.xlu0 %v2462
      %v2464 = vpop.xlane.xlu0 %2463
      %v2465 = vsel %vm706, %v2452, 0.0
      %2466 = vadd.xlane.f32.xlu0 %v2465
      %v2467 = vpop.xlane.xlu0 %2466
      %v2468 = vsel %vm706, %v2453, 0.0
      %2469 = vadd.xlane.f32.xlu0 %v2468
      %v2470 = vpop.xlane.xlu0 %2469
      %v2471 = vmul.f32 %v2458, %v722
      %v2472 = vmul.f32 %v2461, %v722
      %v2473 = vmul.f32 %v2464, %v722
      %v2474 = vmul.f32 %v2467, %v722
      %v2475 = vmul.f32 %v2470, %v722
      %v2476 = vsub.f32 %v2449, %v2471
      %v2477 = vsub.f32 %v2450, %v2472
      %v2478 = vsub.f32 %v2451, %v2473
      %v2479 = vsub.f32 %v2452, %v2474
      %v2480 = vsub.f32 %v2453, %v2475
      %v2481 = vmul.f32 %v2476, %v2476
      %v2482 = vmul.f32 %v2477, %v2477
      %v2483 = vmul.f32 %v2478, %v2478
      %v2484 = vmul.f32 %v2479, %v2479
      %v2485 = vmul.f32 %v2480, %v2480
      %v2486 = vsel %vm706, %v2481, 0.0
      %2487 = vadd.xlane.f32.xlu0 %v2486
      %v2488 = vpop.xlane.xlu0 %2487
      %v2489 = vsel %vm706, %v2482, 0.0
      %2490 = vadd.xlane.f32.xlu0 %v2489
      %v2491 = vpop.xlane.xlu0 %2490
      %v2492 = vsel %vm706, %v2483, 0.0
      %2493 = vadd.xlane.f32.xlu0 %v2492
      %v2494 = vpop.xlane.xlu0 %2493
      %v2495 = vsel %vm706, %v2484, 0.0
      %2496 = vadd.xlane.f32.xlu0 %v2495
      %v2497 = vpop.xlane.xlu0 %2496
      %v2498 = vsel %vm706, %v2485, 0.0
      %2499 = vadd.xlane.f32.xlu0 %v2498
      %v2500 = vpop.xlane.xlu0 %2499
      %v2501 = vmul.f32 %v2488, %v722
      %v2502 = vmul.f32 %v2491, %v722
      %v2503 = vmul.f32 %v2494, %v722
      %v2504 = vmul.f32 %v2497, %v722
      %v2505 = vmul.f32 %v2500, %v722
      %v2506 = vadd.f32 %v2501, 1e-06
      %v2507 = vadd.f32 %v2502, 1e-06
      %v2508 = vadd.f32 %v2503, 1e-06
      %v2509 = vadd.f32 %v2504, 1e-06
      %v2510 = vadd.f32 %v2505, 1e-06
      %v2511 = vrsqrt.pop %v2506
      %v2512 = vrsqrt.pop %v2507
      %v2513 = vrsqrt.pop %v2508
      %v2514 = vrsqrt.pop %v2509
      %v2515 = vrsqrt.pop %v2510
      %v2516 = vmul.f32 %v2476, %v2511
      %v2517 = vmul.f32 %v2477, %v2512
      %v2518 = vmul.f32 %v2478, %v2513
      %v2519 = vmul.f32 %v2479, %v2514
      %v2520 = vmul.f32 %v2480, %v2515
      %v2521 = vlaneseq
      %v2522 = vshrl.u32 %v2521, 7
      %v2523 = vsub.s32 0, %v2522
      %v2524 = vrot.slane %v2455, %v2523
      %v2525 = vmul.f32 %v2516, %v2524
      %v2526 = vmul.f32 %v2517, %v2524
      %v2527 = vmul.f32 %v2518, %v2524
      %v2528 = vmul.f32 %v2519, %v2524
      %v2529 = vmul.f32 %v2520, %v2524
      %v2530 = vlaneseq
      %v2531 = vshrl.u32 %v2530, 7
      %v2532 = vsub.s32 1, %v2531
      %v2533 = vrot.slane %v2455, %v2532
      %v2534 = vadd.f32 %v2525, %v2533
      %v2535 = vadd.f32 %v2526, %v2533
      %v2536 = vadd.f32 %v2527, %v2533
      %v2537 = vadd.f32 %v2528, %v2533
      %v2538 = vadd.f32 %v2529, %v2533
      %s2539 = scalar_lea.vmem %s3, 16
      %v2540 = vld [vmem:[%s2539] sm:$0xf]
      %v2541 = vld [vmem:[%s2539 + $0x4] sm:$0xf]
      %v2542 = vld [vmem:[%s2539 + $0x8] sm:$0xf]
      %v2543 = vld [vmem:[%s2539 + $0xc] sm:$0xf]
      %s2544 = scalar_lea.vmem %s4, 16
      %v2545 = vld [vmem:[%s2544] sm:$0xf]
      %v2546 = vld [vmem:[%s2544 + $0x4] sm:$0xf]
      %v2547 = vld [vmem:[%s2544 + $0x8] sm:$0xf]
      %v2548 = vld [vmem:[%s2544 + $0xc] sm:$0xf]
      %v2549 = vpack.c.bf16 %v2535, %v2534
      %v2550 = vpack.c.bf16 %v2537, %v2536
      %v2551 = vpack.c.bf16 %v2538, %v2538
      %v2552 = vlaneseq
      %v2553 = vshrl.u32 %v2552, 7
      %v2554 = vsub.s32 4, %v2553
      %v2555 = vrot.slane %v2455, %v2554
      %v2560 = vunpack.c.l.b16 %v2540
      %v2561 = vunpack.c.l.b16 %v2541
      %v2562 = vunpack.c.l.b16 %v2542
      %v2563 = vunpack.c.l.b16 %v2543
      %v2564 = vpack.c.b16 %v2561, %v2560
      %v2565 = vpack.c.b16 %v2563, %v2562
      %v2569 = vsel %vm706, %v2549, 0
      %v2572 = vsel %vm706, %v2550, 0
      %v2575 = vsel %vm706, %v2551, 0
      %2577 = vmatprep.subr.bf16.mxu0 0
      %2578 = vmatpush1.bf16.msra.mxu0 %v2564
      %2579 = vmatprep.subr.bf16.mxu0 0
      %2580 = vmatpush1.bf16.msra.mxu0 %v2565
      %2581 = vmatprep.subr.bf16.mxu0 0
      %2582 = vmatpush1.bf16.msra.mxu0 0
      %2583 = vmatprep.subr.bf16.mxu0 0
      %2584 = vmatpush1.bf16.msra.mxu0 0
      %2585 = vmatprep.subr.bf16.mxu0 0
      %2586 = vmatpush1.bf16.msra.mxu0 0
      %2587 = vmatprep.subr.bf16.mxu0 0
      %2588 = vmatpush1.bf16.msra.mxu0 0
      %2589 = vmatprep.subr.bf16.mxu0 0
      %2590 = vmatpush1.bf16.msra.mxu0 0
      %2591 = vmatprep.subr.bf16.mxu0 0
      %2592 = vmatpush1.bf16.msra.mxu0 0
      %2593 = vmatprep.subr.bf16.mxu0 0
      %2594 = vmatpush1.bf16.msra.mxu0 0
      %2595 = vmatprep.subr.bf16.mxu0 0
      %2596 = vmatpush1.bf16.msra.mxu0 0
      %2597 = vmatprep.subr.bf16.mxu0 0
      %2598 = vmatpush1.bf16.msra.mxu0 0
      %2599 = vmatprep.subr.bf16.mxu0 0
      %2600 = vmatpush1.bf16.msra.mxu0 0
      %2601 = vmatprep.subr.bf16.mxu0 0
      %2602 = vmatpush1.bf16.msra.mxu0 0
      %2603 = vmatprep.subr.bf16.mxu0 0
      %2604 = vmatpush1.bf16.msra.mxu0 0
      %2605 = vmatprep.subr.bf16.mxu0 0
      %2606 = vmatpush1.bf16.msra.mxu0 0
      %2607 = vmatprep.subr.bf16.mxu0 0
      %2608 = vmatpush1.bf16.msra.mxu0 0
      %2609 = vmatprep.mubr.bf16.mxu0 0
      %2610 = vmatmul.mubr.bf16.gmra.mrb[0].mxu0 %v2569
      %v2611 = vpop.f32.mrb[0].mxu0
      %v2612 = vadd.f32 %v2555, %v2611
      %v2613 = vpop.f32.mrb[0].mxu0
      %v2614 = vpop.f32.mrb[0].mxu0
      %v2615 = vadd.f32 %v2555, %v2614
      %v2616 = vpop.f32.mrb[0].mxu0
      %2617 = vmatprep.mubr.bf16.mxu0 0
      %2618 = vmatmul.mubr.bf16.gmra.mrb[0].mxu0 %v2572
      %v2619 = vpop.f32.mrb[0].mxu0
      %v2620 = vadd.f32 %v2555, %v2619
      %v2621 = vpop.f32.mrb[0].mxu0
      %v2622 = vpop.f32.mrb[0].mxu0
      %v2623 = vadd.f32 %v2555, %v2622
      %v2624 = vpop.f32.mrb[0].mxu0
      %2625 = vmatprep.mubr.bf16.mxu0 0
      %2626 = vmatmul.mubr.bf16.gmra.mrb[0].mxu0 %v2575
      %v2627 = vpop.f32.mrb[0].mxu0
      %v2628 = vadd.f32 %v2555, %v2627
      %v2629 = vpop.f32.mrb[0].mxu0
      %v2630 = vpop.f32.mrb[0].mxu0
      %v2631 = vpop.f32.mrb[0].mxu0
      %2632 = vdwg.mxu0
      %2638 = vrot.lane.b32.xlu0 %v2612, 96
      %v2639 = vpop.permute.xlu0 %2638
      %2640 = vrot.lane.b32.xlu0 %v2615, 96
      %v2641 = vpop.permute.xlu0 %2640
      %2642 = vrot.lane.b32.xlu0 %v2620, 96
      %v2643 = vpop.permute.xlu0 %2642
      %2644 = vrot.lane.b32.xlu0 %v2623, 96
      %v2645 = vpop.permute.xlu0 %2644
      %2646 = vrot.lane.b32.xlu0 %v2628, 96
      %v2647 = vpop.permute.xlu0 %2646
      %2653 = vxpose.xlu0.b32.start [1/16] %v2639, 128
      %2654 = vxpose.xlu0.b32.cont [2/16] %v2641, 128
      %2655 = vxpose.xlu0.b32.cont [3/16] %v2643, 128
      %2656 = vxpose.xlu0.b32.cont [4/16] %v2645, 128
      %2657 = vxpose.xlu0.b32.cont [5/16] %v2647, 128
      %2658 = vxpose.xlu0.b32.cont [6/16] 0.0, 128
      %2659 = vxpose.xlu0.b32.cont [7/16] 0.0, 128
      %2660 = vxpose.xlu0.b32.cont [8/16] 0.0, 128
      %2661 = vxpose.xlu0.b32.cont [9/16] 0.0, 128
      %2662 = vxpose.xlu0.b32.cont [10/16] 0.0, 128
      %2663 = vxpose.xlu0.b32.cont [11/16] 0.0, 128
      %2664 = vxpose.xlu0.b32.cont [12/16] 0.0, 128
      %2665 = vxpose.xlu0.b32.cont [13/16] 0.0, 128
      %2666 = vxpose.xlu0.b32.cont [14/16] 0.0, 128
      %2667 = vxpose.xlu0.b32.cont [15/16] 0.0, 128
      %2668 = vxpose.xlu0.b32.end [16/16] 0.0, 128
      %v2669 = vpop.trf.xlu0
      %v2670 = vpop.trf.xlu0
      %v2671 = vpop.trf.xlu0
      %v2672 = vpop.trf.xlu0
      %v2673 = vpop.trf.xlu0
      %v2674 = vpop.trf.xlu0
      %v2675 = vpop.trf.xlu0
      %v2676 = vpop.trf.xlu0
      %v2677 = vpop.trf.xlu0
      %v2678 = vpop.trf.xlu0
      %v2679 = vpop.trf.xlu0
      %v2680 = vpop.trf.xlu0
      %v2681 = vpop.trf.xlu0
      %v2682 = vpop.trf.xlu0
      %v2683 = vpop.trf.xlu0
      %v2684 = vpop.trf.xlu0
      %v2685 = vpack.c.bf16 %v2615, %v2612
      %v2686 = vpack.c.bf16 %v2623, %v2620
      %v2687 = vpack.c.bf16 %v2628, %v2628
      %v2688 = vpack.c.bf16 %v2669, %v2669
      %v2690 = vsel %vm939, %v2685, 0
      %v2693 = vsel %vm939, %v2686, 0
      %v2696 = vsel %vm939, %v2687, 0
      %v2699 = vsel %vm949, %v2688, 0
      %2701 = vmatprep.subr.bf16.mxu0 0
      %2702 = vmatpush1.bf16.msra.mxu0 %v2699
      %2703 = vmatprep.subr.bf16.mxu0 0
      %2704 = vmatpush1.bf16.msra.mxu0 0
      %2705 = vmatprep.subr.bf16.mxu0 0
      %2706 = vmatpush1.bf16.msra.mxu0 0
      %2707 = vmatprep.subr.bf16.mxu0 0
      %2708 = vmatpush1.bf16.msra.mxu0 0
      %2709 = vmatprep.subr.bf16.mxu0 0
      %2710 = vmatpush1.bf16.msra.mxu0 0
      %2711 = vmatprep.subr.bf16.mxu0 0
      %2712 = vmatpush1.bf16.msra.mxu0 0
      %2713 = vmatprep.subr.bf16.mxu0 0
      %2714 = vmatpush1.bf16.msra.mxu0 0
      %2715 = vmatprep.subr.bf16.mxu0 0
      %2716 = vmatpush1.bf16.msra.mxu0 0
      %2717 = vmatprep.subr.bf16.mxu0 0
      %2718 = vmatpush1.bf16.msra.mxu0 0
      %2719 = vmatprep.subr.bf16.mxu0 0
      %2720 = vmatpush1.bf16.msra.mxu0 0
      %2721 = vmatprep.subr.bf16.mxu0 0
      %2722 = vmatpush1.bf16.msra.mxu0 0
      %2723 = vmatprep.subr.bf16.mxu0 0
      %2724 = vmatpush1.bf16.msra.mxu0 0
      %2725 = vmatprep.subr.bf16.mxu0 0
      %2726 = vmatpush1.bf16.msra.mxu0 0
      %2727 = vmatprep.subr.bf16.mxu0 0
      %2728 = vmatpush1.bf16.msra.mxu0 0
      %2729 = vmatprep.subr.bf16.mxu0 0
      %2730 = vmatpush1.bf16.msra.mxu0 0
      %2731 = vmatprep.subr.bf16.mxu0 0
      %2732 = vmatpush1.bf16.msra.mxu0 0
      %2733 = vmatprep.mubr.bf16.mxu0 0
      %2734 = vmatmul.mubr.bf16.gmra.mrb[0].mxu0 %v2690
      %v2735 = vpop.f32.mrb[0].mxu0
      %v2736 = vadd.f32 0.0, %v2735
      %v2737 = vpop.f32.mrb[0].mxu0
      %v2738 = vpop.f32.mrb[0].mxu0
      %v2739 = vadd.f32 0.0, %v2738
      %v2740 = vpop.f32.mrb[0].mxu0
      %2741 = vmatprep.mubr.bf16.mxu0 0
      %2742 = vmatmul.mubr.bf16.gmra.mrb[0].mxu0 %v2693
      %v2743 = vpop.f32.mrb[0].mxu0
      %v2744 = vadd.f32 0.0, %v2743
      %v2745 = vpop.f32.mrb[0].mxu0
      %v2746 = vpop.f32.mrb[0].mxu0
      %v2747 = vadd.f32 0.0, %v2746
      %v2748 = vpop.f32.mrb[0].mxu0
      %2749 = vmatprep.mubr.bf16.mxu0 0
      %2750 = vmatmul.mubr.bf16.gmra.mrb[0].mxu0 %v2696
      %v2751 = vpop.f32.mrb[0].mxu0
      %v2752 = vadd.f32 0.0, %v2751
      %v2753 = vpop.f32.mrb[0].mxu0
      %v2754 = vpop.f32.mrb[0].mxu0
      %v2755 = vpop.f32.mrb[0].mxu0
      %2756 = vdwg.mxu0
      %v2757 = vsel %vm700, %v2736, -1e+09
      %v2758 = vsel %vm701, %v2739, -1e+09
      %v2759 = vsel %vm702, %v2744, -1e+09
      %v2760 = vsel %vm703, %v2747, -1e+09
      %v2761 = vsel %vm704, %v2752, -1e+09
      %v2762 = vsel %vm1014, %v2757, -inf
      %2763 = vmax.xlane.f32.xlu0 %v2762
      %v2764 = vpop.xlane.xlu0 %2763
      %v2765 = vsel %vm1014, %v2758, -inf
      %2766 = vmax.xlane.f32.xlu0 %v2765
      %v2767 = vpop.xlane.xlu0 %2766
      %v2768 = vsel %vm1014, %v2759, -inf
      %2769 = vmax.xlane.f32.xlu0 %v2768
      %v2770 = vpop.xlane.xlu0 %2769
      %v2771 = vsel %vm1014, %v2760, -inf
      %2772 = vmax.xlane.f32.xlu0 %v2771
      %v2773 = vpop.xlane.xlu0 %2772
      %v2774 = vsel %vm1014, %v2761, -inf
      %2775 = vmax.xlane.f32.xlu0 %v2774
      %v2776 = vpop.xlane.xlu0 %2775
      %v2777 = vsub.f32 %v2757, %v2764
      %v2778 = vsub.f32 %v2758, %v2767
      %v2779 = vsub.f32 %v2759, %v2770
      %v2780 = vsub.f32 %v2760, %v2773
      %v2781 = vsub.f32 %v2761, %v2776
      %v2782 = vmul.f32 %v2777, 1.442695
      %v2783 = vpow.pop %v2782
      %v2784 = vmul.f32 %v2778, 1.442695
      %v2785 = vpow.pop %v2784
      %v2786 = vmul.f32 %v2779, 1.442695
      %v2787 = vpow.pop %v2786
      %v2788 = vmul.f32 %v2780, 1.442695
      %v2789 = vpow.pop %v2788
      %v2790 = vmul.f32 %v2781, 1.442695
      %v2791 = vpow.pop %v2790
      %v2792 = vsel %vm1014, %v2783, 0.0
      %2793 = vadd.xlane.f32.xlu0 %v2792
      %v2794 = vpop.xlane.xlu0 %2793
      %v2795 = vsel %vm1014, %v2785, 0.0
      %2796 = vadd.xlane.f32.xlu0 %v2795
      %v2797 = vpop.xlane.xlu0 %2796
      %v2798 = vsel %vm1014, %v2787, 0.0
      %2799 = vadd.xlane.f32.xlu0 %v2798
      %v2800 = vpop.xlane.xlu0 %2799
      %v2801 = vsel %vm1014, %v2789, 0.0
      %2802 = vadd.xlane.f32.xlu0 %v2801
      %v2803 = vpop.xlane.xlu0 %2802
      %v2804 = vsel %vm1014, %v2791, 0.0
      %2805 = vadd.xlane.f32.xlu0 %v2804
      %v2806 = vpop.xlane.xlu0 %2805
      %v2807 = vrcp.pop %v2794
      %v2808 = vrcp.pop %v2797
      %v2809 = vrcp.pop %v2800
      %v2810 = vrcp.pop %v2803
      %v2811 = vrcp.pop %v2806
      %v2812 = vmul.f32 %v2783, %v2807
      %v2813 = vmul.f32 %v2785, %v2808
      %v2814 = vmul.f32 %v2787, %v2809
      %v2815 = vmul.f32 %v2789, %v2810
      %v2816 = vmul.f32 %v2791, %v2811
      %v2817 = vpack.c.bf16 %v2813, %v2812
      %v2818 = vpack.c.bf16 %v2815, %v2814
      %v2819 = vpack.c.bf16 %v2816, %v2816
      %2823 = vrot.lane.b32.xlu0 %v2685, 64
      %v2824 = vpop.permute.xlu0 %2823
      %2825 = vrot.lane.b32.xlu0 %v2686, 64
      %v2826 = vpop.permute.xlu0 %2825
      %2827 = vrot.lane.b32.xlu0 %v2687, 64
      %v2828 = vpop.permute.xlu0 %2827
      %v2832 = vsel %vm1014, %v2817, 0
      %v2835 = vsel %vm1014, %v2818, 0
      %v2838 = vsel %vm1014, %v2819, 0
      %v2841 = vsel %vm949, %v2828, 0
      %2843 = vmatprep.subr.bf16.mxu0 0
      %2844 = vmatpush1.bf16.msra.mxu0 %v2824
      %2845 = vmatprep.subr.bf16.mxu0 0
      %2846 = vmatpush1.bf16.msra.mxu0 %v2826
      %2847 = vmatprep.subr.bf16.mxu0 0
      %2848 = vmatpush1.bf16.msra.mxu0 %v2841
      %2849 = vmatprep.subr.bf16.mxu0 0
      %2850 = vmatpush1.bf16.msra.mxu0 0
      %2851 = vmatprep.subr.bf16.mxu0 0
      %2852 = vmatpush1.bf16.msra.mxu0 0
      %2853 = vmatprep.subr.bf16.mxu0 0
      %2854 = vmatpush1.bf16.msra.mxu0 0
      %2855 = vmatprep.subr.bf16.mxu0 0
      %2856 = vmatpush1.bf16.msra.mxu0 0
      %2857 = vmatprep.subr.bf16.mxu0 0
      %2858 = vmatpush1.bf16.msra.mxu0 0
      %2859 = vmatprep.subr.bf16.mxu0 0
      %2860 = vmatpush1.bf16.msra.mxu0 0
      %2861 = vmatprep.subr.bf16.mxu0 0
      %2862 = vmatpush1.bf16.msra.mxu0 0
      %2863 = vmatprep.subr.bf16.mxu0 0
      %2864 = vmatpush1.bf16.msra.mxu0 0
      %2865 = vmatprep.subr.bf16.mxu0 0
      %2866 = vmatpush1.bf16.msra.mxu0 0
      %2867 = vmatprep.subr.bf16.mxu0 0
      %2868 = vmatpush1.bf16.msra.mxu0 0
      %2869 = vmatprep.subr.bf16.mxu0 0
      %2870 = vmatpush1.bf16.msra.mxu0 0
      %2871 = vmatprep.subr.bf16.mxu0 0
      %2872 = vmatpush1.bf16.msra.mxu0 0
      %2873 = vmatprep.subr.bf16.mxu0 0
      %2874 = vmatpush1.bf16.msra.mxu0 0
      %2875 = vmatprep.mubr.bf16.mxu0 0
      %2876 = vmatmul.mubr.bf16.gmra.mrb[0].mxu0 %v2832
      %v2877 = vpop.f32.mrb[0].mxu0
      %v2878 = vadd.f32 0.0, %v2877
      %v2879 = vpop.f32.mrb[0].mxu0
      %v2880 = vpop.f32.mrb[0].mxu0
      %v2881 = vadd.f32 0.0, %v2880
      %v2882 = vpop.f32.mrb[0].mxu0
      %2883 = vmatprep.mubr.bf16.mxu0 0
      %2884 = vmatmul.mubr.bf16.gmra.mrb[0].mxu0 %v2835
      %v2885 = vpop.f32.mrb[0].mxu0
      %v2886 = vadd.f32 0.0, %v2885
      %v2887 = vpop.f32.mrb[0].mxu0
      %v2888 = vpop.f32.mrb[0].mxu0
      %v2889 = vadd.f32 0.0, %v2888
      %v2890 = vpop.f32.mrb[0].mxu0
      %2891 = vmatprep.mubr.bf16.mxu0 0
      %2892 = vmatmul.mubr.bf16.gmra.mrb[0].mxu0 %v2838
      %v2893 = vpop.f32.mrb[0].mxu0
      %v2894 = vadd.f32 0.0, %v2893
      %v2895 = vpop.f32.mrb[0].mxu0
      %v2896 = vpop.f32.mrb[0].mxu0
      %v2897 = vpop.f32.mrb[0].mxu0
      %2898 = vdwg.mxu0
      %2899 = vrot.lane.b32.xlu0 %v2612, 88
      %v2900 = vpop.permute.xlu0 %2899
      %2901 = vrot.lane.b32.xlu0 %v2615, 88
      %v2902 = vpop.permute.xlu0 %2901
      %2903 = vrot.lane.b32.xlu0 %v2620, 88
      %v2904 = vpop.permute.xlu0 %2903
      %2905 = vrot.lane.b32.xlu0 %v2623, 88
      %v2906 = vpop.permute.xlu0 %2905
      %2907 = vrot.lane.b32.xlu0 %v2628, 88
      %v2908 = vpop.permute.xlu0 %2907
      %2914 = vxpose.xlu0.b32.start [1/16] %v2900, 128
      %2915 = vxpose.xlu0.b32.cont [2/16] %v2902, 128
      %2916 = vxpose.xlu0.b32.cont [3/16] %v2904, 128
      %2917 = vxpose.xlu0.b32.cont [4/16] %v2906, 128
      %2918 = vxpose.xlu0.b32.cont [5/16] %v2908, 128
      %2919 = vxpose.xlu0.b32.cont [6/16] 0.0, 128
      %2920 = vxpose.xlu0.b32.cont [7/16] 0.0, 128
      %2921 = vxpose.xlu0.b32.cont [8/16] 0.0, 128
      %2922 = vxpose.xlu0.b32.cont [9/16] 0.0, 128
      %2923 = vxpose.xlu0.b32.cont [10/16] 0.0, 128
      %2924 = vxpose.xlu0.b32.cont [11/16] 0.0, 128
      %2925 = vxpose.xlu0.b32.cont [12/16] 0.0, 128
      %2926 = vxpose.xlu0.b32.cont [13/16] 0.0, 128
      %2927 = vxpose.xlu0.b32.cont [14/16] 0.0, 128
      %2928 = vxpose.xlu0.b32.cont [15/16] 0.0, 128
      %2929 = vxpose.xlu0.b32.end [16/16] 0.0, 128
      %v2930 = vpop.trf.xlu0
      %v2931 = vpop.trf.xlu0
      %v2932 = vpop.trf.xlu0
      %v2933 = vpop.trf.xlu0
      %v2934 = vpop.trf.xlu0
      %v2935 = vpop.trf.xlu0
      %v2936 = vpop.trf.xlu0
      %v2937 = vpop.trf.xlu0
      %v2938 = vpop.trf.xlu0
      %v2939 = vpop.trf.xlu0
      %v2940 = vpop.trf.xlu0
      %v2941 = vpop.trf.xlu0
      %v2942 = vpop.trf.xlu0
      %v2943 = vpop.trf.xlu0
      %v2944 = vpop.trf.xlu0
      %v2945 = vpop.trf.xlu0
      %v2946 = vpack.c.bf16 %v2930, %v2930
      %2947 = vrot.lane.b32.xlu0 %v2685, 120
      %v2948 = vpop.permute.xlu0 %2947
      %2949 = vrot.lane.b32.xlu0 %v2686, 120
      %v2950 = vpop.permute.xlu0 %2949
      %2951 = vrot.lane.b32.xlu0 %v2687, 120
      %v2952 = vpop.permute.xlu0 %2951
      %v2954 = vsel %vm939, %v2948, 0
      %v2957 = vsel %vm939, %v2950, 0
      %v2960 = vsel %vm939, %v2952, 0
      %v2963 = vsel %vm949, %v2946, 0
      %2965 = vmatprep.subr.bf16.mxu0 0
      %2966 = vmatpush1.bf16.msra.mxu0 %v2963
      %2967 = vmatprep.subr.bf16.mxu0 0
      %2968 = vmatpush1.bf16.msra.mxu0 0
      %2969 = vmatprep.subr.bf16.mxu0 0
      %2970 = vmatpush1.bf16.msra.mxu0 0
      %2971 = vmatprep.subr.bf16.mxu0 0
      %2972 = vmatpush1.bf16.msra.mxu0 0
      %2973 = vmatprep.subr.bf16.mxu0 0
      %2974 = vmatpush1.bf16.msra.mxu0 0
      %2975 = vmatprep.subr.bf16.mxu0 0
      %2976 = vmatpush1.bf16.msra.mxu0 0
      %2977 = vmatprep.subr.bf16.mxu0 0
      %2978 = vmatpush1.bf16.msra.mxu0 0
      %2979 = vmatprep.subr.bf16.mxu0 0
      %2980 = vmatpush1.bf16.msra.mxu0 0
      %2981 = vmatprep.subr.bf16.mxu0 0
      %2982 = vmatpush1.bf16.msra.mxu0 0
      %2983 = vmatprep.subr.bf16.mxu0 0
      %2984 = vmatpush1.bf16.msra.mxu0 0
      %2985 = vmatprep.subr.bf16.mxu0 0
      %2986 = vmatpush1.bf16.msra.mxu0 0
      %2987 = vmatprep.subr.bf16.mxu0 0
      %2988 = vmatpush1.bf16.msra.mxu0 0
      %2989 = vmatprep.subr.bf16.mxu0 0
      %2990 = vmatpush1.bf16.msra.mxu0 0
      %2991 = vmatprep.subr.bf16.mxu0 0
      %2992 = vmatpush1.bf16.msra.mxu0 0
      %2993 = vmatprep.subr.bf16.mxu0 0
      %2994 = vmatpush1.bf16.msra.mxu0 0
      %2995 = vmatprep.subr.bf16.mxu0 0
      %2996 = vmatpush1.bf16.msra.mxu0 0
      %2997 = vmatprep.mubr.bf16.mxu0 0
      %2998 = vmatmul.mubr.bf16.gmra.mrb[0].mxu0 %v2954
      %v2999 = vpop.f32.mrb[0].mxu0
      %v3000 = vadd.f32 0.0, %v2999
      %v3001 = vpop.f32.mrb[0].mxu0
      %v3002 = vpop.f32.mrb[0].mxu0
      %v3003 = vadd.f32 0.0, %v3002
      %v3004 = vpop.f32.mrb[0].mxu0
      %3005 = vmatprep.mubr.bf16.mxu0 0
      %3006 = vmatmul.mubr.bf16.gmra.mrb[0].mxu0 %v2957
      %v3007 = vpop.f32.mrb[0].mxu0
      %v3008 = vadd.f32 0.0, %v3007
      %v3009 = vpop.f32.mrb[0].mxu0
      %v3010 = vpop.f32.mrb[0].mxu0
      %v3011 = vadd.f32 0.0, %v3010
      %v3012 = vpop.f32.mrb[0].mxu0
      %3013 = vmatprep.mubr.bf16.mxu0 0
      %3014 = vmatmul.mubr.bf16.gmra.mrb[0].mxu0 %v2960
      %v3015 = vpop.f32.mrb[0].mxu0
      %v3016 = vadd.f32 0.0, %v3015
      %v3017 = vpop.f32.mrb[0].mxu0
      %v3018 = vpop.f32.mrb[0].mxu0
      %v3019 = vpop.f32.mrb[0].mxu0
      %3020 = vdwg.mxu0
      %v3021 = vsel %vm700, %v3000, -1e+09
      %v3022 = vsel %vm701, %v3003, -1e+09
      %v3023 = vsel %vm702, %v3008, -1e+09
      %v3024 = vsel %vm703, %v3011, -1e+09
      %v3025 = vsel %vm704, %v3016, -1e+09
      %v3026 = vsel %vm1014, %v3021, -inf
      %3027 = vmax.xlane.f32.xlu0 %v3026
      %v3028 = vpop.xlane.xlu0 %3027
      %v3029 = vsel %vm1014, %v3022, -inf
      %3030 = vmax.xlane.f32.xlu0 %v3029
      %v3031 = vpop.xlane.xlu0 %3030
      %v3032 = vsel %vm1014, %v3023, -inf
      %3033 = vmax.xlane.f32.xlu0 %v3032
      %v3034 = vpop.xlane.xlu0 %3033
      %v3035 = vsel %vm1014, %v3024, -inf
      %3036 = vmax.xlane.f32.xlu0 %v3035
      %v3037 = vpop.xlane.xlu0 %3036
      %v3038 = vsel %vm1014, %v3025, -inf
      %3039 = vmax.xlane.f32.xlu0 %v3038
      %v3040 = vpop.xlane.xlu0 %3039
      %v3041 = vsub.f32 %v3021, %v3028
      %v3042 = vsub.f32 %v3022, %v3031
      %v3043 = vsub.f32 %v3023, %v3034
      %v3044 = vsub.f32 %v3024, %v3037
      %v3045 = vsub.f32 %v3025, %v3040
      %v3046 = vmul.f32 %v3041, 1.442695
      %v3047 = vpow.pop %v3046
      %v3048 = vmul.f32 %v3042, 1.442695
      %v3049 = vpow.pop %v3048
      %v3050 = vmul.f32 %v3043, 1.442695
      %v3051 = vpow.pop %v3050
      %v3052 = vmul.f32 %v3044, 1.442695
      %v3053 = vpow.pop %v3052
      %v3054 = vmul.f32 %v3045, 1.442695
      %v3055 = vpow.pop %v3054
      %v3056 = vsel %vm1014, %v3047, 0.0
      %3057 = vadd.xlane.f32.xlu0 %v3056
      %v3058 = vpop.xlane.xlu0 %3057
      %v3059 = vsel %vm1014, %v3049, 0.0
      %3060 = vadd.xlane.f32.xlu0 %v3059
      %v3061 = vpop.xlane.xlu0 %3060
      %v3062 = vsel %vm1014, %v3051, 0.0
      %3063 = vadd.xlane.f32.xlu0 %v3062
      %v3064 = vpop.xlane.xlu0 %3063
      %v3065 = vsel %vm1014, %v3053, 0.0
      %3066 = vadd.xlane.f32.xlu0 %v3065
      %v3067 = vpop.xlane.xlu0 %3066
      %v3068 = vsel %vm1014, %v3055, 0.0
      %3069 = vadd.xlane.f32.xlu0 %v3068
      %v3070 = vpop.xlane.xlu0 %3069
      %v3071 = vrcp.pop %v3058
      %v3072 = vrcp.pop %v3061
      %v3073 = vrcp.pop %v3064
      %v3074 = vrcp.pop %v3067
      %v3075 = vrcp.pop %v3070
      %v3076 = vmul.f32 %v3047, %v3071
      %v3077 = vmul.f32 %v3049, %v3072
      %v3078 = vmul.f32 %v3051, %v3073
      %v3079 = vmul.f32 %v3053, %v3074
      %v3080 = vmul.f32 %v3055, %v3075
      %v3081 = vpack.c.bf16 %v3077, %v3076
      %v3082 = vpack.c.bf16 %v3079, %v3078
      %v3083 = vpack.c.bf16 %v3080, %v3080
      %3084 = vrot.lane.b32.xlu0 %v2685, 56
      %v3085 = vpop.permute.xlu0 %3084
      %3086 = vrot.lane.b32.xlu0 %v2686, 56
      %v3087 = vpop.permute.xlu0 %3086
      %3088 = vrot.lane.b32.xlu0 %v2687, 56
      %v3089 = vpop.permute.xlu0 %3088
      %v3093 = vsel %vm1014, %v3081, 0
      %v3096 = vsel %vm1014, %v3082, 0
      %v3099 = vsel %vm1014, %v3083, 0
      %v3102 = vsel %vm949, %v3089, 0
      %3104 = vmatprep.subr.bf16.mxu0 0
      %3105 = vmatpush1.bf16.msra.mxu0 %v3085
      %3106 = vmatprep.subr.bf16.mxu0 0
      %3107 = vmatpush1.bf16.msra.mxu0 %v3087
      %3108 = vmatprep.subr.bf16.mxu0 0
      %3109 = vmatpush1.bf16.msra.mxu0 %v3102
      %3110 = vmatprep.subr.bf16.mxu0 0
      %3111 = vmatpush1.bf16.msra.mxu0 0
      %3112 = vmatprep.subr.bf16.mxu0 0
      %3113 = vmatpush1.bf16.msra.mxu0 0
      %3114 = vmatprep.subr.bf16.mxu0 0
      %3115 = vmatpush1.bf16.msra.mxu0 0
      %3116 = vmatprep.subr.bf16.mxu0 0
      %3117 = vmatpush1.bf16.msra.mxu0 0
      %3118 = vmatprep.subr.bf16.mxu0 0
      %3119 = vmatpush1.bf16.msra.mxu0 0
      %3120 = vmatprep.subr.bf16.mxu0 0
      %3121 = vmatpush1.bf16.msra.mxu0 0
      %3122 = vmatprep.subr.bf16.mxu0 0
      %3123 = vmatpush1.bf16.msra.mxu0 0
      %3124 = vmatprep.subr.bf16.mxu0 0
      %3125 = vmatpush1.bf16.msra.mxu0 0
      %3126 = vmatprep.subr.bf16.mxu0 0
      %3127 = vmatpush1.bf16.msra.mxu0 0
      %3128 = vmatprep.subr.bf16.mxu0 0
      %3129 = vmatpush1.bf16.msra.mxu0 0
      %3130 = vmatprep.subr.bf16.mxu0 0
      %3131 = vmatpush1.bf16.msra.mxu0 0
      %3132 = vmatprep.subr.bf16.mxu0 0
      %3133 = vmatpush1.bf16.msra.mxu0 0
      %3134 = vmatprep.subr.bf16.mxu0 0
      %3135 = vmatpush1.bf16.msra.mxu0 0
      %3136 = vmatprep.mubr.bf16.mxu0 0
      %3137 = vmatmul.mubr.bf16.gmra.mrb[0].mxu0 %v3093
      %v3138 = vpop.f32.mrb[0].mxu0
      %v3139 = vadd.f32 0.0, %v3138
      %v3140 = vpop.f32.mrb[0].mxu0
      %v3141 = vpop.f32.mrb[0].mxu0
      %v3142 = vadd.f32 0.0, %v3141
      %v3143 = vpop.f32.mrb[0].mxu0
      %3144 = vmatprep.mubr.bf16.mxu0 0
      %3145 = vmatmul.mubr.bf16.gmra.mrb[0].mxu0 %v3096
      %v3146 = vpop.f32.mrb[0].mxu0
      %v3147 = vadd.f32 0.0, %v3146
      %v3148 = vpop.f32.mrb[0].mxu0
      %v3149 = vpop.f32.mrb[0].mxu0
      %v3150 = vadd.f32 0.0, %v3149
      %v3151 = vpop.f32.mrb[0].mxu0
      %3152 = vmatprep.mubr.bf16.mxu0 0
      %3153 = vmatmul.mubr.bf16.gmra.mrb[0].mxu0 %v3099
      %v3154 = vpop.f32.mrb[0].mxu0
      %v3155 = vadd.f32 0.0, %v3154
      %v3156 = vpop.f32.mrb[0].mxu0
      %v3157 = vpop.f32.mrb[0].mxu0
      %v3158 = vpop.f32.mrb[0].mxu0
      %3159 = vdwg.mxu0
      %3160 = vrot.lane.b32.xlu0 %v2612, 80
      %v3161 = vpop.permute.xlu0 %3160
      %3162 = vrot.lane.b32.xlu0 %v2615, 80
      %v3163 = vpop.permute.xlu0 %3162
      %3164 = vrot.lane.b32.xlu0 %v2620, 80
      %v3165 = vpop.permute.xlu0 %3164
      %3166 = vrot.lane.b32.xlu0 %v2623, 80
      %v3167 = vpop.permute.xlu0 %3166
      %3168 = vrot.lane.b32.xlu0 %v2628, 80
      %v3169 = vpop.permute.xlu0 %3168
      %3175 = vxpose.xlu0.b32.start [1/16] %v3161, 128
      %3176 = vxpose.xlu0.b32.cont [2/16] %v3163, 128
      %3177 = vxpose.xlu0.b32.cont [3/16] %v3165, 128
      %3178 = vxpose.xlu0.b32.cont [4/16] %v3167, 128
      %3179 = vxpose.xlu0.b32.cont [5/16] %v3169, 128
      %3180 = vxpose.xlu0.b32.cont [6/16] 0.0, 128
      %3181 = vxpose.xlu0.b32.cont [7/16] 0.0, 128
      %3182 = vxpose.xlu0.b32.cont [8/16] 0.0, 128
      %3183 = vxpose.xlu0.b32.cont [9/16] 0.0, 128
      %3184 = vxpose.xlu0.b32.cont [10/16] 0.0, 128
      %3185 = vxpose.xlu0.b32.cont [11/16] 0.0, 128
      %3186 = vxpose.xlu0.b32.cont [12/16] 0.0, 128
      %3187 = vxpose.xlu0.b32.cont [13/16] 0.0, 128
      %3188 = vxpose.xlu0.b32.cont [14/16] 0.0, 128
      %3189 = vxpose.xlu0.b32.cont [15/16] 0.0, 128
      %3190 = vxpose.xlu0.b32.end [16/16] 0.0, 128
      %v3191 = vpop.trf.xlu0
      %v3192 = vpop.trf.xlu0
      %v3193 = vpop.trf.xlu0
      %v3194 = vpop.trf.xlu0
      %v3195 = vpop.trf.xlu0
      %v3196 = vpop.trf.xlu0
      %v3197 = vpop.trf.xlu0
      %v3198 = vpop.trf.xlu0
      %v3199 = vpop.trf.xlu0
      %v3200 = vpop.trf.xlu0
      %v3201 = vpop.trf.xlu0
      %v3202 = vpop.trf.xlu0
      %v3203 = vpop.trf.xlu0
      %v3204 = vpop.trf.xlu0
      %v3205 = vpop.trf.xlu0
      %v3206 = vpop.trf.xlu0
      %v3207 = vpack.c.bf16 %v3191, %v3191
      %3208 = vrot.lane.b32.xlu0 %v2685, 112
      %v3209 = vpop.permute.xlu0 %3208
      %3210 = vrot.lane.b32.xlu0 %v2686, 112
      %v3211 = vpop.permute.xlu0 %3210
      %3212 = vrot.lane.b32.xlu0 %v2687, 112
      %v3213 = vpop.permute.xlu0 %3212
      %v3215 = vsel %vm939, %v3209, 0
      %v3218 = vsel %vm939, %v3211, 0
      %v3221 = vsel %vm939, %v3213, 0
      %v3224 = vsel %vm949, %v3207, 0
      %3226 = vmatprep.subr.bf16.mxu0 0
      %3227 = vmatpush1.bf16.msra.mxu0 %v3224
      %3228 = vmatprep.subr.bf16.mxu0 0
      %3229 = vmatpush1.bf16.msra.mxu0 0
      %3230 = vmatprep.subr.bf16.mxu0 0
      %3231 = vmatpush1.bf16.msra.mxu0 0
      %3232 = vmatprep.subr.bf16.mxu0 0
      %3233 = vmatpush1.bf16.msra.mxu0 0
      %3234 = vmatprep.subr.bf16.mxu0 0
      %3235 = vmatpush1.bf16.msra.mxu0 0
      %3236 = vmatprep.subr.bf16.mxu0 0
      %3237 = vmatpush1.bf16.msra.mxu0 0
      %3238 = vmatprep.subr.bf16.mxu0 0
      %3239 = vmatpush1.bf16.msra.mxu0 0
      %3240 = vmatprep.subr.bf16.mxu0 0
      %3241 = vmatpush1.bf16.msra.mxu0 0
      %3242 = vmatprep.subr.bf16.mxu0 0
      %3243 = vmatpush1.bf16.msra.mxu0 0
      %3244 = vmatprep.subr.bf16.mxu0 0
      %3245 = vmatpush1.bf16.msra.mxu0 0
      %3246 = vmatprep.subr.bf16.mxu0 0
      %3247 = vmatpush1.bf16.msra.mxu0 0
      %3248 = vmatprep.subr.bf16.mxu0 0
      %3249 = vmatpush1.bf16.msra.mxu0 0
      %3250 = vmatprep.subr.bf16.mxu0 0
      %3251 = vmatpush1.bf16.msra.mxu0 0
      %3252 = vmatprep.subr.bf16.mxu0 0
      %3253 = vmatpush1.bf16.msra.mxu0 0
      %3254 = vmatprep.subr.bf16.mxu0 0
      %3255 = vmatpush1.bf16.msra.mxu0 0
      %3256 = vmatprep.subr.bf16.mxu0 0
      %3257 = vmatpush1.bf16.msra.mxu0 0
      %3258 = vmatprep.mubr.bf16.mxu0 0
      %3259 = vmatmul.mubr.bf16.gmra.mrb[0].mxu0 %v3215
      %v3260 = vpop.f32.mrb[0].mxu0
      %v3261 = vadd.f32 0.0, %v3260
      %v3262 = vpop.f32.mrb[0].mxu0
      %v3263 = vpop.f32.mrb[0].mxu0
      %v3264 = vadd.f32 0.0, %v3263
      %v3265 = vpop.f32.mrb[0].mxu0
      %3266 = vmatprep.mubr.bf16.mxu0 0
      %3267 = vmatmul.mubr.bf16.gmra.mrb[0].mxu0 %v3218
      %v3268 = vpop.f32.mrb[0].mxu0
      %v3269 = vadd.f32 0.0, %v3268
      %v3270 = vpop.f32.mrb[0].mxu0
      %v3271 = vpop.f32.mrb[0].mxu0
      %v3272 = vadd.f32 0.0, %v3271
      %v3273 = vpop.f32.mrb[0].mxu0
      %3274 = vmatprep.mubr.bf16.mxu0 0
      %3275 = vmatmul.mubr.bf16.gmra.mrb[0].mxu0 %v3221
      %v3276 = vpop.f32.mrb[0].mxu0
      %v3277 = vadd.f32 0.0, %v3276
      %v3278 = vpop.f32.mrb[0].mxu0
      %v3279 = vpop.f32.mrb[0].mxu0
      %v3280 = vpop.f32.mrb[0].mxu0
      %3281 = vdwg.mxu0
      %v3282 = vsel %vm700, %v3261, -1e+09
      %v3283 = vsel %vm701, %v3264, -1e+09
      %v3284 = vsel %vm702, %v3269, -1e+09
      %v3285 = vsel %vm703, %v3272, -1e+09
      %v3286 = vsel %vm704, %v3277, -1e+09
      %v3287 = vsel %vm1014, %v3282, -inf
      %3288 = vmax.xlane.f32.xlu0 %v3287
      %v3289 = vpop.xlane.xlu0 %3288
      %v3290 = vsel %vm1014, %v3283, -inf
      %3291 = vmax.xlane.f32.xlu0 %v3290
      %v3292 = vpop.xlane.xlu0 %3291
      %v3293 = vsel %vm1014, %v3284, -inf
      %3294 = vmax.xlane.f32.xlu0 %v3293
      %v3295 = vpop.xlane.xlu0 %3294
      %v3296 = vsel %vm1014, %v3285, -inf
      %3297 = vmax.xlane.f32.xlu0 %v3296
      %v3298 = vpop.xlane.xlu0 %3297
      %v3299 = vsel %vm1014, %v3286, -inf
      %3300 = vmax.xlane.f32.xlu0 %v3299
      %v3301 = vpop.xlane.xlu0 %3300
      %v3302 = vsub.f32 %v3282, %v3289
      %v3303 = vsub.f32 %v3283, %v3292
      %v3304 = vsub.f32 %v3284, %v3295
      %v3305 = vsub.f32 %v3285, %v3298
      %v3306 = vsub.f32 %v3286, %v3301
      %v3307 = vmul.f32 %v3302, 1.442695
      %v3308 = vpow.pop %v3307
      %v3309 = vmul.f32 %v3303, 1.442695
      %v3310 = vpow.pop %v3309
      %v3311 = vmul.f32 %v3304, 1.442695
      %v3312 = vpow.pop %v3311
      %v3313 = vmul.f32 %v3305, 1.442695
      %v3314 = vpow.pop %v3313
      %v3315 = vmul.f32 %v3306, 1.442695
      %v3316 = vpow.pop %v3315
      %v3317 = vsel %vm1014, %v3308, 0.0
      %3318 = vadd.xlane.f32.xlu0 %v3317
      %v3319 = vpop.xlane.xlu0 %3318
      %v3320 = vsel %vm1014, %v3310, 0.0
      %3321 = vadd.xlane.f32.xlu0 %v3320
      %v3322 = vpop.xlane.xlu0 %3321
      %v3323 = vsel %vm1014, %v3312, 0.0
      %3324 = vadd.xlane.f32.xlu0 %v3323
      %v3325 = vpop.xlane.xlu0 %3324
      %v3326 = vsel %vm1014, %v3314, 0.0
      %3327 = vadd.xlane.f32.xlu0 %v3326
      %v3328 = vpop.xlane.xlu0 %3327
      %v3329 = vsel %vm1014, %v3316, 0.0
      %3330 = vadd.xlane.f32.xlu0 %v3329
      %v3331 = vpop.xlane.xlu0 %3330
      %v3332 = vrcp.pop %v3319
      %v3333 = vrcp.pop %v3322
      %v3334 = vrcp.pop %v3325
      %v3335 = vrcp.pop %v3328
      %v3336 = vrcp.pop %v3331
      %v3337 = vmul.f32 %v3308, %v3332
      %v3338 = vmul.f32 %v3310, %v3333
      %v3339 = vmul.f32 %v3312, %v3334
      %v3340 = vmul.f32 %v3314, %v3335
      %v3341 = vmul.f32 %v3316, %v3336
      %v3342 = vpack.c.bf16 %v3338, %v3337
      %v3343 = vpack.c.bf16 %v3340, %v3339
      %v3344 = vpack.c.bf16 %v3341, %v3341
      %3345 = vrot.lane.b32.xlu0 %v2685, 48
      %v3346 = vpop.permute.xlu0 %3345
      %3347 = vrot.lane.b32.xlu0 %v2686, 48
      %v3348 = vpop.permute.xlu0 %3347
      %3349 = vrot.lane.b32.xlu0 %v2687, 48
      %v3350 = vpop.permute.xlu0 %3349
      %v3354 = vsel %vm1014, %v3342, 0
      %v3357 = vsel %vm1014, %v3343, 0
      %v3360 = vsel %vm1014, %v3344, 0
      %v3363 = vsel %vm949, %v3350, 0
      %3365 = vmatprep.subr.bf16.mxu0 0
      %3366 = vmatpush1.bf16.msra.mxu0 %v3346
      %3367 = vmatprep.subr.bf16.mxu0 0
      %3368 = vmatpush1.bf16.msra.mxu0 %v3348
      %3369 = vmatprep.subr.bf16.mxu0 0
      %3370 = vmatpush1.bf16.msra.mxu0 %v3363
      %3371 = vmatprep.subr.bf16.mxu0 0
      %3372 = vmatpush1.bf16.msra.mxu0 0
      %3373 = vmatprep.subr.bf16.mxu0 0
      %3374 = vmatpush1.bf16.msra.mxu0 0
      %3375 = vmatprep.subr.bf16.mxu0 0
      %3376 = vmatpush1.bf16.msra.mxu0 0
      %3377 = vmatprep.subr.bf16.mxu0 0
      %3378 = vmatpush1.bf16.msra.mxu0 0
      %3379 = vmatprep.subr.bf16.mxu0 0
      %3380 = vmatpush1.bf16.msra.mxu0 0
      %3381 = vmatprep.subr.bf16.mxu0 0
      %3382 = vmatpush1.bf16.msra.mxu0 0
      %3383 = vmatprep.subr.bf16.mxu0 0
      %3384 = vmatpush1.bf16.msra.mxu0 0
      %3385 = vmatprep.subr.bf16.mxu0 0
      %3386 = vmatpush1.bf16.msra.mxu0 0
      %3387 = vmatprep.subr.bf16.mxu0 0
      %3388 = vmatpush1.bf16.msra.mxu0 0
      %3389 = vmatprep.subr.bf16.mxu0 0
      %3390 = vmatpush1.bf16.msra.mxu0 0
      %3391 = vmatprep.subr.bf16.mxu0 0
      %3392 = vmatpush1.bf16.msra.mxu0 0
      %3393 = vmatprep.subr.bf16.mxu0 0
      %3394 = vmatpush1.bf16.msra.mxu0 0
      %3395 = vmatprep.subr.bf16.mxu0 0
      %3396 = vmatpush1.bf16.msra.mxu0 0
      %3397 = vmatprep.mubr.bf16.mxu0 0
      %3398 = vmatmul.mubr.bf16.gmra.mrb[0].mxu0 %v3354
      %v3399 = vpop.f32.mrb[0].mxu0
      %v3400 = vadd.f32 0.0, %v3399
      %v3401 = vpop.f32.mrb[0].mxu0
      %v3402 = vpop.f32.mrb[0].mxu0
      %v3403 = vadd.f32 0.0, %v3402
      %v3404 = vpop.f32.mrb[0].mxu0
      %3405 = vmatprep.mubr.bf16.mxu0 0
      %3406 = vmatmul.mubr.bf16.gmra.mrb[0].mxu0 %v3357
      %v3407 = vpop.f32.mrb[0].mxu0
      %v3408 = vadd.f32 0.0, %v3407
      %v3409 = vpop.f32.mrb[0].mxu0
      %v3410 = vpop.f32.mrb[0].mxu0
      %v3411 = vadd.f32 0.0, %v3410
      %v3412 = vpop.f32.mrb[0].mxu0
      %3413 = vmatprep.mubr.bf16.mxu0 0
      %3414 = vmatmul.mubr.bf16.gmra.mrb[0].mxu0 %v3360
      %v3415 = vpop.f32.mrb[0].mxu0
      %v3416 = vadd.f32 0.0, %v3415
      %v3417 = vpop.f32.mrb[0].mxu0
      %v3418 = vpop.f32.mrb[0].mxu0
      %v3419 = vpop.f32.mrb[0].mxu0
      %3420 = vdwg.mxu0
      %3421 = vrot.lane.b32.xlu0 %v2612, 72
      %v3422 = vpop.permute.xlu0 %3421
      %3423 = vrot.lane.b32.xlu0 %v2615, 72
      %v3424 = vpop.permute.xlu0 %3423
      %3425 = vrot.lane.b32.xlu0 %v2620, 72
      %v3426 = vpop.permute.xlu0 %3425
      %3427 = vrot.lane.b32.xlu0 %v2623, 72
      %v3428 = vpop.permute.xlu0 %3427
      %3429 = vrot.lane.b32.xlu0 %v2628, 72
      %v3430 = vpop.permute.xlu0 %3429
      %3436 = vxpose.xlu0.b32.start [1/16] %v3422, 128
      %3437 = vxpose.xlu0.b32.cont [2/16] %v3424, 128
      %3438 = vxpose.xlu0.b32.cont [3/16] %v3426, 128
      %3439 = vxpose.xlu0.b32.cont [4/16] %v3428, 128
      %3440 = vxpose.xlu0.b32.cont [5/16] %v3430, 128
      %3441 = vxpose.xlu0.b32.cont [6/16] 0.0, 128
      %3442 = vxpose.xlu0.b32.cont [7/16] 0.0, 128
      %3443 = vxpose.xlu0.b32.cont [8/16] 0.0, 128
      %3444 = vxpose.xlu0.b32.cont [9/16] 0.0, 128
      %3445 = vxpose.xlu0.b32.cont [10/16] 0.0, 128
      %3446 = vxpose.xlu0.b32.cont [11/16] 0.0, 128
      %3447 = vxpose.xlu0.b32.cont [12/16] 0.0, 128
      %3448 = vxpose.xlu0.b32.cont [13/16] 0.0, 128
      %3449 = vxpose.xlu0.b32.cont [14/16] 0.0, 128
      %3450 = vxpose.xlu0.b32.cont [15/16] 0.0, 128
      %3451 = vxpose.xlu0.b32.end [16/16] 0.0, 128
      %v3452 = vpop.trf.xlu0
      %v3453 = vpop.trf.xlu0
      %v3454 = vpop.trf.xlu0
      %v3455 = vpop.trf.xlu0
      %v3456 = vpop.trf.xlu0
      %v3457 = vpop.trf.xlu0
      %v3458 = vpop.trf.xlu0
      %v3459 = vpop.trf.xlu0
      %v3460 = vpop.trf.xlu0
      %v3461 = vpop.trf.xlu0
      %v3462 = vpop.trf.xlu0
      %v3463 = vpop.trf.xlu0
      %v3464 = vpop.trf.xlu0
      %v3465 = vpop.trf.xlu0
      %v3466 = vpop.trf.xlu0
      %v3467 = vpop.trf.xlu0
      %v3468 = vpack.c.bf16 %v3452, %v3452
      %3469 = vrot.lane.b32.xlu0 %v2685, 104
      %v3470 = vpop.permute.xlu0 %3469
      %3471 = vrot.lane.b32.xlu0 %v2686, 104
      %v3472 = vpop.permute.xlu0 %3471
      %3473 = vrot.lane.b32.xlu0 %v2687, 104
      %v3474 = vpop.permute.xlu0 %3473
      %v3476 = vsel %vm939, %v3470, 0
      %v3479 = vsel %vm939, %v3472, 0
      %v3482 = vsel %vm939, %v3474, 0
      %v3485 = vsel %vm949, %v3468, 0
      %3487 = vmatprep.subr.bf16.mxu0 0
      %3488 = vmatpush1.bf16.msra.mxu0 %v3485
      %3489 = vmatprep.subr.bf16.mxu0 0
      %3490 = vmatpush1.bf16.msra.mxu0 0
      %3491 = vmatprep.subr.bf16.mxu0 0
      %3492 = vmatpush1.bf16.msra.mxu0 0
      %3493 = vmatprep.subr.bf16.mxu0 0
      %3494 = vmatpush1.bf16.msra.mxu0 0
      %3495 = vmatprep.subr.bf16.mxu0 0
      %3496 = vmatpush1.bf16.msra.mxu0 0
      %3497 = vmatprep.subr.bf16.mxu0 0
      %3498 = vmatpush1.bf16.msra.mxu0 0
      %3499 = vmatprep.subr.bf16.mxu0 0
      %3500 = vmatpush1.bf16.msra.mxu0 0
      %3501 = vmatprep.subr.bf16.mxu0 0
      %3502 = vmatpush1.bf16.msra.mxu0 0
      %3503 = vmatprep.subr.bf16.mxu0 0
      %3504 = vmatpush1.bf16.msra.mxu0 0
      %3505 = vmatprep.subr.bf16.mxu0 0
      %3506 = vmatpush1.bf16.msra.mxu0 0
      %3507 = vmatprep.subr.bf16.mxu0 0
      %3508 = vmatpush1.bf16.msra.mxu0 0
      %3509 = vmatprep.subr.bf16.mxu0 0
      %3510 = vmatpush1.bf16.msra.mxu0 0
      %3511 = vmatprep.subr.bf16.mxu0 0
      %3512 = vmatpush1.bf16.msra.mxu0 0
      %3513 = vmatprep.subr.bf16.mxu0 0
      %3514 = vmatpush1.bf16.msra.mxu0 0
      %3515 = vmatprep.subr.bf16.mxu0 0
      %3516 = vmatpush1.bf16.msra.mxu0 0
      %3517 = vmatprep.subr.bf16.mxu0 0
      %3518 = vmatpush1.bf16.msra.mxu0 0
      %3519 = vmatprep.mubr.bf16.mxu0 0
      %3520 = vmatmul.mubr.bf16.gmra.mrb[0].mxu0 %v3476
      %v3521 = vpop.f32.mrb[0].mxu0
      %v3522 = vadd.f32 0.0, %v3521
      %v3523 = vpop.f32.mrb[0].mxu0
      %v3524 = vpop.f32.mrb[0].mxu0
      %v3525 = vadd.f32 0.0, %v3524
      %v3526 = vpop.f32.mrb[0].mxu0
      %3527 = vmatprep.mubr.bf16.mxu0 0
      %3528 = vmatmul.mubr.bf16.gmra.mrb[0].mxu0 %v3479
      %v3529 = vpop.f32.mrb[0].mxu0
      %v3530 = vadd.f32 0.0, %v3529
      %v3531 = vpop.f32.mrb[0].mxu0
      %v3532 = vpop.f32.mrb[0].mxu0
      %v3533 = vadd.f32 0.0, %v3532
      %v3534 = vpop.f32.mrb[0].mxu0
      %3535 = vmatprep.mubr.bf16.mxu0 0
      %3536 = vmatmul.mubr.bf16.gmra.mrb[0].mxu0 %v3482
      %v3537 = vpop.f32.mrb[0].mxu0
      %v3538 = vadd.f32 0.0, %v3537
      %v3539 = vpop.f32.mrb[0].mxu0
      %v3540 = vpop.f32.mrb[0].mxu0
      %v3541 = vpop.f32.mrb[0].mxu0
      %3542 = vdwg.mxu0
      %v3543 = vsel %vm700, %v3522, -1e+09
      %v3544 = vsel %vm701, %v3525, -1e+09
      %v3545 = vsel %vm702, %v3530, -1e+09
      %v3546 = vsel %vm703, %v3533, -1e+09
      %v3547 = vsel %vm704, %v3538, -1e+09
      %v3548 = vsel %vm1014, %v3543, -inf
      %3549 = vmax.xlane.f32.xlu0 %v3548
      %v3550 = vpop.xlane.xlu0 %3549
      %v3551 = vsel %vm1014, %v3544, -inf
      %3552 = vmax.xlane.f32.xlu0 %v3551
      %v3553 = vpop.xlane.xlu0 %3552
      %v3554 = vsel %vm1014, %v3545, -inf
      %3555 = vmax.xlane.f32.xlu0 %v3554
      %v3556 = vpop.xlane.xlu0 %3555
      %v3557 = vsel %vm1014, %v3546, -inf
      %3558 = vmax.xlane.f32.xlu0 %v3557
      %v3559 = vpop.xlane.xlu0 %3558
      %v3560 = vsel %vm1014, %v3547, -inf
      %3561 = vmax.xlane.f32.xlu0 %v3560
      %v3562 = vpop.xlane.xlu0 %3561
      %v3563 = vsub.f32 %v3543, %v3550
      %v3564 = vsub.f32 %v3544, %v3553
      %v3565 = vsub.f32 %v3545, %v3556
      %v3566 = vsub.f32 %v3546, %v3559
      %v3567 = vsub.f32 %v3547, %v3562
      %v3568 = vmul.f32 %v3563, 1.442695
      %v3569 = vpow.pop %v3568
      %v3570 = vmul.f32 %v3564, 1.442695
      %v3571 = vpow.pop %v3570
      %v3572 = vmul.f32 %v3565, 1.442695
      %v3573 = vpow.pop %v3572
      %v3574 = vmul.f32 %v3566, 1.442695
      %v3575 = vpow.pop %v3574
      %v3576 = vmul.f32 %v3567, 1.442695
      %v3577 = vpow.pop %v3576
      %v3578 = vsel %vm1014, %v3569, 0.0
      %3579 = vadd.xlane.f32.xlu0 %v3578
      %v3580 = vpop.xlane.xlu0 %3579
      %v3581 = vsel %vm1014, %v3571, 0.0
      %3582 = vadd.xlane.f32.xlu0 %v3581
      %v3583 = vpop.xlane.xlu0 %3582
      %v3584 = vsel %vm1014, %v3573, 0.0
      %3585 = vadd.xlane.f32.xlu0 %v3584
      %v3586 = vpop.xlane.xlu0 %3585
      %v3587 = vsel %vm1014, %v3575, 0.0
      %3588 = vadd.xlane.f32.xlu0 %v3587
      %v3589 = vpop.xlane.xlu0 %3588
      %v3590 = vsel %vm1014, %v3577, 0.0
      %3591 = vadd.xlane.f32.xlu0 %v3590
      %v3592 = vpop.xlane.xlu0 %3591
      %v3593 = vrcp.pop %v3580
      %v3594 = vrcp.pop %v3583
      %v3595 = vrcp.pop %v3586
      %v3596 = vrcp.pop %v3589
      %v3597 = vrcp.pop %v3592
      %v3598 = vmul.f32 %v3569, %v3593
      %v3599 = vmul.f32 %v3571, %v3594
      %v3600 = vmul.f32 %v3573, %v3595
      %v3601 = vmul.f32 %v3575, %v3596
      %v3602 = vmul.f32 %v3577, %v3597
      %v3603 = vpack.c.bf16 %v3599, %v3598
      %v3604 = vpack.c.bf16 %v3601, %v3600
      %v3605 = vpack.c.bf16 %v3602, %v3602
      %3606 = vrot.lane.b32.xlu0 %v2685, 40
      %v3607 = vpop.permute.xlu0 %3606
      %3608 = vrot.lane.b32.xlu0 %v2686, 40
      %v3609 = vpop.permute.xlu0 %3608
      %3610 = vrot.lane.b32.xlu0 %v2687, 40
      %v3611 = vpop.permute.xlu0 %3610
      %v3615 = vsel %vm1014, %v3603, 0
      %v3618 = vsel %vm1014, %v3604, 0
      %v3621 = vsel %vm1014, %v3605, 0
      %v3624 = vsel %vm949, %v3611, 0
      %3626 = vmatprep.subr.bf16.mxu0 0
      %3627 = vmatpush1.bf16.msra.mxu0 %v3607
      %3628 = vmatprep.subr.bf16.mxu0 0
      %3629 = vmatpush1.bf16.msra.mxu0 %v3609
      %3630 = vmatprep.subr.bf16.mxu0 0
      %3631 = vmatpush1.bf16.msra.mxu0 %v3624
      %3632 = vmatprep.subr.bf16.mxu0 0
      %3633 = vmatpush1.bf16.msra.mxu0 0
      %3634 = vmatprep.subr.bf16.mxu0 0
      %3635 = vmatpush1.bf16.msra.mxu0 0
      %3636 = vmatprep.subr.bf16.mxu0 0
      %3637 = vmatpush1.bf16.msra.mxu0 0
      %3638 = vmatprep.subr.bf16.mxu0 0
      %3639 = vmatpush1.bf16.msra.mxu0 0
      %3640 = vmatprep.subr.bf16.mxu0 0
      %3641 = vmatpush1.bf16.msra.mxu0 0
      %3642 = vmatprep.subr.bf16.mxu0 0
      %3643 = vmatpush1.bf16.msra.mxu0 0
      %3644 = vmatprep.subr.bf16.mxu0 0
      %3645 = vmatpush1.bf16.msra.mxu0 0
      %3646 = vmatprep.subr.bf16.mxu0 0
      %3647 = vmatpush1.bf16.msra.mxu0 0
      %3648 = vmatprep.subr.bf16.mxu0 0
      %3649 = vmatpush1.bf16.msra.mxu0 0
      %3650 = vmatprep.subr.bf16.mxu0 0
      %3651 = vmatpush1.bf16.msra.mxu0 0
      %3652 = vmatprep.subr.bf16.mxu0 0
      %3653 = vmatpush1.bf16.msra.mxu0 0
      %3654 = vmatprep.subr.bf16.mxu0 0
      %3655 = vmatpush1.bf16.msra.mxu0 0
      %3656 = vmatprep.subr.bf16.mxu0 0
      %3657 = vmatpush1.bf16.msra.mxu0 0
      %3658 = vmatprep.mubr.bf16.mxu0 0
      %3659 = vmatmul.mubr.bf16.gmra.mrb[0].mxu0 %v3615
      %v3660 = vpop.f32.mrb[0].mxu0
      %v3661 = vadd.f32 0.0, %v3660
      %v3662 = vpop.f32.mrb[0].mxu0
      %v3663 = vpop.f32.mrb[0].mxu0
      %v3664 = vadd.f32 0.0, %v3663
      %v3665 = vpop.f32.mrb[0].mxu0
      %3666 = vmatprep.mubr.bf16.mxu0 0
      %3667 = vmatmul.mubr.bf16.gmra.mrb[0].mxu0 %v3618
      %v3668 = vpop.f32.mrb[0].mxu0
      %v3669 = vadd.f32 0.0, %v3668
      %v3670 = vpop.f32.mrb[0].mxu0
      %v3671 = vpop.f32.mrb[0].mxu0
      %v3672 = vadd.f32 0.0, %v3671
      %v3673 = vpop.f32.mrb[0].mxu0
      %3674 = vmatprep.mubr.bf16.mxu0 0
      %3675 = vmatmul.mubr.bf16.gmra.mrb[0].mxu0 %v3621
      %v3676 = vpop.f32.mrb[0].mxu0
      %v3677 = vadd.f32 0.0, %v3676
      %v3678 = vpop.f32.mrb[0].mxu0
      %v3679 = vpop.f32.mrb[0].mxu0
      %v3680 = vpop.f32.mrb[0].mxu0
      %3681 = vdwg.mxu0
      %3687 = vrot.lane.b32.xlu0 %v3139, 8
      %v3688 = vpop.permute.xlu0 %3687
      %3689 = vrot.lane.b32.xlu0 %v3142, 8
      %v3690 = vpop.permute.xlu0 %3689
      %3691 = vrot.lane.b32.xlu0 %v3147, 8
      %v3692 = vpop.permute.xlu0 %3691
      %3693 = vrot.lane.b32.xlu0 %v3150, 8
      %v3694 = vpop.permute.xlu0 %3693
      %3695 = vrot.lane.b32.xlu0 %v3155, 8
      %v3696 = vpop.permute.xlu0 %3695
      %3707 = vrot.lane.b32.xlu0 %v3400, 16
      %v3708 = vpop.permute.xlu0 %3707
      %3709 = vrot.lane.b32.xlu0 %v3403, 16
      %v3710 = vpop.permute.xlu0 %3709
      %3711 = vrot.lane.b32.xlu0 %v3408, 16
      %v3712 = vpop.permute.xlu0 %3711
      %3713 = vrot.lane.b32.xlu0 %v3411, 16
      %v3714 = vpop.permute.xlu0 %3713
      %3715 = vrot.lane.b32.xlu0 %v3416, 16
      %v3716 = vpop.permute.xlu0 %3715
      %3727 = vrot.lane.b32.xlu0 %v3661, 24
      %v3728 = vpop.permute.xlu0 %3727
      %3729 = vrot.lane.b32.xlu0 %v3664, 24
      %v3730 = vpop.permute.xlu0 %3729
      %3731 = vrot.lane.b32.xlu0 %v3669, 24
      %v3732 = vpop.permute.xlu0 %3731
      %3733 = vrot.lane.b32.xlu0 %v3672, 24
      %v3734 = vpop.permute.xlu0 %3733
      %3735 = vrot.lane.b32.xlu0 %v3677, 24
      %v3736 = vpop.permute.xlu0 %3735
      %v3742 = vsel %vm939, %v2878, %v3688
      %v3743 = vsel %vm939, %v2881, %v3690
      %v3744 = vsel %vm939, %v2886, %v3692
      %v3745 = vsel %vm939, %v2889, %v3694
      %v3746 = vsel %vm939, %v2894, %v3696
      %v3747 = vsel %vm2000, %v3742, %v3708
      %v3748 = vsel %vm2000, %v3743, %v3710
      %v3749 = vsel %vm2000, %v3744, %v3712
      %v3750 = vsel %vm2000, %v3745, %v3714
      %v3751 = vsel %vm2000, %v3746, %v3716
      %v3752 = vsel %vm2006, %v3747, %v3728
      %v3753 = vsel %vm2006, %v3748, %v3730
      %v3754 = vsel %vm2006, %v3749, %v3732
      %v3755 = vsel %vm2006, %v3750, %v3734
      %v3756 = vsel %vm2006, %v3751, %v3736
      %v3757 = vpack.c.bf16 %v3753, %v3752
      %v3758 = vpack.c.bf16 %v3755, %v3754
      %v3759 = vpack.c.bf16 %v3756, %v3756
      %v3760 = vlaneseq
      %v3761 = vshrl.u32 %v3760, 7
      %v3762 = vsub.s32 5, %v3761
      %v3763 = vrot.slane %v2455, %v3762
      %v3768 = vunpack.c.l.b16 %v2545
      %v3769 = vunpack.c.l.b16 %v2546
      %v3770 = vunpack.c.l.b16 %v2547
      %v3771 = vunpack.c.l.b16 %v2548
      %v3772 = vpack.c.b16 %v3769, %v3768
      %v3773 = vpack.c.b16 %v3771, %v3770
      %v3777 = vsel %vm706, %v3757, 0
      %v3780 = vsel %vm706, %v3758, 0
      %v3783 = vsel %vm706, %v3759, 0
      %3785 = vmatprep.subr.bf16.mxu0 0
      %3786 = vmatpush1.bf16.msra.mxu0 %v3772
      %3787 = vmatprep.subr.bf16.mxu0 0
      %3788 = vmatpush1.bf16.msra.mxu0 %v3773
      %3789 = vmatprep.subr.bf16.mxu0 0
      %3790 = vmatpush1.bf16.msra.mxu0 0
      %3791 = vmatprep.subr.bf16.mxu0 0
      %3792 = vmatpush1.bf16.msra.mxu0 0
      %3793 = vmatprep.subr.bf16.mxu0 0
      %3794 = vmatpush1.bf16.msra.mxu0 0
      %3795 = vmatprep.subr.bf16.mxu0 0
      %3796 = vmatpush1.bf16.msra.mxu0 0
      %3797 = vmatprep.subr.bf16.mxu0 0
      %3798 = vmatpush1.bf16.msra.mxu0 0
      %3799 = vmatprep.subr.bf16.mxu0 0
      %3800 = vmatpush1.bf16.msra.mxu0 0
      %3801 = vmatprep.subr.bf16.mxu0 0
      %3802 = vmatpush1.bf16.msra.mxu0 0
      %3803 = vmatprep.subr.bf16.mxu0 0
      %3804 = vmatpush1.bf16.msra.mxu0 0
      %3805 = vmatprep.subr.bf16.mxu0 0
      %3806 = vmatpush1.bf16.msra.mxu0 0
      %3807 = vmatprep.subr.bf16.mxu0 0
      %3808 = vmatpush1.bf16.msra.mxu0 0
      %3809 = vmatprep.subr.bf16.mxu0 0
      %3810 = vmatpush1.bf16.msra.mxu0 0
      %3811 = vmatprep.subr.bf16.mxu0 0
      %3812 = vmatpush1.bf16.msra.mxu0 0
      %3813 = vmatprep.subr.bf16.mxu0 0
      %3814 = vmatpush1.bf16.msra.mxu0 0
      %3815 = vmatprep.subr.bf16.mxu0 0
      %3816 = vmatpush1.bf16.msra.mxu0 0
      %3817 = vmatprep.mubr.bf16.mxu0 0
      %3818 = vmatmul.mubr.bf16.gmra.mrb[0].mxu0 %v3777
      %v3819 = vpop.f32.mrb[0].mxu0
      %v3820 = vadd.f32 %v3763, %v3819
      %v3821 = vpop.f32.mrb[0].mxu0
      %v3822 = vpop.f32.mrb[0].mxu0
      %v3823 = vadd.f32 %v3763, %v3822
      %v3824 = vpop.f32.mrb[0].mxu0
      %3825 = vmatprep.mubr.bf16.mxu0 0
      %3826 = vmatmul.mubr.bf16.gmra.mrb[0].mxu0 %v3780
      %v3827 = vpop.f32.mrb[0].mxu0
      %v3828 = vadd.f32 %v3763, %v3827
      %v3829 = vpop.f32.mrb[0].mxu0
      %v3830 = vpop.f32.mrb[0].mxu0
      %v3831 = vadd.f32 %v3763, %v3830
      %v3832 = vpop.f32.mrb[0].mxu0
      %3833 = vmatprep.mubr.bf16.mxu0 0
      %3834 = vmatmul.mubr.bf16.gmra.mrb[0].mxu0 %v3783
      %v3835 = vpop.f32.mrb[0].mxu0
      %v3836 = vadd.f32 %v3763, %v3835
      %v3837 = vpop.f32.mrb[0].mxu0
      %v3838 = vpop.f32.mrb[0].mxu0
      %v3839 = vpop.f32.mrb[0].mxu0
      %3840 = vdwg.mxu0
      %v3841 = vadd.f32 %v2449, %v3820
      %v3842 = vadd.f32 %v2450, %v3823
      %v3843 = vadd.f32 %v2451, %v3828
      %v3844 = vadd.f32 %v2452, %v3831
      %v3845 = vadd.f32 %v2453, %v3836
      %v3846 = vsel %vm706, %v3841, 0.0
      %3847 = vadd.xlane.f32.xlu0 %v3846
      %v3848 = vpop.xlane.xlu0 %3847
      %v3849 = vsel %vm706, %v3842, 0.0
      %3850 = vadd.xlane.f32.xlu0 %v3849
      %v3851 = vpop.xlane.xlu0 %3850
      %v3852 = vsel %vm706, %v3843, 0.0
      %3853 = vadd.xlane.f32.xlu0 %v3852
      %v3854 = vpop.xlane.xlu0 %3853
      %v3855 = vsel %vm706, %v3844, 0.0
      %3856 = vadd.xlane.f32.xlu0 %v3855
      %v3857 = vpop.xlane.xlu0 %3856
      %v3858 = vsel %vm706, %v3845, 0.0
      %3859 = vadd.xlane.f32.xlu0 %v3858
      %v3860 = vpop.xlane.xlu0 %3859
      %v3861 = vmul.f32 %v3848, %v722
      %v3862 = vmul.f32 %v3851, %v722
      %v3863 = vmul.f32 %v3854, %v722
      %v3864 = vmul.f32 %v3857, %v722
      %v3865 = vmul.f32 %v3860, %v722
      %v3866 = vsub.f32 %v3841, %v3861
      %v3867 = vsub.f32 %v3842, %v3862
      %v3868 = vsub.f32 %v3843, %v3863
      %v3869 = vsub.f32 %v3844, %v3864
      %v3870 = vsub.f32 %v3845, %v3865
      %v3871 = vmul.f32 %v3866, %v3866
      %v3872 = vmul.f32 %v3867, %v3867
      %v3873 = vmul.f32 %v3868, %v3868
      %v3874 = vmul.f32 %v3869, %v3869
      %v3875 = vmul.f32 %v3870, %v3870
      %v3876 = vsel %vm706, %v3871, 0.0
      %3877 = vadd.xlane.f32.xlu0 %v3876
      %v3878 = vpop.xlane.xlu0 %3877
      %v3879 = vsel %vm706, %v3872, 0.0
      %3880 = vadd.xlane.f32.xlu0 %v3879
      %v3881 = vpop.xlane.xlu0 %3880
      %v3882 = vsel %vm706, %v3873, 0.0
      %3883 = vadd.xlane.f32.xlu0 %v3882
      %v3884 = vpop.xlane.xlu0 %3883
      %v3885 = vsel %vm706, %v3874, 0.0
      %3886 = vadd.xlane.f32.xlu0 %v3885
      %v3887 = vpop.xlane.xlu0 %3886
      %v3888 = vsel %vm706, %v3875, 0.0
      %3889 = vadd.xlane.f32.xlu0 %v3888
      %v3890 = vpop.xlane.xlu0 %3889
      %v3891 = vmul.f32 %v3878, %v722
      %v3892 = vmul.f32 %v3881, %v722
      %v3893 = vmul.f32 %v3884, %v722
      %v3894 = vmul.f32 %v3887, %v722
      %v3895 = vmul.f32 %v3890, %v722
      %v3896 = vadd.f32 %v3891, 1e-06
      %v3897 = vadd.f32 %v3892, 1e-06
      %v3898 = vadd.f32 %v3893, 1e-06
      %v3899 = vadd.f32 %v3894, 1e-06
      %v3900 = vadd.f32 %v3895, 1e-06
      %v3901 = vrsqrt.pop %v3896
      %v3902 = vrsqrt.pop %v3897
      %v3903 = vrsqrt.pop %v3898
      %v3904 = vrsqrt.pop %v3899
      %v3905 = vrsqrt.pop %v3900
      %v3906 = vmul.f32 %v3866, %v3901
      %v3907 = vmul.f32 %v3867, %v3902
      %v3908 = vmul.f32 %v3868, %v3903
      %v3909 = vmul.f32 %v3869, %v3904
      %v3910 = vmul.f32 %v3870, %v3905
      %v3911 = vlaneseq
      %v3912 = vshrl.u32 %v3911, 7
      %v3913 = vsub.s32 2, %v3912
      %v3914 = vrot.slane %v2455, %v3913
      %v3915 = vmul.f32 %v3906, %v3914
      %v3916 = vmul.f32 %v3907, %v3914
      %v3917 = vmul.f32 %v3908, %v3914
      %v3918 = vmul.f32 %v3909, %v3914
      %v3919 = vmul.f32 %v3910, %v3914
      %v3920 = vlaneseq
      %v3921 = vshrl.u32 %v3920, 7
      %v3922 = vsub.s32 3, %v3921
      %v3923 = vrot.slane %v2455, %v3922
      %v3924 = vadd.f32 %v3915, %v3923
      %v3925 = vadd.f32 %v3916, %v3923
      %v3926 = vadd.f32 %v3917, %v3923
      %v3927 = vadd.f32 %v3918, %v3923
      %v3928 = vadd.f32 %v3919, %v3923
      %s3929 = scalar_lea.vmem %s5, 16
      %v3930 = vld [vmem:[%s3929] sm:$0xf]
      %v3931 = vld [vmem:[%s3929 + $0x4] sm:$0xf]
      %v3932 = vld [vmem:[%s3929 + $0x8] sm:$0xf]
      %v3933 = vld [vmem:[%s3929 + $0xc] sm:$0xf]
      %v3934 = vpack.c.bf16 %v3925, %v3924
      %v3935 = vpack.c.bf16 %v3927, %v3926
      %v3936 = vpack.c.bf16 %v3928, %v3928
      %v3937 = vlaneseq
      %v3938 = vshrl.u32 %v3937, 7
      %v3939 = vsub.s32 6, %v3938
      %v3940 = vrot.slane %v2455, %v3939
      %v3945 = vunpack.c.l.b16 %v3930
      %v3946 = vunpack.c.l.b16 %v3931
      %v3947 = vunpack.c.l.b16 %v3932
      %v3948 = vunpack.c.l.b16 %v3933
      %v3949 = vpack.c.b16 %v3946, %v3945
      %v3950 = vpack.c.b16 %v3948, %v3947
      %v3954 = vsel %vm706, %v3934, 0
      %v3957 = vsel %vm706, %v3935, 0
      %v3960 = vsel %vm706, %v3936, 0
      %3962 = vmatprep.subr.bf16.mxu0 0
      %3963 = vmatpush1.bf16.msra.mxu0 %v3949
      %3964 = vmatprep.subr.bf16.mxu0 0
      %3965 = vmatpush1.bf16.msra.mxu0 %v3950
      %3966 = vmatprep.subr.bf16.mxu0 0
      %3967 = vmatpush1.bf16.msra.mxu0 0
      %3968 = vmatprep.subr.bf16.mxu0 0
      %3969 = vmatpush1.bf16.msra.mxu0 0
      %3970 = vmatprep.subr.bf16.mxu0 0
      %3971 = vmatpush1.bf16.msra.mxu0 0
      %3972 = vmatprep.subr.bf16.mxu0 0
      %3973 = vmatpush1.bf16.msra.mxu0 0
      %3974 = vmatprep.subr.bf16.mxu0 0
      %3975 = vmatpush1.bf16.msra.mxu0 0
      %3976 = vmatprep.subr.bf16.mxu0 0
      %3977 = vmatpush1.bf16.msra.mxu0 0
      %3978 = vmatprep.subr.bf16.mxu0 0
      %3979 = vmatpush1.bf16.msra.mxu0 0
      %3980 = vmatprep.subr.bf16.mxu0 0
      %3981 = vmatpush1.bf16.msra.mxu0 0
      %3982 = vmatprep.subr.bf16.mxu0 0
      %3983 = vmatpush1.bf16.msra.mxu0 0
      %3984 = vmatprep.subr.bf16.mxu0 0
      %3985 = vmatpush1.bf16.msra.mxu0 0
      %3986 = vmatprep.subr.bf16.mxu0 0
      %3987 = vmatpush1.bf16.msra.mxu0 0
      %3988 = vmatprep.subr.bf16.mxu0 0
      %3989 = vmatpush1.bf16.msra.mxu0 0
      %3990 = vmatprep.subr.bf16.mxu0 0
      %3991 = vmatpush1.bf16.msra.mxu0 0
      %3992 = vmatprep.subr.bf16.mxu0 0
      %3993 = vmatpush1.bf16.msra.mxu0 0
      %3994 = vmatprep.mubr.bf16.mxu0 0
      %3995 = vmatmul.mubr.bf16.gmra.mrb[0].mxu0 %v3954
      %v3996 = vpop.f32.mrb[0].mxu0
      %v3997 = vadd.f32 %v3940, %v3996
      %v3998 = vpop.f32.mrb[0].mxu0
      %v3999 = vpop.f32.mrb[0].mxu0
      %v4000 = vadd.f32 %v3940, %v3999
      %v4001 = vpop.f32.mrb[0].mxu0
      %4002 = vmatprep.mubr.bf16.mxu0 0
      %4003 = vmatmul.mubr.bf16.gmra.mrb[0].mxu0 %v3957
      %v4004 = vpop.f32.mrb[0].mxu0
      %v4005 = vadd.f32 %v3940, %v4004
      %v4006 = vpop.f32.mrb[0].mxu0
      %v4007 = vpop.f32.mrb[0].mxu0
      %v4008 = vadd.f32 %v3940, %v4007
      %v4009 = vpop.f32.mrb[0].mxu0
      %4010 = vmatprep.mubr.bf16.mxu0 0
      %4011 = vmatmul.mubr.bf16.gmra.mrb[0].mxu0 %v3960
      %v4012 = vpop.f32.mrb[0].mxu0
      %v4013 = vadd.f32 %v3940, %v4012
      %v4014 = vpop.f32.mrb[0].mxu0
      %v4015 = vpop.f32.mrb[0].mxu0
      %v4016 = vpop.f32.mrb[0].mxu0
      %4017 = vdwg.mxu0
      %v4018 = vmul.f32 %v3997, 0.5
      %v4019 = vmul.f32 %v4000, 0.5
      %v4020 = vmul.f32 %v4005, 0.5
      %v4021 = vmul.f32 %v4008, 0.5
      %v4022 = vmul.f32 %v4013, 0.5
      %v4023 = vmul.f32 %v3997, 0.044715
      %v4024 = vmul.f32 %v4000, 0.044715
      %v4025 = vmul.f32 %v4005, 0.044715
      %v4026 = vmul.f32 %v4008, 0.044715
      %v4027 = vmul.f32 %v4013, 0.044715
      %v4028 = vmul.f32 %v4023, %v3997
      %v4029 = vmul.f32 %v4024, %v4000
      %v4030 = vmul.f32 %v4025, %v4005
      %v4031 = vmul.f32 %v4026, %v4008
      %v4032 = vmul.f32 %v4027, %v4013
      %v4033 = vmul.f32 %v4028, %v3997
      %v4034 = vmul.f32 %v4029, %v4000
      %v4035 = vmul.f32 %v4030, %v4005
      %v4036 = vmul.f32 %v4031, %v4008
      %v4037 = vmul.f32 %v4032, %v4013
      %v4038 = vadd.f32 %v3997, %v4033
      %v4039 = vadd.f32 %v4000, %v4034
      %v4040 = vadd.f32 %v4005, %v4035
      %v4041 = vadd.f32 %v4008, %v4036
      %v4042 = vadd.f32 %v4013, %v4037
      %v4043 = vmul.f32 %v4038, 0.7978846
      %v4044 = vmul.f32 %v4039, 0.7978846
      %v4045 = vmul.f32 %v4040, 0.7978846
      %v4046 = vmul.f32 %v4041, 0.7978846
      %v4047 = vmul.f32 %v4042, 0.7978846
      %v4048 = vtanh.pop %v4043
      %v4049 = vtanh.pop %v4044
      %v4050 = vtanh.pop %v4045
      %v4051 = vtanh.pop %v4046
      %v4052 = vtanh.pop %v4047
      %v4053 = vadd.f32 %v4048, 1.0
      %v4054 = vadd.f32 %v4049, 1.0
      %v4055 = vadd.f32 %v4050, 1.0
      %v4056 = vadd.f32 %v4051, 1.0
      %v4057 = vadd.f32 %v4052, 1.0
      %v4058 = vmul.f32 %v4018, %v4053
      %v4059 = vmul.f32 %v4019, %v4054
      %v4060 = vmul.f32 %v4020, %v4055
      %v4061 = vmul.f32 %v4021, %v4056
      %v4062 = vmul.f32 %v4022, %v4057
      %s4063 = scalar_lea.vmem %s6, 64
      %v4064 = vld [vmem:[%s4063] sm:$0xf]
      %v4065 = vld [vmem:[%s4063 + $0x4] sm:$0xf]
      %v4066 = vld [vmem:[%s4063 + $0x8] sm:$0xf]
      %v4067 = vld [vmem:[%s4063 + $0xc] sm:$0xf]
      %v4068 = vld [vmem:[%s4063 + $0x10] sm:$0xf]
      %v4069 = vld [vmem:[%s4063 + $0x14] sm:$0xf]
      %v4070 = vld [vmem:[%s4063 + $0x18] sm:$0xf]
      %v4071 = vld [vmem:[%s4063 + $0x1c] sm:$0xf]
      %v4072 = vld [vmem:[%s4063 + $0x20] sm:$0xf]
      %v4073 = vld [vmem:[%s4063 + $0x24] sm:$0xf]
      %v4074 = vld [vmem:[%s4063 + $0x28] sm:$0xf]
      %v4075 = vld [vmem:[%s4063 + $0x2c] sm:$0xf]
      %v4076 = vld [vmem:[%s4063 + $0x30] sm:$0xf]
      %v4077 = vld [vmem:[%s4063 + $0x34] sm:$0xf]
      %v4078 = vld [vmem:[%s4063 + $0x38] sm:$0xf]
      %v4079 = vld [vmem:[%s4063 + $0x3c] sm:$0xf]
      %v4080 = vpack.c.bf16 %v4059, %v4058
      %v4081 = vpack.c.bf16 %v4061, %v4060
      %v4082 = vpack.c.bf16 %v4062, %v4062
      %v4099 = vunpack.c.l.b16 %v4064
      %v4100 = vunpack.c.l.b16 %v4065
      %v4101 = vunpack.c.l.b16 %v4066
      %v4102 = vunpack.c.l.b16 %v4067
      %v4103 = vunpack.c.l.b16 %v4068
      %v4104 = vunpack.c.l.b16 %v4069
      %v4105 = vunpack.c.l.b16 %v4070
      %v4106 = vunpack.c.l.b16 %v4071
      %v4107 = vunpack.c.l.b16 %v4072
      %v4108 = vunpack.c.l.b16 %v4073
      %v4109 = vunpack.c.l.b16 %v4074
      %v4110 = vunpack.c.l.b16 %v4075
      %v4111 = vunpack.c.l.b16 %v4076
      %v4112 = vunpack.c.l.b16 %v4077
      %v4113 = vunpack.c.l.b16 %v4078
      %v4114 = vunpack.c.l.b16 %v4079
      %v4115 = vpack.c.b16 %v4100, %v4099
      %v4116 = vpack.c.b16 %v4102, %v4101
      %v4117 = vpack.c.b16 %v4104, %v4103
      %v4118 = vpack.c.b16 %v4106, %v4105
      %v4119 = vpack.c.b16 %v4108, %v4107
      %v4120 = vpack.c.b16 %v4110, %v4109
      %v4121 = vpack.c.b16 %v4112, %v4111
      %v4122 = vpack.c.b16 %v4114, %v4113
      %4131 = vmatprep.subr.bf16.mxu0 0
      %4132 = vmatpush1.bf16.msra.mxu0 %v4115
      %4133 = vmatprep.subr.bf16.mxu0 0
      %4134 = vmatpush1.bf16.msra.mxu0 %v4116
      %4135 = vmatprep.subr.bf16.mxu0 0
      %4136 = vmatpush1.bf16.msra.mxu0 %v4117
      %4137 = vmatprep.subr.bf16.mxu0 0
      %4138 = vmatpush1.bf16.msra.mxu0 %v4118
      %4139 = vmatprep.subr.bf16.mxu0 0
      %4140 = vmatpush1.bf16.msra.mxu0 %v4119
      %4141 = vmatprep.subr.bf16.mxu0 0
      %4142 = vmatpush1.bf16.msra.mxu0 %v4120
      %4143 = vmatprep.subr.bf16.mxu0 0
      %4144 = vmatpush1.bf16.msra.mxu0 %v4121
      %4145 = vmatprep.subr.bf16.mxu0 0
      %4146 = vmatpush1.bf16.msra.mxu0 %v4122
      %4147 = vmatprep.subr.bf16.mxu0 0
      %4148 = vmatpush1.bf16.msra.mxu0 0
      %4149 = vmatprep.subr.bf16.mxu0 0
      %4150 = vmatpush1.bf16.msra.mxu0 0
      %4151 = vmatprep.subr.bf16.mxu0 0
      %4152 = vmatpush1.bf16.msra.mxu0 0
      %4153 = vmatprep.subr.bf16.mxu0 0
      %4154 = vmatpush1.bf16.msra.mxu0 0
      %4155 = vmatprep.subr.bf16.mxu0 0
      %4156 = vmatpush1.bf16.msra.mxu0 0
      %4157 = vmatprep.subr.bf16.mxu0 0
      %4158 = vmatpush1.bf16.msra.mxu0 0
      %4159 = vmatprep.subr.bf16.mxu0 0
      %4160 = vmatpush1.bf16.msra.mxu0 0
      %4161 = vmatprep.subr.bf16.mxu0 0
      %4162 = vmatpush1.bf16.msra.mxu0 0
      %4163 = vmatprep.mubr.bf16.mxu0 0
      %4164 = vmatmul.mubr.bf16.gmra.mrb[0].mxu0 %v4080
      %v4165 = vpop.f32.mrb[0].mxu0
      %v4166 = vadd.f32 0.0, %v4165
      %v4167 = vpop.f32.mrb[0].mxu0
      %v4168 = vpop.f32.mrb[0].mxu0
      %v4169 = vpop.f32.mrb[0].mxu0
      %4170 = vmatprep.mubr.bf16.mxu0 0
      %4171 = vmatmul.mubr.bf16.gmra.mrb[0].mxu0 %v4081
      %v4172 = vpop.f32.mrb[0].mxu0
      %v4173 = vpop.f32.mrb[0].mxu0
      %v4174 = vpop.f32.mrb[0].mxu0
      %v4175 = vpop.f32.mrb[0].mxu0
      %4176 = vmatprep.mubr.bf16.mxu0 0
      %4177 = vmatmul.mubr.bf16.gmra.mrb[0].mxu0 %v4082
      %v4178 = vpop.f32.mrb[0].mxu0
      %v4179 = vpop.f32.mrb[0].mxu0
      %v4180 = vpop.f32.mrb[0].mxu0
      %v4181 = vpop.f32.mrb[0].mxu0
      %4182 = vdwg.mxu0
      %v4183 = vadd.f32 %v3841, %v4166
      %v4184 = vlaneseq
      %v4185 = vshrl.u32 %v4184, 7
      %v4186 = vsub.s32 7, %v4185
      %v4187 = vrot.slane %v2455, %v4186
      %v4188 = vadd.f32 %v4183, %v4187
      %v4189 = vsel %vm706, %v4188, 0.0
      %4190 = vadd.xlane.f32.xlu0 %v4189
      %v4191 = vpop.xlane.xlu0 %4190
      %v4192 = vmul.f32 %v4191, %v722
      %v4193 = vsub.f32 %v4188, %v4192
      %v4194 = vmul.f32 %v4193, %v4193
      %v4195 = vsel %vm706, %v4194, 0.0
      %4196 = vadd.xlane.f32.xlu0 %v4195
      %v4197 = vpop.xlane.xlu0 %4196
      %v4198 = vmul.f32 %v4197, %v722
      %v4199 = vadd.f32 %v4198, 1e-06
      %v4200 = vrsqrt.pop %v4199
      %v4201 = vmul.f32 %v4193, %v4200
      %v4202 = vlaneseq
      %v4203 = vshrl.u32 %v4202, 7
      %v4204 = vsub.s32 2, %v4203
      %v4205 = vrot.slane %v470, %v4204
      %v4206 = vmul.f32 %v4201, %v4205
      %v4207 = vlaneseq
      %v4208 = vshrl.u32 %v4207, 7
      %v4209 = vsub.s32 3, %v4208
      %v4210 = vrot.slane %v470, %v4209
      %v4211 = vadd.f32 %v4206, %v4210
      %v4212 = vadd.f32 %v4211, %v469
      %v4213 = vld [vmem:[%s10] sm:$0x1]
      %v4214 = vld [vmem:[%s8] sm:$0xf]
      %v4215 = vld [vmem:[%s8 + $0x4] sm:$0xf]
      %v4216 = vld [vmem:[%s8 + $0x8] sm:$0xf]
      %v4217 = vld [vmem:[%s8 + $0xc] sm:$0xf]
      %v4218 = vld [vmem:[%s9] sm:$0xf]
      %v4219 = vld [vmem:[%s9 + $0x4] sm:$0xf]
      %v4220 = vld [vmem:[%s9 + $0x8] sm:$0xf]
      %v4221 = vld [vmem:[%s9 + $0xc] sm:$0xf]
      %v4222 = vpack.c.bf16 %v4212, %v4212
      %v4224 = vlaneseq
      %v4225 = vshrl.u32 %v4224, 7
      %v4226 = vsub.s32 0, %v4225
      %v4227 = vrot.slane %v4213, %v4226
      %v4233 = vunpack.c.l.b16 %v4214
      %v4234 = vunpack.c.l.b16 %v4215
      %v4235 = vunpack.c.l.b16 %v4216
      %v4236 = vunpack.c.l.b16 %v4217
      %v4237 = vpack.c.b16 %v4234, %v4233
      %v4238 = vpack.c.b16 %v4236, %v4235
      %v4242 = vsel %vm706, %v4222, 0
      %4244 = vmatprep.subr.bf16.mxu0 0
      %4245 = vmatpush1.bf16.msra.mxu0 %v4237
      %4246 = vmatprep.subr.bf16.mxu0 0
      %4247 = vmatpush1.bf16.msra.mxu0 %v4238
      %4248 = vmatprep.subr.bf16.mxu0 0
      %4249 = vmatpush1.bf16.msra.mxu0 0
      %4250 = vmatprep.subr.bf16.mxu0 0
      %4251 = vmatpush1.bf16.msra.mxu0 0
      %4252 = vmatprep.subr.bf16.mxu0 0
      %4253 = vmatpush1.bf16.msra.mxu0 0
      %4254 = vmatprep.subr.bf16.mxu0 0
      %4255 = vmatpush1.bf16.msra.mxu0 0
      %4256 = vmatprep.subr.bf16.mxu0 0
      %4257 = vmatpush1.bf16.msra.mxu0 0
      %4258 = vmatprep.subr.bf16.mxu0 0
      %4259 = vmatpush1.bf16.msra.mxu0 0
      %4260 = vmatprep.subr.bf16.mxu0 0
      %4261 = vmatpush1.bf16.msra.mxu0 0
      %4262 = vmatprep.subr.bf16.mxu0 0
      %4263 = vmatpush1.bf16.msra.mxu0 0
      %4264 = vmatprep.subr.bf16.mxu0 0
      %4265 = vmatpush1.bf16.msra.mxu0 0
      %4266 = vmatprep.subr.bf16.mxu0 0
      %4267 = vmatpush1.bf16.msra.mxu0 0
      %4268 = vmatprep.subr.bf16.mxu0 0
      %4269 = vmatpush1.bf16.msra.mxu0 0
      %4270 = vmatprep.subr.bf16.mxu0 0
      %4271 = vmatpush1.bf16.msra.mxu0 0
      %4272 = vmatprep.subr.bf16.mxu0 0
      %4273 = vmatpush1.bf16.msra.mxu0 0
      %4274 = vmatprep.subr.bf16.mxu0 0
      %4275 = vmatpush1.bf16.msra.mxu0 0
      %4276 = vmatprep.mubr.bf16.mxu0 0
      %4277 = vmatmul.mubr.bf16.gmra.mrb[0].mxu0 %v4242
      %v4278 = vpop.f32.mrb[0].mxu0
      %v4279 = vadd.f32 %v4227, %v4278
      %v4280 = vpop.f32.mrb[0].mxu0
      %v4281 = vpop.f32.mrb[0].mxu0
      %v4282 = vpop.f32.mrb[0].mxu0
      %4283 = vdwg.mxu0
      %4285 = vrot.lane.b32.xlu0 %v4279, 96
      %v4286 = vpop.permute.xlu0 %4285
      %4288 = vxpose.xlu0.b32.start [1/16] %v4286, 128
      %4289 = vxpose.xlu0.b32.cont [2/16] 0.0, 128
      %4290 = vxpose.xlu0.b32.cont [3/16] 0.0, 128
      %4291 = vxpose.xlu0.b32.cont [4/16] 0.0, 128
      %4292 = vxpose.xlu0.b32.cont [5/16] 0.0, 128
      %4293 = vxpose.xlu0.b32.cont [6/16] 0.0, 128
      %4294 = vxpose.xlu0.b32.cont [7/16] 0.0, 128
      %4295 = vxpose.xlu0.b32.cont [8/16] 0.0, 128
      %4296 = vxpose.xlu0.b32.cont [9/16] 0.0, 128
      %4297 = vxpose.xlu0.b32.cont [10/16] 0.0, 128
      %4298 = vxpose.xlu0.b32.cont [11/16] 0.0, 128
      %4299 = vxpose.xlu0.b32.cont [12/16] 0.0, 128
      %4300 = vxpose.xlu0.b32.cont [13/16] 0.0, 128
      %4301 = vxpose.xlu0.b32.cont [14/16] 0.0, 128
      %4302 = vxpose.xlu0.b32.cont [15/16] 0.0, 128
      %4303 = vxpose.xlu0.b32.end [16/16] 0.0, 128
      %v4304 = vpop.trf.xlu0
      %v4305 = vpop.trf.xlu0
      %v4306 = vpop.trf.xlu0
      %v4307 = vpop.trf.xlu0
      %v4308 = vpop.trf.xlu0
      %v4309 = vpop.trf.xlu0
      %v4310 = vpop.trf.xlu0
      %v4311 = vpop.trf.xlu0
      %v4312 = vpop.trf.xlu0
      %v4313 = vpop.trf.xlu0
      %v4314 = vpop.trf.xlu0
      %v4315 = vpop.trf.xlu0
      %v4316 = vpop.trf.xlu0
      %v4317 = vpop.trf.xlu0
      %v4318 = vpop.trf.xlu0
      %v4319 = vpop.trf.xlu0
      %v4320 = vpack.c.bf16 %v4279, %v4279
      %v4321 = vpack.c.bf16 %v4304, %v4304
      %v4323 = vsel %vm939, %v4320, 0
      %v4326 = vsel %vm949, %v4321, 0
      %4328 = vmatprep.subr.bf16.mxu0 0
      %4329 = vmatpush1.bf16.msra.mxu0 %v4326
      %4330 = vmatprep.subr.bf16.mxu0 0
      %4331 = vmatpush1.bf16.msra.mxu0 0
      %4332 = vmatprep.subr.bf16.mxu0 0
      %4333 = vmatpush1.bf16.msra.mxu0 0
      %4334 = vmatprep.subr.bf16.mxu0 0
      %4335 = vmatpush1.bf16.msra.mxu0 0
      %4336 = vmatprep.subr.bf16.mxu0 0
      %4337 = vmatpush1.bf16.msra.mxu0 0
      %4338 = vmatprep.subr.bf16.mxu0 0
      %4339 = vmatpush1.bf16.msra.mxu0 0
      %4340 = vmatprep.subr.bf16.mxu0 0
      %4341 = vmatpush1.bf16.msra.mxu0 0
      %4342 = vmatprep.subr.bf16.mxu0 0
      %4343 = vmatpush1.bf16.msra.mxu0 0
      %4344 = vmatprep.subr.bf16.mxu0 0
      %4345 = vmatpush1.bf16.msra.mxu0 0
      %4346 = vmatprep.subr.bf16.mxu0 0
      %4347 = vmatpush1.bf16.msra.mxu0 0
      %4348 = vmatprep.subr.bf16.mxu0 0
      %4349 = vmatpush1.bf16.msra.mxu0 0
      %4350 = vmatprep.subr.bf16.mxu0 0
      %4351 = vmatpush1.bf16.msra.mxu0 0
      %4352 = vmatprep.subr.bf16.mxu0 0
      %4353 = vmatpush1.bf16.msra.mxu0 0
      %4354 = vmatprep.subr.bf16.mxu0 0
      %4355 = vmatpush1.bf16.msra.mxu0 0
      %4356 = vmatprep.subr.bf16.mxu0 0
      %4357 = vmatpush1.bf16.msra.mxu0 0
      %4358 = vmatprep.subr.bf16.mxu0 0
      %4359 = vmatpush1.bf16.msra.mxu0 0
      %4360 = vmatprep.mubr.bf16.mxu0 0
      %4361 = vmatmul.mubr.bf16.gmra.mrb[0].mxu0 %v4323
      %v4362 = vpop.f32.mrb[0].mxu0
      %v4363 = vadd.f32 0.0, %v4362
      %v4364 = vpop.f32.mrb[0].mxu0
      %v4365 = vpop.f32.mrb[0].mxu0
      %v4366 = vpop.f32.mrb[0].mxu0
      %4367 = vdwg.mxu0
      %v4368 = vsel %vm939, %v4363, -inf
      %4369 = vmax.xlane.f32.xlu0 %v4368
      %v4370 = vpop.xlane.xlu0 %4369
      %v4371 = vsub.f32 %v4363, %v4370
      %v4372 = vmul.f32 %v4371, 1.442695
      %v4373 = vpow.pop %v4372
      %v4374 = vsel %vm939, %v4373, 0.0
      %4375 = vadd.xlane.f32.xlu0 %v4374
      %v4376 = vpop.xlane.xlu0 %4375
      %v4377 = vrcp.pop %v4376
      %v4378 = vmul.f32 %v4373, %v4377
      %v4379 = vpack.c.bf16 %v4378, %v4378
      %4381 = vrot.lane.b32.xlu0 %v4320, 64
      %v4382 = vpop.permute.xlu0 %4381
      %v4384 = vsel %vm939, %v4379, 0
      %v4387 = vsel %vm949, %v4382, 0
      %4389 = vmatprep.subr.bf16.mxu0 0
      %4390 = vmatpush1.bf16.msra.mxu0 %v4387
      %4391 = vmatprep.subr.bf16.mxu0 0
      %4392 = vmatpush1.bf16.msra.mxu0 0
      %4393 = vmatprep.subr.bf16.mxu0 0
      %4394 = vmatpush1.bf16.msra.mxu0 0
      %4395 = vmatprep.subr.bf16.mxu0 0
      %4396 = vmatpush1.bf16.msra.mxu0 0
      %4397 = vmatprep.subr.bf16.mxu0 0
      %4398 = vmatpush1.bf16.msra.mxu0 0
      %4399 = vmatprep.subr.bf16.mxu0 0
      %4400 = vmatpush1.bf16.msra.mxu0 0
      %4401 = vmatprep.subr.bf16.mxu0 0
      %4402 = vmatpush1.bf16.msra.mxu0 0
      %4403 = vmatprep.subr.bf16.mxu0 0
      %4404 = vmatpush1.bf16.msra.mxu0 0
      %4405 = vmatprep.subr.bf16.mxu0 0
      %4406 = vmatpush1.bf16.msra.mxu0 0
      %4407 = vmatprep.subr.bf16.mxu0 0
      %4408 = vmatpush1.bf16.msra.mxu0 0
      %4409 = vmatprep.subr.bf16.mxu0 0
      %4410 = vmatpush1.bf16.msra.mxu0 0
      %4411 = vmatprep.subr.bf16.mxu0 0
      %4412 = vmatpush1.bf16.msra.mxu0 0
      %4413 = vmatprep.subr.bf16.mxu0 0
      %4414 = vmatpush1.bf16.msra.mxu0 0
      %4415 = vmatprep.subr.bf16.mxu0 0
      %4416 = vmatpush1.bf16.msra.mxu0 0
      %4417 = vmatprep.subr.bf16.mxu0 0
      %4418 = vmatpush1.bf16.msra.mxu0 0
      %4419 = vmatprep.subr.bf16.mxu0 0
      %4420 = vmatpush1.bf16.msra.mxu0 0
      %4421 = vmatprep.mubr.bf16.mxu0 0
      %4422 = vmatmul.mubr.bf16.gmra.mrb[0].mxu0 %v4384
      %v4423 = vpop.f32.mrb[0].mxu0
      %v4424 = vadd.f32 0.0, %v4423
      %v4425 = vpop.f32.mrb[0].mxu0
      %v4426 = vpop.f32.mrb[0].mxu0
      %v4427 = vpop.f32.mrb[0].mxu0
      %4428 = vdwg.mxu0
      %4429 = vrot.lane.b32.xlu0 %v4279, 88
      %v4430 = vpop.permute.xlu0 %4429
      %4432 = vxpose.xlu0.b32.start [1/16] %v4430, 128
      %4433 = vxpose.xlu0.b32.cont [2/16] 0.0, 128
      %4434 = vxpose.xlu0.b32.cont [3/16] 0.0, 128
      %4435 = vxpose.xlu0.b32.cont [4/16] 0.0, 128
      %4436 = vxpose.xlu0.b32.cont [5/16] 0.0, 128
      %4437 = vxpose.xlu0.b32.cont [6/16] 0.0, 128
      %4438 = vxpose.xlu0.b32.cont [7/16] 0.0, 128
      %4439 = vxpose.xlu0.b32.cont [8/16] 0.0, 128
      %4440 = vxpose.xlu0.b32.cont [9/16] 0.0, 128
      %4441 = vxpose.xlu0.b32.cont [10/16] 0.0, 128
      %4442 = vxpose.xlu0.b32.cont [11/16] 0.0, 128
      %4443 = vxpose.xlu0.b32.cont [12/16] 0.0, 128
      %4444 = vxpose.xlu0.b32.cont [13/16] 0.0, 128
      %4445 = vxpose.xlu0.b32.cont [14/16] 0.0, 128
      %4446 = vxpose.xlu0.b32.cont [15/16] 0.0, 128
      %4447 = vxpose.xlu0.b32.end [16/16] 0.0, 128
      %v4448 = vpop.trf.xlu0
      %v4449 = vpop.trf.xlu0
      %v4450 = vpop.trf.xlu0
      %v4451 = vpop.trf.xlu0
      %v4452 = vpop.trf.xlu0
      %v4453 = vpop.trf.xlu0
      %v4454 = vpop.trf.xlu0
      %v4455 = vpop.trf.xlu0
      %v4456 = vpop.trf.xlu0
      %v4457 = vpop.trf.xlu0
      %v4458 = vpop.trf.xlu0
      %v4459 = vpop.trf.xlu0
      %v4460 = vpop.trf.xlu0
      %v4461 = vpop.trf.xlu0
      %v4462 = vpop.trf.xlu0
      %v4463 = vpop.trf.xlu0
      %v4464 = vpack.c.bf16 %v4448, %v4448
      %4465 = vrot.lane.b32.xlu0 %v4320, 120
      %v4466 = vpop.permute.xlu0 %4465
      %v4468 = vsel %vm939, %v4466, 0
      %v4471 = vsel %vm949, %v4464, 0
      %4473 = vmatprep.subr.bf16.mxu0 0
      %4474 = vmatpush1.bf16.msra.mxu0 %v4471
      %4475 = vmatprep.subr.bf16.mxu0 0
      %4476 = vmatpush1.bf16.msra.mxu0 0
      %4477 = vmatprep.subr.bf16.mxu0 0
      %4478 = vmatpush1.bf16.msra.mxu0 0
      %4479 = vmatprep.subr.bf16.mxu0 0
      %4480 = vmatpush1.bf16.msra.mxu0 0
      %4481 = vmatprep.subr.bf16.mxu0 0
      %4482 = vmatpush1.bf16.msra.mxu0 0
      %4483 = vmatprep.subr.bf16.mxu0 0
      %4484 = vmatpush1.bf16.msra.mxu0 0
      %4485 = vmatprep.subr.bf16.mxu0 0
      %4486 = vmatpush1.bf16.msra.mxu0 0
      %4487 = vmatprep.subr.bf16.mxu0 0
      %4488 = vmatpush1.bf16.msra.mxu0 0
      %4489 = vmatprep.subr.bf16.mxu0 0
      %4490 = vmatpush1.bf16.msra.mxu0 0
      %4491 = vmatprep.subr.bf16.mxu0 0
      %4492 = vmatpush1.bf16.msra.mxu0 0
      %4493 = vmatprep.subr.bf16.mxu0 0
      %4494 = vmatpush1.bf16.msra.mxu0 0
      %4495 = vmatprep.subr.bf16.mxu0 0
      %4496 = vmatpush1.bf16.msra.mxu0 0
      %4497 = vmatprep.subr.bf16.mxu0 0
      %4498 = vmatpush1.bf16.msra.mxu0 0
      %4499 = vmatprep.subr.bf16.mxu0 0
      %4500 = vmatpush1.bf16.msra.mxu0 0
      %4501 = vmatprep.subr.bf16.mxu0 0
      %4502 = vmatpush1.bf16.msra.mxu0 0
      %4503 = vmatprep.subr.bf16.mxu0 0
      %4504 = vmatpush1.bf16.msra.mxu0 0
      %4505 = vmatprep.mubr.bf16.mxu0 0
      %4506 = vmatmul.mubr.bf16.gmra.mrb[0].mxu0 %v4468
      %v4507 = vpop.f32.mrb[0].mxu0
      %v4508 = vadd.f32 0.0, %v4507
      %v4509 = vpop.f32.mrb[0].mxu0
      %v4510 = vpop.f32.mrb[0].mxu0
      %v4511 = vpop.f32.mrb[0].mxu0
      %4512 = vdwg.mxu0
      %v4513 = vsel %vm939, %v4508, -inf
      %4514 = vmax.xlane.f32.xlu0 %v4513
      %v4515 = vpop.xlane.xlu0 %4514
      %v4516 = vsub.f32 %v4508, %v4515
      %v4517 = vmul.f32 %v4516, 1.442695
      %v4518 = vpow.pop %v4517
      %v4519 = vsel %vm939, %v4518, 0.0
      %4520 = vadd.xlane.f32.xlu0 %v4519
      %v4521 = vpop.xlane.xlu0 %4520
      %v4522 = vrcp.pop %v4521
      %v4523 = vmul.f32 %v4518, %v4522
      %v4524 = vpack.c.bf16 %v4523, %v4523
      %4525 = vrot.lane.b32.xlu0 %v4320, 56
      %v4526 = vpop.permute.xlu0 %4525
      %v4528 = vsel %vm939, %v4524, 0
      %v4531 = vsel %vm949, %v4526, 0
      %4533 = vmatprep.subr.bf16.mxu0 0
      %4534 = vmatpush1.bf16.msra.mxu0 %v4531
      %4535 = vmatprep.subr.bf16.mxu0 0
      %4536 = vmatpush1.bf16.msra.mxu0 0
      %4537 = vmatprep.subr.bf16.mxu0 0
      %4538 = vmatpush1.bf16.msra.mxu0 0
      %4539 = vmatprep.subr.bf16.mxu0 0
      %4540 = vmatpush1.bf16.msra.mxu0 0
      %4541 = vmatprep.subr.bf16.mxu0 0
      %4542 = vmatpush1.bf16.msra.mxu0 0
      %4543 = vmatprep.subr.bf16.mxu0 0
      %4544 = vmatpush1.bf16.msra.mxu0 0
      %4545 = vmatprep.subr.bf16.mxu0 0
      %4546 = vmatpush1.bf16.msra.mxu0 0
      %4547 = vmatprep.subr.bf16.mxu0 0
      %4548 = vmatpush1.bf16.msra.mxu0 0
      %4549 = vmatprep.subr.bf16.mxu0 0
      %4550 = vmatpush1.bf16.msra.mxu0 0
      %4551 = vmatprep.subr.bf16.mxu0 0
      %4552 = vmatpush1.bf16.msra.mxu0 0
      %4553 = vmatprep.subr.bf16.mxu0 0
      %4554 = vmatpush1.bf16.msra.mxu0 0
      %4555 = vmatprep.subr.bf16.mxu0 0
      %4556 = vmatpush1.bf16.msra.mxu0 0
      %4557 = vmatprep.subr.bf16.mxu0 0
      %4558 = vmatpush1.bf16.msra.mxu0 0
      %4559 = vmatprep.subr.bf16.mxu0 0
      %4560 = vmatpush1.bf16.msra.mxu0 0
      %4561 = vmatprep.subr.bf16.mxu0 0
      %4562 = vmatpush1.bf16.msra.mxu0 0
      %4563 = vmatprep.subr.bf16.mxu0 0
      %4564 = vmatpush1.bf16.msra.mxu0 0
      %4565 = vmatprep.mubr.bf16.mxu0 0
      %4566 = vmatmul.mubr.bf16.gmra.mrb[0].mxu0 %v4528
      %v4567 = vpop.f32.mrb[0].mxu0
      %v4568 = vadd.f32 0.0, %v4567
      %v4569 = vpop.f32.mrb[0].mxu0
      %v4570 = vpop.f32.mrb[0].mxu0
      %v4571 = vpop.f32.mrb[0].mxu0
      %4572 = vdwg.mxu0
      %4573 = vrot.lane.b32.xlu0 %v4279, 80
      %v4574 = vpop.permute.xlu0 %4573
      %4576 = vxpose.xlu0.b32.start [1/16] %v4574, 128
      %4577 = vxpose.xlu0.b32.cont [2/16] 0.0, 128
      %4578 = vxpose.xlu0.b32.cont [3/16] 0.0, 128
      %4579 = vxpose.xlu0.b32.cont [4/16] 0.0, 128
      %4580 = vxpose.xlu0.b32.cont [5/16] 0.0, 128
      %4581 = vxpose.xlu0.b32.cont [6/16] 0.0, 128
      %4582 = vxpose.xlu0.b32.cont [7/16] 0.0, 128
      %4583 = vxpose.xlu0.b32.cont [8/16] 0.0, 128
      %4584 = vxpose.xlu0.b32.cont [9/16] 0.0, 128
      %4585 = vxpose.xlu0.b32.cont [10/16] 0.0, 128
      %4586 = vxpose.xlu0.b32.cont [11/16] 0.0, 128
      %4587 = vxpose.xlu0.b32.cont [12/16] 0.0, 128
      %4588 = vxpose.xlu0.b32.cont [13/16] 0.0, 128
      %4589 = vxpose.xlu0.b32.cont [14/16] 0.0, 128
      %4590 = vxpose.xlu0.b32.cont [15/16] 0.0, 128
      %4591 = vxpose.xlu0.b32.end [16/16] 0.0, 128
      %v4592 = vpop.trf.xlu0
      %v4593 = vpop.trf.xlu0
      %v4594 = vpop.trf.xlu0
      %v4595 = vpop.trf.xlu0
      %v4596 = vpop.trf.xlu0
      %v4597 = vpop.trf.xlu0
      %v4598 = vpop.trf.xlu0
      %v4599 = vpop.trf.xlu0
      %v4600 = vpop.trf.xlu0
      %v4601 = vpop.trf.xlu0
      %v4602 = vpop.trf.xlu0
      %v4603 = vpop.trf.xlu0
      %v4604 = vpop.trf.xlu0
      %v4605 = vpop.trf.xlu0
      %v4606 = vpop.trf.xlu0
      %v4607 = vpop.trf.xlu0
      %v4608 = vpack.c.bf16 %v4592, %v4592
      %4609 = vrot.lane.b32.xlu0 %v4320, 112
      %v4610 = vpop.permute.xlu0 %4609
      %v4612 = vsel %vm939, %v4610, 0
      %v4615 = vsel %vm949, %v4608, 0
      %4617 = vmatprep.subr.bf16.mxu0 0
      %4618 = vmatpush1.bf16.msra.mxu0 %v4615
      %4619 = vmatprep.subr.bf16.mxu0 0
      %4620 = vmatpush1.bf16.msra.mxu0 0
      %4621 = vmatprep.subr.bf16.mxu0 0
      %4622 = vmatpush1.bf16.msra.mxu0 0
      %4623 = vmatprep.subr.bf16.mxu0 0
      %4624 = vmatpush1.bf16.msra.mxu0 0
      %4625 = vmatprep.subr.bf16.mxu0 0
      %4626 = vmatpush1.bf16.msra.mxu0 0
      %4627 = vmatprep.subr.bf16.mxu0 0
      %4628 = vmatpush1.bf16.msra.mxu0 0
      %4629 = vmatprep.subr.bf16.mxu0 0
      %4630 = vmatpush1.bf16.msra.mxu0 0
      %4631 = vmatprep.subr.bf16.mxu0 0
      %4632 = vmatpush1.bf16.msra.mxu0 0
      %4633 = vmatprep.subr.bf16.mxu0 0
      %4634 = vmatpush1.bf16.msra.mxu0 0
      %4635 = vmatprep.subr.bf16.mxu0 0
      %4636 = vmatpush1.bf16.msra.mxu0 0
      %4637 = vmatprep.subr.bf16.mxu0 0
      %4638 = vmatpush1.bf16.msra.mxu0 0
      %4639 = vmatprep.subr.bf16.mxu0 0
      %4640 = vmatpush1.bf16.msra.mxu0 0
      %4641 = vmatprep.subr.bf16.mxu0 0
      %4642 = vmatpush1.bf16.msra.mxu0 0
      %4643 = vmatprep.subr.bf16.mxu0 0
      %4644 = vmatpush1.bf16.msra.mxu0 0
      %4645 = vmatprep.subr.bf16.mxu0 0
      %4646 = vmatpush1.bf16.msra.mxu0 0
      %4647 = vmatprep.subr.bf16.mxu0 0
      %4648 = vmatpush1.bf16.msra.mxu0 0
      %4649 = vmatprep.mubr.bf16.mxu0 0
      %4650 = vmatmul.mubr.bf16.gmra.mrb[0].mxu0 %v4612
      %v4651 = vpop.f32.mrb[0].mxu0
      %v4652 = vadd.f32 0.0, %v4651
      %v4653 = vpop.f32.mrb[0].mxu0
      %v4654 = vpop.f32.mrb[0].mxu0
      %v4655 = vpop.f32.mrb[0].mxu0
      %4656 = vdwg.mxu0
      %v4657 = vsel %vm939, %v4652, -inf
      %4658 = vmax.xlane.f32.xlu0 %v4657
      %v4659 = vpop.xlane.xlu0 %4658
      %v4660 = vsub.f32 %v4652, %v4659
      %v4661 = vmul.f32 %v4660, 1.442695
      %v4662 = vpow.pop %v4661
      %v4663 = vsel %vm939, %v4662, 0.0
      %4664 = vadd.xlane.f32.xlu0 %v4663
      %v4665 = vpop.xlane.xlu0 %4664
      %v4666 = vrcp.pop %v4665
      %v4667 = vmul.f32 %v4662, %v4666
      %v4668 = vpack.c.bf16 %v4667, %v4667
      %4669 = vrot.lane.b32.xlu0 %v4320, 48
      %v4670 = vpop.permute.xlu0 %4669
      %v4672 = vsel %vm939, %v4668, 0
      %v4675 = vsel %vm949, %v4670, 0
      %4677 = vmatprep.subr.bf16.mxu0 0
      %4678 = vmatpush1.bf16.msra.mxu0 %v4675
      %4679 = vmatprep.subr.bf16.mxu0 0
      %4680 = vmatpush1.bf16.msra.mxu0 0
      %4681 = vmatprep.subr.bf16.mxu0 0
      %4682 = vmatpush1.bf16.msra.mxu0 0
      %4683 = vmatprep.subr.bf16.mxu0 0
      %4684 = vmatpush1.bf16.msra.mxu0 0
      %4685 = vmatprep.subr.bf16.mxu0 0
      %4686 = vmatpush1.bf16.msra.mxu0 0
      %4687 = vmatprep.subr.bf16.mxu0 0
      %4688 = vmatpush1.bf16.msra.mxu0 0
      %4689 = vmatprep.subr.bf16.mxu0 0
      %4690 = vmatpush1.bf16.msra.mxu0 0
      %4691 = vmatprep.subr.bf16.mxu0 0
      %4692 = vmatpush1.bf16.msra.mxu0 0
      %4693 = vmatprep.subr.bf16.mxu0 0
      %4694 = vmatpush1.bf16.msra.mxu0 0
      %4695 = vmatprep.subr.bf16.mxu0 0
      %4696 = vmatpush1.bf16.msra.mxu0 0
      %4697 = vmatprep.subr.bf16.mxu0 0
      %4698 = vmatpush1.bf16.msra.mxu0 0
      %4699 = vmatprep.subr.bf16.mxu0 0
      %4700 = vmatpush1.bf16.msra.mxu0 0
      %4701 = vmatprep.subr.bf16.mxu0 0
      %4702 = vmatpush1.bf16.msra.mxu0 0
      %4703 = vmatprep.subr.bf16.mxu0 0
      %4704 = vmatpush1.bf16.msra.mxu0 0
      %4705 = vmatprep.subr.bf16.mxu0 0
      %4706 = vmatpush1.bf16.msra.mxu0 0
      %4707 = vmatprep.subr.bf16.mxu0 0
      %4708 = vmatpush1.bf16.msra.mxu0 0
      %4709 = vmatprep.mubr.bf16.mxu0 0
      %4710 = vmatmul.mubr.bf16.gmra.mrb[0].mxu0 %v4672
      %v4711 = vpop.f32.mrb[0].mxu0
      %v4712 = vadd.f32 0.0, %v4711
      %v4713 = vpop.f32.mrb[0].mxu0
      %v4714 = vpop.f32.mrb[0].mxu0
      %v4715 = vpop.f32.mrb[0].mxu0
      %4716 = vdwg.mxu0
      %4717 = vrot.lane.b32.xlu0 %v4279, 72
      %v4718 = vpop.permute.xlu0 %4717
      %4720 = vxpose.xlu0.b32.start [1/16] %v4718, 128
      %4721 = vxpose.xlu0.b32.cont [2/16] 0.0, 128
      %4722 = vxpose.xlu0.b32.cont [3/16] 0.0, 128
      %4723 = vxpose.xlu0.b32.cont [4/16] 0.0, 128
      %4724 = vxpose.xlu0.b32.cont [5/16] 0.0, 128
      %4725 = vxpose.xlu0.b32.cont [6/16] 0.0, 128
      %4726 = vxpose.xlu0.b32.cont [7/16] 0.0, 128
      %4727 = vxpose.xlu0.b32.cont [8/16] 0.0, 128
      %4728 = vxpose.xlu0.b32.cont [9/16] 0.0, 128
      %4729 = vxpose.xlu0.b32.cont [10/16] 0.0, 128
      %4730 = vxpose.xlu0.b32.cont [11/16] 0.0, 128
      %4731 = vxpose.xlu0.b32.cont [12/16] 0.0, 128
      %4732 = vxpose.xlu0.b32.cont [13/16] 0.0, 128
      %4733 = vxpose.xlu0.b32.cont [14/16] 0.0, 128
      %4734 = vxpose.xlu0.b32.cont [15/16] 0.0, 128
      %4735 = vxpose.xlu0.b32.end [16/16] 0.0, 128
      %v4736 = vpop.trf.xlu0
      %v4737 = vpop.trf.xlu0
      %v4738 = vpop.trf.xlu0
      %v4739 = vpop.trf.xlu0
      %v4740 = vpop.trf.xlu0
      %v4741 = vpop.trf.xlu0
      %v4742 = vpop.trf.xlu0
      %v4743 = vpop.trf.xlu0
      %v4744 = vpop.trf.xlu0
      %v4745 = vpop.trf.xlu0
      %v4746 = vpop.trf.xlu0
      %v4747 = vpop.trf.xlu0
      %v4748 = vpop.trf.xlu0
      %v4749 = vpop.trf.xlu0
      %v4750 = vpop.trf.xlu0
      %v4751 = vpop.trf.xlu0
      %v4752 = vpack.c.bf16 %v4736, %v4736
      %4753 = vrot.lane.b32.xlu0 %v4320, 104
      %v4754 = vpop.permute.xlu0 %4753
      %v4756 = vsel %vm939, %v4754, 0
      %v4759 = vsel %vm949, %v4752, 0
      %4761 = vmatprep.subr.bf16.mxu0 0
      %4762 = vmatpush1.bf16.msra.mxu0 %v4759
      %4763 = vmatprep.subr.bf16.mxu0 0
      %4764 = vmatpush1.bf16.msra.mxu0 0
      %4765 = vmatprep.subr.bf16.mxu0 0
      %4766 = vmatpush1.bf16.msra.mxu0 0
      %4767 = vmatprep.subr.bf16.mxu0 0
      %4768 = vmatpush1.bf16.msra.mxu0 0
      %4769 = vmatprep.subr.bf16.mxu0 0
      %4770 = vmatpush1.bf16.msra.mxu0 0
      %4771 = vmatprep.subr.bf16.mxu0 0
      %4772 = vmatpush1.bf16.msra.mxu0 0
      %4773 = vmatprep.subr.bf16.mxu0 0
      %4774 = vmatpush1.bf16.msra.mxu0 0
      %4775 = vmatprep.subr.bf16.mxu0 0
      %4776 = vmatpush1.bf16.msra.mxu0 0
      %4777 = vmatprep.subr.bf16.mxu0 0
      %4778 = vmatpush1.bf16.msra.mxu0 0
      %4779 = vmatprep.subr.bf16.mxu0 0
      %4780 = vmatpush1.bf16.msra.mxu0 0
      %4781 = vmatprep.subr.bf16.mxu0 0
      %4782 = vmatpush1.bf16.msra.mxu0 0
      %4783 = vmatprep.subr.bf16.mxu0 0
      %4784 = vmatpush1.bf16.msra.mxu0 0
      %4785 = vmatprep.subr.bf16.mxu0 0
      %4786 = vmatpush1.bf16.msra.mxu0 0
      %4787 = vmatprep.subr.bf16.mxu0 0
      %4788 = vmatpush1.bf16.msra.mxu0 0
      %4789 = vmatprep.subr.bf16.mxu0 0
      %4790 = vmatpush1.bf16.msra.mxu0 0
      %4791 = vmatprep.subr.bf16.mxu0 0
      %4792 = vmatpush1.bf16.msra.mxu0 0
      %4793 = vmatprep.mubr.bf16.mxu0 0
      %4794 = vmatmul.mubr.bf16.gmra.mrb[0].mxu0 %v4756
      %v4795 = vpop.f32.mrb[0].mxu0
      %v4796 = vadd.f32 0.0, %v4795
      %v4797 = vpop.f32.mrb[0].mxu0
      %v4798 = vpop.f32.mrb[0].mxu0
      %v4799 = vpop.f32.mrb[0].mxu0
      %4800 = vdwg.mxu0
      %v4801 = vsel %vm939, %v4796, -inf
      %4802 = vmax.xlane.f32.xlu0 %v4801
      %v4803 = vpop.xlane.xlu0 %4802
      %v4804 = vsub.f32 %v4796, %v4803
      %v4805 = vmul.f32 %v4804, 1.442695
      %v4806 = vpow.pop %v4805
      %v4807 = vsel %vm939, %v4806, 0.0
      %4808 = vadd.xlane.f32.xlu0 %v4807
      %v4809 = vpop.xlane.xlu0 %4808
      %v4810 = vrcp.pop %v4809
      %v4811 = vmul.f32 %v4806, %v4810
      %v4812 = vpack.c.bf16 %v4811, %v4811
      %4813 = vrot.lane.b32.xlu0 %v4320, 40
      %v4814 = vpop.permute.xlu0 %4813
      %v4816 = vsel %vm939, %v4812, 0
      %v4819 = vsel %vm949, %v4814, 0
      %4821 = vmatprep.subr.bf16.mxu0 0
      %4822 = vmatpush1.bf16.msra.mxu0 %v4819
      %4823 = vmatprep.subr.bf16.mxu0 0
      %4824 = vmatpush1.bf16.msra.mxu0 0
      %4825 = vmatprep.subr.bf16.mxu0 0
      %4826 = vmatpush1.bf16.msra.mxu0 0
      %4827 = vmatprep.subr.bf16.mxu0 0
      %4828 = vmatpush1.bf16.msra.mxu0 0
      %4829 = vmatprep.subr.bf16.mxu0 0
      %4830 = vmatpush1.bf16.msra.mxu0 0
      %4831 = vmatprep.subr.bf16.mxu0 0
      %4832 = vmatpush1.bf16.msra.mxu0 0
      %4833 = vmatprep.subr.bf16.mxu0 0
      %4834 = vmatpush1.bf16.msra.mxu0 0
      %4835 = vmatprep.subr.bf16.mxu0 0
      %4836 = vmatpush1.bf16.msra.mxu0 0
      %4837 = vmatprep.subr.bf16.mxu0 0
      %4838 = vmatpush1.bf16.msra.mxu0 0
      %4839 = vmatprep.subr.bf16.mxu0 0
      %4840 = vmatpush1.bf16.msra.mxu0 0
      %4841 = vmatprep.subr.bf16.mxu0 0
      %4842 = vmatpush1.bf16.msra.mxu0 0
      %4843 = vmatprep.subr.bf16.mxu0 0
      %4844 = vmatpush1.bf16.msra.mxu0 0
      %4845 = vmatprep.subr.bf16.mxu0 0
      %4846 = vmatpush1.bf16.msra.mxu0 0
      %4847 = vmatprep.subr.bf16.mxu0 0
      %4848 = vmatpush1.bf16.msra.mxu0 0
      %4849 = vmatprep.subr.bf16.mxu0 0
      %4850 = vmatpush1.bf16.msra.mxu0 0
      %4851 = vmatprep.subr.bf16.mxu0 0
      %4852 = vmatpush1.bf16.msra.mxu0 0
      %4853 = vmatprep.mubr.bf16.mxu0 0
      %4854 = vmatmul.mubr.bf16.gmra.mrb[0].mxu0 %v4816
      %v4855 = vpop.f32.mrb[0].mxu0
      %v4856 = vadd.f32 0.0, %v4855
      %v4857 = vpop.f32.mrb[0].mxu0
      %v4858 = vpop.f32.mrb[0].mxu0
      %v4859 = vpop.f32.mrb[0].mxu0
      %4860 = vdwg.mxu0
      %4862 = vrot.lane.b32.xlu0 %v4568, 8
      %v4863 = vpop.permute.xlu0 %4862
      %4866 = vrot.lane.b32.xlu0 %v4712, 16
      %v4867 = vpop.permute.xlu0 %4866
      %4870 = vrot.lane.b32.xlu0 %v4856, 24
      %v4871 = vpop.permute.xlu0 %4870
      %v4873 = vsel %vm939, %v4424, %v4863
      %v4874 = vsel %vm2000, %v4873, %v4867
      %v4875 = vsel %vm2006, %v4874, %v4871
      %v4876 = vpack.c.bf16 %v4875, %v4875
      %v4881 = vunpack.c.l.b16 %v4218
      %v4882 = vunpack.c.l.b16 %v4219
      %v4883 = vunpack.c.l.b16 %v4220
      %v4884 = vunpack.c.l.b16 %v4221
      %v4885 = vpack.c.b16 %v4882, %v4881
      %v4886 = vpack.c.b16 %v4884, %v4883
      %4889 = vrot.lane.b32.xlu0 %v4227, 32
      %v4890 = vpop.permute.xlu0 %4889
      %v4893 = vsel %vm706, %v4876, 0
      %4895 = vmatprep.subr.bf16.mxu0 0
      %4896 = vmatpush1.bf16.msra.mxu0 %v4885
      %4897 = vmatprep.subr.bf16.mxu0 0
      %4898 = vmatpush1.bf16.msra.mxu0 %v4886
      %4899 = vmatprep.subr.bf16.mxu0 0
      %4900 = vmatpush1.bf16.msra.mxu0 0
      %4901 = vmatprep.subr.bf16.mxu0 0
      %4902 = vmatpush1.bf16.msra.mxu0 0
      %4903 = vmatprep.subr.bf16.mxu0 0
      %4904 = vmatpush1.bf16.msra.mxu0 0
      %4905 = vmatprep.subr.bf16.mxu0 0
      %4906 = vmatpush1.bf16.msra.mxu0 0
      %4907 = vmatprep.subr.bf16.mxu0 0
      %4908 = vmatpush1.bf16.msra.mxu0 0
      %4909 = vmatprep.subr.bf16.mxu0 0
      %4910 = vmatpush1.bf16.msra.mxu0 0
      %4911 = vmatprep.subr.bf16.mxu0 0
      %4912 = vmatpush1.bf16.msra.mxu0 0
      %4913 = vmatprep.subr.bf16.mxu0 0
      %4914 = vmatpush1.bf16.msra.mxu0 0
      %4915 = vmatprep.subr.bf16.mxu0 0
      %4916 = vmatpush1.bf16.msra.mxu0 0
      %4917 = vmatprep.subr.bf16.mxu0 0
      %4918 = vmatpush1.bf16.msra.mxu0 0
      %4919 = vmatprep.subr.bf16.mxu0 0
      %4920 = vmatpush1.bf16.msra.mxu0 0
      %4921 = vmatprep.subr.bf16.mxu0 0
      %4922 = vmatpush1.bf16.msra.mxu0 0
      %4923 = vmatprep.subr.bf16.mxu0 0
      %4924 = vmatpush1.bf16.msra.mxu0 0
      %4925 = vmatprep.subr.bf16.mxu0 0
      %4926 = vmatpush1.bf16.msra.mxu0 0
      %4927 = vmatprep.mubr.bf16.mxu0 0
      %4928 = vmatmul.mubr.bf16.gmra.mrb[0].mxu0 %v4893
      %v4929 = vpop.f32.mrb[0].mxu0
      %v4930 = vadd.f32 %v4890, %v4929
      %v4931 = vpop.f32.mrb[0].mxu0
      %v4932 = vpop.f32.mrb[0].mxu0
      %v4933 = vpop.f32.mrb[0].mxu0
      %4934 = vdwg.mxu0
      %v4935 = vadd.f32 %v4212, %v4930
      %s4936 = scalar_lea.vmem %s10, 1
      %v4937 = vld [vmem:[%s4936] sm:$0x1]
      %s4938 = scalar_lea.vmem %s8, 16
      %v4939 = vld [vmem:[%s4938] sm:$0xf]
      %v4940 = vld [vmem:[%s4938 + $0x4] sm:$0xf]
      %v4941 = vld [vmem:[%s4938 + $0x8] sm:$0xf]
      %v4942 = vld [vmem:[%s4938 + $0xc] sm:$0xf]
      %s4943 = scalar_lea.vmem %s9, 16
      %v4944 = vld [vmem:[%s4943] sm:$0xf]
      %v4945 = vld [vmem:[%s4943 + $0x4] sm:$0xf]
      %v4946 = vld [vmem:[%s4943 + $0x8] sm:$0xf]
      %v4947 = vld [vmem:[%s4943 + $0xc] sm:$0xf]
      %v4948 = vpack.c.bf16 %v4935, %v4935
      %v4950 = vlaneseq
      %v4951 = vshrl.u32 %v4950, 7
      %v4952 = vsub.s32 0, %v4951
      %v4953 = vrot.slane %v4937, %v4952
      %v4959 = vunpack.c.l.b16 %v4939
      %v4960 = vunpack.c.l.b16 %v4940
      %v4961 = vunpack.c.l.b16 %v4941
      %v4962 = vunpack.c.l.b16 %v4942
      %v4963 = vpack.c.b16 %v4960, %v4959
      %v4964 = vpack.c.b16 %v4962, %v4961
      %v4968 = vsel %vm706, %v4948, 0
      %4970 = vmatprep.subr.bf16.mxu0 0
      %4971 = vmatpush1.bf16.msra.mxu0 %v4963
      %4972 = vmatprep.subr.bf16.mxu0 0
      %4973 = vmatpush1.bf16.msra.mxu0 %v4964
      %4974 = vmatprep.subr.bf16.mxu0 0
      %4975 = vmatpush1.bf16.msra.mxu0 0
      %4976 = vmatprep.subr.bf16.mxu0 0
      %4977 = vmatpush1.bf16.msra.mxu0 0
      %4978 = vmatprep.subr.bf16.mxu0 0
      %4979 = vmatpush1.bf16.msra.mxu0 0
      %4980 = vmatprep.subr.bf16.mxu0 0
      %4981 = vmatpush1.bf16.msra.mxu0 0
      %4982 = vmatprep.subr.bf16.mxu0 0
      %4983 = vmatpush1.bf16.msra.mxu0 0
      %4984 = vmatprep.subr.bf16.mxu0 0
      %4985 = vmatpush1.bf16.msra.mxu0 0
      %4986 = vmatprep.subr.bf16.mxu0 0
      %4987 = vmatpush1.bf16.msra.mxu0 0
      %4988 = vmatprep.subr.bf16.mxu0 0
      %4989 = vmatpush1.bf16.msra.mxu0 0
      %4990 = vmatprep.subr.bf16.mxu0 0
      %4991 = vmatpush1.bf16.msra.mxu0 0
      %4992 = vmatprep.subr.bf16.mxu0 0
      %4993 = vmatpush1.bf16.msra.mxu0 0
      %4994 = vmatprep.subr.bf16.mxu0 0
      %4995 = vmatpush1.bf16.msra.mxu0 0
      %4996 = vmatprep.subr.bf16.mxu0 0
      %4997 = vmatpush1.bf16.msra.mxu0 0
      %4998 = vmatprep.subr.bf16.mxu0 0
      %4999 = vmatpush1.bf16.msra.mxu0 0
      %5000 = vmatprep.subr.bf16.mxu0 0
      %5001 = vmatpush1.bf16.msra.mxu0 0
      %5002 = vmatprep.mubr.bf16.mxu0 0
      %5003 = vmatmul.mubr.bf16.gmra.mrb[0].mxu0 %v4968
      %v5004 = vpop.f32.mrb[0].mxu0
      %v5005 = vadd.f32 %v4953, %v5004
      %v5006 = vpop.f32.mrb[0].mxu0
      %v5007 = vpop.f32.mrb[0].mxu0
      %v5008 = vpop.f32.mrb[0].mxu0
      %5009 = vdwg.mxu0
      %5011 = vrot.lane.b32.xlu0 %v5005, 96
      %v5012 = vpop.permute.xlu0 %5011
      %5014 = vxpose.xlu0.b32.start [1/16] %v5012, 128
      %5015 = vxpose.xlu0.b32.cont [2/16] 0.0, 128
      %5016 = vxpose.xlu0.b32.cont [3/16] 0.0, 128
      %5017 = vxpose.xlu0.b32.cont [4/16] 0.0, 128
      %5018 = vxpose.xlu0.b32.cont [5/16] 0.0, 128
      %5019 = vxpose.xlu0.b32.cont [6/16] 0.0, 128
      %5020 = vxpose.xlu0.b32.cont [7/16] 0.0, 128
      %5021 = vxpose.xlu0.b32.cont [8/16] 0.0, 128
      %5022 = vxpose.xlu0.b32.cont [9/16] 0.0, 128
      %5023 = vxpose.xlu0.b32.cont [10/16] 0.0, 128
      %5024 = vxpose.xlu0.b32.cont [11/16] 0.0, 128
      %5025 = vxpose.xlu0.b32.cont [12/16] 0.0, 128
      %5026 = vxpose.xlu0.b32.cont [13/16] 0.0, 128
      %5027 = vxpose.xlu0.b32.cont [14/16] 0.0, 128
      %5028 = vxpose.xlu0.b32.cont [15/16] 0.0, 128
      %5029 = vxpose.xlu0.b32.end [16/16] 0.0, 128
      %v5030 = vpop.trf.xlu0
      %v5031 = vpop.trf.xlu0
      %v5032 = vpop.trf.xlu0
      %v5033 = vpop.trf.xlu0
      %v5034 = vpop.trf.xlu0
      %v5035 = vpop.trf.xlu0
      %v5036 = vpop.trf.xlu0
      %v5037 = vpop.trf.xlu0
      %v5038 = vpop.trf.xlu0
      %v5039 = vpop.trf.xlu0
      %v5040 = vpop.trf.xlu0
      %v5041 = vpop.trf.xlu0
      %v5042 = vpop.trf.xlu0
      %v5043 = vpop.trf.xlu0
      %v5044 = vpop.trf.xlu0
      %v5045 = vpop.trf.xlu0
      %v5046 = vpack.c.bf16 %v5005, %v5005
      %v5047 = vpack.c.bf16 %v5030, %v5030
      %v5049 = vsel %vm939, %v5046, 0
      %v5052 = vsel %vm949, %v5047, 0
      %5054 = vmatprep.subr.bf16.mxu0 0
      %5055 = vmatpush1.bf16.msra.mxu0 %v5052
      %5056 = vmatprep.subr.bf16.mxu0 0
      %5057 = vmatpush1.bf16.msra.mxu0 0
      %5058 = vmatprep.subr.bf16.mxu0 0
      %5059 = vmatpush1.bf16.msra.mxu0 0
      %5060 = vmatprep.subr.bf16.mxu0 0
      %5061 = vmatpush1.bf16.msra.mxu0 0
      %5062 = vmatprep.subr.bf16.mxu0 0
      %5063 = vmatpush1.bf16.msra.mxu0 0
      %5064 = vmatprep.subr.bf16.mxu0 0
      %5065 = vmatpush1.bf16.msra.mxu0 0
      %5066 = vmatprep.subr.bf16.mxu0 0
      %5067 = vmatpush1.bf16.msra.mxu0 0
      %5068 = vmatprep.subr.bf16.mxu0 0
      %5069 = vmatpush1.bf16.msra.mxu0 0
      %5070 = vmatprep.subr.bf16.mxu0 0
      %5071 = vmatpush1.bf16.msra.mxu0 0
      %5072 = vmatprep.subr.bf16.mxu0 0
      %5073 = vmatpush1.bf16.msra.mxu0 0
      %5074 = vmatprep.subr.bf16.mxu0 0
      %5075 = vmatpush1.bf16.msra.mxu0 0
      %5076 = vmatprep.subr.bf16.mxu0 0
      %5077 = vmatpush1.bf16.msra.mxu0 0
      %5078 = vmatprep.subr.bf16.mxu0 0
      %5079 = vmatpush1.bf16.msra.mxu0 0
      %5080 = vmatprep.subr.bf16.mxu0 0
      %5081 = vmatpush1.bf16.msra.mxu0 0
      %5082 = vmatprep.subr.bf16.mxu0 0
      %5083 = vmatpush1.bf16.msra.mxu0 0
      %5084 = vmatprep.subr.bf16.mxu0 0
      %5085 = vmatpush1.bf16.msra.mxu0 0
      %5086 = vmatprep.mubr.bf16.mxu0 0
      %5087 = vmatmul.mubr.bf16.gmra.mrb[0].mxu0 %v5049
      %v5088 = vpop.f32.mrb[0].mxu0
      %v5089 = vadd.f32 0.0, %v5088
      %v5090 = vpop.f32.mrb[0].mxu0
      %v5091 = vpop.f32.mrb[0].mxu0
      %v5092 = vpop.f32.mrb[0].mxu0
      %5093 = vdwg.mxu0
      %v5094 = vsel %vm939, %v5089, -inf
      %5095 = vmax.xlane.f32.xlu0 %v5094
      %v5096 = vpop.xlane.xlu0 %5095
      %v5097 = vsub.f32 %v5089, %v5096
      %v5098 = vmul.f32 %v5097, 1.442695
      %v5099 = vpow.pop %v5098
      %v5100 = vsel %vm939, %v5099, 0.0
      %5101 = vadd.xlane.f32.xlu0 %v5100
      %v5102 = vpop.xlane.xlu0 %5101
      %v5103 = vrcp.pop %v5102
      %v5104 = vmul.f32 %v5099, %v5103
      %v5105 = vpack.c.bf16 %v5104, %v5104
      %5107 = vrot.lane.b32.xlu0 %v5046, 64
      %v5108 = vpop.permute.xlu0 %5107
      %v5110 = vsel %vm939, %v5105, 0
      %v5113 = vsel %vm949, %v5108, 0
      %5115 = vmatprep.subr.bf16.mxu0 0
      %5116 = vmatpush1.bf16.msra.mxu0 %v5113
      %5117 = vmatprep.subr.bf16.mxu0 0
      %5118 = vmatpush1.bf16.msra.mxu0 0
      %5119 = vmatprep.subr.bf16.mxu0 0
      %5120 = vmatpush1.bf16.msra.mxu0 0
      %5121 = vmatprep.subr.bf16.mxu0 0
      %5122 = vmatpush1.bf16.msra.mxu0 0
      %5123 = vmatprep.subr.bf16.mxu0 0
      %5124 = vmatpush1.bf16.msra.mxu0 0
      %5125 = vmatprep.subr.bf16.mxu0 0
      %5126 = vmatpush1.bf16.msra.mxu0 0
      %5127 = vmatprep.subr.bf16.mxu0 0
      %5128 = vmatpush1.bf16.msra.mxu0 0
      %5129 = vmatprep.subr.bf16.mxu0 0
      %5130 = vmatpush1.bf16.msra.mxu0 0
      %5131 = vmatprep.subr.bf16.mxu0 0
      %5132 = vmatpush1.bf16.msra.mxu0 0
      %5133 = vmatprep.subr.bf16.mxu0 0
      %5134 = vmatpush1.bf16.msra.mxu0 0
      %5135 = vmatprep.subr.bf16.mxu0 0
      %5136 = vmatpush1.bf16.msra.mxu0 0
      %5137 = vmatprep.subr.bf16.mxu0 0
      %5138 = vmatpush1.bf16.msra.mxu0 0
      %5139 = vmatprep.subr.bf16.mxu0 0
      %5140 = vmatpush1.bf16.msra.mxu0 0
      %5141 = vmatprep.subr.bf16.mxu0 0
      %5142 = vmatpush1.bf16.msra.mxu0 0
      %5143 = vmatprep.subr.bf16.mxu0 0
      %5144 = vmatpush1.bf16.msra.mxu0 0
      %5145 = vmatprep.subr.bf16.mxu0 0
      %5146 = vmatpush1.bf16.msra.mxu0 0
      %5147 = vmatprep.mubr.bf16.mxu0 0
      %5148 = vmatmul.mubr.bf16.gmra.mrb[0].mxu0 %v5110
      %v5149 = vpop.f32.mrb[0].mxu0
      %v5150 = vadd.f32 0.0, %v5149
      %v5151 = vpop.f32.mrb[0].mxu0
      %v5152 = vpop.f32.mrb[0].mxu0
      %v5153 = vpop.f32.mrb[0].mxu0
      %5154 = vdwg.mxu0
      %5155 = vrot.lane.b32.xlu0 %v5005, 88
      %v5156 = vpop.permute.xlu0 %5155
      %5158 = vxpose.xlu0.b32.start [1/16] %v5156, 128
      %5159 = vxpose.xlu0.b32.cont [2/16] 0.0, 128
      %5160 = vxpose.xlu0.b32.cont [3/16] 0.0, 128
      %5161 = vxpose.xlu0.b32.cont [4/16] 0.0, 128
      %5162 = vxpose.xlu0.b32.cont [5/16] 0.0, 128
      %5163 = vxpose.xlu0.b32.cont [6/16] 0.0, 128
      %5164 = vxpose.xlu0.b32.cont [7/16] 0.0, 128
      %5165 = vxpose.xlu0.b32.cont [8/16] 0.0, 128
      %5166 = vxpose.xlu0.b32.cont [9/16] 0.0, 128
      %5167 = vxpose.xlu0.b32.cont [10/16] 0.0, 128
      %5168 = vxpose.xlu0.b32.cont [11/16] 0.0, 128
      %5169 = vxpose.xlu0.b32.cont [12/16] 0.0, 128
      %5170 = vxpose.xlu0.b32.cont [13/16] 0.0, 128
      %5171 = vxpose.xlu0.b32.cont [14/16] 0.0, 128
      %5172 = vxpose.xlu0.b32.cont [15/16] 0.0, 128
      %5173 = vxpose.xlu0.b32.end [16/16] 0.0, 128
      %v5174 = vpop.trf.xlu0
      %v5175 = vpop.trf.xlu0
      %v5176 = vpop.trf.xlu0
      %v5177 = vpop.trf.xlu0
      %v5178 = vpop.trf.xlu0
      %v5179 = vpop.trf.xlu0
      %v5180 = vpop.trf.xlu0
      %v5181 = vpop.trf.xlu0
      %v5182 = vpop.trf.xlu0
      %v5183 = vpop.trf.xlu0
      %v5184 = vpop.trf.xlu0
      %v5185 = vpop.trf.xlu0
      %v5186 = vpop.trf.xlu0
      %v5187 = vpop.trf.xlu0
      %v5188 = vpop.trf.xlu0
      %v5189 = vpop.trf.xlu0
      %v5190 = vpack.c.bf16 %v5174, %v5174
      %5191 = vrot.lane.b32.xlu0 %v5046, 120
      %v5192 = vpop.permute.xlu0 %5191
      %v5194 = vsel %vm939, %v5192, 0
      %v5197 = vsel %vm949, %v5190, 0
      %5199 = vmatprep.subr.bf16.mxu0 0
      %5200 = vmatpush1.bf16.msra.mxu0 %v5197
      %5201 = vmatprep.subr.bf16.mxu0 0
      %5202 = vmatpush1.bf16.msra.mxu0 0
      %5203 = vmatprep.subr.bf16.mxu0 0
      %5204 = vmatpush1.bf16.msra.mxu0 0
      %5205 = vmatprep.subr.bf16.mxu0 0
      %5206 = vmatpush1.bf16.msra.mxu0 0
      %5207 = vmatprep.subr.bf16.mxu0 0
      %5208 = vmatpush1.bf16.msra.mxu0 0
      %5209 = vmatprep.subr.bf16.mxu0 0
      %5210 = vmatpush1.bf16.msra.mxu0 0
      %5211 = vmatprep.subr.bf16.mxu0 0
      %5212 = vmatpush1.bf16.msra.mxu0 0
      %5213 = vmatprep.subr.bf16.mxu0 0
      %5214 = vmatpush1.bf16.msra.mxu0 0
      %5215 = vmatprep.subr.bf16.mxu0 0
      %5216 = vmatpush1.bf16.msra.mxu0 0
      %5217 = vmatprep.subr.bf16.mxu0 0
      %5218 = vmatpush1.bf16.msra.mxu0 0
      %5219 = vmatprep.subr.bf16.mxu0 0
      %5220 = vmatpush1.bf16.msra.mxu0 0
      %5221 = vmatprep.subr.bf16.mxu0 0
      %5222 = vmatpush1.bf16.msra.mxu0 0
      %5223 = vmatprep.subr.bf16.mxu0 0
      %5224 = vmatpush1.bf16.msra.mxu0 0
      %5225 = vmatprep.subr.bf16.mxu0 0
      %5226 = vmatpush1.bf16.msra.mxu0 0
      %5227 = vmatprep.subr.bf16.mxu0 0
      %5228 = vmatpush1.bf16.msra.mxu0 0
      %5229 = vmatprep.subr.bf16.mxu0 0
      %5230 = vmatpush1.bf16.msra.mxu0 0
      %5231 = vmatprep.mubr.bf16.mxu0 0
      %5232 = vmatmul.mubr.bf16.gmra.mrb[0].mxu0 %v5194
      %v5233 = vpop.f32.mrb[0].mxu0
      %v5234 = vadd.f32 0.0, %v5233
      %v5235 = vpop.f32.mrb[0].mxu0
      %v5236 = vpop.f32.mrb[0].mxu0
      %v5237 = vpop.f32.mrb[0].mxu0
      %5238 = vdwg.mxu0
      %v5239 = vsel %vm939, %v5234, -inf
      %5240 = vmax.xlane.f32.xlu0 %v5239
      %v5241 = vpop.xlane.xlu0 %5240
      %v5242 = vsub.f32 %v5234, %v5241
      %v5243 = vmul.f32 %v5242, 1.442695
      %v5244 = vpow.pop %v5243
      %v5245 = vsel %vm939, %v5244, 0.0
      %5246 = vadd.xlane.f32.xlu0 %v5245
      %v5247 = vpop.xlane.xlu0 %5246
      %v5248 = vrcp.pop %v5247
      %v5249 = vmul.f32 %v5244, %v5248
      %v5250 = vpack.c.bf16 %v5249, %v5249
      %5251 = vrot.lane.b32.xlu0 %v5046, 56
      %v5252 = vpop.permute.xlu0 %5251
      %v5254 = vsel %vm939, %v5250, 0
      %v5257 = vsel %vm949, %v5252, 0
      %5259 = vmatprep.subr.bf16.mxu0 0
      %5260 = vmatpush1.bf16.msra.mxu0 %v5257
      %5261 = vmatprep.subr.bf16.mxu0 0
      %5262 = vmatpush1.bf16.msra.mxu0 0
      %5263 = vmatprep.subr.bf16.mxu0 0
      %5264 = vmatpush1.bf16.msra.mxu0 0
      %5265 = vmatprep.subr.bf16.mxu0 0
      %5266 = vmatpush1.bf16.msra.mxu0 0
      %5267 = vmatprep.subr.bf16.mxu0 0
      %5268 = vmatpush1.bf16.msra.mxu0 0
      %5269 = vmatprep.subr.bf16.mxu0 0
      %5270 = vmatpush1.bf16.msra.mxu0 0
      %5271 = vmatprep.subr.bf16.mxu0 0
      %5272 = vmatpush1.bf16.msra.mxu0 0
      %5273 = vmatprep.subr.bf16.mxu0 0
      %5274 = vmatpush1.bf16.msra.mxu0 0
      %5275 = vmatprep.subr.bf16.mxu0 0
      %5276 = vmatpush1.bf16.msra.mxu0 0
      %5277 = vmatprep.subr.bf16.mxu0 0
      %5278 = vmatpush1.bf16.msra.mxu0 0
      %5279 = vmatprep.subr.bf16.mxu0 0
      %5280 = vmatpush1.bf16.msra.mxu0 0
      %5281 = vmatprep.subr.bf16.mxu0 0
      %5282 = vmatpush1.bf16.msra.mxu0 0
      %5283 = vmatprep.subr.bf16.mxu0 0
      %5284 = vmatpush1.bf16.msra.mxu0 0
      %5285 = vmatprep.subr.bf16.mxu0 0
      %5286 = vmatpush1.bf16.msra.mxu0 0
      %5287 = vmatprep.subr.bf16.mxu0 0
      %5288 = vmatpush1.bf16.msra.mxu0 0
      %5289 = vmatprep.subr.bf16.mxu0 0
      %5290 = vmatpush1.bf16.msra.mxu0 0
      %5291 = vmatprep.mubr.bf16.mxu0 0
      %5292 = vmatmul.mubr.bf16.gmra.mrb[0].mxu0 %v5254
      %v5293 = vpop.f32.mrb[0].mxu0
      %v5294 = vadd.f32 0.0, %v5293
      %v5295 = vpop.f32.mrb[0].mxu0
      %v5296 = vpop.f32.mrb[0].mxu0
      %v5297 = vpop.f32.mrb[0].mxu0
      %5298 = vdwg.mxu0
      %5299 = vrot.lane.b32.xlu0 %v5005, 80
      %v5300 = vpop.permute.xlu0 %5299
      %5302 = vxpose.xlu0.b32.start [1/16] %v5300, 128
      %5303 = vxpose.xlu0.b32.cont [2/16] 0.0, 128
      %5304 = vxpose.xlu0.b32.cont [3/16] 0.0, 128
      %5305 = vxpose.xlu0.b32.cont [4/16] 0.0, 128
      %5306 = vxpose.xlu0.b32.cont [5/16] 0.0, 128
      %5307 = vxpose.xlu0.b32.cont [6/16] 0.0, 128
      %5308 = vxpose.xlu0.b32.cont [7/16] 0.0, 128
      %5309 = vxpose.xlu0.b32.cont [8/16] 0.0, 128
      %5310 = vxpose.xlu0.b32.cont [9/16] 0.0, 128
      %5311 = vxpose.xlu0.b32.cont [10/16] 0.0, 128
      %5312 = vxpose.xlu0.b32.cont [11/16] 0.0, 128
      %5313 = vxpose.xlu0.b32.cont [12/16] 0.0, 128
      %5314 = vxpose.xlu0.b32.cont [13/16] 0.0, 128
      %5315 = vxpose.xlu0.b32.cont [14/16] 0.0, 128
      %5316 = vxpose.xlu0.b32.cont [15/16] 0.0, 128
      %5317 = vxpose.xlu0.b32.end [16/16] 0.0, 128
      %v5318 = vpop.trf.xlu0
      %v5319 = vpop.trf.xlu0
      %v5320 = vpop.trf.xlu0
      %v5321 = vpop.trf.xlu0
      %v5322 = vpop.trf.xlu0
      %v5323 = vpop.trf.xlu0
      %v5324 = vpop.trf.xlu0
      %v5325 = vpop.trf.xlu0
      %v5326 = vpop.trf.xlu0
      %v5327 = vpop.trf.xlu0
      %v5328 = vpop.trf.xlu0
      %v5329 = vpop.trf.xlu0
      %v5330 = vpop.trf.xlu0
      %v5331 = vpop.trf.xlu0
      %v5332 = vpop.trf.xlu0
      %v5333 = vpop.trf.xlu0
      %v5334 = vpack.c.bf16 %v5318, %v5318
      %5335 = vrot.lane.b32.xlu0 %v5046, 112
      %v5336 = vpop.permute.xlu0 %5335
      %v5338 = vsel %vm939, %v5336, 0
      %v5341 = vsel %vm949, %v5334, 0
      %5343 = vmatprep.subr.bf16.mxu0 0
      %5344 = vmatpush1.bf16.msra.mxu0 %v5341
      %5345 = vmatprep.subr.bf16.mxu0 0
      %5346 = vmatpush1.bf16.msra.mxu0 0
      %5347 = vmatprep.subr.bf16.mxu0 0
      %5348 = vmatpush1.bf16.msra.mxu0 0
      %5349 = vmatprep.subr.bf16.mxu0 0
      %5350 = vmatpush1.bf16.msra.mxu0 0
      %5351 = vmatprep.subr.bf16.mxu0 0
      %5352 = vmatpush1.bf16.msra.mxu0 0
      %5353 = vmatprep.subr.bf16.mxu0 0
      %5354 = vmatpush1.bf16.msra.mxu0 0
      %5355 = vmatprep.subr.bf16.mxu0 0
      %5356 = vmatpush1.bf16.msra.mxu0 0
      %5357 = vmatprep.subr.bf16.mxu0 0
      %5358 = vmatpush1.bf16.msra.mxu0 0
      %5359 = vmatprep.subr.bf16.mxu0 0
      %5360 = vmatpush1.bf16.msra.mxu0 0
      %5361 = vmatprep.subr.bf16.mxu0 0
      %5362 = vmatpush1.bf16.msra.mxu0 0
      %5363 = vmatprep.subr.bf16.mxu0 0
      %5364 = vmatpush1.bf16.msra.mxu0 0
      %5365 = vmatprep.subr.bf16.mxu0 0
      %5366 = vmatpush1.bf16.msra.mxu0 0
      %5367 = vmatprep.subr.bf16.mxu0 0
      %5368 = vmatpush1.bf16.msra.mxu0 0
      %5369 = vmatprep.subr.bf16.mxu0 0
      %5370 = vmatpush1.bf16.msra.mxu0 0
      %5371 = vmatprep.subr.bf16.mxu0 0
      %5372 = vmatpush1.bf16.msra.mxu0 0
      %5373 = vmatprep.subr.bf16.mxu0 0
      %5374 = vmatpush1.bf16.msra.mxu0 0
      %5375 = vmatprep.mubr.bf16.mxu0 0
      %5376 = vmatmul.mubr.bf16.gmra.mrb[0].mxu0 %v5338
      %v5377 = vpop.f32.mrb[0].mxu0
      %v5378 = vadd.f32 0.0, %v5377
      %v5379 = vpop.f32.mrb[0].mxu0
      %v5380 = vpop.f32.mrb[0].mxu0
      %v5381 = vpop.f32.mrb[0].mxu0
      %5382 = vdwg.mxu0
      %v5383 = vsel %vm939, %v5378, -inf
      %5384 = vmax.xlane.f32.xlu0 %v5383
      %v5385 = vpop.xlane.xlu0 %5384
      %v5386 = vsub.f32 %v5378, %v5385
      %v5387 = vmul.f32 %v5386, 1.442695
      %v5388 = vpow.pop %v5387
      %v5389 = vsel %vm939, %v5388, 0.0
      %5390 = vadd.xlane.f32.xlu0 %v5389
      %v5391 = vpop.xlane.xlu0 %5390
      %v5392 = vrcp.pop %v5391
      %v5393 = vmul.f32 %v5388, %v5392
      %v5394 = vpack.c.bf16 %v5393, %v5393
      %5395 = vrot.lane.b32.xlu0 %v5046, 48
      %v5396 = vpop.permute.xlu0 %5395
      %v5398 = vsel %vm939, %v5394, 0
      %v5401 = vsel %vm949, %v5396, 0
      %5403 = vmatprep.subr.bf16.mxu0 0
      %5404 = vmatpush1.bf16.msra.mxu0 %v5401
      %5405 = vmatprep.subr.bf16.mxu0 0
      %5406 = vmatpush1.bf16.msra.mxu0 0
      %5407 = vmatprep.subr.bf16.mxu0 0
      %5408 = vmatpush1.bf16.msra.mxu0 0
      %5409 = vmatprep.subr.bf16.mxu0 0
      %5410 = vmatpush1.bf16.msra.mxu0 0
      %5411 = vmatprep.subr.bf16.mxu0 0
      %5412 = vmatpush1.bf16.msra.mxu0 0
      %5413 = vmatprep.subr.bf16.mxu0 0
      %5414 = vmatpush1.bf16.msra.mxu0 0
      %5415 = vmatprep.subr.bf16.mxu0 0
      %5416 = vmatpush1.bf16.msra.mxu0 0
      %5417 = vmatprep.subr.bf16.mxu0 0
      %5418 = vmatpush1.bf16.msra.mxu0 0
      %5419 = vmatprep.subr.bf16.mxu0 0
      %5420 = vmatpush1.bf16.msra.mxu0 0
      %5421 = vmatprep.subr.bf16.mxu0 0
      %5422 = vmatpush1.bf16.msra.mxu0 0
      %5423 = vmatprep.subr.bf16.mxu0 0
      %5424 = vmatpush1.bf16.msra.mxu0 0
      %5425 = vmatprep.subr.bf16.mxu0 0
      %5426 = vmatpush1.bf16.msra.mxu0 0
      %5427 = vmatprep.subr.bf16.mxu0 0
      %5428 = vmatpush1.bf16.msra.mxu0 0
      %5429 = vmatprep.subr.bf16.mxu0 0
      %5430 = vmatpush1.bf16.msra.mxu0 0
      %5431 = vmatprep.subr.bf16.mxu0 0
      %5432 = vmatpush1.bf16.msra.mxu0 0
      %5433 = vmatprep.subr.bf16.mxu0 0
      %5434 = vmatpush1.bf16.msra.mxu0 0
      %5435 = vmatprep.mubr.bf16.mxu0 0
      %5436 = vmatmul.mubr.bf16.gmra.mrb[0].mxu0 %v5398
      %v5437 = vpop.f32.mrb[0].mxu0
      %v5438 = vadd.f32 0.0, %v5437
      %v5439 = vpop.f32.mrb[0].mxu0
      %v5440 = vpop.f32.mrb[0].mxu0
      %v5441 = vpop.f32.mrb[0].mxu0
      %5442 = vdwg.mxu0
      %5443 = vrot.lane.b32.xlu0 %v5005, 72
      %v5444 = vpop.permute.xlu0 %5443
      %5446 = vxpose.xlu0.b32.start [1/16] %v5444, 128
      %5447 = vxpose.xlu0.b32.cont [2/16] 0.0, 128
      %5448 = vxpose.xlu0.b32.cont [3/16] 0.0, 128
      %5449 = vxpose.xlu0.b32.cont [4/16] 0.0, 128
      %5450 = vxpose.xlu0.b32.cont [5/16] 0.0, 128
      %5451 = vxpose.xlu0.b32.cont [6/16] 0.0, 128
      %5452 = vxpose.xlu0.b32.cont [7/16] 0.0, 128
      %5453 = vxpose.xlu0.b32.cont [8/16] 0.0, 128
      %5454 = vxpose.xlu0.b32.cont [9/16] 0.0, 128
      %5455 = vxpose.xlu0.b32.cont [10/16] 0.0, 128
      %5456 = vxpose.xlu0.b32.cont [11/16] 0.0, 128
      %5457 = vxpose.xlu0.b32.cont [12/16] 0.0, 128
      %5458 = vxpose.xlu0.b32.cont [13/16] 0.0, 128
      %5459 = vxpose.xlu0.b32.cont [14/16] 0.0, 128
      %5460 = vxpose.xlu0.b32.cont [15/16] 0.0, 128
      %5461 = vxpose.xlu0.b32.end [16/16] 0.0, 128
      %v5462 = vpop.trf.xlu0
      %v5463 = vpop.trf.xlu0
      %v5464 = vpop.trf.xlu0
      %v5465 = vpop.trf.xlu0
      %v5466 = vpop.trf.xlu0
      %v5467 = vpop.trf.xlu0
      %v5468 = vpop.trf.xlu0
      %v5469 = vpop.trf.xlu0
      %v5470 = vpop.trf.xlu0
      %v5471 = vpop.trf.xlu0
      %v5472 = vpop.trf.xlu0
      %v5473 = vpop.trf.xlu0
      %v5474 = vpop.trf.xlu0
      %v5475 = vpop.trf.xlu0
      %v5476 = vpop.trf.xlu0
      %v5477 = vpop.trf.xlu0
      %v5478 = vpack.c.bf16 %v5462, %v5462
      %5479 = vrot.lane.b32.xlu0 %v5046, 104
      %v5480 = vpop.permute.xlu0 %5479
      %v5482 = vsel %vm939, %v5480, 0
      %v5485 = vsel %vm949, %v5478, 0
      %5487 = vmatprep.subr.bf16.mxu0 0
      %5488 = vmatpush1.bf16.msra.mxu0 %v5485
      %5489 = vmatprep.subr.bf16.mxu0 0
      %5490 = vmatpush1.bf16.msra.mxu0 0
      %5491 = vmatprep.subr.bf16.mxu0 0
      %5492 = vmatpush1.bf16.msra.mxu0 0
      %5493 = vmatprep.subr.bf16.mxu0 0
      %5494 = vmatpush1.bf16.msra.mxu0 0
      %5495 = vmatprep.subr.bf16.mxu0 0
      %5496 = vmatpush1.bf16.msra.mxu0 0
      %5497 = vmatprep.subr.bf16.mxu0 0
      %5498 = vmatpush1.bf16.msra.mxu0 0
      %5499 = vmatprep.subr.bf16.mxu0 0
      %5500 = vmatpush1.bf16.msra.mxu0 0
      %5501 = vmatprep.subr.bf16.mxu0 0
      %5502 = vmatpush1.bf16.msra.mxu0 0
      %5503 = vmatprep.subr.bf16.mxu0 0
      %5504 = vmatpush1.bf16.msra.mxu0 0
      %5505 = vmatprep.subr.bf16.mxu0 0
      %5506 = vmatpush1.bf16.msra.mxu0 0
      %5507 = vmatprep.subr.bf16.mxu0 0
      %5508 = vmatpush1.bf16.msra.mxu0 0
      %5509 = vmatprep.subr.bf16.mxu0 0
      %5510 = vmatpush1.bf16.msra.mxu0 0
      %5511 = vmatprep.subr.bf16.mxu0 0
      %5512 = vmatpush1.bf16.msra.mxu0 0
      %5513 = vmatprep.subr.bf16.mxu0 0
      %5514 = vmatpush1.bf16.msra.mxu0 0
      %5515 = vmatprep.subr.bf16.mxu0 0
      %5516 = vmatpush1.bf16.msra.mxu0 0
      %5517 = vmatprep.subr.bf16.mxu0 0
      %5518 = vmatpush1.bf16.msra.mxu0 0
      %5519 = vmatprep.mubr.bf16.mxu0 0
      %5520 = vmatmul.mubr.bf16.gmra.mrb[0].mxu0 %v5482
      %v5521 = vpop.f32.mrb[0].mxu0
      %v5522 = vadd.f32 0.0, %v5521
      %v5523 = vpop.f32.mrb[0].mxu0
      %v5524 = vpop.f32.mrb[0].mxu0
      %v5525 = vpop.f32.mrb[0].mxu0
      %5526 = vdwg.mxu0
      %v5527 = vsel %vm939, %v5522, -inf
      %5528 = vmax.xlane.f32.xlu0 %v5527
      %v5529 = vpop.xlane.xlu0 %5528
      %v5530 = vsub.f32 %v5522, %v5529
      %v5531 = vmul.f32 %v5530, 1.442695
      %v5532 = vpow.pop %v5531
      %v5533 = vsel %vm939, %v5532, 0.0
      %5534 = vadd.xlane.f32.xlu0 %v5533
      %v5535 = vpop.xlane.xlu0 %5534
      %v5536 = vrcp.pop %v5535
      %v5537 = vmul.f32 %v5532, %v5536
      %v5538 = vpack.c.bf16 %v5537, %v5537
      %5539 = vrot.lane.b32.xlu0 %v5046, 40
      %v5540 = vpop.permute.xlu0 %5539
      %v5542 = vsel %vm939, %v5538, 0
      %v5545 = vsel %vm949, %v5540, 0
      %5547 = vmatprep.subr.bf16.mxu0 0
      %5548 = vmatpush1.bf16.msra.mxu0 %v5545
      %5549 = vmatprep.subr.bf16.mxu0 0
      %5550 = vmatpush1.bf16.msra.mxu0 0
      %5551 = vmatprep.subr.bf16.mxu0 0
      %5552 = vmatpush1.bf16.msra.mxu0 0
      %5553 = vmatprep.subr.bf16.mxu0 0
      %5554 = vmatpush1.bf16.msra.mxu0 0
      %5555 = vmatprep.subr.bf16.mxu0 0
      %5556 = vmatpush1.bf16.msra.mxu0 0
      %5557 = vmatprep.subr.bf16.mxu0 0
      %5558 = vmatpush1.bf16.msra.mxu0 0
      %5559 = vmatprep.subr.bf16.mxu0 0
      %5560 = vmatpush1.bf16.msra.mxu0 0
      %5561 = vmatprep.subr.bf16.mxu0 0
      %5562 = vmatpush1.bf16.msra.mxu0 0
      %5563 = vmatprep.subr.bf16.mxu0 0
      %5564 = vmatpush1.bf16.msra.mxu0 0
      %5565 = vmatprep.subr.bf16.mxu0 0
      %5566 = vmatpush1.bf16.msra.mxu0 0
      %5567 = vmatprep.subr.bf16.mxu0 0
      %5568 = vmatpush1.bf16.msra.mxu0 0
      %5569 = vmatprep.subr.bf16.mxu0 0
      %5570 = vmatpush1.bf16.msra.mxu0 0
      %5571 = vmatprep.subr.bf16.mxu0 0
      %5572 = vmatpush1.bf16.msra.mxu0 0
      %5573 = vmatprep.subr.bf16.mxu0 0
      %5574 = vmatpush1.bf16.msra.mxu0 0
      %5575 = vmatprep.subr.bf16.mxu0 0
      %5576 = vmatpush1.bf16.msra.mxu0 0
      %5577 = vmatprep.subr.bf16.mxu0 0
      %5578 = vmatpush1.bf16.msra.mxu0 0
      %5579 = vmatprep.mubr.bf16.mxu0 0
      %5580 = vmatmul.mubr.bf16.gmra.mrb[0].mxu0 %v5542
      %v5581 = vpop.f32.mrb[0].mxu0
      %v5582 = vadd.f32 0.0, %v5581
      %v5583 = vpop.f32.mrb[0].mxu0
      %v5584 = vpop.f32.mrb[0].mxu0
      %v5585 = vpop.f32.mrb[0].mxu0
      %5586 = vdwg.mxu0
      %5588 = vrot.lane.b32.xlu0 %v5294, 8
      %v5589 = vpop.permute.xlu0 %5588
      %5592 = vrot.lane.b32.xlu0 %v5438, 16
      %v5593 = vpop.permute.xlu0 %5592
      %5596 = vrot.lane.b32.xlu0 %v5582, 24
      %v5597 = vpop.permute.xlu0 %5596
      %v5599 = vsel %vm939, %v5150, %v5589
      %v5600 = vsel %vm2000, %v5599, %v5593
      %v5601 = vsel %vm2006, %v5600, %v5597
      %v5602 = vpack.c.bf16 %v5601, %v5601
      %v5607 = vunpack.c.l.b16 %v4944
      %v5608 = vunpack.c.l.b16 %v4945
      %v5609 = vunpack.c.l.b16 %v4946
      %v5610 = vunpack.c.l.b16 %v4947
      %v5611 = vpack.c.b16 %v5608, %v5607
      %v5612 = vpack.c.b16 %v5610, %v5609
      %5615 = vrot.lane.b32.xlu0 %v4953, 32
      %v5616 = vpop.permute.xlu0 %5615
      %v5619 = vsel %vm706, %v5602, 0
      %5621 = vmatprep.subr.bf16.mxu0 0
      %5622 = vmatpush1.bf16.msra.mxu0 %v5611
      %5623 = vmatprep.subr.bf16.mxu0 0
      %5624 = vmatpush1.bf16.msra.mxu0 %v5612
      %5625 = vmatprep.subr.bf16.mxu0 0
      %5626 = vmatpush1.bf16.msra.mxu0 0
      %5627 = vmatprep.subr.bf16.mxu0 0
      %5628 = vmatpush1.bf16.msra.mxu0 0
      %5629 = vmatprep.subr.bf16.mxu0 0
      %5630 = vmatpush1.bf16.msra.mxu0 0
      %5631 = vmatprep.subr.bf16.mxu0 0
      %5632 = vmatpush1.bf16.msra.mxu0 0
      %5633 = vmatprep.subr.bf16.mxu0 0
      %5634 = vmatpush1.bf16.msra.mxu0 0
      %5635 = vmatprep.subr.bf16.mxu0 0
      %5636 = vmatpush1.bf16.msra.mxu0 0
      %5637 = vmatprep.subr.bf16.mxu0 0
      %5638 = vmatpush1.bf16.msra.mxu0 0
      %5639 = vmatprep.subr.bf16.mxu0 0
      %5640 = vmatpush1.bf16.msra.mxu0 0
      %5641 = vmatprep.subr.bf16.mxu0 0
      %5642 = vmatpush1.bf16.msra.mxu0 0
      %5643 = vmatprep.subr.bf16.mxu0 0
      %5644 = vmatpush1.bf16.msra.mxu0 0
      %5645 = vmatprep.subr.bf16.mxu0 0
      %5646 = vmatpush1.bf16.msra.mxu0 0
      %5647 = vmatprep.subr.bf16.mxu0 0
      %5648 = vmatpush1.bf16.msra.mxu0 0
      %5649 = vmatprep.subr.bf16.mxu0 0
      %5650 = vmatpush1.bf16.msra.mxu0 0
      %5651 = vmatprep.subr.bf16.mxu0 0
      %5652 = vmatpush1.bf16.msra.mxu0 0
      %5653 = vmatprep.mubr.bf16.mxu0 0
      %5654 = vmatmul.mubr.bf16.gmra.mrb[0].mxu0 %v5619
      %v5655 = vpop.f32.mrb[0].mxu0
      %v5656 = vadd.f32 %v5616, %v5655
      %v5657 = vpop.f32.mrb[0].mxu0
      %v5658 = vpop.f32.mrb[0].mxu0
      %v5659 = vpop.f32.mrb[0].mxu0
      %5660 = vdwg.mxu0
      %v5661 = vadd.f32 %v4935, %v5656
      %v5662 = vld [vmem:[%s13] sm:$0xff]
      %v5663 = vld [vmem:[%s13 + $0x8] sm:$0xff]
      %v5664 = vld [vmem:[%s11] sm:$0xff]
      %v5665 = vld [vmem:[%s11 + $0x8] sm:$0xff]
      %v5666 = vld [vmem:[%s11 + $0x10] sm:$0xff]
      %v5667 = vld [vmem:[%s11 + $0x18] sm:$0xff]
      %v5668 = vpack.c.bf16 %v5661, %v5661
      %v5669 = vlaneseq
      %v5670 = vshrl.u32 %v5669, 7
      %v5671 = vsub.s32 0, %v5670
      %v5672 = vrot.slane %v5662, %v5671
      %v5673 = vlaneseq
      %v5674 = vshrl.u32 %v5673, 7
      %v5675 = vsub.s32 0, %v5674
      %v5676 = vrot.slane %v5663, %v5675
      %v5681 = vunpack.c.l.b16 %v5664
      %v5682 = vunpack.c.h.b16 %v5664
      %v5683 = vunpack.c.l.b16 %v5665
      %v5684 = vunpack.c.h.b16 %v5665
      %v5685 = vunpack.c.l.b16 %v5666
      %v5686 = vunpack.c.h.b16 %v5666
      %v5687 = vunpack.c.l.b16 %v5667
      %v5688 = vunpack.c.h.b16 %v5667
      %v5689 = vpack.c.b16 %v5683, %v5681
      %v5690 = vpack.c.b16 %v5684, %v5682
      %v5691 = vpack.c.b16 %v5687, %v5685
      %v5692 = vpack.c.b16 %v5688, %v5686
      %v5698 = vsel %vm706, %v5668, 0
      %5700 = vmatprep.subr.bf16.mxu0 %v5690
      %5701 = vmatpush1.bf16.msra.mxu0 %v5689
      %5702 = vmatprep.subr.bf16.mxu0 %v5692
      %5703 = vmatpush1.bf16.msra.mxu0 %v5691
      %5704 = vmatprep.subr.bf16.mxu0 0
      %5705 = vmatpush1.bf16.msra.mxu0 0
      %5706 = vmatprep.subr.bf16.mxu0 0
      %5707 = vmatpush1.bf16.msra.mxu0 0
      %5708 = vmatprep.subr.bf16.mxu0 0
      %5709 = vmatpush1.bf16.msra.mxu0 0
      %5710 = vmatprep.subr.bf16.mxu0 0
      %5711 = vmatpush1.bf16.msra.mxu0 0
      %5712 = vmatprep.subr.bf16.mxu0 0
      %5713 = vmatpush1.bf16.msra.mxu0 0
      %5714 = vmatprep.subr.bf16.mxu0 0
      %5715 = vmatpush1.bf16.msra.mxu0 0
      %5716 = vmatprep.subr.bf16.mxu0 0
      %5717 = vmatpush1.bf16.msra.mxu0 0
      %5718 = vmatprep.subr.bf16.mxu0 0
      %5719 = vmatpush1.bf16.msra.mxu0 0
      %5720 = vmatprep.subr.bf16.mxu0 0
      %5721 = vmatpush1.bf16.msra.mxu0 0
      %5722 = vmatprep.subr.bf16.mxu0 0
      %5723 = vmatpush1.bf16.msra.mxu0 0
      %5724 = vmatprep.subr.bf16.mxu0 0
      %5725 = vmatpush1.bf16.msra.mxu0 0
      %5726 = vmatprep.subr.bf16.mxu0 0
      %5727 = vmatpush1.bf16.msra.mxu0 0
      %5728 = vmatprep.subr.bf16.mxu0 0
      %5729 = vmatpush1.bf16.msra.mxu0 0
      %5730 = vmatprep.subr.bf16.mxu0 0
      %5731 = vmatpush1.bf16.msra.mxu0 0
      %5732 = vmatprep.mubr.bf16.mxu0 0
      %5733 = vmatmul.mubr.bf16.gmra.mrb[0].mxu0 %v5698
      %v5734 = vpop.f32.mrb[0].mxu0
      %v5735 = vadd.f32 %v5672, %v5734
      %v5736 = vpop.f32.mrb[0].mxu0
      %v5737 = vadd.f32 %v5676, %v5736
      %v5738 = vpop.f32.mrb[0].mxu0
      %v5739 = vpop.f32.mrb[0].mxu0
      %5740 = vdwg.mxu0
      %v5741 = vmax.f32 %v5735, 0.0
      %v5742 = vmax.f32 %v5737, 0.0
      %v5743 = vlaneseq
      %v5744 = vshrl.u32 %v5743, 7
      %v5745 = vsub.s32 1, %v5744
      %v5746 = vrot.slane %v5662, %v5745
      %v5747 = vlaneseq
      %v5748 = vshrl.u32 %v5747, 7
      %v5749 = vsub.s32 1, %v5748
      %v5750 = vrot.slane %v5663, %v5749
      %v5751 = vmul.f32 %v5741, %v5746
      %v5752 = vmul.f32 %v5742, %v5750
      %v5753 = vadd.f32 %v5751, %v5752
      %5754 = vadd.xlane.f32.xlu0 %v5753
      %v5755 = vpop.xlane.xlu0 %5754
      %v5756 = vlaneseq
      %v5757 = vshrl.u32 %v5756, 7
      %v5758 = vsub.s32 4, %v5757
      %v5759 = vrot.slane %v5662, %v5758
      %v5760 = vadd.f32 %v5755, %v5759
      %v5761 = vld [vmem:[%s12] sm:$0xff]
      %5763 = vset.pattern.permute.xlu0 0
      %5764 = vperm.xlu0 %5763, %v5760
      %v5765 = vpop.permute.xlu0 %5764
      %v5767 = vmul.f32 %v5765, %v5761
      %v5768 = vsel %vm593, %v5767, 0.0
      %v5769 = vrot.slane %v5768, 4
      %v5770 = vadd.f32 %v5768, %v5769
      %v5771 = vrot.slane %v5770, 2
      %v5772 = vadd.f32 %v5770, %v5771
      %v5773 = vrot.slane %v5772, 1
      %v5774 = vadd.f32 %v5772, %v5773
      %v5775 = vadd.f32 %v5774, %v5662
      %v5776 = vmax.f32 %v5775, 0.0
      %v5778 = vrot.slane %v5662, 1
      %v5780 = vmul.f32 %v5776, %v5778
      %vm5781 = vcmask 518146
      %v5782 = vsel %vm5781, %v5780, 0.0
      %5783 = vadd.xlane.f32.xlu0 %v5782
      %v5784 = vpop.xlane.xlu0 %5783
      %v5785 = vrot.slane %v5662, 2
      %5786 = vrot.lane.b32.xlu0 %v5785, 127
      %v5787 = vpop.permute.xlu0 %5786
      %v5789 = vadd.f32 %v5784, %v5787
      %v5790 = vxor.u32 %v5789, 2147483648
      %v5791 = vmul.f32 %v5790, 1.442695
      %v5792 = vpow.pop %v5791
      %v5793 = vadd.f32 %v5792, 1.0
      %v5794 = vrcp.pop %v5793
      %v5795 = vmul.f32 1.0, %v5794
      %vm5796 = vcmask 2050
      %5797 = vst.msk [vmem:[%s463 - $0x2] sm:$0x4] %vm5796, %v5795
      %p5798 = scmp.lt.s32.totalorder %s25, 1
      %s5799 = scalar_select %p5798, %s25, 1
      %s5800 = scalar_lea.vmem %s14, %s5799
      // Predicated region
      $region77: #{pallas_forward.1} parent=75 // pred_check
        %p5801 = pneg %p342
      $region78: #{pallas_forward.1} parent=75 // pred_check_branch
        %5803 = sbr.rel (%p5801) target = $region80
      $region79: #{pallas_forward.1} parent=75 // pred_region
        _
      $region80: #{pallas_forward.1} parent=75 // pred_fallthru
        _
    $region76: #{pallas_forward.1} parent=5 // pred_fallthru
      _
    %p5804 = scmp.le.s32.totalorder 2, %s20
    // Predicated region
    $region81: #{pallas_forward.1} parent=5 // pred_check
      %p5805 = pneg %p5804
    $region82: #{pallas_forward.1} parent=5 // pred_check_branch
      %5807 = sbr.rel (%p5805) target = $region84
    $region83: #{pallas_forward.1} parent=5 // pred_region
      %s5808 = ssub.s32 %s20, 2
      // Predicated region
      $region85: #{pallas_forward.1} parent=83 // pred_check
        %p5809 = pneg %p348
      $region86: #{pallas_forward.1} parent=83 // pred_check_branch
        %5811 = sbr.rel (%p5809) target = $region88
      $region87: #{pallas_forward.1} parent=83 // pred_region
        %p5812 = scmp.lt.s32.totalorder %s26, 1
        %s5813 = scalar_select %p5812, %s26, 1
        %s5814 = scalar_lea.vmem %s14, %s5813
      $region88: #{pallas_forward.1} parent=83 // pred_fallthru
        _
    $region84: #{pallas_forward.1} parent=5 // pred_fallthru
      _
  $region6: #{pallas_forward.1} parent=0 // loop_footer
    %s24 = sadd.s32 1, %s20
  $region7: #{pallas_forward.1} parent=0 // loop_footer_branch
    %19 = sbr.rel target = $region3
  $region8: #{pallas_forward.1} parent=0 // loop_exit
    _

</llo_original>
